<compile_context>
chip_gen: v6e
topology: v6e:2x2x1
jax: 0.10.0
libtpu: 0.0.40
codegen_flags: <defaults>
</compile_context>

<pallas_src>
import functools

import numpy as np
import jax
import jax.numpy as jnp
from jax import lax
from jax.experimental import pallas as pl
from jax.experimental.pallas import tpu as pltpu

NUM_GROUPS = 8
EPS = 1e-5
NEG_SLOPE = 0.01


def _make_group_mat(C, groups):
    """(C, C) block one-hot: A[i,j] = 1 iff channels i, j share a group."""
    gs = C // groups
    idx = np.arange(C) // gs
    return jnp.asarray((idx[:, None] == idx[None, :]).astype(np.float32))


def _shift_lanes(x, off, n):
    """out[:, s] = x[:, (s + off) % n]  (static circular lane shift).

    Equivalent to jnp.roll(x, -off, axis=1), written as slice + concat so the
    direction is unambiguous.  Wrapped lanes only ever reach pad-voxel
    outputs, which are masked / discarded, so the circular wrap is harmless.
    """
    o = off % n
    if o == 0:
        return x
    return jnp.concatenate([x[:, o:], x[:, :o]], axis=1)


def _deblock_kernel(x_ref, mask_ref, gmat_ref, w1_ref, w2_ref,
                    b1_ref, g1_ref, be1_ref, b2_ref, g2_ref, be2_ref,
                    o_ref, slab_ref, *, offs, num_groups, valid_count):
    C = x_ref.shape[1]
    Sp = x_ref.shape[2]
    gs = C // num_groups
    inv_n = 1.0 / float(valid_count * gs)

    mask = mask_ref[...]            # (1, Sp)  1.0 on real voxels, 0.0 on pads
    x = x_ref[0]                    # (C, Sp)  f32, zero at pad voxels

    def conv3(xin, w_ref, b_ref):
        # Build the K-stacked im2col slab:
        #   slab[k*C + i, s] = xin[i, s + off_k]   (matmul dtype, e.g. bf16)
        # Shifts are in-register circular lane shifts: no halo buffer, no
        # VMEM round trip, and no per-tap validity masks (the volume is
        # already zero-padded in this layout).
        for k, off in enumerate(offs):
            slab_ref[k * C:(k + 1) * C, :] = (
                _shift_lanes(xin, off, Sp).astype(slab_ref.dtype))
        # The whole 3x3x3 conv is one MXU matmul; f32 accumulation.
        y = jnp.dot(w_ref[...], slab_ref[...],
                    preferred_element_type=jnp.float32)
        return y + b_ref[...]                          # (C, Sp) + (C, 1)

    def gn_lrelu(y, gamma_ref, beta_ref):
        # Masked one-pass statistics over the real voxels only.
        # (One-pass E[x^2]-mean^2 is fine at this scale; use a centered /
        #  Welford variant if reused on activations with large means.)
        ym = y * mask
        s1 = jnp.sum(ym, axis=1, keepdims=True)        # (C, 1) sum
        s2 = jnp.sum(ym * ym, axis=1, keepdims=True)   # (C, 1) sum of squares
        grp = jnp.dot(gmat_ref[...], jnp.concatenate([s1, s2], axis=1),
                      preferred_element_type=jnp.float32) * inv_n   # (C, 2)
        mean = grp[:, 0:1]
        var = grp[:, 1:2] - mean * mean                # biased (PyTorch GN)
        # Folded affine: z = y*a + b, LeakyReLU fused in the same pass.
        a = gamma_ref[...] * lax.rsqrt(var + EPS)
        b = beta_ref[...] - mean * a
        z = y * a + b
        return jnp.where(z >= 0, z, NEG_SLOPE * z)

    # stage 1: output must be re-zeroed at pad voxels before feeding conv2
    y1 = gn_lrelu(conv3(x, w1_ref, b1_ref), g1_ref, be1_ref) * mask
    # stage 2: pad voxels of the result are sliced away by the wrapper
    y2 = gn_lrelu(conv3(y1, w2_ref, b2_ref), g2_ref, be2_ref)
    o_ref[0] = y2 + x                                  # residual


def deblock_forward(x_ncdhw, params, matmul_dtype=jnp.bfloat16):
    """Fused Pallas implementation of DeBlock.forward (NCDHW layout)."""
    N, C, D, H, W = x_ncdhw.shape
    assert C % NUM_GROUPS == 0 and C % 8 == 0
    Dp, Hp, Wp = D + 2, H + 2, W + 2
    Sr = Dp * Hp * Wp                        # padded voxel count
    Sp = ((Sr + 127) // 128) * 128           # lane-dense length (mult. of 128)

    # Host-side zero pad (one cheap XLA op; removes all in-kernel tap masks).
    xp = jnp.pad(x_ncdhw, ((0, 0), (0, 0), (1, 1), (1, 1), (1, 1)))
    xp = xp.reshape(N, C, Sr)
    if Sp != Sr:
        xp = jnp.pad(xp, ((0, 0), (0, 0), (0, Sp - Sr)))

    # Validity mask of real voxels in the padded flat layout.
    dd, hh, ww = np.meshgrid(np.arange(Dp), np.arange(Hp), np.arange(Wp),
                             indexing="ij")
    inside = ((dd >= 1) & (dd <= D) & (hh >= 1) & (hh <= H)
              & (ww >= 1) & (ww <= W)).reshape(-1).astype(np.float32)
    mask = jnp.asarray(np.pad(inside, (0, Sp - Sr))[None, :])     # (1, Sp)

    # Conv tap lane offsets in the padded flat layout (kd-major order).
    offs = tuple((kd - 1) * Hp * Wp + (kh - 1) * Wp + (kw - 1)
                 for kd in range(3) for kh in range(3) for kw in range(3))

    # K-stacked weights: (C_out, 27*C_in), tap-major to match the slab rows.
    def stack_w(w):
        return (jnp.transpose(w, (0, 2, 3, 4, 1))
                .reshape(C, 27 * C).astype(matmul_dtype))

    col = lambda v: v.reshape(C, 1).astype(jnp.float32)
    gmat = _make_group_mat(C, NUM_GROUPS)

    kernel = functools.partial(_deblock_kernel, offs=offs,
                               num_groups=NUM_GROUPS, valid_count=D * H * W)

    # VMEM limit sized from the actual footprint (not a fixed 32 MiB).
    mm_bytes = np.dtype(matmul_dtype).itemsize
    est = (4 * C * Sp * 4                    # x + out blocks, double-buffered
           + 27 * C * Sp * mm_bytes          # stacked im2col slab (scratch)
           + 2 * C * 27 * C * mm_bytes       # stacked weights
           + (Sp + C * C + 6 * C) * 4        # mask / group matrix / GN params
           + (4 << 20))                      # compiler headroom
    vmem_limit = int(min(max(est, 16 << 20), 64 << 20))

    bcast = lambda n: (0, 0)
    out = pl.pallas_call(
        kernel,
        out_shape=jax.ShapeDtypeStruct((N, C, Sp), jnp.float32),
        grid_spec=pltpu.PrefetchScalarGridSpec(
            num_scalar_prefetch=0,
            grid=(N,),
            in_specs=[
                pl.BlockSpec((1, C, Sp), lambda n: (n, 0, 0)),   # x (one sample)
                pl.BlockSpec((1, Sp), bcast),                    # voxel mask
                pl.BlockSpec((C, C), bcast),                     # group one-hot
                pl.BlockSpec((C, 27 * C), bcast),                # conv1 weights
                pl.BlockSpec((C, 27 * C), bcast),                # conv2 weights
                pl.BlockSpec((C, 1), bcast),                     # b1
                pl.BlockSpec((C, 1), bcast),                     # gamma1
                pl.BlockSpec((C, 1), bcast),                     # beta1
                pl.BlockSpec((C, 1), bcast),                     # b2
                pl.BlockSpec((C, 1), bcast),                     # gamma2
                pl.BlockSpec((C, 1), bcast),                     # beta2
            ],
            out_specs=pl.BlockSpec((1, C, Sp), lambda n: (n, 0, 0)),
            scratch_shapes=[pltpu.VMEM((27 * C, Sp), matmul_dtype)],
        ),
        compiler_params=pltpu.CompilerParams(
            dimension_semantics=("parallel",),
            vmem_limit_bytes=vmem_limit,
        ),
    )(xp, mask, gmat, stack_w(params["w1"]), stack_w(params["w2"]),
      col(params["b1"]), col(params["g1"]), col(params["be1"]),
      col(params["b2"]), col(params["g2"]), col(params["be2"]))

    out = out[:, :, :Sr].reshape(N, C, Dp, Hp, Wp)
    return out[:, :, 1:-1, 1:-1, 1:-1]


def deblock_reference(x, params):
    """Pure-JAX reference (lax conv + GroupNorm) for validation."""
    def conv(v, w, b):
        y = lax.conv_general_dilated(
            v, w, window_strides=(1, 1, 1), padding=[(1, 1)] * 3,
            dimension_numbers=("NCDHW", "OIDHW", "NCDHW"))
        return y + b[None, :, None, None, None]

    def gn(v, gamma, beta):
        N, C, D, H, W = v.shape
        g = NUM_GROUPS
        vr = v.reshape(N, g, C // g, D, H, W)
        mean = vr.mean(axis=(2, 3, 4, 5), keepdims=True)
        var = ((vr - mean) ** 2).mean(axis=(2, 3, 4, 5), keepdims=True)
        vn = ((vr - mean) / jnp.sqrt(var + EPS)).reshape(N, C, D, H, W)
        return (vn * gamma[None, :, None, None, None]
                + beta[None, :, None, None, None])

    def lrelu(v):
        return jnp.where(v >= 0, v, NEG_SLOPE * v)

    y = lrelu(gn(conv(x, params["w1"], params["b1"]), params["g1"], params["be1"]))
    y = lrelu(gn(conv(y, params["w2"], params["b2"]), params["g2"], params["be2"]))
    return y + x


def init_params(key, C):
    ks = jax.random.split(key, 8)
    scale = 0.1
    return {
        "w1": scale * jax.random.normal(ks[0], (C, C, 3, 3, 3), jnp.float32),
        "b1": scale * jax.random.normal(ks[1], (C,), jnp.float32),
        "w2": scale * jax.random.normal(ks[2], (C, C, 3, 3, 3), jnp.float32),
        "b2": scale * jax.random.normal(ks[3], (C,), jnp.float32),
        "g1": 1.0 + scale * jax.random.normal(ks[4], (C,), jnp.float32),
        "be1": scale * jax.random.normal(ks[5], (C,), jnp.float32),
        "g2": 1.0 + scale * jax.random.normal(ks[6], (C,), jnp.float32),
        "be2": scale * jax.random.normal(ks[7], (C,), jnp.float32),
    }


if __name__ == "__main__":
    key = jax.random.PRNGKey(0)
    k_x, k_p = jax.random.split(key)

    N, C, D, H, W = 2, 16, 8, 8, 8          # C must be divisible by 8 groups
    x = jax.random.normal(k_x, (N, C, D, H, W), jnp.float32)
    params = init_params(k_p, C)

    ref = jax.block_until_ready(deblock_reference(x, params))

    # f32 operands: exact algorithm check; bf16 operands: production path
    # (MXU-native), validated at bf16 rounding tolerance.
    for mm_dtype, tol in ((jnp.float32, 2e-3), (jnp.bfloat16, 2e-2)):
        out = jax.block_until_ready(
            deblock_forward(x, params, matmul_dtype=mm_dtype))
        assert out.shape == (N, C, D, H, W)
        err = float(jnp.max(jnp.abs(out - ref)))
        assert jnp.allclose(out, ref, rtol=tol, atol=tol), (str(mm_dtype), err)

    print("KERNEL_OK")
</pallas_src>

<mosaic_0001>
module attributes {stable_mosaic.version = 11 : i64} {
  func.func @_deblock_kernel(%arg0: i32, %arg1: memref<1x16x1024xf32, #tpu.memory_space<vmem>>, %arg2: memref<1x1024xf32, #tpu.memory_space<vmem>>, %arg3: memref<16x16xf32, #tpu.memory_space<vmem>>, %arg4: memref<16x432xf32, #tpu.memory_space<vmem>>, %arg5: memref<16x432xf32, #tpu.memory_space<vmem>>, %arg6: memref<16x1xf32, #tpu.memory_space<vmem>>, %arg7: memref<16x1xf32, #tpu.memory_space<vmem>>, %arg8: memref<16x1xf32, #tpu.memory_space<vmem>>, %arg9: memref<16x1xf32, #tpu.memory_space<vmem>>, %arg10: memref<16x1xf32, #tpu.memory_space<vmem>>, %arg11: memref<16x1xf32, #tpu.memory_space<vmem>>, %arg12: memref<1x16x1024xf32, #tpu.memory_space<vmem>>, %arg13: memref<432x1024xf32, #tpu.memory_space<vmem>>) attributes {dimension_semantics = [#tpu.dimension_semantics<parallel>], iteration_bounds = array<i64: 2>, scalar_prefetch = 0 : i64, scratch_operands = 1 : i64, tpu.core_type = #tpu.core_type<tc>, window_params = [{transform_indices = @transform_0, window_bounds = array<i64: 1, 16, 1024>}, {pipeline_mode = #tpu.pipeline_mode<synchronous>, transform_indices = @transform_1, window_bounds = array<i64: 1, 1024>}, {pipeline_mode = #tpu.pipeline_mode<synchronous>, transform_indices = @transform_2, window_bounds = array<i64: 16, 16>}, {pipeline_mode = #tpu.pipeline_mode<synchronous>, transform_indices = @transform_3, window_bounds = array<i64: 16, 432>}, {pipeline_mode = #tpu.pipeline_mode<synchronous>, transform_indices = @transform_4, window_bounds = array<i64: 16, 432>}, {pipeline_mode = #tpu.pipeline_mode<synchronous>, transform_indices = @transform_5, window_bounds = array<i64: 16, 1>}, {pipeline_mode = #tpu.pipeline_mode<synchronous>, transform_indices = @transform_6, window_bounds = array<i64: 16, 1>}, {pipeline_mode = #tpu.pipeline_mode<synchronous>, transform_indices = @transform_7, window_bounds = array<i64: 16, 1>}, {pipeline_mode = #tpu.pipeline_mode<synchronous>, transform_indices = @transform_8, window_bounds = array<i64: 16, 1>}, {pipeline_mode = #tpu.pipeline_mode<synchronous>, transform_indices = @transform_9, window_bounds = array<i64: 16, 1>}, {pipeline_mode = #tpu.pipeline_mode<synchronous>, transform_indices = @transform_10, window_bounds = array<i64: 16, 1>}, {transform_indices = @transform_11, window_bounds = array<i64: 1, 16, 1024>}]} {
    %c0 = arith.constant 0 : index
    %c0_0 = arith.constant 0 : index
    %0 = vector.load %arg2[%c0, %c0_0] : memref<1x1024xf32, #tpu.memory_space<vmem>>, vector<1x1024xf32>
    %c0_1 = arith.constant 0 : index
    %c0_2 = arith.constant 0 : index
    %c0_3 = arith.constant 0 : index
    %1 = vector.load %arg1[%c0_1, %c0_2, %c0_3] : memref<1x16x1024xf32, #tpu.memory_space<vmem>>, vector<1x16x1024xf32>
    %2 = vector.shape_cast %1 : vector<1x16x1024xf32> to vector<16x1024xf32>
    %3 = vector.extract_strided_slice %2 {offsets = [0, 913], sizes = [16, 111], strides = [1, 1]} : vector<16x1024xf32> to vector<16x111xf32>
    %4 = vector.extract_strided_slice %2 {offsets = [0, 0], sizes = [16, 913], strides = [1, 1]} : vector<16x1024xf32> to vector<16x913xf32>
    %5 = tpu.concatenate %3, %4 in 1 : vector<16x111xf32>, vector<16x913xf32> -> vector<16x1024xf32>
    %c0_4 = arith.constant 0 : index
    %c0_5 = arith.constant 0 : index
    %6 = vector.load %arg13[%c0_4, %c0_5] : memref<432x1024xf32, #tpu.memory_space<vmem>>, vector<16x1024xf32>
    tpu.vector_store %arg13[%c0_4, %c0_5], %5 {strides = array<i32>} : memref<432x1024xf32, #tpu.memory_space<vmem>>, vector<16x1024xf32>,
    %7 = vector.extract_strided_slice %2 {offsets = [0, 914], sizes = [16, 110], strides = [1, 1]} : vector<16x1024xf32> to vector<16x110xf32>
    %8 = vector.extract_strided_slice %2 {offsets = [0, 0], sizes = [16, 914], strides = [1, 1]} : vector<16x1024xf32> to vector<16x914xf32>
    %9 = tpu.concatenate %7, %8 in 1 : vector<16x110xf32>, vector<16x914xf32> -> vector<16x1024xf32>
    %c16 = arith.constant 16 : index
    %c0_6 = arith.constant 0 : index
    %10 = vector.load %arg13[%c16, %c0_6] : memref<432x1024xf32, #tpu.memory_space<vmem>>, vector<16x1024xf32>
    tpu.vector_store %arg13[%c16, %c0_6], %9 {strides = array<i32>} : memref<432x1024xf32, #tpu.memory_space<vmem>>, vector<16x1024xf32>,
    %11 = vector.extract_strided_slice %2 {offsets = [0, 915], sizes = [16, 109], strides = [1, 1]} : vector<16x1024xf32> to vector<16x109xf32>
    %12 = vector.extract_strided_slice %2 {offsets = [0, 0], sizes = [16, 915], strides = [1, 1]} : vector<16x1024xf32> to vector<16x915xf32>
    %13 = tpu.concatenate %11, %12 in 1 : vector<16x109xf32>, vector<16x915xf32> -> vector<16x1024xf32>
    %c32 = arith.constant 32 : index
    %c0_7 = arith.constant 0 : index
    %14 = vector.load %arg13[%c32, %c0_7] : memref<432x1024xf32, #tpu.memory_space<vmem>>, vector<16x1024xf32>
    tpu.vector_store %arg13[%c32, %c0_7], %13 {strides = array<i32>} : memref<432x1024xf32, #tpu.memory_space<vmem>>, vector<16x1024xf32>,
    %15 = vector.extract_strided_slice %2 {offsets = [0, 923], sizes = [16, 101], strides = [1, 1]} : vector<16x1024xf32> to vector<16x101xf32>
    %16 = vector.extract_strided_slice %2 {offsets = [0, 0], sizes = [16, 923], strides = [1, 1]} : vector<16x1024xf32> to vector<16x923xf32>
    %17 = tpu.concatenate %15, %16 in 1 : vector<16x101xf32>, vector<16x923xf32> -> vector<16x1024xf32>
    %c48 = arith.constant 48 : index
    %c0_8 = arith.constant 0 : index
    %18 = vector.load %arg13[%c48, %c0_8] : memref<432x1024xf32, #tpu.memory_space<vmem>>, vector<16x1024xf32>
    tpu.vector_store %arg13[%c48, %c0_8], %17 {strides = array<i32>} : memref<432x1024xf32, #tpu.memory_space<vmem>>, vector<16x1024xf32>,
    %19 = vector.extract_strided_slice %2 {offsets = [0, 924], sizes = [16, 100], strides = [1, 1]} : vector<16x1024xf32> to vector<16x100xf32>
    %20 = vector.extract_strided_slice %2 {offsets = [0, 0], sizes = [16, 924], strides = [1, 1]} : vector<16x1024xf32> to vector<16x924xf32>
    %21 = tpu.concatenate %19, %20 in 1 : vector<16x100xf32>, vector<16x924xf32> -> vector<16x1024xf32>
    %c64 = arith.constant 64 : index
    %c0_9 = arith.constant 0 : index
    %22 = vector.load %arg13[%c64, %c0_9] : memref<432x1024xf32, #tpu.memory_space<vmem>>, vector<16x1024xf32>
    tpu.vector_store %arg13[%c64, %c0_9], %21 {strides = array<i32>} : memref<432x1024xf32, #tpu.memory_space<vmem>>, vector<16x1024xf32>,
    %23 = vector.extract_strided_slice %2 {offsets = [0, 925], sizes = [16, 99], strides = [1, 1]} : vector<16x1024xf32> to vector<16x99xf32>
    %24 = vector.extract_strided_slice %2 {offsets = [0, 0], sizes = [16, 925], strides = [1, 1]} : vector<16x1024xf32> to vector<16x925xf32>
    %25 = tpu.concatenate %23, %24 in 1 : vector<16x99xf32>, vector<16x925xf32> -> vector<16x1024xf32>
    %c80 = arith.constant 80 : index
    %c0_10 = arith.constant 0 : index
    %26 = vector.load %arg13[%c80, %c0_10] : memref<432x1024xf32, #tpu.memory_space<vmem>>, vector<16x1024xf32>
    tpu.vector_store %arg13[%c80, %c0_10], %25 {strides = array<i32>} : memref<432x1024xf32, #tpu.memory_space<vmem>>, vector<16x1024xf32>,
    %27 = vector.extract_strided_slice %2 {offsets = [0, 933], sizes = [16, 91], strides = [1, 1]} : vector<16x1024xf32> to vector<16x91xf32>
    %28 = vector.extract_strided_slice %2 {offsets = [0, 0], sizes = [16, 933], strides = [1, 1]} : vector<16x1024xf32> to vector<16x933xf32>
    %29 = tpu.concatenate %27, %28 in 1 : vector<16x91xf32>, vector<16x933xf32> -> vector<16x1024xf32>
    %c96 = arith.constant 96 : index
    %c0_11 = arith.constant 0 : index
    %30 = vector.load %arg13[%c96, %c0_11] : memref<432x1024xf32, #tpu.memory_space<vmem>>, vector<16x1024xf32>
    tpu.vector_store %arg13[%c96, %c0_11], %29 {strides = array<i32>} : memref<432x1024xf32, #tpu.memory_space<vmem>>, vector<16x1024xf32>,
    %31 = vector.extract_strided_slice %2 {offsets = [0, 934], sizes = [16, 90], strides = [1, 1]} : vector<16x1024xf32> to vector<16x90xf32>
    %32 = vector.extract_strided_slice %2 {offsets = [0, 0], sizes = [16, 934], strides = [1, 1]} : vector<16x1024xf32> to vector<16x934xf32>
    %33 = tpu.concatenate %31, %32 in 1 : vector<16x90xf32>, vector<16x934xf32> -> vector<16x1024xf32>
    %c112 = arith.constant 112 : index
    %c0_12 = arith.constant 0 : index
    %34 = vector.load %arg13[%c112, %c0_12] : memref<432x1024xf32, #tpu.memory_space<vmem>>, vector<16x1024xf32>
    tpu.vector_store %arg13[%c112, %c0_12], %33 {strides = array<i32>} : memref<432x1024xf32, #tpu.memory_space<vmem>>, vector<16x1024xf32>,
    %35 = vector.extract_strided_slice %2 {offsets = [0, 935], sizes = [16, 89], strides = [1, 1]} : vector<16x1024xf32> to vector<16x89xf32>
    %36 = vector.extract_strided_slice %2 {offsets = [0, 0], sizes = [16, 935], strides = [1, 1]} : vector<16x1024xf32> to vector<16x935xf32>
    %37 = tpu.concatenate %35, %36 in 1 : vector<16x89xf32>, vector<16x935xf32> -> vector<16x1024xf32>
    %c128 = arith.constant 128 : index
    %c0_13 = arith.constant 0 : index
    %38 = vector.load %arg13[%c128, %c0_13] : memref<432x1024xf32, #tpu.memory_space<vmem>>, vector<16x1024xf32>
    tpu.vector_store %arg13[%c128, %c0_13], %37 {strides = array<i32>} : memref<432x1024xf32, #tpu.memory_space<vmem>>, vector<16x1024xf32>,
    %39 = vector.extract_strided_slice %2 {offsets = [0, 1013], sizes = [16, 11], strides = [1, 1]} : vector<16x1024xf32> to vector<16x11xf32>
    %40 = vector.extract_strided_slice %2 {offsets = [0, 0], sizes = [16, 1013], strides = [1, 1]} : vector<16x1024xf32> to vector<16x1013xf32>
    %41 = tpu.concatenate %39, %40 in 1 : vector<16x11xf32>, vector<16x1013xf32> -> vector<16x1024xf32>
    %c144 = arith.constant 144 : index
    %c0_14 = arith.constant 0 : index
    %42 = vector.load %arg13[%c144, %c0_14] : memref<432x1024xf32, #tpu.memory_space<vmem>>, vector<16x1024xf32>
    tpu.vector_store %arg13[%c144, %c0_14], %41 {strides = array<i32>} : memref<432x1024xf32, #tpu.memory_space<vmem>>, vector<16x1024xf32>,
    %43 = vector.extract_strided_slice %2 {offsets = [0, 1014], sizes = [16, 10], strides = [1, 1]} : vector<16x1024xf32> to vector<16x10xf32>
    %44 = vector.extract_strided_slice %2 {offsets = [0, 0], sizes = [16, 1014], strides = [1, 1]} : vector<16x1024xf32> to vector<16x1014xf32>
    %45 = tpu.concatenate %43, %44 in 1 : vector<16x10xf32>, vector<16x1014xf32> -> vector<16x1024xf32>
    %c160 = arith.constant 160 : index
    %c0_15 = arith.constant 0 : index
    %46 = vector.load %arg13[%c160, %c0_15] : memref<432x1024xf32, #tpu.memory_space<vmem>>, vector<16x1024xf32>
    tpu.vector_store %arg13[%c160, %c0_15], %45 {strides = array<i32>} : memref<432x1024xf32, #tpu.memory_space<vmem>>, vector<16x1024xf32>,
    %47 = vector.extract_strided_slice %2 {offsets = [0, 1015], sizes = [16, 9], strides = [1, 1]} : vector<16x1024xf32> to vector<16x9xf32>
    %48 = vector.extract_strided_slice %2 {offsets = [0, 0], sizes = [16, 1015], strides = [1, 1]} : vector<16x1024xf32> to vector<16x1015xf32>
    %49 = tpu.concatenate %47, %48 in 1 : vector<16x9xf32>, vector<16x1015xf32> -> vector<16x1024xf32>
    %c176 = arith.constant 176 : index
    %c0_16 = arith.constant 0 : index
    %50 = vector.load %arg13[%c176, %c0_16] : memref<432x1024xf32, #tpu.memory_space<vmem>>, vector<16x1024xf32>
    tpu.vector_store %arg13[%c176, %c0_16], %49 {strides = array<i32>} : memref<432x1024xf32, #tpu.memory_space<vmem>>, vector<16x1024xf32>,
    %51 = vector.extract_strided_slice %2 {offsets = [0, 1023], sizes = [16, 1], strides = [1, 1]} : vector<16x1024xf32> to vector<16x1xf32>
    %52 = vector.extract_strided_slice %2 {offsets = [0, 0], sizes = [16, 1023], strides = [1, 1]} : vector<16x1024xf32> to vector<16x1023xf32>
    %53 = tpu.concatenate %51, %52 in 1 : vector<16x1xf32>, vector<16x1023xf32> -> vector<16x1024xf32>
    %c192 = arith.constant 192 : index
    %c0_17 = arith.constant 0 : index
    %54 = vector.load %arg13[%c192, %c0_17] : memref<432x1024xf32, #tpu.memory_space<vmem>>, vector<16x1024xf32>
    tpu.vector_store %arg13[%c192, %c0_17], %53 {strides = array<i32>} : memref<432x1024xf32, #tpu.memory_space<vmem>>, vector<16x1024xf32>,
    %c208 = arith.constant 208 : index
    %c0_18 = arith.constant 0 : index
    %55 = vector.load %arg13[%c208, %c0_18] : memref<432x1024xf32, #tpu.memory_space<vmem>>, vector<16x1024xf32>
    tpu.vector_store %arg13[%c208, %c0_18], %2 {strides = array<i32>} : memref<432x1024xf32, #tpu.memory_space<vmem>>, vector<16x1024xf32>,
    %56 = vector.extract_strided_slice %2 {offsets = [0, 1], sizes = [16, 1023], strides = [1, 1]} : vector<16x1024xf32> to vector<16x1023xf32>
    %57 = vector.extract_strided_slice %2 {offsets = [0, 0], sizes = [16, 1], strides = [1, 1]} : vector<16x1024xf32> to vector<16x1xf32>
    %58 = tpu.concatenate %56, %57 in 1 : vector<16x1023xf32>, vector<16x1xf32> -> vector<16x1024xf32>
    %c224 = arith.constant 224 : index
    %c0_19 = arith.constant 0 : index
    %59 = vector.load %arg13[%c224, %c0_19] : memref<432x1024xf32, #tpu.memory_space<vmem>>, vector<16x1024xf32>
    tpu.vector_store %arg13[%c224, %c0_19], %58 {strides = array<i32>} : memref<432x1024xf32, #tpu.memory_space<vmem>>, vector<16x1024xf32>,
    %60 = vector.extract_strided_slice %2 {offsets = [0, 9], sizes = [16, 1015], strides = [1, 1]} : vector<16x1024xf32> to vector<16x1015xf32>
    %61 = vector.extract_strided_slice %2 {offsets = [0, 0], sizes = [16, 9], strides = [1, 1]} : vector<16x1024xf32> to vector<16x9xf32>
    %62 = tpu.concatenate %60, %61 in 1 : vector<16x1015xf32>, vector<16x9xf32> -> vector<16x1024xf32>
    %c240 = arith.constant 240 : index
    %c0_20 = arith.constant 0 : index
    %63 = vector.load %arg13[%c240, %c0_20] : memref<432x1024xf32, #tpu.memory_space<vmem>>, vector<16x1024xf32>
    tpu.vector_store %arg13[%c240, %c0_20], %62 {strides = array<i32>} : memref<432x1024xf32, #tpu.memory_space<vmem>>, vector<16x1024xf32>,
    %64 = vector.extract_strided_slice %2 {offsets = [0, 10], sizes = [16, 1014], strides = [1, 1]} : vector<16x1024xf32> to vector<16x1014xf32>
    %65 = vector.extract_strided_slice %2 {offsets = [0, 0], sizes = [16, 10], strides = [1, 1]} : vector<16x1024xf32> to vector<16x10xf32>
    %66 = tpu.concatenate %64, %65 in 1 : vector<16x1014xf32>, vector<16x10xf32> -> vector<16x1024xf32>
    %c256 = arith.constant 256 : index
    %c0_21 = arith.constant 0 : index
    %67 = vector.load %arg13[%c256, %c0_21] : memref<432x1024xf32, #tpu.memory_space<vmem>>, vector<16x1024xf32>
    tpu.vector_store %arg13[%c256, %c0_21], %66 {strides = array<i32>} : memref<432x1024xf32, #tpu.memory_space<vmem>>, vector<16x1024xf32>,
    %68 = vector.extract_strided_slice %2 {offsets = [0, 11], sizes = [16, 1013], strides = [1, 1]} : vector<16x1024xf32> to vector<16x1013xf32>
    %69 = vector.extract_strided_slice %2 {offsets = [0, 0], sizes = [16, 11], strides = [1, 1]} : vector<16x1024xf32> to vector<16x11xf32>
    %70 = tpu.concatenate %68, %69 in 1 : vector<16x1013xf32>, vector<16x11xf32> -> vector<16x1024xf32>
    %c272 = arith.constant 272 : index
    %c0_22 = arith.constant 0 : index
    %71 = vector.load %arg13[%c272, %c0_22] : memref<432x1024xf32, #tpu.memory_space<vmem>>, vector<16x1024xf32>
    tpu.vector_store %arg13[%c272, %c0_22], %70 {strides = array<i32>} : memref<432x1024xf32, #tpu.memory_space<vmem>>, vector<16x1024xf32>,
    %72 = vector.extract_strided_slice %2 {offsets = [0, 89], sizes = [16, 935], strides = [1, 1]} : vector<16x1024xf32> to vector<16x935xf32>
    %73 = vector.extract_strided_slice %2 {offsets = [0, 0], sizes = [16, 89], strides = [1, 1]} : vector<16x1024xf32> to vector<16x89xf32>
    %74 = tpu.concatenate %72, %73 in 1 : vector<16x935xf32>, vector<16x89xf32> -> vector<16x1024xf32>
    %c288 = arith.constant 288 : index
    %c0_23 = arith.constant 0 : index
    %75 = vector.load %arg13[%c288, %c0_23] : memref<432x1024xf32, #tpu.memory_space<vmem>>, vector<16x1024xf32>
    tpu.vector_store %arg13[%c288, %c0_23], %74 {strides = array<i32>} : memref<432x1024xf32, #tpu.memory_space<vmem>>, vector<16x1024xf32>,
    %76 = vector.extract_strided_slice %2 {offsets = [0, 90], sizes = [16, 934], strides = [1, 1]} : vector<16x1024xf32> to vector<16x934xf32>
    %77 = vector.extract_strided_slice %2 {offsets = [0, 0], sizes = [16, 90], strides = [1, 1]} : vector<16x1024xf32> to vector<16x90xf32>
    %78 = tpu.concatenate %76, %77 in 1 : vector<16x934xf32>, vector<16x90xf32> -> vector<16x1024xf32>
    %c304 = arith.constant 304 : index
    %c0_24 = arith.constant 0 : index
    %79 = vector.load %arg13[%c304, %c0_24] : memref<432x1024xf32, #tpu.memory_space<vmem>>, vector<16x1024xf32>
    tpu.vector_store %arg13[%c304, %c0_24], %78 {strides = array<i32>} : memref<432x1024xf32, #tpu.memory_space<vmem>>, vector<16x1024xf32>,
    %80 = vector.extract_strided_slice %2 {offsets = [0, 91], sizes = [16, 933], strides = [1, 1]} : vector<16x1024xf32> to vector<16x933xf32>
    %81 = vector.extract_strided_slice %2 {offsets = [0, 0], sizes = [16, 91], strides = [1, 1]} : vector<16x1024xf32> to vector<16x91xf32>
    %82 = tpu.concatenate %80, %81 in 1 : vector<16x933xf32>, vector<16x91xf32> -> vector<16x1024xf32>
    %c320 = arith.constant 320 : index
    %c0_25 = arith.constant 0 : index
    %83 = vector.load %arg13[%c320, %c0_25] : memref<432x1024xf32, #tpu.memory_space<vmem>>, vector<16x1024xf32>
    tpu.vector_store %arg13[%c320, %c0_25], %82 {strides = array<i32>} : memref<432x1024xf32, #tpu.memory_space<vmem>>, vector<16x1024xf32>,
    %84 = vector.extract_strided_slice %2 {offsets = [0, 99], sizes = [16, 925], strides = [1, 1]} : vector<16x1024xf32> to vector<16x925xf32>
    %85 = vector.extract_strided_slice %2 {offsets = [0, 0], sizes = [16, 99], strides = [1, 1]} : vector<16x1024xf32> to vector<16x99xf32>
    %86 = tpu.concatenate %84, %85 in 1 : vector<16x925xf32>, vector<16x99xf32> -> vector<16x1024xf32>
    %c336 = arith.constant 336 : index
    %c0_26 = arith.constant 0 : index
    %87 = vector.load %arg13[%c336, %c0_26] : memref<432x1024xf32, #tpu.memory_space<vmem>>, vector<16x1024xf32>
    tpu.vector_store %arg13[%c336, %c0_26], %86 {strides = array<i32>} : memref<432x1024xf32, #tpu.memory_space<vmem>>, vector<16x1024xf32>,
    %88 = vector.extract_strided_slice %2 {offsets = [0, 100], sizes = [16, 924], strides = [1, 1]} : vector<16x1024xf32> to vector<16x924xf32>
    %89 = vector.extract_strided_slice %2 {offsets = [0, 0], sizes = [16, 100], strides = [1, 1]} : vector<16x1024xf32> to vector<16x100xf32>
    %90 = tpu.concatenate %88, %89 in 1 : vector<16x924xf32>, vector<16x100xf32> -> vector<16x1024xf32>
    %c352 = arith.constant 352 : index
    %c0_27 = arith.constant 0 : index
    %91 = vector.load %arg13[%c352, %c0_27] : memref<432x1024xf32, #tpu.memory_space<vmem>>, vector<16x1024xf32>
    tpu.vector_store %arg13[%c352, %c0_27], %90 {strides = array<i32>} : memref<432x1024xf32, #tpu.memory_space<vmem>>, vector<16x1024xf32>,
    %92 = vector.extract_strided_slice %2 {offsets = [0, 101], sizes = [16, 923], strides = [1, 1]} : vector<16x1024xf32> to vector<16x923xf32>
    %93 = vector.extract_strided_slice %2 {offsets = [0, 0], sizes = [16, 101], strides = [1, 1]} : vector<16x1024xf32> to vector<16x101xf32>
    %94 = tpu.concatenate %92, %93 in 1 : vector<16x923xf32>, vector<16x101xf32> -> vector<16x1024xf32>
    %c368 = arith.constant 368 : index
    %c0_28 = arith.constant 0 : index
    %95 = vector.load %arg13[%c368, %c0_28] : memref<432x1024xf32, #tpu.memory_space<vmem>>, vector<16x1024xf32>
    tpu.vector_store %arg13[%c368, %c0_28], %94 {strides = array<i32>} : memref<432x1024xf32, #tpu.memory_space<vmem>>, vector<16x1024xf32>,
    %96 = vector.extract_strided_slice %2 {offsets = [0, 109], sizes = [16, 915], strides = [1, 1]} : vector<16x1024xf32> to vector<16x915xf32>
    %97 = vector.extract_strided_slice %2 {offsets = [0, 0], sizes = [16, 109], strides = [1, 1]} : vector<16x1024xf32> to vector<16x109xf32>
    %98 = tpu.concatenate %96, %97 in 1 : vector<16x915xf32>, vector<16x109xf32> -> vector<16x1024xf32>
    %c384 = arith.constant 384 : index
    %c0_29 = arith.constant 0 : index
    %99 = vector.load %arg13[%c384, %c0_29] : memref<432x1024xf32, #tpu.memory_space<vmem>>, vector<16x1024xf32>
    tpu.vector_store %arg13[%c384, %c0_29], %98 {strides = array<i32>} : memref<432x1024xf32, #tpu.memory_space<vmem>>, vector<16x1024xf32>,
    %100 = vector.extract_strided_slice %2 {offsets = [0, 110], sizes = [16, 914], strides = [1, 1]} : vector<16x1024xf32> to vector<16x914xf32>
    %101 = vector.extract_strided_slice %2 {offsets = [0, 0], sizes = [16, 110], strides = [1, 1]} : vector<16x1024xf32> to vector<16x110xf32>
    %102 = tpu.concatenate %100, %101 in 1 : vector<16x914xf32>, vector<16x110xf32> -> vector<16x1024xf32>
    %c400 = arith.constant 400 : index
    %c0_30 = arith.constant 0 : index
    %103 = vector.load %arg13[%c400, %c0_30] : memref<432x1024xf32, #tpu.memory_space<vmem>>, vector<16x1024xf32>
    tpu.vector_store %arg13[%c400, %c0_30], %102 {strides = array<i32>} : memref<432x1024xf32, #tpu.memory_space<vmem>>, vector<16x1024xf32>,
    %104 = vector.extract_strided_slice %2 {offsets = [0, 111], sizes = [16, 913], strides = [1, 1]} : vector<16x1024xf32> to vector<16x913xf32>
    %105 = vector.extract_strided_slice %2 {offsets = [0, 0], sizes = [16, 111], strides = [1, 1]} : vector<16x1024xf32> to vector<16x111xf32>
    %106 = tpu.concatenate %104, %105 in 1 : vector<16x913xf32>, vector<16x111xf32> -> vector<16x1024xf32>
    %c416 = arith.constant 416 : index
    %c0_31 = arith.constant 0 : index
    %107 = vector.load %arg13[%c416, %c0_31] : memref<432x1024xf32, #tpu.memory_space<vmem>>, vector<16x1024xf32>
    tpu.vector_store %arg13[%c416, %c0_31], %106 {strides = array<i32>} : memref<432x1024xf32, #tpu.memory_space<vmem>>, vector<16x1024xf32>,
    %c0_32 = arith.constant 0 : index
    %c0_33 = arith.constant 0 : index
    %108 = vector.load %arg4[%c0_32, %c0_33] : memref<16x432xf32, #tpu.memory_space<vmem>>, vector<16x432xf32>
    %c0_34 = arith.constant 0 : index
    %c0_35 = arith.constant 0 : index
    %109 = vector.load %arg13[%c0_34, %c0_35] : memref<432x1024xf32, #tpu.memory_space<vmem>>, vector<432x1024xf32>
    %cst = arith.constant dense<0.000000e+00> : vector<16x1024xf32>
    %110 = tpu.matmul %108, %109, %cst {dimension_numbers = #tpu.dot_dimension_numbers<[1], [0], [0], [1], [0, 0, 1, 1], [], []>} : vector<16x432xf32>, vector<432x1024xf32>, vector<16x1024xf32> -> vector<16x1024xf32>
    %c0_36 = arith.constant 0 : index
    %c0_37 = arith.constant 0 : index
    %111 = vector.load %arg6[%c0_36, %c0_37] : memref<16x1xf32, #tpu.memory_space<vmem>>, vector<16x1xf32>
    %112 = vector.broadcast %111 : vector<16x1xf32> to vector<16x1024xf32>
    %113 = arith.addf %110, %112 : vector<16x1024xf32>
    %114 = vector.broadcast %0 : vector<1x1024xf32> to vector<16x1024xf32>
    %115 = arith.mulf %113, %114 : vector<16x1024xf32>
    %cst_38 = arith.constant dense<0.000000e+00> : vector<16xf32>
    %116 = vector.multi_reduction <add>, %115, %cst_38 [1] : vector<16x1024xf32> to vector<16xf32>
    %117 = vector.shape_cast %116 : vector<16xf32> to vector<16x1xf32>
    %118 = arith.mulf %115, %115 : vector<16x1024xf32>
    %cst_39 = arith.constant dense<0.000000e+00> : vector<16xf32>
    %119 = vector.multi_reduction <add>, %118, %cst_39 [1] : vector<16x1024xf32> to vector<16xf32>
    %120 = vector.shape_cast %119 : vector<16xf32> to vector<16x1xf32>
    %c0_40 = arith.constant 0 : index
    %c0_41 = arith.constant 0 : index
    %121 = vector.load %arg3[%c0_40, %c0_41] : memref<16x16xf32, #tpu.memory_space<vmem>>, vector<16x16xf32>
    %122 = tpu.concatenate %117, %120 in 1 : vector<16x1xf32>, vector<16x1xf32> -> vector<16x2xf32>
    %cst_42 = arith.constant dense<0.000000e+00> : vector<16x2xf32>
    %123 = tpu.matmul %121, %122, %cst_42 {dimension_numbers = #tpu.dot_dimension_numbers<[1], [0], [0], [1], [0, 0, 1, 1], [], []>} : vector<16x16xf32>, vector<16x2xf32>, vector<16x2xf32> -> vector<16x2xf32>
    %cst_43 = arith.constant 9.765625E-4 : f32
    %124 = vector.broadcast %cst_43 : f32 to vector<16x2xf32>
    %125 = arith.mulf %123, %124 : vector<16x2xf32>
    %126 = vector.extract_strided_slice %125 {offsets = [0, 0], sizes = [16, 1], strides = [1, 1]} : vector<16x2xf32> to vector<16x1xf32>
    %127 = vector.extract_strided_slice %125 {offsets = [0, 1], sizes = [16, 1], strides = [1, 1]} : vector<16x2xf32> to vector<16x1xf32>
    %128 = arith.mulf %126, %126 : vector<16x1xf32>
    %129 = arith.subf %127, %128 : vector<16x1xf32>
    %c0_44 = arith.constant 0 : index
    %c0_45 = arith.constant 0 : index
    %130 = vector.load %arg7[%c0_44, %c0_45] : memref<16x1xf32, #tpu.memory_space<vmem>>, vector<16x1xf32>
    %cst_46 = arith.constant 9.99999974E-6 : f32
    %131 = vector.broadcast %cst_46 : f32 to vector<16x1xf32>
    %132 = arith.addf %129, %131 : vector<16x1xf32>
    %133 = math.rsqrt %132 : vector<16x1xf32>
    %134 = arith.mulf %130, %133 : vector<16x1xf32>
    %c0_47 = arith.constant 0 : index
    %c0_48 = arith.constant 0 : index
    %135 = vector.load %arg8[%c0_47, %c0_48] : memref<16x1xf32, #tpu.memory_space<vmem>>, vector<16x1xf32>
    %136 = arith.mulf %126, %134 : vector<16x1xf32>
    %137 = arith.subf %135, %136 : vector<16x1xf32>
    %138 = vector.broadcast %134 : vector<16x1xf32> to vector<16x1024xf32>
    %139 = arith.mulf %113, %138 : vector<16x1024xf32>
    %140 = vector.broadcast %137 : vector<16x1xf32> to vector<16x1024xf32>
    %141 = arith.addf %139, %140 : vector<16x1024xf32>
    %cst_49 = arith.constant 0.000000e+00 : f32
    %142 = vector.broadcast %cst_49 : f32 to vector<16x1024xf32>
    %143 = arith.cmpf oge, %141, %142 : vector<16x1024xf32>
    %cst_50 = arith.constant 0.00999999977 : f32
    %144 = vector.broadcast %cst_50 : f32 to vector<16x1024xf32>
    %145 = arith.mulf %144, %141 : vector<16x1024xf32>
    %146 = arith.select %143, %141, %145 : vector<16x1024xi1>, vector<16x1024xf32>
    %147 = vector.broadcast %0 : vector<1x1024xf32> to vector<16x1024xf32>
    %148 = arith.mulf %146, %147 : vector<16x1024xf32>
    %149 = vector.extract_strided_slice %148 {offsets = [0, 913], sizes = [16, 111], strides = [1, 1]} : vector<16x1024xf32> to vector<16x111xf32>
    %150 = vector.extract_strided_slice %148 {offsets = [0, 0], sizes = [16, 913], strides = [1, 1]} : vector<16x1024xf32> to vector<16x913xf32>
    %151 = tpu.concatenate %149, %150 in 1 : vector<16x111xf32>, vector<16x913xf32> -> vector<16x1024xf32>
    %c0_51 = arith.constant 0 : index
    %c0_52 = arith.constant 0 : index
    %152 = vector.load %arg13[%c0_51, %c0_52] : memref<432x1024xf32, #tpu.memory_space<vmem>>, vector<16x1024xf32>
    tpu.vector_store %arg13[%c0_51, %c0_52], %151 {strides = array<i32>} : memref<432x1024xf32, #tpu.memory_space<vmem>>, vector<16x1024xf32>,
    %153 = vector.extract_strided_slice %148 {offsets = [0, 914], sizes = [16, 110], strides = [1, 1]} : vector<16x1024xf32> to vector<16x110xf32>
    %154 = vector.extract_strided_slice %148 {offsets = [0, 0], sizes = [16, 914], strides = [1, 1]} : vector<16x1024xf32> to vector<16x914xf32>
    %155 = tpu.concatenate %153, %154 in 1 : vector<16x110xf32>, vector<16x914xf32> -> vector<16x1024xf32>
    %c16_53 = arith.constant 16 : index
    %c0_54 = arith.constant 0 : index
    %156 = vector.load %arg13[%c16_53, %c0_54] : memref<432x1024xf32, #tpu.memory_space<vmem>>, vector<16x1024xf32>
    tpu.vector_store %arg13[%c16_53, %c0_54], %155 {strides = array<i32>} : memref<432x1024xf32, #tpu.memory_space<vmem>>, vector<16x1024xf32>,
    %157 = vector.extract_strided_slice %148 {offsets = [0, 915], sizes = [16, 109], strides = [1, 1]} : vector<16x1024xf32> to vector<16x109xf32>
    %158 = vector.extract_strided_slice %148 {offsets = [0, 0], sizes = [16, 915], strides = [1, 1]} : vector<16x1024xf32> to vector<16x915xf32>
    %159 = tpu.concatenate %157, %158 in 1 : vector<16x109xf32>, vector<16x915xf32> -> vector<16x1024xf32>
    %c32_55 = arith.constant 32 : index
    %c0_56 = arith.constant 0 : index
    %160 = vector.load %arg13[%c32_55, %c0_56] : memref<432x1024xf32, #tpu.memory_space<vmem>>, vector<16x1024xf32>
    tpu.vector_store %arg13[%c32_55, %c0_56], %159 {strides = array<i32>} : memref<432x1024xf32, #tpu.memory_space<vmem>>, vector<16x1024xf32>,
    %161 = vector.extract_strided_slice %148 {offsets = [0, 923], sizes = [16, 101], strides = [1, 1]} : vector<16x1024xf32> to vector<16x101xf32>
    %162 = vector.extract_strided_slice %148 {offsets = [0, 0], sizes = [16, 923], strides = [1, 1]} : vector<16x1024xf32> to vector<16x923xf32>
    %163 = tpu.concatenate %161, %162 in 1 : vector<16x101xf32>, vector<16x923xf32> -> vector<16x1024xf32>
    %c48_57 = arith.constant 48 : index
    %c0_58 = arith.constant 0 : index
    %164 = vector.load %arg13[%c48_57, %c0_58] : memref<432x1024xf32, #tpu.memory_space<vmem>>, vector<16x1024xf32>
    tpu.vector_store %arg13[%c48_57, %c0_58], %163 {strides = array<i32>} : memref<432x1024xf32, #tpu.memory_space<vmem>>, vector<16x1024xf32>,
    %165 = vector.extract_strided_slice %148 {offsets = [0, 924], sizes = [16, 100], strides = [1, 1]} : vector<16x1024xf32> to vector<16x100xf32>
    %166 = vector.extract_strided_slice %148 {offsets = [0, 0], sizes = [16, 924], strides = [1, 1]} : vector<16x1024xf32> to vector<16x924xf32>
    %167 = tpu.concatenate %165, %166 in 1 : vector<16x100xf32>, vector<16x924xf32> -> vector<16x1024xf32>
    %c64_59 = arith.constant 64 : index
    %c0_60 = arith.constant 0 : index
    %168 = vector.load %arg13[%c64_59, %c0_60] : memref<432x1024xf32, #tpu.memory_space<vmem>>, vector<16x1024xf32>
    tpu.vector_store %arg13[%c64_59, %c0_60], %167 {strides = array<i32>} : memref<432x1024xf32, #tpu.memory_space<vmem>>, vector<16x1024xf32>,
    %169 = vector.extract_strided_slice %148 {offsets = [0, 925], sizes = [16, 99], strides = [1, 1]} : vector<16x1024xf32> to vector<16x99xf32>
    %170 = vector.extract_strided_slice %148 {offsets = [0, 0], sizes = [16, 925], strides = [1, 1]} : vector<16x1024xf32> to vector<16x925xf32>
    %171 = tpu.concatenate %169, %170 in 1 : vector<16x99xf32>, vector<16x925xf32> -> vector<16x1024xf32>
    %c80_61 = arith.constant 80 : index
    %c0_62 = arith.constant 0 : index
    %172 = vector.load %arg13[%c80_61, %c0_62] : memref<432x1024xf32, #tpu.memory_space<vmem>>, vector<16x1024xf32>
    tpu.vector_store %arg13[%c80_61, %c0_62], %171 {strides = array<i32>} : memref<432x1024xf32, #tpu.memory_space<vmem>>, vector<16x1024xf32>,
    %173 = vector.extract_strided_slice %148 {offsets = [0, 933], sizes = [16, 91], strides = [1, 1]} : vector<16x1024xf32> to vector<16x91xf32>
    %174 = vector.extract_strided_slice %148 {offsets = [0, 0], sizes = [16, 933], strides = [1, 1]} : vector<16x1024xf32> to vector<16x933xf32>
    %175 = tpu.concatenate %173, %174 in 1 : vector<16x91xf32>, vector<16x933xf32> -> vector<16x1024xf32>
    %c96_63 = arith.constant 96 : index
    %c0_64 = arith.constant 0 : index
    %176 = vector.load %arg13[%c96_63, %c0_64] : memref<432x1024xf32, #tpu.memory_space<vmem>>, vector<16x1024xf32>
    tpu.vector_store %arg13[%c96_63, %c0_64], %175 {strides = array<i32>} : memref<432x1024xf32, #tpu.memory_space<vmem>>, vector<16x1024xf32>,
    %177 = vector.extract_strided_slice %148 {offsets = [0, 934], sizes = [16, 90], strides = [1, 1]} : vector<16x1024xf32> to vector<16x90xf32>
    %178 = vector.extract_strided_slice %148 {offsets = [0, 0], sizes = [16, 934], strides = [1, 1]} : vector<16x1024xf32> to vector<16x934xf32>
    %179 = tpu.concatenate %177, %178 in 1 : vector<16x90xf32>, vector<16x934xf32> -> vector<16x1024xf32>
    %c112_65 = arith.constant 112 : index
    %c0_66 = arith.constant 0 : index
    %180 = vector.load %arg13[%c112_65, %c0_66] : memref<432x1024xf32, #tpu.memory_space<vmem>>, vector<16x1024xf32>
    tpu.vector_store %arg13[%c112_65, %c0_66], %179 {strides = array<i32>} : memref<432x1024xf32, #tpu.memory_space<vmem>>, vector<16x1024xf32>,
    %181 = vector.extract_strided_slice %148 {offsets = [0, 935], sizes = [16, 89], strides = [1, 1]} : vector<16x1024xf32> to vector<16x89xf32>
    %182 = vector.extract_strided_slice %148 {offsets = [0, 0], sizes = [16, 935], strides = [1, 1]} : vector<16x1024xf32> to vector<16x935xf32>
    %183 = tpu.concatenate %181, %182 in 1 : vector<16x89xf32>, vector<16x935xf32> -> vector<16x1024xf32>
    %c128_67 = arith.constant 128 : index
    %c0_68 = arith.constant 0 : index
    %184 = vector.load %arg13[%c128_67, %c0_68] : memref<432x1024xf32, #tpu.memory_space<vmem>>, vector<16x1024xf32>
    tpu.vector_store %arg13[%c128_67, %c0_68], %183 {strides = array<i32>} : memref<432x1024xf32, #tpu.memory_space<vmem>>, vector<16x1024xf32>,
    %185 = vector.extract_strided_slice %148 {offsets = [0, 1013], sizes = [16, 11], strides = [1, 1]} : vector<16x1024xf32> to vector<16x11xf32>
    %186 = vector.extract_strided_slice %148 {offsets = [0, 0], sizes = [16, 1013], strides = [1, 1]} : vector<16x1024xf32> to vector<16x1013xf32>
    %187 = tpu.concatenate %185, %186 in 1 : vector<16x11xf32>, vector<16x1013xf32> -> vector<16x1024xf32>
    %c144_69 = arith.constant 144 : index
    %c0_70 = arith.constant 0 : index
    %188 = vector.load %arg13[%c144_69, %c0_70] : memref<432x1024xf32, #tpu.memory_space<vmem>>, vector<16x1024xf32>
    tpu.vector_store %arg13[%c144_69, %c0_70], %187 {strides = array<i32>} : memref<432x1024xf32, #tpu.memory_space<vmem>>, vector<16x1024xf32>,
    %189 = vector.extract_strided_slice %148 {offsets = [0, 1014], sizes = [16, 10], strides = [1, 1]} : vector<16x1024xf32> to vector<16x10xf32>
    %190 = vector.extract_strided_slice %148 {offsets = [0, 0], sizes = [16, 1014], strides = [1, 1]} : vector<16x1024xf32> to vector<16x1014xf32>
    %191 = tpu.concatenate %189, %190 in 1 : vector<16x10xf32>, vector<16x1014xf32> -> vector<16x1024xf32>
    %c160_71 = arith.constant 160 : index
    %c0_72 = arith.constant 0 : index
    %192 = vector.load %arg13[%c160_71, %c0_72] : memref<432x1024xf32, #tpu.memory_space<vmem>>, vector<16x1024xf32>
    tpu.vector_store %arg13[%c160_71, %c0_72], %191 {strides = array<i32>} : memref<432x1024xf32, #tpu.memory_space<vmem>>, vector<16x1024xf32>,
    %193 = vector.extract_strided_slice %148 {offsets = [0, 1015], sizes = [16, 9], strides = [1, 1]} : vector<16x1024xf32> to vector<16x9xf32>
    %194 = vector.extract_strided_slice %148 {offsets = [0, 0], sizes = [16, 1015], strides = [1, 1]} : vector<16x1024xf32> to vector<16x1015xf32>
    %195 = tpu.concatenate %193, %194 in 1 : vector<16x9xf32>, vector<16x1015xf32> -> vector<16x1024xf32>
    %c176_73 = arith.constant 176 : index
    %c0_74 = arith.constant 0 : index
    %196 = vector.load %arg13[%c176_73, %c0_74] : memref<432x1024xf32, #tpu.memory_space<vmem>>, vector<16x1024xf32>
    tpu.vector_store %arg13[%c176_73, %c0_74], %195 {strides = array<i32>} : memref<432x1024xf32, #tpu.memory_space<vmem>>, vector<16x1024xf32>,
    %197 = vector.extract_strided_slice %148 {offsets = [0, 1023], sizes = [16, 1], strides = [1, 1]} : vector<16x1024xf32> to vector<16x1xf32>
    %198 = vector.extract_strided_slice %148 {offsets = [0, 0], sizes = [16, 1023], strides = [1, 1]} : vector<16x1024xf32> to vector<16x1023xf32>
    %199 = tpu.concatenate %197, %198 in 1 : vector<16x1xf32>, vector<16x1023xf32> -> vector<16x1024xf32>
    %c192_75 = arith.constant 192 : index
    %c0_76 = arith.constant 0 : index
    %200 = vector.load %arg13[%c192_75, %c0_76] : memref<432x1024xf32, #tpu.memory_space<vmem>>, vector<16x1024xf32>
    tpu.vector_store %arg13[%c192_75, %c0_76], %199 {strides = array<i32>} : memref<432x1024xf32, #tpu.memory_space<vmem>>, vector<16x1024xf32>,
    %c208_77 = arith.constant 208 : index
    %c0_78 = arith.constant 0 : index
    %201 = vector.load %arg13[%c208_77, %c0_78] : memref<432x1024xf32, #tpu.memory_space<vmem>>, vector<16x1024xf32>
    tpu.vector_store %arg13[%c208_77, %c0_78], %148 {strides = array<i32>} : memref<432x1024xf32, #tpu.memory_space<vmem>>, vector<16x1024xf32>,
    %202 = vector.extract_strided_slice %148 {offsets = [0, 1], sizes = [16, 1023], strides = [1, 1]} : vector<16x1024xf32> to vector<16x1023xf32>
    %203 = vector.extract_strided_slice %148 {offsets = [0, 0], sizes = [16, 1], strides = [1, 1]} : vector<16x1024xf32> to vector<16x1xf32>
    %204 = tpu.concatenate %202, %203 in 1 : vector<16x1023xf32>, vector<16x1xf32> -> vector<16x1024xf32>
    %c224_79 = arith.constant 224 : index
    %c0_80 = arith.constant 0 : index
    %205 = vector.load %arg13[%c224_79, %c0_80] : memref<432x1024xf32, #tpu.memory_space<vmem>>, vector<16x1024xf32>
    tpu.vector_store %arg13[%c224_79, %c0_80], %204 {strides = array<i32>} : memref<432x1024xf32, #tpu.memory_space<vmem>>, vector<16x1024xf32>,
    %206 = vector.extract_strided_slice %148 {offsets = [0, 9], sizes = [16, 1015], strides = [1, 1]} : vector<16x1024xf32> to vector<16x1015xf32>
    %207 = vector.extract_strided_slice %148 {offsets = [0, 0], sizes = [16, 9], strides = [1, 1]} : vector<16x1024xf32> to vector<16x9xf32>
    %208 = tpu.concatenate %206, %207 in 1 : vector<16x1015xf32>, vector<16x9xf32> -> vector<16x1024xf32>
    %c240_81 = arith.constant 240 : index
    %c0_82 = arith.constant 0 : index
    %209 = vector.load %arg13[%c240_81, %c0_82] : memref<432x1024xf32, #tpu.memory_space<vmem>>, vector<16x1024xf32>
    tpu.vector_store %arg13[%c240_81, %c0_82], %208 {strides = array<i32>} : memref<432x1024xf32, #tpu.memory_space<vmem>>, vector<16x1024xf32>,
    %210 = vector.extract_strided_slice %148 {offsets = [0, 10], sizes = [16, 1014], strides = [1, 1]} : vector<16x1024xf32> to vector<16x1014xf32>
    %211 = vector.extract_strided_slice %148 {offsets = [0, 0], sizes = [16, 10], strides = [1, 1]} : vector<16x1024xf32> to vector<16x10xf32>
    %212 = tpu.concatenate %210, %211 in 1 : vector<16x1014xf32>, vector<16x10xf32> -> vector<16x1024xf32>
    %c256_83 = arith.constant 256 : index
    %c0_84 = arith.constant 0 : index
    %213 = vector.load %arg13[%c256_83, %c0_84] : memref<432x1024xf32, #tpu.memory_space<vmem>>, vector<16x1024xf32>
    tpu.vector_store %arg13[%c256_83, %c0_84], %212 {strides = array<i32>} : memref<432x1024xf32, #tpu.memory_space<vmem>>, vector<16x1024xf32>,
    %214 = vector.extract_strided_slice %148 {offsets = [0, 11], sizes = [16, 1013], strides = [1, 1]} : vector<16x1024xf32> to vector<16x1013xf32>
    %215 = vector.extract_strided_slice %148 {offsets = [0, 0], sizes = [16, 11], strides = [1, 1]} : vector<16x1024xf32> to vector<16x11xf32>
    %216 = tpu.concatenate %214, %215 in 1 : vector<16x1013xf32>, vector<16x11xf32> -> vector<16x1024xf32>
    %c272_85 = arith.constant 272 : index
    %c0_86 = arith.constant 0 : index
    %217 = vector.load %arg13[%c272_85, %c0_86] : memref<432x1024xf32, #tpu.memory_space<vmem>>, vector<16x1024xf32>
    tpu.vector_store %arg13[%c272_85, %c0_86], %216 {strides = array<i32>} : memref<432x1024xf32, #tpu.memory_space<vmem>>, vector<16x1024xf32>,
    %218 = vector.extract_strided_slice %148 {offsets = [0, 89], sizes = [16, 935], strides = [1, 1]} : vector<16x1024xf32> to vector<16x935xf32>
    %219 = vector.extract_strided_slice %148 {offsets = [0, 0], sizes = [16, 89], strides = [1, 1]} : vector<16x1024xf32> to vector<16x89xf32>
    %220 = tpu.concatenate %218, %219 in 1 : vector<16x935xf32>, vector<16x89xf32> -> vector<16x1024xf32>
    %c288_87 = arith.constant 288 : index
    %c0_88 = arith.constant 0 : index
    %221 = vector.load %arg13[%c288_87, %c0_88] : memref<432x1024xf32, #tpu.memory_space<vmem>>, vector<16x1024xf32>
    tpu.vector_store %arg13[%c288_87, %c0_88], %220 {strides = array<i32>} : memref<432x1024xf32, #tpu.memory_space<vmem>>, vector<16x1024xf32>,
    %222 = vector.extract_strided_slice %148 {offsets = [0, 90], sizes = [16, 934], strides = [1, 1]} : vector<16x1024xf32> to vector<16x934xf32>
    %223 = vector.extract_strided_slice %148 {offsets = [0, 0], sizes = [16, 90], strides = [1, 1]} : vector<16x1024xf32> to vector<16x90xf32>
    %224 = tpu.concatenate %222, %223 in 1 : vector<16x934xf32>, vector<16x90xf32> -> vector<16x1024xf32>
    %c304_89 = arith.constant 304 : index
    %c0_90 = arith.constant 0 : index
    %225 = vector.load %arg13[%c304_89, %c0_90] : memref<432x1024xf32, #tpu.memory_space<vmem>>, vector<16x1024xf32>
    tpu.vector_store %arg13[%c304_89, %c0_90], %224 {strides = array<i32>} : memref<432x1024xf32, #tpu.memory_space<vmem>>, vector<16x1024xf32>,
    %226 = vector.extract_strided_slice %148 {offsets = [0, 91], sizes = [16, 933], strides = [1, 1]} : vector<16x1024xf32> to vector<16x933xf32>
    %227 = vector.extract_strided_slice %148 {offsets = [0, 0], sizes = [16, 91], strides = [1, 1]} : vector<16x1024xf32> to vector<16x91xf32>
    %228 = tpu.concatenate %226, %227 in 1 : vector<16x933xf32>, vector<16x91xf32> -> vector<16x1024xf32>
    %c320_91 = arith.constant 320 : index
    %c0_92 = arith.constant 0 : index
    %229 = vector.load %arg13[%c320_91, %c0_92] : memref<432x1024xf32, #tpu.memory_space<vmem>>, vector<16x1024xf32>
    tpu.vector_store %arg13[%c320_91, %c0_92], %228 {strides = array<i32>} : memref<432x1024xf32, #tpu.memory_space<vmem>>, vector<16x1024xf32>,
    %230 = vector.extract_strided_slice %148 {offsets = [0, 99], sizes = [16, 925], strides = [1, 1]} : vector<16x1024xf32> to vector<16x925xf32>
    %231 = vector.extract_strided_slice %148 {offsets = [0, 0], sizes = [16, 99], strides = [1, 1]} : vector<16x1024xf32> to vector<16x99xf32>
    %232 = tpu.concatenate %230, %231 in 1 : vector<16x925xf32>, vector<16x99xf32> -> vector<16x1024xf32>
    %c336_93 = arith.constant 336 : index
    %c0_94 = arith.constant 0 : index
    %233 = vector.load %arg13[%c336_93, %c0_94] : memref<432x1024xf32, #tpu.memory_space<vmem>>, vector<16x1024xf32>
    tpu.vector_store %arg13[%c336_93, %c0_94], %232 {strides = array<i32>} : memref<432x1024xf32, #tpu.memory_space<vmem>>, vector<16x1024xf32>,
    %234 = vector.extract_strided_slice %148 {offsets = [0, 100], sizes = [16, 924], strides = [1, 1]} : vector<16x1024xf32> to vector<16x924xf32>
    %235 = vector.extract_strided_slice %148 {offsets = [0, 0], sizes = [16, 100], strides = [1, 1]} : vector<16x1024xf32> to vector<16x100xf32>
    %236 = tpu.concatenate %234, %235 in 1 : vector<16x924xf32>, vector<16x100xf32> -> vector<16x1024xf32>
    %c352_95 = arith.constant 352 : index
    %c0_96 = arith.constant 0 : index
    %237 = vector.load %arg13[%c352_95, %c0_96] : memref<432x1024xf32, #tpu.memory_space<vmem>>, vector<16x1024xf32>
    tpu.vector_store %arg13[%c352_95, %c0_96], %236 {strides = array<i32>} : memref<432x1024xf32, #tpu.memory_space<vmem>>, vector<16x1024xf32>,
    %238 = vector.extract_strided_slice %148 {offsets = [0, 101], sizes = [16, 923], strides = [1, 1]} : vector<16x1024xf32> to vector<16x923xf32>
    %239 = vector.extract_strided_slice %148 {offsets = [0, 0], sizes = [16, 101], strides = [1, 1]} : vector<16x1024xf32> to vector<16x101xf32>
    %240 = tpu.concatenate %238, %239 in 1 : vector<16x923xf32>, vector<16x101xf32> -> vector<16x1024xf32>
    %c368_97 = arith.constant 368 : index
    %c0_98 = arith.constant 0 : index
    %241 = vector.load %arg13[%c368_97, %c0_98] : memref<432x1024xf32, #tpu.memory_space<vmem>>, vector<16x1024xf32>
    tpu.vector_store %arg13[%c368_97, %c0_98], %240 {strides = array<i32>} : memref<432x1024xf32, #tpu.memory_space<vmem>>, vector<16x1024xf32>,
    %242 = vector.extract_strided_slice %148 {offsets = [0, 109], sizes = [16, 915], strides = [1, 1]} : vector<16x1024xf32> to vector<16x915xf32>
    %243 = vector.extract_strided_slice %148 {offsets = [0, 0], sizes = [16, 109], strides = [1, 1]} : vector<16x1024xf32> to vector<16x109xf32>
    %244 = tpu.concatenate %242, %243 in 1 : vector<16x915xf32>, vector<16x109xf32> -> vector<16x1024xf32>
    %c384_99 = arith.constant 384 : index
    %c0_100 = arith.constant 0 : index
    %245 = vector.load %arg13[%c384_99, %c0_100] : memref<432x1024xf32, #tpu.memory_space<vmem>>, vector<16x1024xf32>
    tpu.vector_store %arg13[%c384_99, %c0_100], %244 {strides = array<i32>} : memref<432x1024xf32, #tpu.memory_space<vmem>>, vector<16x1024xf32>,
    %246 = vector.extract_strided_slice %148 {offsets = [0, 110], sizes = [16, 914], strides = [1, 1]} : vector<16x1024xf32> to vector<16x914xf32>
    %247 = vector.extract_strided_slice %148 {offsets = [0, 0], sizes = [16, 110], strides = [1, 1]} : vector<16x1024xf32> to vector<16x110xf32>
    %248 = tpu.concatenate %246, %247 in 1 : vector<16x914xf32>, vector<16x110xf32> -> vector<16x1024xf32>
    %c400_101 = arith.constant 400 : index
    %c0_102 = arith.constant 0 : index
    %249 = vector.load %arg13[%c400_101, %c0_102] : memref<432x1024xf32, #tpu.memory_space<vmem>>, vector<16x1024xf32>
    tpu.vector_store %arg13[%c400_101, %c0_102], %248 {strides = array<i32>} : memref<432x1024xf32, #tpu.memory_space<vmem>>, vector<16x1024xf32>,
    %250 = vector.extract_strided_slice %148 {offsets = [0, 111], sizes = [16, 913], strides = [1, 1]} : vector<16x1024xf32> to vector<16x913xf32>
    %251 = vector.extract_strided_slice %148 {offsets = [0, 0], sizes = [16, 111], strides = [1, 1]} : vector<16x1024xf32> to vector<16x111xf32>
    %252 = tpu.concatenate %250, %251 in 1 : vector<16x913xf32>, vector<16x111xf32> -> vector<16x1024xf32>
    %c416_103 = arith.constant 416 : index
    %c0_104 = arith.constant 0 : index
    %253 = vector.load %arg13[%c416_103, %c0_104] : memref<432x1024xf32, #tpu.memory_space<vmem>>, vector<16x1024xf32>
    tpu.vector_store %arg13[%c416_103, %c0_104], %252 {strides = array<i32>} : memref<432x1024xf32, #tpu.memory_space<vmem>>, vector<16x1024xf32>,
    %c0_105 = arith.constant 0 : index
    %c0_106 = arith.constant 0 : index
    %254 = vector.load %arg5[%c0_105, %c0_106] : memref<16x432xf32, #tpu.memory_space<vmem>>, vector<16x432xf32>
    %c0_107 = arith.constant 0 : index
    %c0_108 = arith.constant 0 : index
    %255 = vector.load %arg13[%c0_107, %c0_108] : memref<432x1024xf32, #tpu.memory_space<vmem>>, vector<432x1024xf32>
    %cst_109 = arith.constant dense<0.000000e+00> : vector<16x1024xf32>
    %256 = tpu.matmul %254, %255, %cst_109 {dimension_numbers = #tpu.dot_dimension_numbers<[1], [0], [0], [1], [0, 0, 1, 1], [], []>} : vector<16x432xf32>, vector<432x1024xf32>, vector<16x1024xf32> -> vector<16x1024xf32>
    %c0_110 = arith.constant 0 : index
    %c0_111 = arith.constant 0 : index
    %257 = vector.load %arg9[%c0_110, %c0_111] : memref<16x1xf32, #tpu.memory_space<vmem>>, vector<16x1xf32>
    %258 = vector.broadcast %257 : vector<16x1xf32> to vector<16x1024xf32>
    %259 = arith.addf %256, %258 : vector<16x1024xf32>
    %260 = vector.broadcast %0 : vector<1x1024xf32> to vector<16x1024xf32>
    %261 = arith.mulf %259, %260 : vector<16x1024xf32>
    %cst_112 = arith.constant dense<0.000000e+00> : vector<16xf32>
    %262 = vector.multi_reduction <add>, %261, %cst_112 [1] : vector<16x1024xf32> to vector<16xf32>
    %263 = vector.shape_cast %262 : vector<16xf32> to vector<16x1xf32>
    %264 = arith.mulf %261, %261 : vector<16x1024xf32>
    %cst_113 = arith.constant dense<0.000000e+00> : vector<16xf32>
    %265 = vector.multi_reduction <add>, %264, %cst_113 [1] : vector<16x1024xf32> to vector<16xf32>
    %266 = vector.shape_cast %265 : vector<16xf32> to vector<16x1xf32>
    %c0_114 = arith.constant 0 : index
    %c0_115 = arith.constant 0 : index
    %267 = vector.load %arg3[%c0_114, %c0_115] : memref<16x16xf32, #tpu.memory_space<vmem>>, vector<16x16xf32>
    %268 = tpu.concatenate %263, %266 in 1 : vector<16x1xf32>, vector<16x1xf32> -> vector<16x2xf32>
    %cst_116 = arith.constant dense<0.000000e+00> : vector<16x2xf32>
    %269 = tpu.matmul %267, %268, %cst_116 {dimension_numbers = #tpu.dot_dimension_numbers<[1], [0], [0], [1], [0, 0, 1, 1], [], []>} : vector<16x16xf32>, vector<16x2xf32>, vector<16x2xf32> -> vector<16x2xf32>
    %cst_117 = arith.constant 9.765625E-4 : f32
    %270 = vector.broadcast %cst_117 : f32 to vector<16x2xf32>
    %271 = arith.mulf %269, %270 : vector<16x2xf32>
    %272 = vector.extract_strided_slice %271 {offsets = [0, 0], sizes = [16, 1], strides = [1, 1]} : vector<16x2xf32> to vector<16x1xf32>
    %273 = vector.extract_strided_slice %271 {offsets = [0, 1], sizes = [16, 1], strides = [1, 1]} : vector<16x2xf32> to vector<16x1xf32>
    %274 = arith.mulf %272, %272 : vector<16x1xf32>
    %275 = arith.subf %273, %274 : vector<16x1xf32>
    %c0_118 = arith.constant 0 : index
    %c0_119 = arith.constant 0 : index
    %276 = vector.load %arg10[%c0_118, %c0_119] : memref<16x1xf32, #tpu.memory_space<vmem>>, vector<16x1xf32>
    %cst_120 = arith.constant 9.99999974E-6 : f32
    %277 = vector.broadcast %cst_120 : f32 to vector<16x1xf32>
    %278 = arith.addf %275, %277 : vector<16x1xf32>
    %279 = math.rsqrt %278 : vector<16x1xf32>
    %280 = arith.mulf %276, %279 : vector<16x1xf32>
    %c0_121 = arith.constant 0 : index
    %c0_122 = arith.constant 0 : index
    %281 = vector.load %arg11[%c0_121, %c0_122] : memref<16x1xf32, #tpu.memory_space<vmem>>, vector<16x1xf32>
    %282 = arith.mulf %272, %280 : vector<16x1xf32>
    %283 = arith.subf %281, %282 : vector<16x1xf32>
    %284 = vector.broadcast %280 : vector<16x1xf32> to vector<16x1024xf32>
    %285 = arith.mulf %259, %284 : vector<16x1024xf32>
    %286 = vector.broadcast %283 : vector<16x1xf32> to vector<16x1024xf32>
    %287 = arith.addf %285, %286 : vector<16x1024xf32>
    %cst_123 = arith.constant 0.000000e+00 : f32
    %288 = vector.broadcast %cst_123 : f32 to vector<16x1024xf32>
    %289 = arith.cmpf oge, %287, %288 : vector<16x1024xf32>
    %cst_124 = arith.constant 0.00999999977 : f32
    %290 = vector.broadcast %cst_124 : f32 to vector<16x1024xf32>
    %291 = arith.mulf %290, %287 : vector<16x1024xf32>
    %292 = arith.select %289, %287, %291 : vector<16x1024xi1>, vector<16x1024xf32>
    %293 = arith.addf %292, %2 : vector<16x1024xf32>
    %c0_125 = arith.constant 0 : index
    %c0_126 = arith.constant 0 : index
    %c0_127 = arith.constant 0 : index
    %294 = vector.load %arg12[%c0_125, %c0_126, %c0_127] : memref<1x16x1024xf32, #tpu.memory_space<vmem>>, vector<1x16x1024xf32>
    %295 = vector.shape_cast %294 : vector<1x16x1024xf32> to vector<16x1024xf32>
    %296 = vector.shape_cast %293 : vector<16x1024xf32> to vector<1x16x1024xf32>
    tpu.vector_store %arg12[%c0_125, %c0_126, %c0_127], %296 {strides = array<i32>} : memref<1x16x1024xf32, #tpu.memory_space<vmem>>, vector<1x16x1024xf32>,
    return
  }
  func.func @transform_0(%arg0: i32) -> (i32, i32, i32) {
    %c0_i32 = arith.constant 0 : i32
    %c0_i32_0 = arith.constant 0 : i32
    %c0_i32_1 = arith.constant 0 : i32
    return %arg0, %c0_i32, %c0_i32_0 : i32, i32, i32
  }
  func.func @transform_1(%arg0: i32) -> (i32, i32) {
    %c0_i32 = arith.constant 0 : i32
    %c0_i32_0 = arith.constant 0 : i32
    %c0_i32_1 = arith.constant 0 : i32
    return %c0_i32, %c0_i32_0 : i32, i32
  }
  func.func @transform_2(%arg0: i32) -> (i32, i32) {
    %c0_i32 = arith.constant 0 : i32
    %c0_i32_0 = arith.constant 0 : i32
    %c0_i32_1 = arith.constant 0 : i32
    return %c0_i32, %c0_i32_0 : i32, i32
  }
  func.func @transform_3(%arg0: i32) -> (i32, i32) {
    %c0_i32 = arith.constant 0 : i32
    %c0_i32_0 = arith.constant 0 : i32
    %c0_i32_1 = arith.constant 0 : i32
    return %c0_i32, %c0_i32_0 : i32, i32
  }
  func.func @transform_4(%arg0: i32) -> (i32, i32) {
    %c0_i32 = arith.constant 0 : i32
    %c0_i32_0 = arith.constant 0 : i32
    %c0_i32_1 = arith.constant 0 : i32
    return %c0_i32, %c0_i32_0 : i32, i32
  }
  func.func @transform_5(%arg0: i32) -> (i32, i32) {
    %c0_i32 = arith.constant 0 : i32
    %c0_i32_0 = arith.constant 0 : i32
    %c0_i32_1 = arith.constant 0 : i32
    return %c0_i32, %c0_i32_0 : i32, i32
  }
  func.func @transform_6(%arg0: i32) -> (i32, i32) {
    %c0_i32 = arith.constant 0 : i32
    %c0_i32_0 = arith.constant 0 : i32
    %c0_i32_1 = arith.constant 0 : i32
    return %c0_i32, %c0_i32_0 : i32, i32
  }
  func.func @transform_7(%arg0: i32) -> (i32, i32) {
    %c0_i32 = arith.constant 0 : i32
    %c0_i32_0 = arith.constant 0 : i32
    %c0_i32_1 = arith.constant 0 : i32
    return %c0_i32, %c0_i32_0 : i32, i32
  }
  func.func @transform_8(%arg0: i32) -> (i32, i32) {
    %c0_i32 = arith.constant 0 : i32
    %c0_i32_0 = arith.constant 0 : i32
    %c0_i32_1 = arith.constant 0 : i32
    return %c0_i32, %c0_i32_0 : i32, i32
  }
  func.func @transform_9(%arg0: i32) -> (i32, i32) {
    %c0_i32 = arith.constant 0 : i32
    %c0_i32_0 = arith.constant 0 : i32
    %c0_i32_1 = arith.constant 0 : i32
    return %c0_i32, %c0_i32_0 : i32, i32
  }
  func.func @transform_10(%arg0: i32) -> (i32, i32) {
    %c0_i32 = arith.constant 0 : i32
    %c0_i32_0 = arith.constant 0 : i32
    %c0_i32_1 = arith.constant 0 : i32
    return %c0_i32, %c0_i32_0 : i32, i32
  }
  func.func @transform_11(%arg0: i32) -> (i32, i32, i32) {
    %c0_i32 = arith.constant 0 : i32
    %c0_i32_0 = arith.constant 0 : i32
    %c0_i32_1 = arith.constant 0 : i32
    return %arg0, %c0_i32, %c0_i32_0 : i32, i32, i32
  }
}

</mosaic_0001>

<llo_original>
// kernel: tpu_custom_call.1
$region0: #{tpu_custom_call.1}
  #allocation0 [shape = 'u32[]', space=smem, size = 0x4, offset = 0x4, fixed_abs, tag = 'smem constant byte address 0x4 - core index']
  #allocation1 [shape = 'u32[144,128]{1,0:T(1,128)}', space=vmem, size = 0x12000, scoped, tag = 'internal scratch']
  #allocation2 [shape = 'f32[432,1024]{1,0:T(8,128)}', space=vmem, size = 0x1b0000, scoped, tag = 'scratch operand']
  %s0 = inlined_call_operand.hbm [shape: f32[2,16,1024], index: 0, kind: input, shape index: {}]
  %s1 = inlined_call_operand.vmem [shape: f32[1,1024], index: 1, kind: input, shape index: {}]
  %s2 = inlined_call_operand.vmem [shape: f32[16,16], index: 2, kind: input, shape index: {}]
  %s3 = inlined_call_operand.vmem [shape: f32[16,432], index: 3, kind: input, shape index: {}]
  %s4 = inlined_call_operand.hbm [shape: f32[16,432], index: 4, kind: input, shape index: {}]
  %s5 = inlined_call_operand.vmem [shape: f32[16,1], index: 5, kind: input, shape index: {}]
  %s6 = inlined_call_operand.vmem [shape: f32[16,1], index: 6, kind: input, shape index: {}]
  %s7 = inlined_call_operand.vmem [shape: f32[16,1], index: 7, kind: input, shape index: {}]
  %s8 = inlined_call_operand.vmem [shape: f32[16,1], index: 8, kind: input, shape index: {}]
  %s9 = inlined_call_operand.vmem [shape: f32[16,1], index: 9, kind: input, shape index: {}]
  %s10 = inlined_call_operand.vmem [shape: f32[16,1], index: 10, kind: input, shape index: {}]
  %s11 = inlined_call_operand.hbm [shape: f32[2,16,1024], index: 11, kind: output, shape index: {}]
  %s12 = sld [smem:[#allocation0]]
  $region85: #{tpu_custom_call.1} parent=0
    _
  %s14 = ssub.s32 1, %s12
  %s15 = scalar_select 0, %s14, %s12
  $region1: #{tpu_custom_call.1} parent=0
    #allocation3 [shape = 'u8[131072]{0}', space=vmem, size = 0x20000, scoped, tag = 'input window, operand 0']
    #allocation4 [shape = 's32[2]{0}', space=sflag, size = 0x8, scoped, tag = 'scoped memory for tpu_custom_call.1']
    #allocation5 [shape = 's32[2]{0}', space=sflag, size = 0x8, scoped, tag = 'scoped memory for tpu_custom_call.1']
    #allocation6 [shape = 'u8[32768]{0}', space=vmem, size = 0x8000, scoped, tag = 'input window, operand 4, single buffered']
    #allocation7 [shape = 's32[1]{0}', space=sflag, size = 0x4, scoped, tag = 'scoped memory for tpu_custom_call.1']
    #allocation8 [shape = 'u8[131072]{0}', space=vmem, size = 0x20000, scoped, tag = 'output window, operand 0']
    %16 = vsyncpa [#allocation4], 0
    %s17 = scalar_lea.sflag [#allocation4], 1
    %18 = vsyncpa %s17, 0
    %19 = vsyncpa [#allocation7], 0
    %20 = vsyncpa [#allocation5], 0
    %s21 = scalar_lea.sflag [#allocation5], 1
    %22 = vsyncpa %s21, 0
    loop: start=0, step=1, limit=4
    $region2: #{tpu_custom_call.1} parent=1 // loop_pre_header
      _
    $region3: #{tpu_custom_call.1} parent=1 // loop_header
      %s24 = sphi 0, %s28
      %p25 = scmp.ge.s32.totalorder %s24, 4
      %s34 = sphi 0, %s36
      %s37 = sphi 0, %s34
      %s38 = sphi 0, %s37
      %s54 = sphi 0, %s38
      %s58 = sphi 0, %s58
      %s60 = sphi 0, %s58
      %s61 = sphi 0, %s60
      %s75 = sphi 0, %s61
      %s79 = sphi 0, %s79
      %s81 = sphi 0, %s79
      %s82 = sphi 0, %s81
      %s96 = sphi 0, %s82
      %s100 = sphi 0, %s100
      %s102 = sphi 0, %s100
      %s103 = sphi 0, %s102
      %s117 = sphi 0, %s103
      %s121 = sphi 0, %s121
      %s123 = sphi 0, %s121
      %s124 = sphi 0, %s123
      %s138 = sphi 0, %s124
      %s142 = sphi 0, %s142
      %s144 = sphi 0, %s142
      %s145 = sphi 0, %s144
      %s159 = sphi 0, %s145
      %s163 = sphi 0, %s163
      %s165 = sphi 0, %s163
      %s166 = sphi 0, %s165
      %s180 = sphi 0, %s166
      %s184 = sphi 0, %s184
      %s186 = sphi 0, %s184
      %s187 = sphi 0, %s186
      %s201 = sphi 0, %s187
      %s205 = sphi 0, %s205
      %s207 = sphi 0, %s205
      %s208 = sphi 0, %s207
      %s222 = sphi 0, %s208
      %s226 = sphi 0, %s226
      %s228 = sphi 0, %s226
      %s229 = sphi 0, %s228
      %s243 = sphi 0, %s229
      %s247 = sphi 0, %s247
      %s249 = sphi 0, %s247
      %s250 = sphi 0, %s249
      %s264 = sphi 0, %s250
      %s270 = sphi 0, %s272
      %s273 = sphi 0, %s270
      %s274 = sphi 0, %s273
      %s290 = sphi 0, %s274
    $region4: #{tpu_custom_call.1} parent=1 // loop_header_branch
      %27 = sbr.rel (%p25) target = $region8
    $region5: #{tpu_custom_call.1} parent=1 // loop_body
      %s29 = ssub.s32 %s24, 1
      %s30 = ssub.s32 %s24, 2
      %s31 = sadd.s32 %s24, 1
      %s32 = ssub.s32 %s24, %s31
      %p33 = scmp.eq.s32.totalorder %s32, 0
      %s35 = sadd.s32 %s34, 1
      %s36 = scalar_select %p33, %s34, %s35
      %p39 = pneg %p33
      %p40 = scmp.eq.s32.totalorder %s24, 1
      %p41 = por %p39, %p40
      %p42 = scmp.ne.s32.totalorder %s34, %s37
      %p43 = scmp.eq.s32.totalorder %s24, 0
      %p44 = por %p42, %p43
      %p45 = scmp.ne.s32.totalorder %s34, %s37
      %p46 = scmp.eq.s32.totalorder %s29, 1
      %p47 = por %p45, %p46
      %p48 = scmp.ne.s32.totalorder %s37, %s38
      %p49 = scmp.eq.s32.totalorder %s29, 0
      %p50 = por %p48, %p49
      %p51 = scmp.ne.s32.totalorder %s37, %s38
      %p52 = scmp.eq.s32.totalorder %s30, 1
      %p53 = por %p51, %p52
      %p55 = scmp.ne.s32.totalorder %s38, %s54
      %p56 = scmp.eq.s32.totalorder %s30, 0
      %p57 = por %p55, %p56
      %s59 = sadd.s32 %s58, 1
      %p62 = scmp.eq.s32.totalorder %s24, 1
      %p63 = scmp.ne.s32.totalorder %s58, %s60
      %p64 = scmp.eq.s32.totalorder %s24, 0
      %p65 = por %p63, %p64
      %p66 = scmp.ne.s32.totalorder %s58, %s60
      %p67 = scmp.eq.s32.totalorder %s29, 1
      %p68 = por %p66, %p67
      %p69 = scmp.ne.s32.totalorder %s60, %s61
      %p70 = scmp.eq.s32.totalorder %s29, 0
      %p71 = por %p69, %p70
      %p72 = scmp.ne.s32.totalorder %s60, %s61
      %p73 = scmp.eq.s32.totalorder %s30, 1
      %p74 = por %p72, %p73
      %p76 = scmp.ne.s32.totalorder %s61, %s75
      %p77 = scmp.eq.s32.totalorder %s30, 0
      %p78 = por %p76, %p77
      %s80 = sadd.s32 %s79, 1
      %p83 = scmp.eq.s32.totalorder %s24, 1
      %p84 = scmp.ne.s32.totalorder %s79, %s81
      %p85 = scmp.eq.s32.totalorder %s24, 0
      %p86 = por %p84, %p85
      %p87 = scmp.ne.s32.totalorder %s79, %s81
      %p88 = scmp.eq.s32.totalorder %s29, 1
      %p89 = por %p87, %p88
      %p90 = scmp.ne.s32.totalorder %s81, %s82
      %p91 = scmp.eq.s32.totalorder %s29, 0
      %p92 = por %p90, %p91
      %p93 = scmp.ne.s32.totalorder %s81, %s82
      %p94 = scmp.eq.s32.totalorder %s30, 1
      %p95 = por %p93, %p94
      %p97 = scmp.ne.s32.totalorder %s82, %s96
      %p98 = scmp.eq.s32.totalorder %s30, 0
      %p99 = por %p97, %p98
      %s101 = sadd.s32 %s100, 1
      %p104 = scmp.eq.s32.totalorder %s24, 1
      %p105 = scmp.ne.s32.totalorder %s100, %s102
      %p106 = scmp.eq.s32.totalorder %s24, 0
      %p107 = por %p105, %p106
      %p108 = scmp.ne.s32.totalorder %s100, %s102
      %p109 = scmp.eq.s32.totalorder %s29, 1
      %p110 = por %p108, %p109
      %p111 = scmp.ne.s32.totalorder %s102, %s103
      %p112 = scmp.eq.s32.totalorder %s29, 0
      %p113 = por %p111, %p112
      %p114 = scmp.ne.s32.totalorder %s102, %s103
      %p115 = scmp.eq.s32.totalorder %s30, 1
      %p116 = por %p114, %p115
      %p118 = scmp.ne.s32.totalorder %s103, %s117
      %p119 = scmp.eq.s32.totalorder %s30, 0
      %p120 = por %p118, %p119
      %s122 = sadd.s32 %s121, 1
      %p125 = scmp.eq.s32.totalorder %s24, 1
      %p126 = scmp.ne.s32.totalorder %s121, %s123
      %p127 = scmp.eq.s32.totalorder %s24, 0
      %p128 = por %p126, %p127
      %p129 = scmp.ne.s32.totalorder %s121, %s123
      %p130 = scmp.eq.s32.totalorder %s29, 1
      %p131 = por %p129, %p130
      %p132 = scmp.ne.s32.totalorder %s123, %s124
      %p133 = scmp.eq.s32.totalorder %s29, 0
      %p134 = por %p132, %p133
      %p135 = scmp.ne.s32.totalorder %s123, %s124
      %p136 = scmp.eq.s32.totalorder %s30, 1
      %p137 = por %p135, %p136
      %p139 = scmp.ne.s32.totalorder %s124, %s138
      %p140 = scmp.eq.s32.totalorder %s30, 0
      %p141 = por %p139, %p140
      %s143 = sadd.s32 %s142, 1
      %p146 = scmp.eq.s32.totalorder %s24, 1
      %p147 = scmp.ne.s32.totalorder %s142, %s144
      %p148 = scmp.eq.s32.totalorder %s24, 0
      %p149 = por %p147, %p148
      %p150 = scmp.ne.s32.totalorder %s142, %s144
      %p151 = scmp.eq.s32.totalorder %s29, 1
      %p152 = por %p150, %p151
      %p153 = scmp.ne.s32.totalorder %s144, %s145
      %p154 = scmp.eq.s32.totalorder %s29, 0
      %p155 = por %p153, %p154
      %p156 = scmp.ne.s32.totalorder %s144, %s145
      %p157 = scmp.eq.s32.totalorder %s30, 1
      %p158 = por %p156, %p157
      %p160 = scmp.ne.s32.totalorder %s145, %s159
      %p161 = scmp.eq.s32.totalorder %s30, 0
      %p162 = por %p160, %p161
      %s164 = sadd.s32 %s163, 1
      %p167 = scmp.eq.s32.totalorder %s24, 1
      %p168 = scmp.ne.s32.totalorder %s163, %s165
      %p169 = scmp.eq.s32.totalorder %s24, 0
      %p170 = por %p168, %p169
      %p171 = scmp.ne.s32.totalorder %s163, %s165
      %p172 = scmp.eq.s32.totalorder %s29, 1
      %p173 = por %p171, %p172
      %p174 = scmp.ne.s32.totalorder %s165, %s166
      %p175 = scmp.eq.s32.totalorder %s29, 0
      %p176 = por %p174, %p175
      %p177 = scmp.ne.s32.totalorder %s165, %s166
      %p178 = scmp.eq.s32.totalorder %s30, 1
      %p179 = por %p177, %p178
      %p181 = scmp.ne.s32.totalorder %s166, %s180
      %p182 = scmp.eq.s32.totalorder %s30, 0
      %p183 = por %p181, %p182
      %s185 = sadd.s32 %s184, 1
      %p188 = scmp.eq.s32.totalorder %s24, 1
      %p189 = scmp.ne.s32.totalorder %s184, %s186
      %p190 = scmp.eq.s32.totalorder %s24, 0
      %p191 = por %p189, %p190
      %p192 = scmp.ne.s32.totalorder %s184, %s186
      %p193 = scmp.eq.s32.totalorder %s29, 1
      %p194 = por %p192, %p193
      %p195 = scmp.ne.s32.totalorder %s186, %s187
      %p196 = scmp.eq.s32.totalorder %s29, 0
      %p197 = por %p195, %p196
      %p198 = scmp.ne.s32.totalorder %s186, %s187
      %p199 = scmp.eq.s32.totalorder %s30, 1
      %p200 = por %p198, %p199
      %p202 = scmp.ne.s32.totalorder %s187, %s201
      %p203 = scmp.eq.s32.totalorder %s30, 0
      %p204 = por %p202, %p203
      %s206 = sadd.s32 %s205, 1
      %p209 = scmp.eq.s32.totalorder %s24, 1
      %p210 = scmp.ne.s32.totalorder %s205, %s207
      %p211 = scmp.eq.s32.totalorder %s24, 0
      %p212 = por %p210, %p211
      %p213 = scmp.ne.s32.totalorder %s205, %s207
      %p214 = scmp.eq.s32.totalorder %s29, 1
      %p215 = por %p213, %p214
      %p216 = scmp.ne.s32.totalorder %s207, %s208
      %p217 = scmp.eq.s32.totalorder %s29, 0
      %p218 = por %p216, %p217
      %p219 = scmp.ne.s32.totalorder %s207, %s208
      %p220 = scmp.eq.s32.totalorder %s30, 1
      %p221 = por %p219, %p220
      %p223 = scmp.ne.s32.totalorder %s208, %s222
      %p224 = scmp.eq.s32.totalorder %s30, 0
      %p225 = por %p223, %p224
      %s227 = sadd.s32 %s226, 1
      %p230 = scmp.eq.s32.totalorder %s24, 1
      %p231 = scmp.ne.s32.totalorder %s226, %s228
      %p232 = scmp.eq.s32.totalorder %s24, 0
      %p233 = por %p231, %p232
      %p234 = scmp.ne.s32.totalorder %s226, %s228
      %p235 = scmp.eq.s32.totalorder %s29, 1
      %p236 = por %p234, %p235
      %p237 = scmp.ne.s32.totalorder %s228, %s229
      %p238 = scmp.eq.s32.totalorder %s29, 0
      %p239 = por %p237, %p238
      %p240 = scmp.ne.s32.totalorder %s228, %s229
      %p241 = scmp.eq.s32.totalorder %s30, 1
      %p242 = por %p240, %p241
      %p244 = scmp.ne.s32.totalorder %s229, %s243
      %p245 = scmp.eq.s32.totalorder %s30, 0
      %p246 = por %p244, %p245
      %s248 = sadd.s32 %s247, 1
      %p251 = scmp.eq.s32.totalorder %s24, 1
      %p252 = scmp.ne.s32.totalorder %s247, %s249
      %p253 = scmp.eq.s32.totalorder %s24, 0
      %p254 = por %p252, %p253
      %p255 = scmp.ne.s32.totalorder %s247, %s249
      %p256 = scmp.eq.s32.totalorder %s29, 1
      %p257 = por %p255, %p256
      %p258 = scmp.ne.s32.totalorder %s249, %s250
      %p259 = scmp.eq.s32.totalorder %s29, 0
      %p260 = por %p258, %p259
      %p261 = scmp.ne.s32.totalorder %s249, %s250
      %p262 = scmp.eq.s32.totalorder %s30, 1
      %p263 = por %p261, %p262
      %p265 = scmp.ne.s32.totalorder %s250, %s264
      %p266 = scmp.eq.s32.totalorder %s30, 0
      %p267 = por %p265, %p266
      %s268 = ssub.s32 %s24, %s31
      %p269 = scmp.eq.s32.totalorder %s268, 0
      %s271 = sadd.s32 %s270, 1
      %s272 = scalar_select %p269, %s270, %s271
      %p275 = pneg %p269
      %p276 = scmp.eq.s32.totalorder %s24, 1
      %p277 = por %p275, %p276
      %p278 = scmp.ne.s32.totalorder %s270, %s273
      %p279 = scmp.eq.s32.totalorder %s24, 0
      %p280 = por %p278, %p279
      %p281 = scmp.ne.s32.totalorder %s270, %s273
      %p282 = scmp.eq.s32.totalorder %s29, 1
      %p283 = por %p281, %p282
      %p284 = scmp.ne.s32.totalorder %s273, %s274
      %p285 = scmp.eq.s32.totalorder %s29, 0
      %p286 = por %p284, %p285
      %p287 = scmp.ne.s32.totalorder %s273, %s274
      %p288 = scmp.eq.s32.totalorder %s30, 1
      %p289 = por %p287, %p288
      %p291 = scmp.ne.s32.totalorder %s274, %s290
      %p292 = scmp.eq.s32.totalorder %s30, 0
      %p293 = por %p291, %p292
      %p294 = scmp.le.s32.totalorder 1, %s24
      %p295 = scmp.lt.s32.totalorder %s24, 3
      %p296 = pnand %p294, %p295
      %p297 = pneg %p296
      // Predicated region
      $region9: #{tpu_custom_call.1} parent=5 // pred_check
        _
      $region10: #{tpu_custom_call.1} parent=5 // pred_check_branch
        %299 = sbr.rel (%p296) target = $region12
      $region11: #{tpu_custom_call.1} parent=5 // pred_region
        %s300 = ssub.s32 %s24, 1
        // Predicated region
        $region13: #{tpu_custom_call.1} parent=11 // pred_check
          %p301 = pneg %p71
        $region14: #{tpu_custom_call.1} parent=11 // pred_check_branch
          %303 = sbr.rel (%p301) target = $region16
        $region15: #{tpu_custom_call.1} parent=11 // pred_region
          _
        $region16: #{tpu_custom_call.1} parent=11 // pred_fallthru
          _
        // Predicated region
        $region17: #{tpu_custom_call.1} parent=11 // pred_check
          %p304 = pneg %p92
        $region18: #{tpu_custom_call.1} parent=11 // pred_check_branch
          %306 = sbr.rel (%p304) target = $region20
        $region19: #{tpu_custom_call.1} parent=11 // pred_region
          _
        $region20: #{tpu_custom_call.1} parent=11 // pred_fallthru
          _
        // Predicated region
        $region21: #{tpu_custom_call.1} parent=11 // pred_check
          %p307 = pneg %p113
        $region22: #{tpu_custom_call.1} parent=11 // pred_check_branch
          %309 = sbr.rel (%p307) target = $region24
        $region23: #{tpu_custom_call.1} parent=11 // pred_region
          _
        $region24: #{tpu_custom_call.1} parent=11 // pred_fallthru
          _
        // Predicated region
        $region25: #{tpu_custom_call.1} parent=11 // pred_check
          %p310 = pneg %p134
        $region26: #{tpu_custom_call.1} parent=11 // pred_check_branch
          %312 = sbr.rel (%p310) target = $region28
        $region27: #{tpu_custom_call.1} parent=11 // pred_region
          %s314 = ssub.s32 1024, 1024
          %315 = vsyncadd [#allocation7], %s314
          %s316 = sshll.u32 [#allocation6], 4
          %s317 = int_to_ptr.vmem [resolvable:$true] %s316
          %322 = dma.hbm_to_vmem [thread:$0]  %s4, 1024, %s317, [#allocation7], 512, 512, 32
        $region28: #{tpu_custom_call.1} parent=11 // pred_fallthru
          _
        // Predicated region
        $region29: #{tpu_custom_call.1} parent=11 // pred_check
          %p323 = pneg %p155
        $region30: #{tpu_custom_call.1} parent=11 // pred_check_branch
          %325 = sbr.rel (%p323) target = $region32
        $region31: #{tpu_custom_call.1} parent=11 // pred_region
          _
        $region32: #{tpu_custom_call.1} parent=11 // pred_fallthru
          _
        // Predicated region
        $region33: #{tpu_custom_call.1} parent=11 // pred_check
          %p326 = pneg %p176
        $region34: #{tpu_custom_call.1} parent=11 // pred_check_branch
          %328 = sbr.rel (%p326) target = $region36
        $region35: #{tpu_custom_call.1} parent=11 // pred_region
          _
        $region36: #{tpu_custom_call.1} parent=11 // pred_fallthru
          _
        // Predicated region
        $region37: #{tpu_custom_call.1} parent=11 // pred_check
          %p329 = pneg %p197
        $region38: #{tpu_custom_call.1} parent=11 // pred_check_branch
          %331 = sbr.rel (%p329) target = $region40
        $region39: #{tpu_custom_call.1} parent=11 // pred_region
          _
        $region40: #{tpu_custom_call.1} parent=11 // pred_fallthru
          _
        // Predicated region
        $region41: #{tpu_custom_call.1} parent=11 // pred_check
          %p332 = pneg %p218
        $region42: #{tpu_custom_call.1} parent=11 // pred_check_branch
          %334 = sbr.rel (%p332) target = $region44
        $region43: #{tpu_custom_call.1} parent=11 // pred_region
          _
        $region44: #{tpu_custom_call.1} parent=11 // pred_fallthru
          _
        // Predicated region
        $region45: #{tpu_custom_call.1} parent=11 // pred_check
          %p335 = pneg %p239
        $region46: #{tpu_custom_call.1} parent=11 // pred_check_branch
          %337 = sbr.rel (%p335) target = $region48
        $region47: #{tpu_custom_call.1} parent=11 // pred_region
          _
        $region48: #{tpu_custom_call.1} parent=11 // pred_fallthru
          _
        // Predicated region
        $region49: #{tpu_custom_call.1} parent=11 // pred_check
          %p338 = pneg %p260
        $region50: #{tpu_custom_call.1} parent=11 // pred_check_branch
          %340 = sbr.rel (%p338) target = $region52
        $region51: #{tpu_custom_call.1} parent=11 // pred_region
          _
        $region52: #{tpu_custom_call.1} parent=11 // pred_fallthru
          _
      $region12: #{tpu_custom_call.1} parent=5 // pred_fallthru
        _
      %p341 = scmp.lt.s32.totalorder %s24, 2
      // Predicated region
      $region53: #{tpu_custom_call.1} parent=5 // pred_check
        %p342 = pneg %p341
      $region54: #{tpu_custom_call.1} parent=5 // pred_check_branch
        %344 = sbr.rel (%p342) target = $region56
      $region55: #{tpu_custom_call.1} parent=5 // pred_region
        // Predicated region
        $region57: #{tpu_custom_call.1} parent=55 // pred_check
          %p345 = pneg %p44
        $region58: #{tpu_custom_call.1} parent=55 // pred_check_branch
          %347 = sbr.rel (%p345) target = $region60
        $region59: #{tpu_custom_call.1} parent=55 // pred_region
          %s348 = sand.u32 %s34, 1
          %s349 = scalar_lea.sflag [#allocation4], %s348
          %s350 = sand.u32 %s34, 1
          %s351 = smul.addr %s350, 128
          %s352 = scalar_lea.vmem [#allocation3], %s351
          %s354 = ssub.s32 2048, 2048
          %355 = vsyncadd %s349, %s354
          %s356 = smul.addr %s24, 16
          %s357 = smul.addr %s356, 128
          %s358 = scalar_lea.hbm %s0, %s357
          %s359 = sshll.u32 %s352, 4
          %s360 = int_to_ptr.vmem [resolvable:$true] %s359
          %365 = dma.hbm_to_vmem [thread:$0]  %s358, 2048, %s360, %s349, 1024, 1024, 64
        $region60: #{tpu_custom_call.1} parent=55 // pred_fallthru
          _
      $region56: #{tpu_custom_call.1} parent=5 // pred_fallthru
        _
      %p366 = scmp.le.s32.totalorder 1, %s24
      %p367 = scmp.lt.s32.totalorder %s24, 3
      %p368 = pnand %p366, %p367
      %p369 = pneg %p368
      // Predicated region
      $region61: #{tpu_custom_call.1} parent=5 // pred_check
        _
      $region62: #{tpu_custom_call.1} parent=5 // pred_check_branch
        %371 = sbr.rel (%p368) target = $region64
      $region63: #{tpu_custom_call.1} parent=5 // pred_region
        %s372 = ssub.s32 %s24, 1
        %s373 = sand.u32 %s37, 1
        %s374 = scalar_lea.sflag [#allocation4], %s373
        %s375 = sand.u32 %s37, 1
        %s376 = smul.addr %s375, 128
        %s377 = scalar_lea.vmem [#allocation3], %s376
        // Predicated region
        $region65: #{tpu_custom_call.1} parent=63 // pred_check
          %p378 = pneg %p50
        $region66: #{tpu_custom_call.1} parent=63 // pred_check_branch
          %380 = sbr.rel (%p378) target = $region68
        $region67: #{tpu_custom_call.1} parent=63 // pred_region
          %381 = dma.done %s374, 2048
        $region68: #{tpu_custom_call.1} parent=63 // pred_fallthru
          _
        // Predicated region
        $region69: #{tpu_custom_call.1} parent=63 // pred_check
          %p382 = pneg %p134
        $region70: #{tpu_custom_call.1} parent=63 // pred_check_branch
          %384 = sbr.rel (%p382) target = $region72
        $region71: #{tpu_custom_call.1} parent=63 // pred_region
          %385 = dma.done [#allocation7], 1024
        $region72: #{tpu_custom_call.1} parent=63 // pred_fallthru
          _
        %s386 = sand.u32 %s37, 1
        %s387 = scalar_lea.sflag [#allocation4], %s386
        %s388 = sand.u32 %s37, 1
        %s389 = smul.addr %s388, 128
        %s390 = scalar_lea.vmem [#allocation3], %s389
        %p391 = pneg %p50
        %p392 = pneg %p47
        %p393 = pneg %p71
        %p394 = pneg %p68
        %p395 = pneg %p92
        %p396 = pneg %p89
        %p397 = pneg %p113
        %p398 = pneg %p110
        %p399 = pneg %p134
        %p400 = pneg %p131
        %p401 = pneg %p155
        %p402 = pneg %p152
        %p403 = pneg %p176
        %p404 = pneg %p173
        %p405 = pneg %p197
        %p406 = pneg %p194
        %p407 = pneg %p218
        %p408 = pneg %p215
        %p409 = pneg %p239
        %p410 = pneg %p236
        %p411 = pneg %p260
        %p412 = pneg %p257
        %p413 = pneg %p286
        %p414 = pneg %p283
        %s415 = sand.u32 %s273, 1
        %s416 = scalar_lea.sflag [#allocation5], %s415
        %s417 = sand.u32 %s273, 1
        %s418 = smul.addr %s417, 128
        %s419 = scalar_lea.vmem [#allocation8], %s418
        %v420 = vld [vmem:[%s1] sm:$0xff]
        %v421 = vld [vmem:[%s377] sm:$0xff]
        %v422 = vld [vmem:[%s377 + $0x8] sm:$0xff]
        %v423 = vld [vmem:[%s377 + $0x10] sm:$0xff]
        %v424 = vld [vmem:[%s377 + $0x18] sm:$0xff]
        %v425 = vld [vmem:[%s377 + $0x20] sm:$0xff]
        %v426 = vld [vmem:[%s377 + $0x28] sm:$0xff]
        %v427 = vld [vmem:[%s377 + $0x30] sm:$0xff]
        %v428 = vld [vmem:[%s377 + $0x38] sm:$0xff]
        %v429 = vld [vmem:[%s377 + $0x40] sm:$0xff]
        %v430 = vld [vmem:[%s377 + $0x48] sm:$0xff]
        %v431 = vld [vmem:[%s377 + $0x50] sm:$0xff]
        %v432 = vld [vmem:[%s377 + $0x58] sm:$0xff]
        %v433 = vld [vmem:[%s377 + $0x60] sm:$0xff]
        %v434 = vld [vmem:[%s377 + $0x68] sm:$0xff]
        %v435 = vld [vmem:[%s377 + $0x70] sm:$0xff]
        %v436 = vld [vmem:[%s377 + $0x78] sm:$0xff]
        %439 = vrot.lane.b32.xlu0 %v428, 111
        %v440 = vpop.permute.xlu0 %439
        %441 = vrot.lane.b32.xlu0 %v436, 111
        %v442 = vpop.permute.xlu0 %441
        %459 = vrot.lane.b32.xlu0 %v421, 111
        %v460 = vpop.permute.xlu0 %459
        %461 = vrot.lane.b32.xlu0 %v422, 111
        %v462 = vpop.permute.xlu0 %461
        %463 = vrot.lane.b32.xlu0 %v423, 111
        %v464 = vpop.permute.xlu0 %463
        %465 = vrot.lane.b32.xlu0 %v424, 111
        %v466 = vpop.permute.xlu0 %465
        %467 = vrot.lane.b32.xlu0 %v425, 111
        %v468 = vpop.permute.xlu0 %467
        %469 = vrot.lane.b32.xlu0 %v426, 111
        %v470 = vpop.permute.xlu0 %469
        %471 = vrot.lane.b32.xlu0 %v427, 111
        %v472 = vpop.permute.xlu0 %471
        %473 = vrot.lane.b32.xlu0 %v429, 111
        %v474 = vpop.permute.xlu0 %473
        %475 = vrot.lane.b32.xlu0 %v430, 111
        %v476 = vpop.permute.xlu0 %475
        %477 = vrot.lane.b32.xlu0 %v431, 111
        %v478 = vpop.permute.xlu0 %477
        %479 = vrot.lane.b32.xlu0 %v432, 111
        %v480 = vpop.permute.xlu0 %479
        %481 = vrot.lane.b32.xlu0 %v433, 111
        %v482 = vpop.permute.xlu0 %481
        %483 = vrot.lane.b32.xlu0 %v434, 111
        %v484 = vpop.permute.xlu0 %483
        %485 = vrot.lane.b32.xlu0 %v435, 111
        %v486 = vpop.permute.xlu0 %485
        %vm487 = vcmask 908288
        %v488 = vsel %vm487, %v460, %v462
        %v489 = vsel %vm487, %v462, %v464
        %v490 = vsel %vm487, %v464, %v466
        %v491 = vsel %vm487, %v466, %v468
        %v492 = vsel %vm487, %v468, %v470
        %v493 = vsel %vm487, %v470, %v472
        %v494 = vsel %vm487, %v472, %v440
        %v495 = vsel %vm487, %v474, %v476
        %v496 = vsel %vm487, %v476, %v478
        %v497 = vsel %vm487, %v478, %v480
        %v498 = vsel %vm487, %v480, %v482
        %v499 = vsel %vm487, %v482, %v484
        %v500 = vsel %vm487, %v484, %v486
        %v501 = vsel %vm487, %v486, %v442
        %v518 = vsel %vm487, %v440, %v460
        %v519 = vsel %vm487, %v442, %v474
        %520 = vst [vmem:[#allocation2] sm:$0xff] %v518
        %521 = vst [vmem:[#allocation2 + $0x8] sm:$0xff] %v488
        %522 = vst [vmem:[#allocation2 + $0x10] sm:$0xff] %v489
        %523 = vst [vmem:[#allocation2 + $0x18] sm:$0xff] %v490
        %524 = vst [vmem:[#allocation2 + $0x20] sm:$0xff] %v491
        %525 = vst [vmem:[#allocation2 + $0x28] sm:$0xff] %v492
        %526 = vst [vmem:[#allocation2 + $0x30] sm:$0xff] %v493
        %527 = vst [vmem:[#allocation2 + $0x38] sm:$0xff] %v494
        %528 = vst [vmem:[#allocation2 + $0x40] sm:$0xff] %v519
        %529 = vst [vmem:[#allocation2 + $0x48] sm:$0xff] %v495
        %530 = vst [vmem:[#allocation2 + $0x50] sm:$0xff] %v496
        %531 = vst [vmem:[#allocation2 + $0x58] sm:$0xff] %v497
        %532 = vst [vmem:[#allocation2 + $0x60] sm:$0xff] %v498
        %533 = vst [vmem:[#allocation2 + $0x68] sm:$0xff] %v499
        %534 = vst [vmem:[#allocation2 + $0x70] sm:$0xff] %v500
        %535 = vst [vmem:[#allocation2 + $0x78] sm:$0xff] %v501
        %536 = vrot.lane.b32.xlu0 %v428, 110
        %v537 = vpop.permute.xlu0 %536
        %538 = vrot.lane.b32.xlu0 %v436, 110
        %v539 = vpop.permute.xlu0 %538
        %542 = vrot.lane.b32.xlu0 %v421, 110
        %v543 = vpop.permute.xlu0 %542
        %544 = vrot.lane.b32.xlu0 %v422, 110
        %v545 = vpop.permute.xlu0 %544
        %546 = vrot.lane.b32.xlu0 %v423, 110
        %v547 = vpop.permute.xlu0 %546
        %548 = vrot.lane.b32.xlu0 %v424, 110
        %v549 = vpop.permute.xlu0 %548
        %550 = vrot.lane.b32.xlu0 %v425, 110
        %v551 = vpop.permute.xlu0 %550
        %552 = vrot.lane.b32.xlu0 %v426, 110
        %v553 = vpop.permute.xlu0 %552
        %554 = vrot.lane.b32.xlu0 %v427, 110
        %v555 = vpop.permute.xlu0 %554
        %556 = vrot.lane.b32.xlu0 %v429, 110
        %v557 = vpop.permute.xlu0 %556
        %558 = vrot.lane.b32.xlu0 %v430, 110
        %v559 = vpop.permute.xlu0 %558
        %560 = vrot.lane.b32.xlu0 %v431, 110
        %v561 = vpop.permute.xlu0 %560
        %562 = vrot.lane.b32.xlu0 %v432, 110
        %v563 = vpop.permute.xlu0 %562
        %564 = vrot.lane.b32.xlu0 %v433, 110
        %v565 = vpop.permute.xlu0 %564
        %566 = vrot.lane.b32.xlu0 %v434, 110
        %v567 = vpop.permute.xlu0 %566
        %568 = vrot.lane.b32.xlu0 %v435, 110
        %v569 = vpop.permute.xlu0 %568
        %vm570 = vcmask 900096
        %v571 = vsel %vm570, %v543, %v545
        %v572 = vsel %vm570, %v545, %v547
        %v573 = vsel %vm570, %v547, %v549
        %v574 = vsel %vm570, %v549, %v551
        %v575 = vsel %vm570, %v551, %v553
        %v576 = vsel %vm570, %v553, %v555
        %v577 = vsel %vm570, %v555, %v537
        %v578 = vsel %vm570, %v557, %v559
        %v579 = vsel %vm570, %v559, %v561
        %v580 = vsel %vm570, %v561, %v563
        %v581 = vsel %vm570, %v563, %v565
        %v582 = vsel %vm570, %v565, %v567
        %v583 = vsel %vm570, %v567, %v569
        %v584 = vsel %vm570, %v569, %v539
        %v601 = vsel %vm570, %v537, %v543
        %v602 = vsel %vm570, %v539, %v557
        %603 = vst [vmem:[#allocation2 + $0x80] sm:$0xff] %v601
        %604 = vst [vmem:[#allocation2 + $0x88] sm:$0xff] %v571
        %605 = vst [vmem:[#allocation2 + $0x90] sm:$0xff] %v572
        %606 = vst [vmem:[#allocation2 + $0x98] sm:$0xff] %v573
        %607 = vst [vmem:[#allocation2 + $0xa0] sm:$0xff] %v574
        %608 = vst [vmem:[#allocation2 + $0xa8] sm:$0xff] %v575
        %609 = vst [vmem:[#allocation2 + $0xb0] sm:$0xff] %v576
        %610 = vst [vmem:[#allocation2 + $0xb8] sm:$0xff] %v577
        %611 = vst [vmem:[#allocation2 + $0xc0] sm:$0xff] %v602
        %612 = vst [vmem:[#allocation2 + $0xc8] sm:$0xff] %v578
        %613 = vst [vmem:[#allocation2 + $0xd0] sm:$0xff] %v579
        %614 = vst [vmem:[#allocation2 + $0xd8] sm:$0xff] %v580
        %615 = vst [vmem:[#allocation2 + $0xe0] sm:$0xff] %v581
        %616 = vst [vmem:[#allocation2 + $0xe8] sm:$0xff] %v582
        %617 = vst [vmem:[#allocation2 + $0xf0] sm:$0xff] %v583
        %618 = vst [vmem:[#allocation2 + $0xf8] sm:$0xff] %v584
        %619 = vrot.lane.b32.xlu0 %v428, 109
        %v620 = vpop.permute.xlu0 %619
        %621 = vrot.lane.b32.xlu0 %v436, 109
        %v622 = vpop.permute.xlu0 %621
        %625 = vrot.lane.b32.xlu0 %v421, 109
        %v626 = vpop.permute.xlu0 %625
        %627 = vrot.lane.b32.xlu0 %v422, 109
        %v628 = vpop.permute.xlu0 %627
        %629 = vrot.lane.b32.xlu0 %v423, 109
        %v630 = vpop.permute.xlu0 %629
        %631 = vrot.lane.b32.xlu0 %v424, 109
        %v632 = vpop.permute.xlu0 %631
        %633 = vrot.lane.b32.xlu0 %v425, 109
        %v634 = vpop.permute.xlu0 %633
        %635 = vrot.lane.b32.xlu0 %v426, 109
        %v636 = vpop.permute.xlu0 %635
        %637 = vrot.lane.b32.xlu0 %v427, 109
        %v638 = vpop.permute.xlu0 %637
        %639 = vrot.lane.b32.xlu0 %v429, 109
        %v640 = vpop.permute.xlu0 %639
        %641 = vrot.lane.b32.xlu0 %v430, 109
        %v642 = vpop.permute.xlu0 %641
        %643 = vrot.lane.b32.xlu0 %v431, 109
        %v644 = vpop.permute.xlu0 %643
        %645 = vrot.lane.b32.xlu0 %v432, 109
        %v646 = vpop.permute.xlu0 %645
        %647 = vrot.lane.b32.xlu0 %v433, 109
        %v648 = vpop.permute.xlu0 %647
        %649 = vrot.lane.b32.xlu0 %v434, 109
        %v650 = vpop.permute.xlu0 %649
        %651 = vrot.lane.b32.xlu0 %v435, 109
        %v652 = vpop.permute.xlu0 %651
        %vm653 = vcmask 891904
        %v654 = vsel %vm653, %v626, %v628
        %v655 = vsel %vm653, %v628, %v630
        %v656 = vsel %vm653, %v630, %v632
        %v657 = vsel %vm653, %v632, %v634
        %v658 = vsel %vm653, %v634, %v636
        %v659 = vsel %vm653, %v636, %v638
        %v660 = vsel %vm653, %v638, %v620
        %v661 = vsel %vm653, %v640, %v642
        %v662 = vsel %vm653, %v642, %v644
        %v663 = vsel %vm653, %v644, %v646
        %v664 = vsel %vm653, %v646, %v648
        %v665 = vsel %vm653, %v648, %v650
        %v666 = vsel %vm653, %v650, %v652
        %v667 = vsel %vm653, %v652, %v622
        %v684 = vsel %vm653, %v620, %v626
        %v685 = vsel %vm653, %v622, %v640
        %686 = vst [vmem:[#allocation2 + $0x100] sm:$0xff] %v684
        %687 = vst [vmem:[#allocation2 + $0x108] sm:$0xff] %v654
        %688 = vst [vmem:[#allocation2 + $0x110] sm:$0xff] %v655
        %689 = vst [vmem:[#allocation2 + $0x118] sm:$0xff] %v656
        %690 = vst [vmem:[#allocation2 + $0x120] sm:$0xff] %v657
        %691 = vst [vmem:[#allocation2 + $0x128] sm:$0xff] %v658
        %692 = vst [vmem:[#allocation2 + $0x130] sm:$0xff] %v659
        %693 = vst [vmem:[#allocation2 + $0x138] sm:$0xff] %v660
        %694 = vst [vmem:[#allocation2 + $0x140] sm:$0xff] %v685
        %695 = vst [vmem:[#allocation2 + $0x148] sm:$0xff] %v661
        %696 = vst [vmem:[#allocation2 + $0x150] sm:$0xff] %v662
        %697 = vst [vmem:[#allocation2 + $0x158] sm:$0xff] %v663
        %698 = vst [vmem:[#allocation2 + $0x160] sm:$0xff] %v664
        %699 = vst [vmem:[#allocation2 + $0x168] sm:$0xff] %v665
        %700 = vst [vmem:[#allocation2 + $0x170] sm:$0xff] %v666
        %701 = vst [vmem:[#allocation2 + $0x178] sm:$0xff] %v667
        %702 = vrot.lane.b32.xlu0 %v428, 101
        %v703 = vpop.permute.xlu0 %702
        %704 = vrot.lane.b32.xlu0 %v436, 101
        %v705 = vpop.permute.xlu0 %704
        %708 = vrot.lane.b32.xlu0 %v421, 101
        %v709 = vpop.permute.xlu0 %708
        %710 = vrot.lane.b32.xlu0 %v422, 101
        %v711 = vpop.permute.xlu0 %710
        %712 = vrot.lane.b32.xlu0 %v423, 101
        %v713 = vpop.permute.xlu0 %712
        %714 = vrot.lane.b32.xlu0 %v424, 101
        %v715 = vpop.permute.xlu0 %714
        %716 = vrot.lane.b32.xlu0 %v425, 101
        %v717 = vpop.permute.xlu0 %716
        %718 = vrot.lane.b32.xlu0 %v426, 101
        %v719 = vpop.permute.xlu0 %718
        %720 = vrot.lane.b32.xlu0 %v427, 101
        %v721 = vpop.permute.xlu0 %720
        %722 = vrot.lane.b32.xlu0 %v429, 101
        %v723 = vpop.permute.xlu0 %722
        %724 = vrot.lane.b32.xlu0 %v430, 101
        %v725 = vpop.permute.xlu0 %724
        %726 = vrot.lane.b32.xlu0 %v431, 101
        %v727 = vpop.permute.xlu0 %726
        %728 = vrot.lane.b32.xlu0 %v432, 101
        %v729 = vpop.permute.xlu0 %728
        %730 = vrot.lane.b32.xlu0 %v433, 101
        %v731 = vpop.permute.xlu0 %730
        %732 = vrot.lane.b32.xlu0 %v434, 101
        %v733 = vpop.permute.xlu0 %732
        %734 = vrot.lane.b32.xlu0 %v435, 101
        %v735 = vpop.permute.xlu0 %734
        %vm736 = vcmask 826368
        %v737 = vsel %vm736, %v709, %v711
        %v738 = vsel %vm736, %v711, %v713
        %v739 = vsel %vm736, %v713, %v715
        %v740 = vsel %vm736, %v715, %v717
        %v741 = vsel %vm736, %v717, %v719
        %v742 = vsel %vm736, %v719, %v721
        %v743 = vsel %vm736, %v721, %v703
        %v744 = vsel %vm736, %v723, %v725
        %v745 = vsel %vm736, %v725, %v727
        %v746 = vsel %vm736, %v727, %v729
        %v747 = vsel %vm736, %v729, %v731
        %v748 = vsel %vm736, %v731, %v733
        %v749 = vsel %vm736, %v733, %v735
        %v750 = vsel %vm736, %v735, %v705
        %v767 = vsel %vm736, %v703, %v709
        %v768 = vsel %vm736, %v705, %v723
        %769 = vst [vmem:[#allocation2 + $0x180] sm:$0xff] %v767
        %770 = vst [vmem:[#allocation2 + $0x188] sm:$0xff] %v737
        %771 = vst [vmem:[#allocation2 + $0x190] sm:$0xff] %v738
        %772 = vst [vmem:[#allocation2 + $0x198] sm:$0xff] %v739
        %773 = vst [vmem:[#allocation2 + $0x1a0] sm:$0xff] %v740
        %774 = vst [vmem:[#allocation2 + $0x1a8] sm:$0xff] %v741
        %775 = vst [vmem:[#allocation2 + $0x1b0] sm:$0xff] %v742
        %776 = vst [vmem:[#allocation2 + $0x1b8] sm:$0xff] %v743
        %777 = vst [vmem:[#allocation2 + $0x1c0] sm:$0xff] %v768
        %778 = vst [vmem:[#allocation2 + $0x1c8] sm:$0xff] %v744
        %779 = vst [vmem:[#allocation2 + $0x1d0] sm:$0xff] %v745
        %780 = vst [vmem:[#allocation2 + $0x1d8] sm:$0xff] %v746
        %781 = vst [vmem:[#allocation2 + $0x1e0] sm:$0xff] %v747
        %782 = vst [vmem:[#allocation2 + $0x1e8] sm:$0xff] %v748
        %783 = vst [vmem:[#allocation2 + $0x1f0] sm:$0xff] %v749
        %784 = vst [vmem:[#allocation2 + $0x1f8] sm:$0xff] %v750
        %785 = vrot.lane.b32.xlu0 %v428, 100
        %v786 = vpop.permute.xlu0 %785
        %787 = vrot.lane.b32.xlu0 %v436, 100
        %v788 = vpop.permute.xlu0 %787
        %791 = vrot.lane.b32.xlu0 %v421, 100
        %v792 = vpop.permute.xlu0 %791
        %793 = vrot.lane.b32.xlu0 %v422, 100
        %v794 = vpop.permute.xlu0 %793
        %795 = vrot.lane.b32.xlu0 %v423, 100
        %v796 = vpop.permute.xlu0 %795
        %797 = vrot.lane.b32.xlu0 %v424, 100
        %v798 = vpop.permute.xlu0 %797
        %799 = vrot.lane.b32.xlu0 %v425, 100
        %v800 = vpop.permute.xlu0 %799
        %801 = vrot.lane.b32.xlu0 %v426, 100
        %v802 = vpop.permute.xlu0 %801
        %803 = vrot.lane.b32.xlu0 %v427, 100
        %v804 = vpop.permute.xlu0 %803
        %805 = vrot.lane.b32.xlu0 %v429, 100
        %v806 = vpop.permute.xlu0 %805
        %807 = vrot.lane.b32.xlu0 %v430, 100
        %v808 = vpop.permute.xlu0 %807
        %809 = vrot.lane.b32.xlu0 %v431, 100
        %v810 = vpop.permute.xlu0 %809
        %811 = vrot.lane.b32.xlu0 %v432, 100
        %v812 = vpop.permute.xlu0 %811
        %813 = vrot.lane.b32.xlu0 %v433, 100
        %v814 = vpop.permute.xlu0 %813
        %815 = vrot.lane.b32.xlu0 %v434, 100
        %v816 = vpop.permute.xlu0 %815
        %817 = vrot.lane.b32.xlu0 %v435, 100
        %v818 = vpop.permute.xlu0 %817
        %vm819 = vcmask 818176
        %v820 = vsel %vm819, %v792, %v794
        %v821 = vsel %vm819, %v794, %v796
        %v822 = vsel %vm819, %v796, %v798
        %v823 = vsel %vm819, %v798, %v800
        %v824 = vsel %vm819, %v800, %v802
        %v825 = vsel %vm819, %v802, %v804
        %v826 = vsel %vm819, %v804, %v786
        %v827 = vsel %vm819, %v806, %v808
        %v828 = vsel %vm819, %v808, %v810
        %v829 = vsel %vm819, %v810, %v812
        %v830 = vsel %vm819, %v812, %v814
        %v831 = vsel %vm819, %v814, %v816
        %v832 = vsel %vm819, %v816, %v818
        %v833 = vsel %vm819, %v818, %v788
        %v850 = vsel %vm819, %v786, %v792
        %v851 = vsel %vm819, %v788, %v806
        %852 = vst [vmem:[#allocation2 + $0x200] sm:$0xff] %v850
        %853 = vst [vmem:[#allocation2 + $0x208] sm:$0xff] %v820
        %854 = vst [vmem:[#allocation2 + $0x210] sm:$0xff] %v821
        %855 = vst [vmem:[#allocation2 + $0x218] sm:$0xff] %v822
        %856 = vst [vmem:[#allocation2 + $0x220] sm:$0xff] %v823
        %857 = vst [vmem:[#allocation2 + $0x228] sm:$0xff] %v824
        %858 = vst [vmem:[#allocation2 + $0x230] sm:$0xff] %v825
        %859 = vst [vmem:[#allocation2 + $0x238] sm:$0xff] %v826
        %860 = vst [vmem:[#allocation2 + $0x240] sm:$0xff] %v851
        %861 = vst [vmem:[#allocation2 + $0x248] sm:$0xff] %v827
        %862 = vst [vmem:[#allocation2 + $0x250] sm:$0xff] %v828
        %863 = vst [vmem:[#allocation2 + $0x258] sm:$0xff] %v829
        %864 = vst [vmem:[#allocation2 + $0x260] sm:$0xff] %v830
        %865 = vst [vmem:[#allocation2 + $0x268] sm:$0xff] %v831
        %866 = vst [vmem:[#allocation2 + $0x270] sm:$0xff] %v832
        %867 = vst [vmem:[#allocation2 + $0x278] sm:$0xff] %v833
        %868 = vrot.lane.b32.xlu0 %v428, 99
        %v869 = vpop.permute.xlu0 %868
        %870 = vrot.lane.b32.xlu0 %v436, 99
        %v871 = vpop.permute.xlu0 %870
        %874 = vrot.lane.b32.xlu0 %v421, 99
        %v875 = vpop.permute.xlu0 %874
        %876 = vrot.lane.b32.xlu0 %v422, 99
        %v877 = vpop.permute.xlu0 %876
        %878 = vrot.lane.b32.xlu0 %v423, 99
        %v879 = vpop.permute.xlu0 %878
        %880 = vrot.lane.b32.xlu0 %v424, 99
        %v881 = vpop.permute.xlu0 %880
        %882 = vrot.lane.b32.xlu0 %v425, 99
        %v883 = vpop.permute.xlu0 %882
        %884 = vrot.lane.b32.xlu0 %v426, 99
        %v885 = vpop.permute.xlu0 %884
        %886 = vrot.lane.b32.xlu0 %v427, 99
        %v887 = vpop.permute.xlu0 %886
        %888 = vrot.lane.b32.xlu0 %v429, 99
        %v889 = vpop.permute.xlu0 %888
        %890 = vrot.lane.b32.xlu0 %v430, 99
        %v891 = vpop.permute.xlu0 %890
        %892 = vrot.lane.b32.xlu0 %v431, 99
        %v893 = vpop.permute.xlu0 %892
        %894 = vrot.lane.b32.xlu0 %v432, 99
        %v895 = vpop.permute.xlu0 %894
        %896 = vrot.lane.b32.xlu0 %v433, 99
        %v897 = vpop.permute.xlu0 %896
        %898 = vrot.lane.b32.xlu0 %v434, 99
        %v899 = vpop.permute.xlu0 %898
        %900 = vrot.lane.b32.xlu0 %v435, 99
        %v901 = vpop.permute.xlu0 %900
        %vm902 = vcmask 809984
        %v903 = vsel %vm902, %v875, %v877
        %v904 = vsel %vm902, %v877, %v879
        %v905 = vsel %vm902, %v879, %v881
        %v906 = vsel %vm902, %v881, %v883
        %v907 = vsel %vm902, %v883, %v885
        %v908 = vsel %vm902, %v885, %v887
        %v909 = vsel %vm902, %v887, %v869
        %v910 = vsel %vm902, %v889, %v891
        %v911 = vsel %vm902, %v891, %v893
        %v912 = vsel %vm902, %v893, %v895
        %v913 = vsel %vm902, %v895, %v897
        %v914 = vsel %vm902, %v897, %v899
        %v915 = vsel %vm902, %v899, %v901
        %v916 = vsel %vm902, %v901, %v871
        %v933 = vsel %vm902, %v869, %v875
        %v934 = vsel %vm902, %v871, %v889
        %935 = vst [vmem:[#allocation2 + $0x280] sm:$0xff] %v933
        %936 = vst [vmem:[#allocation2 + $0x288] sm:$0xff] %v903
        %937 = vst [vmem:[#allocation2 + $0x290] sm:$0xff] %v904
        %938 = vst [vmem:[#allocation2 + $0x298] sm:$0xff] %v905
        %939 = vst [vmem:[#allocation2 + $0x2a0] sm:$0xff] %v906
        %940 = vst [vmem:[#allocation2 + $0x2a8] sm:$0xff] %v907
        %941 = vst [vmem:[#allocation2 + $0x2b0] sm:$0xff] %v908
        %942 = vst [vmem:[#allocation2 + $0x2b8] sm:$0xff] %v909
        %943 = vst [vmem:[#allocation2 + $0x2c0] sm:$0xff] %v934
        %944 = vst [vmem:[#allocation2 + $0x2c8] sm:$0xff] %v910
        %945 = vst [vmem:[#allocation2 + $0x2d0] sm:$0xff] %v911
        %946 = vst [vmem:[#allocation2 + $0x2d8] sm:$0xff] %v912
        %947 = vst [vmem:[#allocation2 + $0x2e0] sm:$0xff] %v913
        %948 = vst [vmem:[#allocation2 + $0x2e8] sm:$0xff] %v914
        %949 = vst [vmem:[#allocation2 + $0x2f0] sm:$0xff] %v915
        %950 = vst [vmem:[#allocation2 + $0x2f8] sm:$0xff] %v916
        %951 = vrot.lane.b32.xlu0 %v428, 91
        %v952 = vpop.permute.xlu0 %951
        %953 = vrot.lane.b32.xlu0 %v436, 91
        %v954 = vpop.permute.xlu0 %953
        %957 = vrot.lane.b32.xlu0 %v421, 91
        %v958 = vpop.permute.xlu0 %957
        %959 = vrot.lane.b32.xlu0 %v422, 91
        %v960 = vpop.permute.xlu0 %959
        %961 = vrot.lane.b32.xlu0 %v423, 91
        %v962 = vpop.permute.xlu0 %961
        %963 = vrot.lane.b32.xlu0 %v424, 91
        %v964 = vpop.permute.xlu0 %963
        %965 = vrot.lane.b32.xlu0 %v425, 91
        %v966 = vpop.permute.xlu0 %965
        %967 = vrot.lane.b32.xlu0 %v426, 91
        %v968 = vpop.permute.xlu0 %967
        %969 = vrot.lane.b32.xlu0 %v427, 91
        %v970 = vpop.permute.xlu0 %969
        %971 = vrot.lane.b32.xlu0 %v429, 91
        %v972 = vpop.permute.xlu0 %971
        %973 = vrot.lane.b32.xlu0 %v430, 91
        %v974 = vpop.permute.xlu0 %973
        %975 = vrot.lane.b32.xlu0 %v431, 91
        %v976 = vpop.permute.xlu0 %975
        %977 = vrot.lane.b32.xlu0 %v432, 91
        %v978 = vpop.permute.xlu0 %977
        %979 = vrot.lane.b32.xlu0 %v433, 91
        %v980 = vpop.permute.xlu0 %979
        %981 = vrot.lane.b32.xlu0 %v434, 91
        %v982 = vpop.permute.xlu0 %981
        %983 = vrot.lane.b32.xlu0 %v435, 91
        %v984 = vpop.permute.xlu0 %983
        %vm985 = vcmask 744448
        %v986 = vsel %vm985, %v958, %v960
        %v987 = vsel %vm985, %v960, %v962
        %v988 = vsel %vm985, %v962, %v964
        %v989 = vsel %vm985, %v964, %v966
        %v990 = vsel %vm985, %v966, %v968
        %v991 = vsel %vm985, %v968, %v970
        %v992 = vsel %vm985, %v970, %v952
        %v993 = vsel %vm985, %v972, %v974
        %v994 = vsel %vm985, %v974, %v976
        %v995 = vsel %vm985, %v976, %v978
        %v996 = vsel %vm985, %v978, %v980
        %v997 = vsel %vm985, %v980, %v982
        %v998 = vsel %vm985, %v982, %v984
        %v999 = vsel %vm985, %v984, %v954
        %v1016 = vsel %vm985, %v952, %v958
        %v1017 = vsel %vm985, %v954, %v972
        %1018 = vst [vmem:[#allocation2 + $0x300] sm:$0xff] %v1016
        %1019 = vst [vmem:[#allocation2 + $0x308] sm:$0xff] %v986
        %1020 = vst [vmem:[#allocation2 + $0x310] sm:$0xff] %v987
        %1021 = vst [vmem:[#allocation2 + $0x318] sm:$0xff] %v988
        %1022 = vst [vmem:[#allocation2 + $0x320] sm:$0xff] %v989
        %1023 = vst [vmem:[#allocation2 + $0x328] sm:$0xff] %v990
        %1024 = vst [vmem:[#allocation2 + $0x330] sm:$0xff] %v991
        %1025 = vst [vmem:[#allocation2 + $0x338] sm:$0xff] %v992
        %1026 = vst [vmem:[#allocation2 + $0x340] sm:$0xff] %v1017
        %1027 = vst [vmem:[#allocation2 + $0x348] sm:$0xff] %v993
        %1028 = vst [vmem:[#allocation2 + $0x350] sm:$0xff] %v994
        %1029 = vst [vmem:[#allocation2 + $0x358] sm:$0xff] %v995
        %1030 = vst [vmem:[#allocation2 + $0x360] sm:$0xff] %v996
        %1031 = vst [vmem:[#allocation2 + $0x368] sm:$0xff] %v997
        %1032 = vst [vmem:[#allocation2 + $0x370] sm:$0xff] %v998
        %1033 = vst [vmem:[#allocation2 + $0x378] sm:$0xff] %v999
        %1034 = vrot.lane.b32.xlu0 %v428, 90
        %v1035 = vpop.permute.xlu0 %1034
        %1036 = vrot.lane.b32.xlu0 %v436, 90
        %v1037 = vpop.permute.xlu0 %1036
        %1040 = vrot.lane.b32.xlu0 %v421, 90
        %v1041 = vpop.permute.xlu0 %1040
        %1042 = vrot.lane.b32.xlu0 %v422, 90
        %v1043 = vpop.permute.xlu0 %1042
        %1044 = vrot.lane.b32.xlu0 %v423, 90
        %v1045 = vpop.permute.xlu0 %1044
        %1046 = vrot.lane.b32.xlu0 %v424, 90
        %v1047 = vpop.permute.xlu0 %1046
        %1048 = vrot.lane.b32.xlu0 %v425, 90
        %v1049 = vpop.permute.xlu0 %1048
        %1050 = vrot.lane.b32.xlu0 %v426, 90
        %v1051 = vpop.permute.xlu0 %1050
        %1052 = vrot.lane.b32.xlu0 %v427, 90
        %v1053 = vpop.permute.xlu0 %1052
        %1054 = vrot.lane.b32.xlu0 %v429, 90
        %v1055 = vpop.permute.xlu0 %1054
        %1056 = vrot.lane.b32.xlu0 %v430, 90
        %v1057 = vpop.permute.xlu0 %1056
        %1058 = vrot.lane.b32.xlu0 %v431, 90
        %v1059 = vpop.permute.xlu0 %1058
        %1060 = vrot.lane.b32.xlu0 %v432, 90
        %v1061 = vpop.permute.xlu0 %1060
        %1062 = vrot.lane.b32.xlu0 %v433, 90
        %v1063 = vpop.permute.xlu0 %1062
        %1064 = vrot.lane.b32.xlu0 %v434, 90
        %v1065 = vpop.permute.xlu0 %1064
        %1066 = vrot.lane.b32.xlu0 %v435, 90
        %v1067 = vpop.permute.xlu0 %1066
        %vm1068 = vcmask 736256
        %v1069 = vsel %vm1068, %v1041, %v1043
        %v1070 = vsel %vm1068, %v1043, %v1045
        %v1071 = vsel %vm1068, %v1045, %v1047
        %v1072 = vsel %vm1068, %v1047, %v1049
        %v1073 = vsel %vm1068, %v1049, %v1051
        %v1074 = vsel %vm1068, %v1051, %v1053
        %v1075 = vsel %vm1068, %v1053, %v1035
        %v1076 = vsel %vm1068, %v1055, %v1057
        %v1077 = vsel %vm1068, %v1057, %v1059
        %v1078 = vsel %vm1068, %v1059, %v1061
        %v1079 = vsel %vm1068, %v1061, %v1063
        %v1080 = vsel %vm1068, %v1063, %v1065
        %v1081 = vsel %vm1068, %v1065, %v1067
        %v1082 = vsel %vm1068, %v1067, %v1037
        %v1099 = vsel %vm1068, %v1035, %v1041
        %v1100 = vsel %vm1068, %v1037, %v1055
        %1101 = vst [vmem:[#allocation2 + $0x380] sm:$0xff] %v1099
        %1102 = vst [vmem:[#allocation2 + $0x388] sm:$0xff] %v1069
        %1103 = vst [vmem:[#allocation2 + $0x390] sm:$0xff] %v1070
        %1104 = vst [vmem:[#allocation2 + $0x398] sm:$0xff] %v1071
        %1105 = vst [vmem:[#allocation2 + $0x3a0] sm:$0xff] %v1072
        %1106 = vst [vmem:[#allocation2 + $0x3a8] sm:$0xff] %v1073
        %1107 = vst [vmem:[#allocation2 + $0x3b0] sm:$0xff] %v1074
        %1108 = vst [vmem:[#allocation2 + $0x3b8] sm:$0xff] %v1075
        %1109 = vst [vmem:[#allocation2 + $0x3c0] sm:$0xff] %v1100
        %1110 = vst [vmem:[#allocation2 + $0x3c8] sm:$0xff] %v1076
        %1111 = vst [vmem:[#allocation2 + $0x3d0] sm:$0xff] %v1077
        %1112 = vst [vmem:[#allocation2 + $0x3d8] sm:$0xff] %v1078
        %1113 = vst [vmem:[#allocation2 + $0x3e0] sm:$0xff] %v1079
        %1114 = vst [vmem:[#allocation2 + $0x3e8] sm:$0xff] %v1080
        %1115 = vst [vmem:[#allocation2 + $0x3f0] sm:$0xff] %v1081
        %1116 = vst [vmem:[#allocation2 + $0x3f8] sm:$0xff] %v1082
        %1117 = vrot.lane.b32.xlu0 %v428, 89
        %v1118 = vpop.permute.xlu0 %1117
        %1119 = vrot.lane.b32.xlu0 %v436, 89
        %v1120 = vpop.permute.xlu0 %1119
        %1123 = vrot.lane.b32.xlu0 %v421, 89
        %v1124 = vpop.permute.xlu0 %1123
        %1125 = vrot.lane.b32.xlu0 %v422, 89
        %v1126 = vpop.permute.xlu0 %1125
        %1127 = vrot.lane.b32.xlu0 %v423, 89
        %v1128 = vpop.permute.xlu0 %1127
        %1129 = vrot.lane.b32.xlu0 %v424, 89
        %v1130 = vpop.permute.xlu0 %1129
        %1131 = vrot.lane.b32.xlu0 %v425, 89
        %v1132 = vpop.permute.xlu0 %1131
        %1133 = vrot.lane.b32.xlu0 %v426, 89
        %v1134 = vpop.permute.xlu0 %1133
        %1135 = vrot.lane.b32.xlu0 %v427, 89
        %v1136 = vpop.permute.xlu0 %1135
        %1137 = vrot.lane.b32.xlu0 %v429, 89
        %v1138 = vpop.permute.xlu0 %1137
        %1139 = vrot.lane.b32.xlu0 %v430, 89
        %v1140 = vpop.permute.xlu0 %1139
        %1141 = vrot.lane.b32.xlu0 %v431, 89
        %v1142 = vpop.permute.xlu0 %1141
        %1143 = vrot.lane.b32.xlu0 %v432, 89
        %v1144 = vpop.permute.xlu0 %1143
        %1145 = vrot.lane.b32.xlu0 %v433, 89
        %v1146 = vpop.permute.xlu0 %1145
        %1147 = vrot.lane.b32.xlu0 %v434, 89
        %v1148 = vpop.permute.xlu0 %1147
        %1149 = vrot.lane.b32.xlu0 %v435, 89
        %v1150 = vpop.permute.xlu0 %1149
        %vm1151 = vcmask 728064
        %v1152 = vsel %vm1151, %v1124, %v1126
        %v1153 = vsel %vm1151, %v1126, %v1128
        %v1154 = vsel %vm1151, %v1128, %v1130
        %v1155 = vsel %vm1151, %v1130, %v1132
        %v1156 = vsel %vm1151, %v1132, %v1134
        %v1157 = vsel %vm1151, %v1134, %v1136
        %v1158 = vsel %vm1151, %v1136, %v1118
        %v1159 = vsel %vm1151, %v1138, %v1140
        %v1160 = vsel %vm1151, %v1140, %v1142
        %v1161 = vsel %vm1151, %v1142, %v1144
        %v1162 = vsel %vm1151, %v1144, %v1146
        %v1163 = vsel %vm1151, %v1146, %v1148
        %v1164 = vsel %vm1151, %v1148, %v1150
        %v1165 = vsel %vm1151, %v1150, %v1120
        %v1182 = vsel %vm1151, %v1118, %v1124
        %v1183 = vsel %vm1151, %v1120, %v1138
        %1184 = vst [vmem:[#allocation2 + $0x400] sm:$0xff] %v1182
        %1185 = vst [vmem:[#allocation2 + $0x408] sm:$0xff] %v1152
        %1186 = vst [vmem:[#allocation2 + $0x410] sm:$0xff] %v1153
        %1187 = vst [vmem:[#allocation2 + $0x418] sm:$0xff] %v1154
        %1188 = vst [vmem:[#allocation2 + $0x420] sm:$0xff] %v1155
        %1189 = vst [vmem:[#allocation2 + $0x428] sm:$0xff] %v1156
        %1190 = vst [vmem:[#allocation2 + $0x430] sm:$0xff] %v1157
        %1191 = vst [vmem:[#allocation2 + $0x438] sm:$0xff] %v1158
        %1192 = vst [vmem:[#allocation2 + $0x440] sm:$0xff] %v1183
        %1193 = vst [vmem:[#allocation2 + $0x448] sm:$0xff] %v1159
        %1194 = vst [vmem:[#allocation2 + $0x450] sm:$0xff] %v1160
        %1195 = vst [vmem:[#allocation2 + $0x458] sm:$0xff] %v1161
        %1196 = vst [vmem:[#allocation2 + $0x460] sm:$0xff] %v1162
        %1197 = vst [vmem:[#allocation2 + $0x468] sm:$0xff] %v1163
        %1198 = vst [vmem:[#allocation2 + $0x470] sm:$0xff] %v1164
        %1199 = vst [vmem:[#allocation2 + $0x478] sm:$0xff] %v1165
        %1200 = vrot.lane.b32.xlu0 %v428, 11
        %v1201 = vpop.permute.xlu0 %1200
        %1202 = vrot.lane.b32.xlu0 %v436, 11
        %v1203 = vpop.permute.xlu0 %1202
        %1206 = vrot.lane.b32.xlu0 %v421, 11
        %v1207 = vpop.permute.xlu0 %1206
        %1208 = vrot.lane.b32.xlu0 %v422, 11
        %v1209 = vpop.permute.xlu0 %1208
        %1210 = vrot.lane.b32.xlu0 %v423, 11
        %v1211 = vpop.permute.xlu0 %1210
        %1212 = vrot.lane.b32.xlu0 %v424, 11
        %v1213 = vpop.permute.xlu0 %1212
        %1214 = vrot.lane.b32.xlu0 %v425, 11
        %v1215 = vpop.permute.xlu0 %1214
        %1216 = vrot.lane.b32.xlu0 %v426, 11
        %v1217 = vpop.permute.xlu0 %1216
        %1218 = vrot.lane.b32.xlu0 %v427, 11
        %v1219 = vpop.permute.xlu0 %1218
        %1220 = vrot.lane.b32.xlu0 %v429, 11
        %v1221 = vpop.permute.xlu0 %1220
        %1222 = vrot.lane.b32.xlu0 %v430, 11
        %v1223 = vpop.permute.xlu0 %1222
        %1224 = vrot.lane.b32.xlu0 %v431, 11
        %v1225 = vpop.permute.xlu0 %1224
        %1226 = vrot.lane.b32.xlu0 %v432, 11
        %v1227 = vpop.permute.xlu0 %1226
        %1228 = vrot.lane.b32.xlu0 %v433, 11
        %v1229 = vpop.permute.xlu0 %1228
        %1230 = vrot.lane.b32.xlu0 %v434, 11
        %v1231 = vpop.permute.xlu0 %1230
        %1232 = vrot.lane.b32.xlu0 %v435, 11
        %v1233 = vpop.permute.xlu0 %1232
        %vm1234 = vcmask 89088
        %v1235 = vsel %vm1234, %v1207, %v1209
        %v1236 = vsel %vm1234, %v1209, %v1211
        %v1237 = vsel %vm1234, %v1211, %v1213
        %v1238 = vsel %vm1234, %v1213, %v1215
        %v1239 = vsel %vm1234, %v1215, %v1217
        %v1240 = vsel %vm1234, %v1217, %v1219
        %v1241 = vsel %vm1234, %v1219, %v1201
        %v1242 = vsel %vm1234, %v1221, %v1223
        %v1243 = vsel %vm1234, %v1223, %v1225
        %v1244 = vsel %vm1234, %v1225, %v1227
        %v1245 = vsel %vm1234, %v1227, %v1229
        %v1246 = vsel %vm1234, %v1229, %v1231
        %v1247 = vsel %vm1234, %v1231, %v1233
        %v1248 = vsel %vm1234, %v1233, %v1203
        %v1265 = vsel %vm1234, %v1201, %v1207
        %v1266 = vsel %vm1234, %v1203, %v1221
        %1267 = vst [vmem:[#allocation2 + $0x480] sm:$0xff] %v1265
        %1268 = vst [vmem:[#allocation2 + $0x488] sm:$0xff] %v1235
        %1269 = vst [vmem:[#allocation2 + $0x490] sm:$0xff] %v1236
        %1270 = vst [vmem:[#allocation2 + $0x498] sm:$0xff] %v1237
        %1271 = vst [vmem:[#allocation2 + $0x4a0] sm:$0xff] %v1238
        %1272 = vst [vmem:[#allocation2 + $0x4a8] sm:$0xff] %v1239
        %1273 = vst [vmem:[#allocation2 + $0x4b0] sm:$0xff] %v1240
        %1274 = vst [vmem:[#allocation2 + $0x4b8] sm:$0xff] %v1241
        %1275 = vst [vmem:[#allocation2 + $0x4c0] sm:$0xff] %v1266
        %1276 = vst [vmem:[#allocation2 + $0x4c8] sm:$0xff] %v1242
        %1277 = vst [vmem:[#allocation2 + $0x4d0] sm:$0xff] %v1243
        %1278 = vst [vmem:[#allocation2 + $0x4d8] sm:$0xff] %v1244
        %1279 = vst [vmem:[#allocation2 + $0x4e0] sm:$0xff] %v1245
        %1280 = vst [vmem:[#allocation2 + $0x4e8] sm:$0xff] %v1246
        %1281 = vst [vmem:[#allocation2 + $0x4f0] sm:$0xff] %v1247
        %1282 = vst [vmem:[#allocation2 + $0x4f8] sm:$0xff] %v1248
        %1283 = vrot.lane.b32.xlu0 %v428, 10
        %v1284 = vpop.permute.xlu0 %1283
        %1285 = vrot.lane.b32.xlu0 %v436, 10
        %v1286 = vpop.permute.xlu0 %1285
        %1289 = vrot.lane.b32.xlu0 %v421, 10
        %v1290 = vpop.permute.xlu0 %1289
        %1291 = vrot.lane.b32.xlu0 %v422, 10
        %v1292 = vpop.permute.xlu0 %1291
        %1293 = vrot.lane.b32.xlu0 %v423, 10
        %v1294 = vpop.permute.xlu0 %1293
        %1295 = vrot.lane.b32.xlu0 %v424, 10
        %v1296 = vpop.permute.xlu0 %1295
        %1297 = vrot.lane.b32.xlu0 %v425, 10
        %v1298 = vpop.permute.xlu0 %1297
        %1299 = vrot.lane.b32.xlu0 %v426, 10
        %v1300 = vpop.permute.xlu0 %1299
        %1301 = vrot.lane.b32.xlu0 %v427, 10
        %v1302 = vpop.permute.xlu0 %1301
        %1303 = vrot.lane.b32.xlu0 %v429, 10
        %v1304 = vpop.permute.xlu0 %1303
        %1305 = vrot.lane.b32.xlu0 %v430, 10
        %v1306 = vpop.permute.xlu0 %1305
        %1307 = vrot.lane.b32.xlu0 %v431, 10
        %v1308 = vpop.permute.xlu0 %1307
        %1309 = vrot.lane.b32.xlu0 %v432, 10
        %v1310 = vpop.permute.xlu0 %1309
        %1311 = vrot.lane.b32.xlu0 %v433, 10
        %v1312 = vpop.permute.xlu0 %1311
        %1313 = vrot.lane.b32.xlu0 %v434, 10
        %v1314 = vpop.permute.xlu0 %1313
        %1315 = vrot.lane.b32.xlu0 %v435, 10
        %v1316 = vpop.permute.xlu0 %1315
        %vm1317 = vcmask 80896
        %v1318 = vsel %vm1317, %v1290, %v1292
        %v1319 = vsel %vm1317, %v1292, %v1294
        %v1320 = vsel %vm1317, %v1294, %v1296
        %v1321 = vsel %vm1317, %v1296, %v1298
        %v1322 = vsel %vm1317, %v1298, %v1300
        %v1323 = vsel %vm1317, %v1300, %v1302
        %v1324 = vsel %vm1317, %v1302, %v1284
        %v1325 = vsel %vm1317, %v1304, %v1306
        %v1326 = vsel %vm1317, %v1306, %v1308
        %v1327 = vsel %vm1317, %v1308, %v1310
        %v1328 = vsel %vm1317, %v1310, %v1312
        %v1329 = vsel %vm1317, %v1312, %v1314
        %v1330 = vsel %vm1317, %v1314, %v1316
        %v1331 = vsel %vm1317, %v1316, %v1286
        %v1348 = vsel %vm1317, %v1284, %v1290
        %v1349 = vsel %vm1317, %v1286, %v1304
        %1350 = vst [vmem:[#allocation2 + $0x500] sm:$0xff] %v1348
        %1351 = vst [vmem:[#allocation2 + $0x508] sm:$0xff] %v1318
        %1352 = vst [vmem:[#allocation2 + $0x510] sm:$0xff] %v1319
        %1353 = vst [vmem:[#allocation2 + $0x518] sm:$0xff] %v1320
        %1354 = vst [vmem:[#allocation2 + $0x520] sm:$0xff] %v1321
        %1355 = vst [vmem:[#allocation2 + $0x528] sm:$0xff] %v1322
        %1356 = vst [vmem:[#allocation2 + $0x530] sm:$0xff] %v1323
        %1357 = vst [vmem:[#allocation2 + $0x538] sm:$0xff] %v1324
        %1358 = vst [vmem:[#allocation2 + $0x540] sm:$0xff] %v1349
        %1359 = vst [vmem:[#allocation2 + $0x548] sm:$0xff] %v1325
        %1360 = vst [vmem:[#allocation2 + $0x550] sm:$0xff] %v1326
        %1361 = vst [vmem:[#allocation2 + $0x558] sm:$0xff] %v1327
        %1362 = vst [vmem:[#allocation2 + $0x560] sm:$0xff] %v1328
        %1363 = vst [vmem:[#allocation2 + $0x568] sm:$0xff] %v1329
        %1364 = vst [vmem:[#allocation2 + $0x570] sm:$0xff] %v1330
        %1365 = vst [vmem:[#allocation2 + $0x578] sm:$0xff] %v1331
        %1366 = vrot.lane.b32.xlu0 %v428, 9
        %v1367 = vpop.permute.xlu0 %1366
        %1368 = vrot.lane.b32.xlu0 %v436, 9
        %v1369 = vpop.permute.xlu0 %1368
        %1372 = vrot.lane.b32.xlu0 %v421, 9
        %v1373 = vpop.permute.xlu0 %1372
        %1374 = vrot.lane.b32.xlu0 %v422, 9
        %v1375 = vpop.permute.xlu0 %1374
        %1376 = vrot.lane.b32.xlu0 %v423, 9
        %v1377 = vpop.permute.xlu0 %1376
        %1378 = vrot.lane.b32.xlu0 %v424, 9
        %v1379 = vpop.permute.xlu0 %1378
        %1380 = vrot.lane.b32.xlu0 %v425, 9
        %v1381 = vpop.permute.xlu0 %1380
        %1382 = vrot.lane.b32.xlu0 %v426, 9
        %v1383 = vpop.permute.xlu0 %1382
        %1384 = vrot.lane.b32.xlu0 %v427, 9
        %v1385 = vpop.permute.xlu0 %1384
        %1386 = vrot.lane.b32.xlu0 %v429, 9
        %v1387 = vpop.permute.xlu0 %1386
        %1388 = vrot.lane.b32.xlu0 %v430, 9
        %v1389 = vpop.permute.xlu0 %1388
        %1390 = vrot.lane.b32.xlu0 %v431, 9
        %v1391 = vpop.permute.xlu0 %1390
        %1392 = vrot.lane.b32.xlu0 %v432, 9
        %v1393 = vpop.permute.xlu0 %1392
        %1394 = vrot.lane.b32.xlu0 %v433, 9
        %v1395 = vpop.permute.xlu0 %1394
        %1396 = vrot.lane.b32.xlu0 %v434, 9
        %v1397 = vpop.permute.xlu0 %1396
        %1398 = vrot.lane.b32.xlu0 %v435, 9
        %v1399 = vpop.permute.xlu0 %1398
        %vm1400 = vcmask 72704
        %v1401 = vsel %vm1400, %v1373, %v1375
        %v1402 = vsel %vm1400, %v1375, %v1377
        %v1403 = vsel %vm1400, %v1377, %v1379
        %v1404 = vsel %vm1400, %v1379, %v1381
        %v1405 = vsel %vm1400, %v1381, %v1383
        %v1406 = vsel %vm1400, %v1383, %v1385
        %v1407 = vsel %vm1400, %v1385, %v1367
        %v1408 = vsel %vm1400, %v1387, %v1389
        %v1409 = vsel %vm1400, %v1389, %v1391
        %v1410 = vsel %vm1400, %v1391, %v1393
        %v1411 = vsel %vm1400, %v1393, %v1395
        %v1412 = vsel %vm1400, %v1395, %v1397
        %v1413 = vsel %vm1400, %v1397, %v1399
        %v1414 = vsel %vm1400, %v1399, %v1369
        %v1431 = vsel %vm1400, %v1367, %v1373
        %v1432 = vsel %vm1400, %v1369, %v1387
        %1433 = vst [vmem:[#allocation2 + $0x580] sm:$0xff] %v1431
        %1434 = vst [vmem:[#allocation2 + $0x588] sm:$0xff] %v1401
        %1435 = vst [vmem:[#allocation2 + $0x590] sm:$0xff] %v1402
        %1436 = vst [vmem:[#allocation2 + $0x598] sm:$0xff] %v1403
        %1437 = vst [vmem:[#allocation2 + $0x5a0] sm:$0xff] %v1404
        %1438 = vst [vmem:[#allocation2 + $0x5a8] sm:$0xff] %v1405
        %1439 = vst [vmem:[#allocation2 + $0x5b0] sm:$0xff] %v1406
        %1440 = vst [vmem:[#allocation2 + $0x5b8] sm:$0xff] %v1407
        %1441 = vst [vmem:[#allocation2 + $0x5c0] sm:$0xff] %v1432
        %1442 = vst [vmem:[#allocation2 + $0x5c8] sm:$0xff] %v1408
        %1443 = vst [vmem:[#allocation2 + $0x5d0] sm:$0xff] %v1409
        %1444 = vst [vmem:[#allocation2 + $0x5d8] sm:$0xff] %v1410
        %1445 = vst [vmem:[#allocation2 + $0x5e0] sm:$0xff] %v1411
        %1446 = vst [vmem:[#allocation2 + $0x5e8] sm:$0xff] %v1412
        %1447 = vst [vmem:[#allocation2 + $0x5f0] sm:$0xff] %v1413
        %1448 = vst [vmem:[#allocation2 + $0x5f8] sm:$0xff] %v1414
        %1449 = vrot.lane.b32.xlu0 %v428, 1
        %v1450 = vpop.permute.xlu0 %1449
        %1451 = vrot.lane.b32.xlu0 %v436, 1
        %v1452 = vpop.permute.xlu0 %1451
        %1455 = vrot.lane.b32.xlu0 %v421, 1
        %v1456 = vpop.permute.xlu0 %1455
        %1457 = vrot.lane.b32.xlu0 %v422, 1
        %v1458 = vpop.permute.xlu0 %1457
        %1459 = vrot.lane.b32.xlu0 %v423, 1
        %v1460 = vpop.permute.xlu0 %1459
        %1461 = vrot.lane.b32.xlu0 %v424, 1
        %v1462 = vpop.permute.xlu0 %1461
        %1463 = vrot.lane.b32.xlu0 %v425, 1
        %v1464 = vpop.permute.xlu0 %1463
        %1465 = vrot.lane.b32.xlu0 %v426, 1
        %v1466 = vpop.permute.xlu0 %1465
        %1467 = vrot.lane.b32.xlu0 %v427, 1
        %v1468 = vpop.permute.xlu0 %1467
        %1469 = vrot.lane.b32.xlu0 %v429, 1
        %v1470 = vpop.permute.xlu0 %1469
        %1471 = vrot.lane.b32.xlu0 %v430, 1
        %v1472 = vpop.permute.xlu0 %1471
        %1473 = vrot.lane.b32.xlu0 %v431, 1
        %v1474 = vpop.permute.xlu0 %1473
        %1475 = vrot.lane.b32.xlu0 %v432, 1
        %v1476 = vpop.permute.xlu0 %1475
        %1477 = vrot.lane.b32.xlu0 %v433, 1
        %v1478 = vpop.permute.xlu0 %1477
        %1479 = vrot.lane.b32.xlu0 %v434, 1
        %v1480 = vpop.permute.xlu0 %1479
        %1481 = vrot.lane.b32.xlu0 %v435, 1
        %v1482 = vpop.permute.xlu0 %1481
        %vm1483 = vcmask 7168
        %v1484 = vsel %vm1483, %v1456, %v1458
        %v1485 = vsel %vm1483, %v1458, %v1460
        %v1486 = vsel %vm1483, %v1460, %v1462
        %v1487 = vsel %vm1483, %v1462, %v1464
        %v1488 = vsel %vm1483, %v1464, %v1466
        %v1489 = vsel %vm1483, %v1466, %v1468
        %v1490 = vsel %vm1483, %v1468, %v1450
        %v1491 = vsel %vm1483, %v1470, %v1472
        %v1492 = vsel %vm1483, %v1472, %v1474
        %v1493 = vsel %vm1483, %v1474, %v1476
        %v1494 = vsel %vm1483, %v1476, %v1478
        %v1495 = vsel %vm1483, %v1478, %v1480
        %v1496 = vsel %vm1483, %v1480, %v1482
        %v1497 = vsel %vm1483, %v1482, %v1452
        %v1514 = vsel %vm1483, %v1450, %v1456
        %v1515 = vsel %vm1483, %v1452, %v1470
        %1516 = vst [vmem:[#allocation2 + $0x600] sm:$0xff] %v1514
        %1517 = vst [vmem:[#allocation2 + $0x608] sm:$0xff] %v1484
        %1518 = vst [vmem:[#allocation2 + $0x610] sm:$0xff] %v1485
        %1519 = vst [vmem:[#allocation2 + $0x618] sm:$0xff] %v1486
        %1520 = vst [vmem:[#allocation2 + $0x620] sm:$0xff] %v1487
        %1521 = vst [vmem:[#allocation2 + $0x628] sm:$0xff] %v1488
        %1522 = vst [vmem:[#allocation2 + $0x630] sm:$0xff] %v1489
        %1523 = vst [vmem:[#allocation2 + $0x638] sm:$0xff] %v1490
        %1524 = vst [vmem:[#allocation2 + $0x640] sm:$0xff] %v1515
        %1525 = vst [vmem:[#allocation2 + $0x648] sm:$0xff] %v1491
        %1526 = vst [vmem:[#allocation2 + $0x650] sm:$0xff] %v1492
        %1527 = vst [vmem:[#allocation2 + $0x658] sm:$0xff] %v1493
        %1528 = vst [vmem:[#allocation2 + $0x660] sm:$0xff] %v1494
        %1529 = vst [vmem:[#allocation2 + $0x668] sm:$0xff] %v1495
        %1530 = vst [vmem:[#allocation2 + $0x670] sm:$0xff] %v1496
        %1531 = vst [vmem:[#allocation2 + $0x678] sm:$0xff] %v1497
        %1532 = vst [vmem:[#allocation2 + $0x680] sm:$0xff] %v421
        %1533 = vst [vmem:[#allocation2 + $0x688] sm:$0xff] %v422
        %1534 = vst [vmem:[#allocation2 + $0x690] sm:$0xff] %v423
        %1535 = vst [vmem:[#allocation2 + $0x698] sm:$0xff] %v424
        %1536 = vst [vmem:[#allocation2 + $0x6a0] sm:$0xff] %v425
        %1537 = vst [vmem:[#allocation2 + $0x6a8] sm:$0xff] %v426
        %1538 = vst [vmem:[#allocation2 + $0x6b0] sm:$0xff] %v427
        %1539 = vst [vmem:[#allocation2 + $0x6b8] sm:$0xff] %v428
        %1540 = vst [vmem:[#allocation2 + $0x6c0] sm:$0xff] %v429
        %1541 = vst [vmem:[#allocation2 + $0x6c8] sm:$0xff] %v430
        %1542 = vst [vmem:[#allocation2 + $0x6d0] sm:$0xff] %v431
        %1543 = vst [vmem:[#allocation2 + $0x6d8] sm:$0xff] %v432
        %1544 = vst [vmem:[#allocation2 + $0x6e0] sm:$0xff] %v433
        %1545 = vst [vmem:[#allocation2 + $0x6e8] sm:$0xff] %v434
        %1546 = vst [vmem:[#allocation2 + $0x6f0] sm:$0xff] %v435
        %1547 = vst [vmem:[#allocation2 + $0x6f8] sm:$0xff] %v436
        %1548 = vrot.lane.b32.xlu0 %v421, 127
        %v1549 = vpop.permute.xlu0 %1548
        %1550 = vrot.lane.b32.xlu0 %v422, 127
        %v1551 = vpop.permute.xlu0 %1550
        %1552 = vrot.lane.b32.xlu0 %v423, 127
        %v1553 = vpop.permute.xlu0 %1552
        %1554 = vrot.lane.b32.xlu0 %v424, 127
        %v1555 = vpop.permute.xlu0 %1554
        %1556 = vrot.lane.b32.xlu0 %v425, 127
        %v1557 = vpop.permute.xlu0 %1556
        %1558 = vrot.lane.b32.xlu0 %v426, 127
        %v1559 = vpop.permute.xlu0 %1558
        %1560 = vrot.lane.b32.xlu0 %v427, 127
        %v1561 = vpop.permute.xlu0 %1560
        %1562 = vrot.lane.b32.xlu0 %v428, 127
        %v1563 = vpop.permute.xlu0 %1562
        %1564 = vrot.lane.b32.xlu0 %v429, 127
        %v1565 = vpop.permute.xlu0 %1564
        %1566 = vrot.lane.b32.xlu0 %v430, 127
        %v1567 = vpop.permute.xlu0 %1566
        %1568 = vrot.lane.b32.xlu0 %v431, 127
        %v1569 = vpop.permute.xlu0 %1568
        %1570 = vrot.lane.b32.xlu0 %v432, 127
        %v1571 = vpop.permute.xlu0 %1570
        %1572 = vrot.lane.b32.xlu0 %v433, 127
        %v1573 = vpop.permute.xlu0 %1572
        %1574 = vrot.lane.b32.xlu0 %v434, 127
        %v1575 = vpop.permute.xlu0 %1574
        %1576 = vrot.lane.b32.xlu0 %v435, 127
        %v1577 = vpop.permute.xlu0 %1576
        %1578 = vrot.lane.b32.xlu0 %v436, 127
        %v1579 = vpop.permute.xlu0 %1578
        %vm1580 = vcmask 1039360
        %v1581 = vsel %vm1580, %v1549, %v1551
        %v1582 = vsel %vm1580, %v1551, %v1553
        %v1583 = vsel %vm1580, %v1553, %v1555
        %v1584 = vsel %vm1580, %v1555, %v1557
        %v1585 = vsel %vm1580, %v1557, %v1559
        %v1586 = vsel %vm1580, %v1559, %v1561
        %v1587 = vsel %vm1580, %v1561, %v1563
        %v1588 = vsel %vm1580, %v1565, %v1567
        %v1589 = vsel %vm1580, %v1567, %v1569
        %v1590 = vsel %vm1580, %v1569, %v1571
        %v1591 = vsel %vm1580, %v1571, %v1573
        %v1592 = vsel %vm1580, %v1573, %v1575
        %v1593 = vsel %vm1580, %v1575, %v1577
        %v1594 = vsel %vm1580, %v1577, %v1579
        %v1613 = vsel %vm1580, %v1563, %v1549
        %v1614 = vsel %vm1580, %v1579, %v1565
        %1615 = vst [vmem:[#allocation2 + $0x700] sm:$0xff] %v1581
        %1616 = vst [vmem:[#allocation2 + $0x708] sm:$0xff] %v1582
        %1617 = vst [vmem:[#allocation2 + $0x710] sm:$0xff] %v1583
        %1618 = vst [vmem:[#allocation2 + $0x718] sm:$0xff] %v1584
        %1619 = vst [vmem:[#allocation2 + $0x720] sm:$0xff] %v1585
        %1620 = vst [vmem:[#allocation2 + $0x728] sm:$0xff] %v1586
        %1621 = vst [vmem:[#allocation2 + $0x730] sm:$0xff] %v1587
        %1622 = vst [vmem:[#allocation2 + $0x738] sm:$0xff] %v1613
        %1623 = vst [vmem:[#allocation2 + $0x740] sm:$0xff] %v1588
        %1624 = vst [vmem:[#allocation2 + $0x748] sm:$0xff] %v1589
        %1625 = vst [vmem:[#allocation2 + $0x750] sm:$0xff] %v1590
        %1626 = vst [vmem:[#allocation2 + $0x758] sm:$0xff] %v1591
        %1627 = vst [vmem:[#allocation2 + $0x760] sm:$0xff] %v1592
        %1628 = vst [vmem:[#allocation2 + $0x768] sm:$0xff] %v1593
        %1629 = vst [vmem:[#allocation2 + $0x770] sm:$0xff] %v1594
        %1630 = vst [vmem:[#allocation2 + $0x778] sm:$0xff] %v1614
        %1631 = vrot.lane.b32.xlu0 %v421, 119
        %v1632 = vpop.permute.xlu0 %1631
        %1633 = vrot.lane.b32.xlu0 %v422, 119
        %v1634 = vpop.permute.xlu0 %1633
        %1635 = vrot.lane.b32.xlu0 %v423, 119
        %v1636 = vpop.permute.xlu0 %1635
        %1637 = vrot.lane.b32.xlu0 %v424, 119
        %v1638 = vpop.permute.xlu0 %1637
        %1639 = vrot.lane.b32.xlu0 %v425, 119
        %v1640 = vpop.permute.xlu0 %1639
        %1641 = vrot.lane.b32.xlu0 %v426, 119
        %v1642 = vpop.permute.xlu0 %1641
        %1643 = vrot.lane.b32.xlu0 %v427, 119
        %v1644 = vpop.permute.xlu0 %1643
        %1645 = vrot.lane.b32.xlu0 %v428, 119
        %v1646 = vpop.permute.xlu0 %1645
        %1647 = vrot.lane.b32.xlu0 %v429, 119
        %v1648 = vpop.permute.xlu0 %1647
        %1649 = vrot.lane.b32.xlu0 %v430, 119
        %v1650 = vpop.permute.xlu0 %1649
        %1651 = vrot.lane.b32.xlu0 %v431, 119
        %v1652 = vpop.permute.xlu0 %1651
        %1653 = vrot.lane.b32.xlu0 %v432, 119
        %v1654 = vpop.permute.xlu0 %1653
        %1655 = vrot.lane.b32.xlu0 %v433, 119
        %v1656 = vpop.permute.xlu0 %1655
        %1657 = vrot.lane.b32.xlu0 %v434, 119
        %v1658 = vpop.permute.xlu0 %1657
        %1659 = vrot.lane.b32.xlu0 %v435, 119
        %v1660 = vpop.permute.xlu0 %1659
        %1661 = vrot.lane.b32.xlu0 %v436, 119
        %v1662 = vpop.permute.xlu0 %1661
        %vm1663 = vcmask 973824
        %v1664 = vsel %vm1663, %v1632, %v1634
        %v1665 = vsel %vm1663, %v1634, %v1636
        %v1666 = vsel %vm1663, %v1636, %v1638
        %v1667 = vsel %vm1663, %v1638, %v1640
        %v1668 = vsel %vm1663, %v1640, %v1642
        %v1669 = vsel %vm1663, %v1642, %v1644
        %v1670 = vsel %vm1663, %v1644, %v1646
        %v1671 = vsel %vm1663, %v1648, %v1650
        %v1672 = vsel %vm1663, %v1650, %v1652
        %v1673 = vsel %vm1663, %v1652, %v1654
        %v1674 = vsel %vm1663, %v1654, %v1656
        %v1675 = vsel %vm1663, %v1656, %v1658
        %v1676 = vsel %vm1663, %v1658, %v1660
        %v1677 = vsel %vm1663, %v1660, %v1662
        %v1696 = vsel %vm1663, %v1646, %v1632
        %v1697 = vsel %vm1663, %v1662, %v1648
        %1698 = vst [vmem:[#allocation2 + $0x780] sm:$0xff] %v1664
        %1699 = vst [vmem:[#allocation2 + $0x788] sm:$0xff] %v1665
        %1700 = vst [vmem:[#allocation2 + $0x790] sm:$0xff] %v1666
        %1701 = vst [vmem:[#allocation2 + $0x798] sm:$0xff] %v1667
        %1702 = vst [vmem:[#allocation2 + $0x7a0] sm:$0xff] %v1668
        %1703 = vst [vmem:[#allocation2 + $0x7a8] sm:$0xff] %v1669
        %1704 = vst [vmem:[#allocation2 + $0x7b0] sm:$0xff] %v1670
        %1705 = vst [vmem:[#allocation2 + $0x7b8] sm:$0xff] %v1696
        %1706 = vst [vmem:[#allocation2 + $0x7c0] sm:$0xff] %v1671
        %1707 = vst [vmem:[#allocation2 + $0x7c8] sm:$0xff] %v1672
        %1708 = vst [vmem:[#allocation2 + $0x7d0] sm:$0xff] %v1673
        %1709 = vst [vmem:[#allocation2 + $0x7d8] sm:$0xff] %v1674
        %1710 = vst [vmem:[#allocation2 + $0x7e0] sm:$0xff] %v1675
        %1711 = vst [vmem:[#allocation2 + $0x7e8] sm:$0xff] %v1676
        %1712 = vst [vmem:[#allocation2 + $0x7f0] sm:$0xff] %v1677
        %1713 = vst [vmem:[#allocation2 + $0x7f8] sm:$0xff] %v1697
        %1714 = vrot.lane.b32.xlu0 %v421, 118
        %v1715 = vpop.permute.xlu0 %1714
        %1716 = vrot.lane.b32.xlu0 %v422, 118
        %v1717 = vpop.permute.xlu0 %1716
        %1718 = vrot.lane.b32.xlu0 %v423, 118
        %v1719 = vpop.permute.xlu0 %1718
        %1720 = vrot.lane.b32.xlu0 %v424, 118
        %v1721 = vpop.permute.xlu0 %1720
        %1722 = vrot.lane.b32.xlu0 %v425, 118
        %v1723 = vpop.permute.xlu0 %1722
        %1724 = vrot.lane.b32.xlu0 %v426, 118
        %v1725 = vpop.permute.xlu0 %1724
        %1726 = vrot.lane.b32.xlu0 %v427, 118
        %v1727 = vpop.permute.xlu0 %1726
        %1728 = vrot.lane.b32.xlu0 %v428, 118
        %v1729 = vpop.permute.xlu0 %1728
        %1730 = vrot.lane.b32.xlu0 %v429, 118
        %v1731 = vpop.permute.xlu0 %1730
        %1732 = vrot.lane.b32.xlu0 %v430, 118
        %v1733 = vpop.permute.xlu0 %1732
        %1734 = vrot.lane.b32.xlu0 %v431, 118
        %v1735 = vpop.permute.xlu0 %1734
        %1736 = vrot.lane.b32.xlu0 %v432, 118
        %v1737 = vpop.permute.xlu0 %1736
        %1738 = vrot.lane.b32.xlu0 %v433, 118
        %v1739 = vpop.permute.xlu0 %1738
        %1740 = vrot.lane.b32.xlu0 %v434, 118
        %v1741 = vpop.permute.xlu0 %1740
        %1742 = vrot.lane.b32.xlu0 %v435, 118
        %v1743 = vpop.permute.xlu0 %1742
        %1744 = vrot.lane.b32.xlu0 %v436, 118
        %v1745 = vpop.permute.xlu0 %1744
        %vm1746 = vcmask 965632
        %v1747 = vsel %vm1746, %v1715, %v1717
        %v1748 = vsel %vm1746, %v1717, %v1719
        %v1749 = vsel %vm1746, %v1719, %v1721
        %v1750 = vsel %vm1746, %v1721, %v1723
        %v1751 = vsel %vm1746, %v1723, %v1725
        %v1752 = vsel %vm1746, %v1725, %v1727
        %v1753 = vsel %vm1746, %v1727, %v1729
        %v1754 = vsel %vm1746, %v1731, %v1733
        %v1755 = vsel %vm1746, %v1733, %v1735
        %v1756 = vsel %vm1746, %v1735, %v1737
        %v1757 = vsel %vm1746, %v1737, %v1739
        %v1758 = vsel %vm1746, %v1739, %v1741
        %v1759 = vsel %vm1746, %v1741, %v1743
        %v1760 = vsel %vm1746, %v1743, %v1745
        %v1779 = vsel %vm1746, %v1729, %v1715
        %v1780 = vsel %vm1746, %v1745, %v1731
        %1781 = vst [vmem:[#allocation2 + $0x800] sm:$0xff] %v1747
        %1782 = vst [vmem:[#allocation2 + $0x808] sm:$0xff] %v1748
        %1783 = vst [vmem:[#allocation2 + $0x810] sm:$0xff] %v1749
        %1784 = vst [vmem:[#allocation2 + $0x818] sm:$0xff] %v1750
        %1785 = vst [vmem:[#allocation2 + $0x820] sm:$0xff] %v1751
        %1786 = vst [vmem:[#allocation2 + $0x828] sm:$0xff] %v1752
        %1787 = vst [vmem:[#allocation2 + $0x830] sm:$0xff] %v1753
        %1788 = vst [vmem:[#allocation2 + $0x838] sm:$0xff] %v1779
        %1789 = vst [vmem:[#allocation2 + $0x840] sm:$0xff] %v1754
        %1790 = vst [vmem:[#allocation2 + $0x848] sm:$0xff] %v1755
        %1791 = vst [vmem:[#allocation2 + $0x850] sm:$0xff] %v1756
        %1792 = vst [vmem:[#allocation2 + $0x858] sm:$0xff] %v1757
        %1793 = vst [vmem:[#allocation2 + $0x860] sm:$0xff] %v1758
        %1794 = vst [vmem:[#allocation2 + $0x868] sm:$0xff] %v1759
        %1795 = vst [vmem:[#allocation2 + $0x870] sm:$0xff] %v1760
        %1796 = vst [vmem:[#allocation2 + $0x878] sm:$0xff] %v1780
        %1797 = vrot.lane.b32.xlu0 %v421, 117
        %v1798 = vpop.permute.xlu0 %1797
        %1799 = vrot.lane.b32.xlu0 %v422, 117
        %v1800 = vpop.permute.xlu0 %1799
        %1801 = vrot.lane.b32.xlu0 %v423, 117
        %v1802 = vpop.permute.xlu0 %1801
        %1803 = vrot.lane.b32.xlu0 %v424, 117
        %v1804 = vpop.permute.xlu0 %1803
        %1805 = vrot.lane.b32.xlu0 %v425, 117
        %v1806 = vpop.permute.xlu0 %1805
        %1807 = vrot.lane.b32.xlu0 %v426, 117
        %v1808 = vpop.permute.xlu0 %1807
        %1809 = vrot.lane.b32.xlu0 %v427, 117
        %v1810 = vpop.permute.xlu0 %1809
        %1811 = vrot.lane.b32.xlu0 %v428, 117
        %v1812 = vpop.permute.xlu0 %1811
        %1813 = vrot.lane.b32.xlu0 %v429, 117
        %v1814 = vpop.permute.xlu0 %1813
        %1815 = vrot.lane.b32.xlu0 %v430, 117
        %v1816 = vpop.permute.xlu0 %1815
        %1817 = vrot.lane.b32.xlu0 %v431, 117
        %v1818 = vpop.permute.xlu0 %1817
        %1819 = vrot.lane.b32.xlu0 %v432, 117
        %v1820 = vpop.permute.xlu0 %1819
        %1821 = vrot.lane.b32.xlu0 %v433, 117
        %v1822 = vpop.permute.xlu0 %1821
        %1823 = vrot.lane.b32.xlu0 %v434, 117
        %v1824 = vpop.permute.xlu0 %1823
        %1825 = vrot.lane.b32.xlu0 %v435, 117
        %v1826 = vpop.permute.xlu0 %1825
        %1827 = vrot.lane.b32.xlu0 %v436, 117
        %v1828 = vpop.permute.xlu0 %1827
        %vm1829 = vcmask 957440
        %v1830 = vsel %vm1829, %v1798, %v1800
        %v1831 = vsel %vm1829, %v1800, %v1802
        %v1832 = vsel %vm1829, %v1802, %v1804
        %v1833 = vsel %vm1829, %v1804, %v1806
        %v1834 = vsel %vm1829, %v1806, %v1808
        %v1835 = vsel %vm1829, %v1808, %v1810
        %v1836 = vsel %vm1829, %v1810, %v1812
        %v1837 = vsel %vm1829, %v1814, %v1816
        %v1838 = vsel %vm1829, %v1816, %v1818
        %v1839 = vsel %vm1829, %v1818, %v1820
        %v1840 = vsel %vm1829, %v1820, %v1822
        %v1841 = vsel %vm1829, %v1822, %v1824
        %v1842 = vsel %vm1829, %v1824, %v1826
        %v1843 = vsel %vm1829, %v1826, %v1828
        %v1862 = vsel %vm1829, %v1812, %v1798
        %v1863 = vsel %vm1829, %v1828, %v1814
        %1864 = vst [vmem:[#allocation2 + $0x880] sm:$0xff] %v1830
        %1865 = vst [vmem:[#allocation2 + $0x888] sm:$0xff] %v1831
        %1866 = vst [vmem:[#allocation2 + $0x890] sm:$0xff] %v1832
        %1867 = vst [vmem:[#allocation2 + $0x898] sm:$0xff] %v1833
        %1868 = vst [vmem:[#allocation2 + $0x8a0] sm:$0xff] %v1834
        %1869 = vst [vmem:[#allocation2 + $0x8a8] sm:$0xff] %v1835
        %1870 = vst [vmem:[#allocation2 + $0x8b0] sm:$0xff] %v1836
        %1871 = vst [vmem:[#allocation2 + $0x8b8] sm:$0xff] %v1862
        %1872 = vst [vmem:[#allocation2 + $0x8c0] sm:$0xff] %v1837
        %1873 = vst [vmem:[#allocation2 + $0x8c8] sm:$0xff] %v1838
        %1874 = vst [vmem:[#allocation2 + $0x8d0] sm:$0xff] %v1839
        %1875 = vst [vmem:[#allocation2 + $0x8d8] sm:$0xff] %v1840
        %1876 = vst [vmem:[#allocation2 + $0x8e0] sm:$0xff] %v1841
        %1877 = vst [vmem:[#allocation2 + $0x8e8] sm:$0xff] %v1842
        %1878 = vst [vmem:[#allocation2 + $0x8f0] sm:$0xff] %v1843
        %1879 = vst [vmem:[#allocation2 + $0x8f8] sm:$0xff] %v1863
        %1880 = vrot.lane.b32.xlu0 %v421, 39
        %v1881 = vpop.permute.xlu0 %1880
        %1882 = vrot.lane.b32.xlu0 %v422, 39
        %v1883 = vpop.permute.xlu0 %1882
        %1884 = vrot.lane.b32.xlu0 %v423, 39
        %v1885 = vpop.permute.xlu0 %1884
        %1886 = vrot.lane.b32.xlu0 %v424, 39
        %v1887 = vpop.permute.xlu0 %1886
        %1888 = vrot.lane.b32.xlu0 %v425, 39
        %v1889 = vpop.permute.xlu0 %1888
        %1890 = vrot.lane.b32.xlu0 %v426, 39
        %v1891 = vpop.permute.xlu0 %1890
        %1892 = vrot.lane.b32.xlu0 %v427, 39
        %v1893 = vpop.permute.xlu0 %1892
        %1894 = vrot.lane.b32.xlu0 %v428, 39
        %v1895 = vpop.permute.xlu0 %1894
        %1896 = vrot.lane.b32.xlu0 %v429, 39
        %v1897 = vpop.permute.xlu0 %1896
        %1898 = vrot.lane.b32.xlu0 %v430, 39
        %v1899 = vpop.permute.xlu0 %1898
        %1900 = vrot.lane.b32.xlu0 %v431, 39
        %v1901 = vpop.permute.xlu0 %1900
        %1902 = vrot.lane.b32.xlu0 %v432, 39
        %v1903 = vpop.permute.xlu0 %1902
        %1904 = vrot.lane.b32.xlu0 %v433, 39
        %v1905 = vpop.permute.xlu0 %1904
        %1906 = vrot.lane.b32.xlu0 %v434, 39
        %v1907 = vpop.permute.xlu0 %1906
        %1908 = vrot.lane.b32.xlu0 %v435, 39
        %v1909 = vpop.permute.xlu0 %1908
        %1910 = vrot.lane.b32.xlu0 %v436, 39
        %v1911 = vpop.permute.xlu0 %1910
        %vm1912 = vcmask 318464
        %v1913 = vsel %vm1912, %v1881, %v1883
        %v1914 = vsel %vm1912, %v1883, %v1885
        %v1915 = vsel %vm1912, %v1885, %v1887
        %v1916 = vsel %vm1912, %v1887, %v1889
        %v1917 = vsel %vm1912, %v1889, %v1891
        %v1918 = vsel %vm1912, %v1891, %v1893
        %v1919 = vsel %vm1912, %v1893, %v1895
        %v1920 = vsel %vm1912, %v1897, %v1899
        %v1921 = vsel %vm1912, %v1899, %v1901
        %v1922 = vsel %vm1912, %v1901, %v1903
        %v1923 = vsel %vm1912, %v1903, %v1905
        %v1924 = vsel %vm1912, %v1905, %v1907
        %v1925 = vsel %vm1912, %v1907, %v1909
        %v1926 = vsel %vm1912, %v1909, %v1911
        %v1945 = vsel %vm1912, %v1895, %v1881
        %v1946 = vsel %vm1912, %v1911, %v1897
        %1947 = vst [vmem:[#allocation2 + $0x900] sm:$0xff] %v1913
        %1948 = vst [vmem:[#allocation2 + $0x908] sm:$0xff] %v1914
        %1949 = vst [vmem:[#allocation2 + $0x910] sm:$0xff] %v1915
        %1950 = vst [vmem:[#allocation2 + $0x918] sm:$0xff] %v1916
        %1951 = vst [vmem:[#allocation2 + $0x920] sm:$0xff] %v1917
        %1952 = vst [vmem:[#allocation2 + $0x928] sm:$0xff] %v1918
        %1953 = vst [vmem:[#allocation2 + $0x930] sm:$0xff] %v1919
        %1954 = vst [vmem:[#allocation2 + $0x938] sm:$0xff] %v1945
        %1955 = vst [vmem:[#allocation2 + $0x940] sm:$0xff] %v1920
        %1956 = vst [vmem:[#allocation2 + $0x948] sm:$0xff] %v1921
        %1957 = vst [vmem:[#allocation2 + $0x950] sm:$0xff] %v1922
        %1958 = vst [vmem:[#allocation2 + $0x958] sm:$0xff] %v1923
        %1959 = vst [vmem:[#allocation2 + $0x960] sm:$0xff] %v1924
        %1960 = vst [vmem:[#allocation2 + $0x968] sm:$0xff] %v1925
        %1961 = vst [vmem:[#allocation2 + $0x970] sm:$0xff] %v1926
        %1962 = vst [vmem:[#allocation2 + $0x978] sm:$0xff] %v1946
        %1963 = vrot.lane.b32.xlu0 %v421, 38
        %v1964 = vpop.permute.xlu0 %1963
        %1965 = vrot.lane.b32.xlu0 %v422, 38
        %v1966 = vpop.permute.xlu0 %1965
        %1967 = vrot.lane.b32.xlu0 %v423, 38
        %v1968 = vpop.permute.xlu0 %1967
        %1969 = vrot.lane.b32.xlu0 %v424, 38
        %v1970 = vpop.permute.xlu0 %1969
        %1971 = vrot.lane.b32.xlu0 %v425, 38
        %v1972 = vpop.permute.xlu0 %1971
        %1973 = vrot.lane.b32.xlu0 %v426, 38
        %v1974 = vpop.permute.xlu0 %1973
        %1975 = vrot.lane.b32.xlu0 %v427, 38
        %v1976 = vpop.permute.xlu0 %1975
        %1977 = vrot.lane.b32.xlu0 %v428, 38
        %v1978 = vpop.permute.xlu0 %1977
        %1979 = vrot.lane.b32.xlu0 %v429, 38
        %v1980 = vpop.permute.xlu0 %1979
        %1981 = vrot.lane.b32.xlu0 %v430, 38
        %v1982 = vpop.permute.xlu0 %1981
        %1983 = vrot.lane.b32.xlu0 %v431, 38
        %v1984 = vpop.permute.xlu0 %1983
        %1985 = vrot.lane.b32.xlu0 %v432, 38
        %v1986 = vpop.permute.xlu0 %1985
        %1987 = vrot.lane.b32.xlu0 %v433, 38
        %v1988 = vpop.permute.xlu0 %1987
        %1989 = vrot.lane.b32.xlu0 %v434, 38
        %v1990 = vpop.permute.xlu0 %1989
        %1991 = vrot.lane.b32.xlu0 %v435, 38
        %v1992 = vpop.permute.xlu0 %1991
        %1993 = vrot.lane.b32.xlu0 %v436, 38
        %v1994 = vpop.permute.xlu0 %1993
        %vm1995 = vcmask 310272
        %v1996 = vsel %vm1995, %v1964, %v1966
        %v1997 = vsel %vm1995, %v1966, %v1968
        %v1998 = vsel %vm1995, %v1968, %v1970
        %v1999 = vsel %vm1995, %v1970, %v1972
        %v2000 = vsel %vm1995, %v1972, %v1974
        %v2001 = vsel %vm1995, %v1974, %v1976
        %v2002 = vsel %vm1995, %v1976, %v1978
        %v2003 = vsel %vm1995, %v1980, %v1982
        %v2004 = vsel %vm1995, %v1982, %v1984
        %v2005 = vsel %vm1995, %v1984, %v1986
        %v2006 = vsel %vm1995, %v1986, %v1988
        %v2007 = vsel %vm1995, %v1988, %v1990
        %v2008 = vsel %vm1995, %v1990, %v1992
        %v2009 = vsel %vm1995, %v1992, %v1994
        %v2028 = vsel %vm1995, %v1978, %v1964
        %v2029 = vsel %vm1995, %v1994, %v1980
        %2030 = vst [vmem:[#allocation2 + $0x980] sm:$0xff] %v1996
        %2031 = vst [vmem:[#allocation2 + $0x988] sm:$0xff] %v1997
        %2032 = vst [vmem:[#allocation2 + $0x990] sm:$0xff] %v1998
        %2033 = vst [vmem:[#allocation2 + $0x998] sm:$0xff] %v1999
        %2034 = vst [vmem:[#allocation2 + $0x9a0] sm:$0xff] %v2000
        %2035 = vst [vmem:[#allocation2 + $0x9a8] sm:$0xff] %v2001
        %2036 = vst [vmem:[#allocation2 + $0x9b0] sm:$0xff] %v2002
        %2037 = vst [vmem:[#allocation2 + $0x9b8] sm:$0xff] %v2028
        %2038 = vst [vmem:[#allocation2 + $0x9c0] sm:$0xff] %v2003
        %2039 = vst [vmem:[#allocation2 + $0x9c8] sm:$0xff] %v2004
        %2040 = vst [vmem:[#allocation2 + $0x9d0] sm:$0xff] %v2005
        %2041 = vst [vmem:[#allocation2 + $0x9d8] sm:$0xff] %v2006
        %2042 = vst [vmem:[#allocation2 + $0x9e0] sm:$0xff] %v2007
        %2043 = vst [vmem:[#allocation2 + $0x9e8] sm:$0xff] %v2008
        %2044 = vst [vmem:[#allocation2 + $0x9f0] sm:$0xff] %v2009
        %2045 = vst [vmem:[#allocation2 + $0x9f8] sm:$0xff] %v2029
        %2046 = vrot.lane.b32.xlu0 %v421, 37
        %v2047 = vpop.permute.xlu0 %2046
        %2048 = vrot.lane.b32.xlu0 %v422, 37
        %v2049 = vpop.permute.xlu0 %2048
        %2050 = vrot.lane.b32.xlu0 %v423, 37
        %v2051 = vpop.permute.xlu0 %2050
        %2052 = vrot.lane.b32.xlu0 %v424, 37
        %v2053 = vpop.permute.xlu0 %2052
        %2054 = vrot.lane.b32.xlu0 %v425, 37
        %v2055 = vpop.permute.xlu0 %2054
        %2056 = vrot.lane.b32.xlu0 %v426, 37
        %v2057 = vpop.permute.xlu0 %2056
        %2058 = vrot.lane.b32.xlu0 %v427, 37
        %v2059 = vpop.permute.xlu0 %2058
        %2060 = vrot.lane.b32.xlu0 %v428, 37
        %v2061 = vpop.permute.xlu0 %2060
        %2062 = vrot.lane.b32.xlu0 %v429, 37
        %v2063 = vpop.permute.xlu0 %2062
        %2064 = vrot.lane.b32.xlu0 %v430, 37
        %v2065 = vpop.permute.xlu0 %2064
        %2066 = vrot.lane.b32.xlu0 %v431, 37
        %v2067 = vpop.permute.xlu0 %2066
        %2068 = vrot.lane.b32.xlu0 %v432, 37
        %v2069 = vpop.permute.xlu0 %2068
        %2070 = vrot.lane.b32.xlu0 %v433, 37
        %v2071 = vpop.permute.xlu0 %2070
        %2072 = vrot.lane.b32.xlu0 %v434, 37
        %v2073 = vpop.permute.xlu0 %2072
        %2074 = vrot.lane.b32.xlu0 %v435, 37
        %v2075 = vpop.permute.xlu0 %2074
        %2076 = vrot.lane.b32.xlu0 %v436, 37
        %v2077 = vpop.permute.xlu0 %2076
        %vm2078 = vcmask 302080
        %v2079 = vsel %vm2078, %v2047, %v2049
        %v2080 = vsel %vm2078, %v2049, %v2051
        %v2081 = vsel %vm2078, %v2051, %v2053
        %v2082 = vsel %vm2078, %v2053, %v2055
        %v2083 = vsel %vm2078, %v2055, %v2057
        %v2084 = vsel %vm2078, %v2057, %v2059
        %v2085 = vsel %vm2078, %v2059, %v2061
        %v2086 = vsel %vm2078, %v2063, %v2065
        %v2087 = vsel %vm2078, %v2065, %v2067
        %v2088 = vsel %vm2078, %v2067, %v2069
        %v2089 = vsel %vm2078, %v2069, %v2071
        %v2090 = vsel %vm2078, %v2071, %v2073
        %v2091 = vsel %vm2078, %v2073, %v2075
        %v2092 = vsel %vm2078, %v2075, %v2077
        %v2111 = vsel %vm2078, %v2061, %v2047
        %v2112 = vsel %vm2078, %v2077, %v2063
        %2113 = vst [vmem:[#allocation2 + $0xa00] sm:$0xff] %v2079
        %2114 = vst [vmem:[#allocation2 + $0xa08] sm:$0xff] %v2080
        %2115 = vst [vmem:[#allocation2 + $0xa10] sm:$0xff] %v2081
        %2116 = vst [vmem:[#allocation2 + $0xa18] sm:$0xff] %v2082
        %2117 = vst [vmem:[#allocation2 + $0xa20] sm:$0xff] %v2083
        %2118 = vst [vmem:[#allocation2 + $0xa28] sm:$0xff] %v2084
        %2119 = vst [vmem:[#allocation2 + $0xa30] sm:$0xff] %v2085
        %2120 = vst [vmem:[#allocation2 + $0xa38] sm:$0xff] %v2111
        %2121 = vst [vmem:[#allocation2 + $0xa40] sm:$0xff] %v2086
        %2122 = vst [vmem:[#allocation2 + $0xa48] sm:$0xff] %v2087
        %2123 = vst [vmem:[#allocation2 + $0xa50] sm:$0xff] %v2088
        %2124 = vst [vmem:[#allocation2 + $0xa58] sm:$0xff] %v2089
        %2125 = vst [vmem:[#allocation2 + $0xa60] sm:$0xff] %v2090
        %2126 = vst [vmem:[#allocation2 + $0xa68] sm:$0xff] %v2091
        %2127 = vst [vmem:[#allocation2 + $0xa70] sm:$0xff] %v2092
        %2128 = vst [vmem:[#allocation2 + $0xa78] sm:$0xff] %v2112
        %2129 = vrot.lane.b32.xlu0 %v421, 29
        %v2130 = vpop.permute.xlu0 %2129
        %2131 = vrot.lane.b32.xlu0 %v422, 29
        %v2132 = vpop.permute.xlu0 %2131
        %2133 = vrot.lane.b32.xlu0 %v423, 29
        %v2134 = vpop.permute.xlu0 %2133
        %2135 = vrot.lane.b32.xlu0 %v424, 29
        %v2136 = vpop.permute.xlu0 %2135
        %2137 = vrot.lane.b32.xlu0 %v425, 29
        %v2138 = vpop.permute.xlu0 %2137
        %2139 = vrot.lane.b32.xlu0 %v426, 29
        %v2140 = vpop.permute.xlu0 %2139
        %2141 = vrot.lane.b32.xlu0 %v427, 29
        %v2142 = vpop.permute.xlu0 %2141
        %2143 = vrot.lane.b32.xlu0 %v428, 29
        %v2144 = vpop.permute.xlu0 %2143
        %2145 = vrot.lane.b32.xlu0 %v429, 29
        %v2146 = vpop.permute.xlu0 %2145
        %2147 = vrot.lane.b32.xlu0 %v430, 29
        %v2148 = vpop.permute.xlu0 %2147
        %2149 = vrot.lane.b32.xlu0 %v431, 29
        %v2150 = vpop.permute.xlu0 %2149
        %2151 = vrot.lane.b32.xlu0 %v432, 29
        %v2152 = vpop.permute.xlu0 %2151
        %2153 = vrot.lane.b32.xlu0 %v433, 29
        %v2154 = vpop.permute.xlu0 %2153
        %2155 = vrot.lane.b32.xlu0 %v434, 29
        %v2156 = vpop.permute.xlu0 %2155
        %2157 = vrot.lane.b32.xlu0 %v435, 29
        %v2158 = vpop.permute.xlu0 %2157
        %2159 = vrot.lane.b32.xlu0 %v436, 29
        %v2160 = vpop.permute.xlu0 %2159
        %vm2161 = vcmask 236544
        %v2162 = vsel %vm2161, %v2130, %v2132
        %v2163 = vsel %vm2161, %v2132, %v2134
        %v2164 = vsel %vm2161, %v2134, %v2136
        %v2165 = vsel %vm2161, %v2136, %v2138
        %v2166 = vsel %vm2161, %v2138, %v2140
        %v2167 = vsel %vm2161, %v2140, %v2142
        %v2168 = vsel %vm2161, %v2142, %v2144
        %v2169 = vsel %vm2161, %v2146, %v2148
        %v2170 = vsel %vm2161, %v2148, %v2150
        %v2171 = vsel %vm2161, %v2150, %v2152
        %v2172 = vsel %vm2161, %v2152, %v2154
        %v2173 = vsel %vm2161, %v2154, %v2156
        %v2174 = vsel %vm2161, %v2156, %v2158
        %v2175 = vsel %vm2161, %v2158, %v2160
        %v2194 = vsel %vm2161, %v2144, %v2130
        %v2195 = vsel %vm2161, %v2160, %v2146
        %2196 = vst [vmem:[#allocation2 + $0xa80] sm:$0xff] %v2162
        %2197 = vst [vmem:[#allocation2 + $0xa88] sm:$0xff] %v2163
        %2198 = vst [vmem:[#allocation2 + $0xa90] sm:$0xff] %v2164
        %2199 = vst [vmem:[#allocation2 + $0xa98] sm:$0xff] %v2165
        %2200 = vst [vmem:[#allocation2 + $0xaa0] sm:$0xff] %v2166
        %2201 = vst [vmem:[#allocation2 + $0xaa8] sm:$0xff] %v2167
        %2202 = vst [vmem:[#allocation2 + $0xab0] sm:$0xff] %v2168
        %2203 = vst [vmem:[#allocation2 + $0xab8] sm:$0xff] %v2194
        %2204 = vst [vmem:[#allocation2 + $0xac0] sm:$0xff] %v2169
        %2205 = vst [vmem:[#allocation2 + $0xac8] sm:$0xff] %v2170
        %2206 = vst [vmem:[#allocation2 + $0xad0] sm:$0xff] %v2171
        %2207 = vst [vmem:[#allocation2 + $0xad8] sm:$0xff] %v2172
        %2208 = vst [vmem:[#allocation2 + $0xae0] sm:$0xff] %v2173
        %2209 = vst [vmem:[#allocation2 + $0xae8] sm:$0xff] %v2174
        %2210 = vst [vmem:[#allocation2 + $0xaf0] sm:$0xff] %v2175
        %2211 = vst [vmem:[#allocation2 + $0xaf8] sm:$0xff] %v2195
        %2212 = vrot.lane.b32.xlu0 %v421, 28
        %v2213 = vpop.permute.xlu0 %2212
        %2214 = vrot.lane.b32.xlu0 %v422, 28
        %v2215 = vpop.permute.xlu0 %2214
        %2216 = vrot.lane.b32.xlu0 %v423, 28
        %v2217 = vpop.permute.xlu0 %2216
        %2218 = vrot.lane.b32.xlu0 %v424, 28
        %v2219 = vpop.permute.xlu0 %2218
        %2220 = vrot.lane.b32.xlu0 %v425, 28
        %v2221 = vpop.permute.xlu0 %2220
        %2222 = vrot.lane.b32.xlu0 %v426, 28
        %v2223 = vpop.permute.xlu0 %2222
        %2224 = vrot.lane.b32.xlu0 %v427, 28
        %v2225 = vpop.permute.xlu0 %2224
        %2226 = vrot.lane.b32.xlu0 %v428, 28
        %v2227 = vpop.permute.xlu0 %2226
        %2228 = vrot.lane.b32.xlu0 %v429, 28
        %v2229 = vpop.permute.xlu0 %2228
        %2230 = vrot.lane.b32.xlu0 %v430, 28
        %v2231 = vpop.permute.xlu0 %2230
        %2232 = vrot.lane.b32.xlu0 %v431, 28
        %v2233 = vpop.permute.xlu0 %2232
        %2234 = vrot.lane.b32.xlu0 %v432, 28
        %v2235 = vpop.permute.xlu0 %2234
        %2236 = vrot.lane.b32.xlu0 %v433, 28
        %v2237 = vpop.permute.xlu0 %2236
        %2238 = vrot.lane.b32.xlu0 %v434, 28
        %v2239 = vpop.permute.xlu0 %2238
        %2240 = vrot.lane.b32.xlu0 %v435, 28
        %v2241 = vpop.permute.xlu0 %2240
        %2242 = vrot.lane.b32.xlu0 %v436, 28
        %v2243 = vpop.permute.xlu0 %2242
        %vm2244 = vcmask 228352
        %v2245 = vsel %vm2244, %v2213, %v2215
        %v2246 = vsel %vm2244, %v2215, %v2217
        %v2247 = vsel %vm2244, %v2217, %v2219
        %v2248 = vsel %vm2244, %v2219, %v2221
        %v2249 = vsel %vm2244, %v2221, %v2223
        %v2250 = vsel %vm2244, %v2223, %v2225
        %v2251 = vsel %vm2244, %v2225, %v2227
        %v2252 = vsel %vm2244, %v2229, %v2231
        %v2253 = vsel %vm2244, %v2231, %v2233
        %v2254 = vsel %vm2244, %v2233, %v2235
        %v2255 = vsel %vm2244, %v2235, %v2237
        %v2256 = vsel %vm2244, %v2237, %v2239
        %v2257 = vsel %vm2244, %v2239, %v2241
        %v2258 = vsel %vm2244, %v2241, %v2243
        %v2277 = vsel %vm2244, %v2227, %v2213
        %v2278 = vsel %vm2244, %v2243, %v2229
        %2279 = vst [vmem:[#allocation2 + $0xb00] sm:$0xff] %v2245
        %2280 = vst [vmem:[#allocation2 + $0xb08] sm:$0xff] %v2246
        %2281 = vst [vmem:[#allocation2 + $0xb10] sm:$0xff] %v2247
        %2282 = vst [vmem:[#allocation2 + $0xb18] sm:$0xff] %v2248
        %2283 = vst [vmem:[#allocation2 + $0xb20] sm:$0xff] %v2249
        %2284 = vst [vmem:[#allocation2 + $0xb28] sm:$0xff] %v2250
        %2285 = vst [vmem:[#allocation2 + $0xb30] sm:$0xff] %v2251
        %2286 = vst [vmem:[#allocation2 + $0xb38] sm:$0xff] %v2277
        %2287 = vst [vmem:[#allocation2 + $0xb40] sm:$0xff] %v2252
        %2288 = vst [vmem:[#allocation2 + $0xb48] sm:$0xff] %v2253
        %2289 = vst [vmem:[#allocation2 + $0xb50] sm:$0xff] %v2254
        %2290 = vst [vmem:[#allocation2 + $0xb58] sm:$0xff] %v2255
        %2291 = vst [vmem:[#allocation2 + $0xb60] sm:$0xff] %v2256
        %2292 = vst [vmem:[#allocation2 + $0xb68] sm:$0xff] %v2257
        %2293 = vst [vmem:[#allocation2 + $0xb70] sm:$0xff] %v2258
        %2294 = vst [vmem:[#allocation2 + $0xb78] sm:$0xff] %v2278
        %2295 = vrot.lane.b32.xlu0 %v421, 27
        %v2296 = vpop.permute.xlu0 %2295
        %2297 = vrot.lane.b32.xlu0 %v422, 27
        %v2298 = vpop.permute.xlu0 %2297
        %2299 = vrot.lane.b32.xlu0 %v423, 27
        %v2300 = vpop.permute.xlu0 %2299
        %2301 = vrot.lane.b32.xlu0 %v424, 27
        %v2302 = vpop.permute.xlu0 %2301
        %2303 = vrot.lane.b32.xlu0 %v425, 27
        %v2304 = vpop.permute.xlu0 %2303
        %2305 = vrot.lane.b32.xlu0 %v426, 27
        %v2306 = vpop.permute.xlu0 %2305
        %2307 = vrot.lane.b32.xlu0 %v427, 27
        %v2308 = vpop.permute.xlu0 %2307
        %2309 = vrot.lane.b32.xlu0 %v428, 27
        %v2310 = vpop.permute.xlu0 %2309
        %2311 = vrot.lane.b32.xlu0 %v429, 27
        %v2312 = vpop.permute.xlu0 %2311
        %2313 = vrot.lane.b32.xlu0 %v430, 27
        %v2314 = vpop.permute.xlu0 %2313
        %2315 = vrot.lane.b32.xlu0 %v431, 27
        %v2316 = vpop.permute.xlu0 %2315
        %2317 = vrot.lane.b32.xlu0 %v432, 27
        %v2318 = vpop.permute.xlu0 %2317
        %2319 = vrot.lane.b32.xlu0 %v433, 27
        %v2320 = vpop.permute.xlu0 %2319
        %2321 = vrot.lane.b32.xlu0 %v434, 27
        %v2322 = vpop.permute.xlu0 %2321
        %2323 = vrot.lane.b32.xlu0 %v435, 27
        %v2324 = vpop.permute.xlu0 %2323
        %2325 = vrot.lane.b32.xlu0 %v436, 27
        %v2326 = vpop.permute.xlu0 %2325
        %vm2327 = vcmask 220160
        %v2328 = vsel %vm2327, %v2296, %v2298
        %v2329 = vsel %vm2327, %v2298, %v2300
        %v2330 = vsel %vm2327, %v2300, %v2302
        %v2331 = vsel %vm2327, %v2302, %v2304
        %v2332 = vsel %vm2327, %v2304, %v2306
        %v2333 = vsel %vm2327, %v2306, %v2308
        %v2334 = vsel %vm2327, %v2308, %v2310
        %v2335 = vsel %vm2327, %v2312, %v2314
        %v2336 = vsel %vm2327, %v2314, %v2316
        %v2337 = vsel %vm2327, %v2316, %v2318
        %v2338 = vsel %vm2327, %v2318, %v2320
        %v2339 = vsel %vm2327, %v2320, %v2322
        %v2340 = vsel %vm2327, %v2322, %v2324
        %v2341 = vsel %vm2327, %v2324, %v2326
        %v2360 = vsel %vm2327, %v2310, %v2296
        %v2361 = vsel %vm2327, %v2326, %v2312
        %2362 = vst [vmem:[#allocation2 + $0xb80] sm:$0xff] %v2328
        %2363 = vst [vmem:[#allocation2 + $0xb88] sm:$0xff] %v2329
        %2364 = vst [vmem:[#allocation2 + $0xb90] sm:$0xff] %v2330
        %2365 = vst [vmem:[#allocation2 + $0xb98] sm:$0xff] %v2331
        %2366 = vst [vmem:[#allocation2 + $0xba0] sm:$0xff] %v2332
        %2367 = vst [vmem:[#allocation2 + $0xba8] sm:$0xff] %v2333
        %2368 = vst [vmem:[#allocation2 + $0xbb0] sm:$0xff] %v2334
        %2369 = vst [vmem:[#allocation2 + $0xbb8] sm:$0xff] %v2360
        %2370 = vst [vmem:[#allocation2 + $0xbc0] sm:$0xff] %v2335
        %2371 = vst [vmem:[#allocation2 + $0xbc8] sm:$0xff] %v2336
        %2372 = vst [vmem:[#allocation2 + $0xbd0] sm:$0xff] %v2337
        %2373 = vst [vmem:[#allocation2 + $0xbd8] sm:$0xff] %v2338
        %2374 = vst [vmem:[#allocation2 + $0xbe0] sm:$0xff] %v2339
        %2375 = vst [vmem:[#allocation2 + $0xbe8] sm:$0xff] %v2340
        %2376 = vst [vmem:[#allocation2 + $0xbf0] sm:$0xff] %v2341
        %2377 = vst [vmem:[#allocation2 + $0xbf8] sm:$0xff] %v2361
        %2378 = vrot.lane.b32.xlu0 %v421, 19
        %v2379 = vpop.permute.xlu0 %2378
        %2380 = vrot.lane.b32.xlu0 %v422, 19
        %v2381 = vpop.permute.xlu0 %2380
        %2382 = vrot.lane.b32.xlu0 %v423, 19
        %v2383 = vpop.permute.xlu0 %2382
        %2384 = vrot.lane.b32.xlu0 %v424, 19
        %v2385 = vpop.permute.xlu0 %2384
        %2386 = vrot.lane.b32.xlu0 %v425, 19
        %v2387 = vpop.permute.xlu0 %2386
        %2388 = vrot.lane.b32.xlu0 %v426, 19
        %v2389 = vpop.permute.xlu0 %2388
        %2390 = vrot.lane.b32.xlu0 %v427, 19
        %v2391 = vpop.permute.xlu0 %2390
        %2392 = vrot.lane.b32.xlu0 %v428, 19
        %v2393 = vpop.permute.xlu0 %2392
        %2394 = vrot.lane.b32.xlu0 %v429, 19
        %v2395 = vpop.permute.xlu0 %2394
        %2396 = vrot.lane.b32.xlu0 %v430, 19
        %v2397 = vpop.permute.xlu0 %2396
        %2398 = vrot.lane.b32.xlu0 %v431, 19
        %v2399 = vpop.permute.xlu0 %2398
        %2400 = vrot.lane.b32.xlu0 %v432, 19
        %v2401 = vpop.permute.xlu0 %2400
        %2402 = vrot.lane.b32.xlu0 %v433, 19
        %v2403 = vpop.permute.xlu0 %2402
        %2404 = vrot.lane.b32.xlu0 %v434, 19
        %v2405 = vpop.permute.xlu0 %2404
        %2406 = vrot.lane.b32.xlu0 %v435, 19
        %v2407 = vpop.permute.xlu0 %2406
        %2408 = vrot.lane.b32.xlu0 %v436, 19
        %v2409 = vpop.permute.xlu0 %2408
        %vm2410 = vcmask 154624
        %v2411 = vsel %vm2410, %v2379, %v2381
        %v2412 = vsel %vm2410, %v2381, %v2383
        %v2413 = vsel %vm2410, %v2383, %v2385
        %v2414 = vsel %vm2410, %v2385, %v2387
        %v2415 = vsel %vm2410, %v2387, %v2389
        %v2416 = vsel %vm2410, %v2389, %v2391
        %v2417 = vsel %vm2410, %v2391, %v2393
        %v2418 = vsel %vm2410, %v2395, %v2397
        %v2419 = vsel %vm2410, %v2397, %v2399
        %v2420 = vsel %vm2410, %v2399, %v2401
        %v2421 = vsel %vm2410, %v2401, %v2403
        %v2422 = vsel %vm2410, %v2403, %v2405
        %v2423 = vsel %vm2410, %v2405, %v2407
        %v2424 = vsel %vm2410, %v2407, %v2409
        %v2443 = vsel %vm2410, %v2393, %v2379
        %v2444 = vsel %vm2410, %v2409, %v2395
        %2445 = vst [vmem:[#allocation2 + $0xc00] sm:$0xff] %v2411
        %2446 = vst [vmem:[#allocation2 + $0xc08] sm:$0xff] %v2412
        %2447 = vst [vmem:[#allocation2 + $0xc10] sm:$0xff] %v2413
        %2448 = vst [vmem:[#allocation2 + $0xc18] sm:$0xff] %v2414
        %2449 = vst [vmem:[#allocation2 + $0xc20] sm:$0xff] %v2415
        %2450 = vst [vmem:[#allocation2 + $0xc28] sm:$0xff] %v2416
        %2451 = vst [vmem:[#allocation2 + $0xc30] sm:$0xff] %v2417
        %2452 = vst [vmem:[#allocation2 + $0xc38] sm:$0xff] %v2443
        %2453 = vst [vmem:[#allocation2 + $0xc40] sm:$0xff] %v2418
        %2454 = vst [vmem:[#allocation2 + $0xc48] sm:$0xff] %v2419
        %2455 = vst [vmem:[#allocation2 + $0xc50] sm:$0xff] %v2420
        %2456 = vst [vmem:[#allocation2 + $0xc58] sm:$0xff] %v2421
        %2457 = vst [vmem:[#allocation2 + $0xc60] sm:$0xff] %v2422
        %2458 = vst [vmem:[#allocation2 + $0xc68] sm:$0xff] %v2423
        %2459 = vst [vmem:[#allocation2 + $0xc70] sm:$0xff] %v2424
        %2460 = vst [vmem:[#allocation2 + $0xc78] sm:$0xff] %v2444
        %2461 = vrot.lane.b32.xlu0 %v421, 18
        %v2462 = vpop.permute.xlu0 %2461
        %2463 = vrot.lane.b32.xlu0 %v422, 18
        %v2464 = vpop.permute.xlu0 %2463
        %2465 = vrot.lane.b32.xlu0 %v423, 18
        %v2466 = vpop.permute.xlu0 %2465
        %2467 = vrot.lane.b32.xlu0 %v424, 18
        %v2468 = vpop.permute.xlu0 %2467
        %2469 = vrot.lane.b32.xlu0 %v425, 18
        %v2470 = vpop.permute.xlu0 %2469
        %2471 = vrot.lane.b32.xlu0 %v426, 18
        %v2472 = vpop.permute.xlu0 %2471
        %2473 = vrot.lane.b32.xlu0 %v427, 18
        %v2474 = vpop.permute.xlu0 %2473
        %2475 = vrot.lane.b32.xlu0 %v428, 18
        %v2476 = vpop.permute.xlu0 %2475
        %2477 = vrot.lane.b32.xlu0 %v429, 18
        %v2478 = vpop.permute.xlu0 %2477
        %2479 = vrot.lane.b32.xlu0 %v430, 18
        %v2480 = vpop.permute.xlu0 %2479
        %2481 = vrot.lane.b32.xlu0 %v431, 18
        %v2482 = vpop.permute.xlu0 %2481
        %2483 = vrot.lane.b32.xlu0 %v432, 18
        %v2484 = vpop.permute.xlu0 %2483
        %2485 = vrot.lane.b32.xlu0 %v433, 18
        %v2486 = vpop.permute.xlu0 %2485
        %2487 = vrot.lane.b32.xlu0 %v434, 18
        %v2488 = vpop.permute.xlu0 %2487
        %2489 = vrot.lane.b32.xlu0 %v435, 18
        %v2490 = vpop.permute.xlu0 %2489
        %2491 = vrot.lane.b32.xlu0 %v436, 18
        %v2492 = vpop.permute.xlu0 %2491
        %vm2493 = vcmask 146432
        %v2494 = vsel %vm2493, %v2462, %v2464
        %v2495 = vsel %vm2493, %v2464, %v2466
        %v2496 = vsel %vm2493, %v2466, %v2468
        %v2497 = vsel %vm2493, %v2468, %v2470
        %v2498 = vsel %vm2493, %v2470, %v2472
        %v2499 = vsel %vm2493, %v2472, %v2474
        %v2500 = vsel %vm2493, %v2474, %v2476
        %v2501 = vsel %vm2493, %v2478, %v2480
        %v2502 = vsel %vm2493, %v2480, %v2482
        %v2503 = vsel %vm2493, %v2482, %v2484
        %v2504 = vsel %vm2493, %v2484, %v2486
        %v2505 = vsel %vm2493, %v2486, %v2488
        %v2506 = vsel %vm2493, %v2488, %v2490
        %v2507 = vsel %vm2493, %v2490, %v2492
        %v2526 = vsel %vm2493, %v2476, %v2462
        %v2527 = vsel %vm2493, %v2492, %v2478
        %2528 = vst [vmem:[#allocation2 + $0xc80] sm:$0xff] %v2494
        %2529 = vst [vmem:[#allocation2 + $0xc88] sm:$0xff] %v2495
        %2530 = vst [vmem:[#allocation2 + $0xc90] sm:$0xff] %v2496
        %2531 = vst [vmem:[#allocation2 + $0xc98] sm:$0xff] %v2497
        %2532 = vst [vmem:[#allocation2 + $0xca0] sm:$0xff] %v2498
        %2533 = vst [vmem:[#allocation2 + $0xca8] sm:$0xff] %v2499
        %2534 = vst [vmem:[#allocation2 + $0xcb0] sm:$0xff] %v2500
        %2535 = vst [vmem:[#allocation2 + $0xcb8] sm:$0xff] %v2526
        %2536 = vst [vmem:[#allocation2 + $0xcc0] sm:$0xff] %v2501
        %2537 = vst [vmem:[#allocation2 + $0xcc8] sm:$0xff] %v2502
        %2538 = vst [vmem:[#allocation2 + $0xcd0] sm:$0xff] %v2503
        %2539 = vst [vmem:[#allocation2 + $0xcd8] sm:$0xff] %v2504
        %2540 = vst [vmem:[#allocation2 + $0xce0] sm:$0xff] %v2505
        %2541 = vst [vmem:[#allocation2 + $0xce8] sm:$0xff] %v2506
        %2542 = vst [vmem:[#allocation2 + $0xcf0] sm:$0xff] %v2507
        %2543 = vst [vmem:[#allocation2 + $0xcf8] sm:$0xff] %v2527
        %2544 = vrot.lane.b32.xlu0 %v421, 17
        %v2545 = vpop.permute.xlu0 %2544
        %2546 = vrot.lane.b32.xlu0 %v422, 17
        %v2547 = vpop.permute.xlu0 %2546
        %2548 = vrot.lane.b32.xlu0 %v423, 17
        %v2549 = vpop.permute.xlu0 %2548
        %2550 = vrot.lane.b32.xlu0 %v424, 17
        %v2551 = vpop.permute.xlu0 %2550
        %2552 = vrot.lane.b32.xlu0 %v425, 17
        %v2553 = vpop.permute.xlu0 %2552
        %2554 = vrot.lane.b32.xlu0 %v426, 17
        %v2555 = vpop.permute.xlu0 %2554
        %2556 = vrot.lane.b32.xlu0 %v427, 17
        %v2557 = vpop.permute.xlu0 %2556
        %2558 = vrot.lane.b32.xlu0 %v428, 17
        %v2559 = vpop.permute.xlu0 %2558
        %2560 = vrot.lane.b32.xlu0 %v429, 17
        %v2561 = vpop.permute.xlu0 %2560
        %2562 = vrot.lane.b32.xlu0 %v430, 17
        %v2563 = vpop.permute.xlu0 %2562
        %2564 = vrot.lane.b32.xlu0 %v431, 17
        %v2565 = vpop.permute.xlu0 %2564
        %2566 = vrot.lane.b32.xlu0 %v432, 17
        %v2567 = vpop.permute.xlu0 %2566
        %2568 = vrot.lane.b32.xlu0 %v433, 17
        %v2569 = vpop.permute.xlu0 %2568
        %2570 = vrot.lane.b32.xlu0 %v434, 17
        %v2571 = vpop.permute.xlu0 %2570
        %2572 = vrot.lane.b32.xlu0 %v435, 17
        %v2573 = vpop.permute.xlu0 %2572
        %2574 = vrot.lane.b32.xlu0 %v436, 17
        %v2575 = vpop.permute.xlu0 %2574
        %vm2576 = vcmask 138240
        %v2577 = vsel %vm2576, %v2545, %v2547
        %v2578 = vsel %vm2576, %v2547, %v2549
        %v2579 = vsel %vm2576, %v2549, %v2551
        %v2580 = vsel %vm2576, %v2551, %v2553
        %v2581 = vsel %vm2576, %v2553, %v2555
        %v2582 = vsel %vm2576, %v2555, %v2557
        %v2583 = vsel %vm2576, %v2557, %v2559
        %v2584 = vsel %vm2576, %v2561, %v2563
        %v2585 = vsel %vm2576, %v2563, %v2565
        %v2586 = vsel %vm2576, %v2565, %v2567
        %v2587 = vsel %vm2576, %v2567, %v2569
        %v2588 = vsel %vm2576, %v2569, %v2571
        %v2589 = vsel %vm2576, %v2571, %v2573
        %v2590 = vsel %vm2576, %v2573, %v2575
        %v2609 = vsel %vm2576, %v2559, %v2545
        %v2610 = vsel %vm2576, %v2575, %v2561
        %2611 = vst [vmem:[#allocation2 + $0xd00] sm:$0xff] %v2577
        %2612 = vst [vmem:[#allocation2 + $0xd08] sm:$0xff] %v2578
        %2613 = vst [vmem:[#allocation2 + $0xd10] sm:$0xff] %v2579
        %2614 = vst [vmem:[#allocation2 + $0xd18] sm:$0xff] %v2580
        %2615 = vst [vmem:[#allocation2 + $0xd20] sm:$0xff] %v2581
        %2616 = vst [vmem:[#allocation2 + $0xd28] sm:$0xff] %v2582
        %2617 = vst [vmem:[#allocation2 + $0xd30] sm:$0xff] %v2583
        %2618 = vst [vmem:[#allocation2 + $0xd38] sm:$0xff] %v2609
        %2619 = vst [vmem:[#allocation2 + $0xd40] sm:$0xff] %v2584
        %2620 = vst [vmem:[#allocation2 + $0xd48] sm:$0xff] %v2585
        %2621 = vst [vmem:[#allocation2 + $0xd50] sm:$0xff] %v2586
        %2622 = vst [vmem:[#allocation2 + $0xd58] sm:$0xff] %v2587
        %2623 = vst [vmem:[#allocation2 + $0xd60] sm:$0xff] %v2588
        %2624 = vst [vmem:[#allocation2 + $0xd68] sm:$0xff] %v2589
        %2625 = vst [vmem:[#allocation2 + $0xd70] sm:$0xff] %v2590
        %2626 = vst [vmem:[#allocation2 + $0xd78] sm:$0xff] %v2610
        %v2627 = vld [vmem:[%s3] sm:$0xff]
        %v2628 = vld [vmem:[%s3 + $0x8] sm:$0xff]
        %v2629 = vld [vmem:[%s3 + $0x10] sm:$0xff]
        %v2630 = vld [vmem:[%s3 + $0x18] sm:$0xff]
        %v2631 = vld [vmem:[%s3 + $0x20] sm:$0xff]
        %v2632 = vld [vmem:[%s3 + $0x28] sm:$0xff]
        %v2633 = vld [vmem:[%s3 + $0x30] sm:$0xff]
        %v2634 = vld [vmem:[%s3 + $0x38] sm:$0xff]
        %v2635 = vld [vmem:[#allocation2] sm:$0xff]
        %v2636 = vld [vmem:[#allocation2 + $0x8] sm:$0xff]
        %v2637 = vld [vmem:[#allocation2 + $0x10] sm:$0xff]
        %v2638 = vld [vmem:[#allocation2 + $0x18] sm:$0xff]
        %v2639 = vld [vmem:[#allocation2 + $0x20] sm:$0xff]
        %v2640 = vld [vmem:[#allocation2 + $0x28] sm:$0xff]
        %v2641 = vld [vmem:[#allocation2 + $0x30] sm:$0xff]
        %v2642 = vld [vmem:[#allocation2 + $0x38] sm:$0xff]
        %v2643 = vld [vmem:[#allocation2 + $0x40] sm:$0xff]
        %v2644 = vld [vmem:[#allocation2 + $0x48] sm:$0xff]
        %v2645 = vld [vmem:[#allocation2 + $0x50] sm:$0xff]
        %v2646 = vld [vmem:[#allocation2 + $0x58] sm:$0xff]
        %v2647 = vld [vmem:[#allocation2 + $0x60] sm:$0xff]
        %v2648 = vld [vmem:[#allocation2 + $0x68] sm:$0xff]
        %v2649 = vld [vmem:[#allocation2 + $0x70] sm:$0xff]
        %v2650 = vld [vmem:[#allocation2 + $0x78] sm:$0xff]
        %v2651 = vld [vmem:[#allocation2 + $0x80] sm:$0xff]
        %v2652 = vld [vmem:[#allocation2 + $0x88] sm:$0xff]
        %v2653 = vld [vmem:[#allocation2 + $0x90] sm:$0xff]
        %v2654 = vld [vmem:[#allocation2 + $0x98] sm:$0xff]
        %v2655 = vld [vmem:[#allocation2 + $0xa0] sm:$0xff]
        %v2656 = vld [vmem:[#allocation2 + $0xa8] sm:$0xff]
        %v2657 = vld [vmem:[#allocation2 + $0xb0] sm:$0xff]
        %v2658 = vld [vmem:[#allocation2 + $0xb8] sm:$0xff]
        %v2659 = vld [vmem:[#allocation2 + $0xc0] sm:$0xff]
        %v2660 = vld [vmem:[#allocation2 + $0xc8] sm:$0xff]
        %v2661 = vld [vmem:[#allocation2 + $0xd0] sm:$0xff]
        %v2662 = vld [vmem:[#allocation2 + $0xd8] sm:$0xff]
        %v2663 = vld [vmem:[#allocation2 + $0xe0] sm:$0xff]
        %v2664 = vld [vmem:[#allocation2 + $0xe8] sm:$0xff]
        %v2665 = vld [vmem:[#allocation2 + $0xf0] sm:$0xff]
        %v2666 = vld [vmem:[#allocation2 + $0xf8] sm:$0xff]
        %v2667 = vld [vmem:[#allocation2 + $0x100] sm:$0xff]
        %v2668 = vld [vmem:[#allocation2 + $0x108] sm:$0xff]
        %v2669 = vld [vmem:[#allocation2 + $0x110] sm:$0xff]
        %v2670 = vld [vmem:[#allocation2 + $0x118] sm:$0xff]
        %v2671 = vld [vmem:[#allocation2 + $0x120] sm:$0xff]
        %v2672 = vld [vmem:[#allocation2 + $0x128] sm:$0xff]
        %v2673 = vld [vmem:[#allocation2 + $0x130] sm:$0xff]
        %v2674 = vld [vmem:[#allocation2 + $0x138] sm:$0xff]
        %v2675 = vld [vmem:[#allocation2 + $0x140] sm:$0xff]
        %v2676 = vld [vmem:[#allocation2 + $0x148] sm:$0xff]
        %v2677 = vld [vmem:[#allocation2 + $0x150] sm:$0xff]
        %v2678 = vld [vmem:[#allocation2 + $0x158] sm:$0xff]
        %v2679 = vld [vmem:[#allocation2 + $0x160] sm:$0xff]
        %v2680 = vld [vmem:[#allocation2 + $0x168] sm:$0xff]
        %v2681 = vld [vmem:[#allocation2 + $0x170] sm:$0xff]
        %v2682 = vld [vmem:[#allocation2 + $0x178] sm:$0xff]
        %v2683 = vld [vmem:[#allocation2 + $0x180] sm:$0xff]
        %v2684 = vld [vmem:[#allocation2 + $0x188] sm:$0xff]
        %v2685 = vld [vmem:[#allocation2 + $0x190] sm:$0xff]
        %v2686 = vld [vmem:[#allocation2 + $0x198] sm:$0xff]
        %v2687 = vld [vmem:[#allocation2 + $0x1a0] sm:$0xff]
        %v2688 = vld [vmem:[#allocation2 + $0x1a8] sm:$0xff]
        %v2689 = vld [vmem:[#allocation2 + $0x1b0] sm:$0xff]
        %v2690 = vld [vmem:[#allocation2 + $0x1b8] sm:$0xff]
        %v2691 = vld [vmem:[#allocation2 + $0x1c0] sm:$0xff]
        %v2692 = vld [vmem:[#allocation2 + $0x1c8] sm:$0xff]
        %v2693 = vld [vmem:[#allocation2 + $0x1d0] sm:$0xff]
        %v2694 = vld [vmem:[#allocation2 + $0x1d8] sm:$0xff]
        %v2695 = vld [vmem:[#allocation2 + $0x1e0] sm:$0xff]
        %v2696 = vld [vmem:[#allocation2 + $0x1e8] sm:$0xff]
        %v2697 = vld [vmem:[#allocation2 + $0x1f0] sm:$0xff]
        %v2698 = vld [vmem:[#allocation2 + $0x1f8] sm:$0xff]
        %v2699 = vld [vmem:[#allocation2 + $0x200] sm:$0xff]
        %v2700 = vld [vmem:[#allocation2 + $0x208] sm:$0xff]
        %v2701 = vld [vmem:[#allocation2 + $0x210] sm:$0xff]
        %v2702 = vld [vmem:[#allocation2 + $0x218] sm:$0xff]
        %v2703 = vld [vmem:[#allocation2 + $0x220] sm:$0xff]
        %v2704 = vld [vmem:[#allocation2 + $0x228] sm:$0xff]
        %v2705 = vld [vmem:[#allocation2 + $0x230] sm:$0xff]
        %v2706 = vld [vmem:[#allocation2 + $0x238] sm:$0xff]
        %v2707 = vld [vmem:[#allocation2 + $0x240] sm:$0xff]
        %v2708 = vld [vmem:[#allocation2 + $0x248] sm:$0xff]
        %v2709 = vld [vmem:[#allocation2 + $0x250] sm:$0xff]
        %v2710 = vld [vmem:[#allocation2 + $0x258] sm:$0xff]
        %v2711 = vld [vmem:[#allocation2 + $0x260] sm:$0xff]
        %v2712 = vld [vmem:[#allocation2 + $0x268] sm:$0xff]
        %v2713 = vld [vmem:[#allocation2 + $0x270] sm:$0xff]
        %v2714 = vld [vmem:[#allocation2 + $0x278] sm:$0xff]
        %v2715 = vld [vmem:[#allocation2 + $0x280] sm:$0xff]
        %v2716 = vld [vmem:[#allocation2 + $0x288] sm:$0xff]
        %v2717 = vld [vmem:[#allocation2 + $0x290] sm:$0xff]
        %v2718 = vld [vmem:[#allocation2 + $0x298] sm:$0xff]
        %v2719 = vld [vmem:[#allocation2 + $0x2a0] sm:$0xff]
        %v2720 = vld [vmem:[#allocation2 + $0x2a8] sm:$0xff]
        %v2721 = vld [vmem:[#allocation2 + $0x2b0] sm:$0xff]
        %v2722 = vld [vmem:[#allocation2 + $0x2b8] sm:$0xff]
        %v2723 = vld [vmem:[#allocation2 + $0x2c0] sm:$0xff]
        %v2724 = vld [vmem:[#allocation2 + $0x2c8] sm:$0xff]
        %v2725 = vld [vmem:[#allocation2 + $0x2d0] sm:$0xff]
        %v2726 = vld [vmem:[#allocation2 + $0x2d8] sm:$0xff]
        %v2727 = vld [vmem:[#allocation2 + $0x2e0] sm:$0xff]
        %v2728 = vld [vmem:[#allocation2 + $0x2e8] sm:$0xff]
        %v2729 = vld [vmem:[#allocation2 + $0x2f0] sm:$0xff]
        %v2730 = vld [vmem:[#allocation2 + $0x2f8] sm:$0xff]
        %v2731 = vld [vmem:[#allocation2 + $0x300] sm:$0xff]
        %v2732 = vld [vmem:[#allocation2 + $0x308] sm:$0xff]
        %v2733 = vld [vmem:[#allocation2 + $0x310] sm:$0xff]
        %v2734 = vld [vmem:[#allocation2 + $0x318] sm:$0xff]
        %v2735 = vld [vmem:[#allocation2 + $0x320] sm:$0xff]
        %v2736 = vld [vmem:[#allocation2 + $0x328] sm:$0xff]
        %v2737 = vld [vmem:[#allocation2 + $0x330] sm:$0xff]
        %v2738 = vld [vmem:[#allocation2 + $0x338] sm:$0xff]
        %v2739 = vld [vmem:[#allocation2 + $0x340] sm:$0xff]
        %v2740 = vld [vmem:[#allocation2 + $0x348] sm:$0xff]
        %v2741 = vld [vmem:[#allocation2 + $0x350] sm:$0xff]
        %v2742 = vld [vmem:[#allocation2 + $0x358] sm:$0xff]
        %v2743 = vld [vmem:[#allocation2 + $0x360] sm:$0xff]
        %v2744 = vld [vmem:[#allocation2 + $0x368] sm:$0xff]
        %v2745 = vld [vmem:[#allocation2 + $0x370] sm:$0xff]
        %v2746 = vld [vmem:[#allocation2 + $0x378] sm:$0xff]
        %v2747 = vld [vmem:[#allocation2 + $0x380] sm:$0xff]
        %v2748 = vld [vmem:[#allocation2 + $0x388] sm:$0xff]
        %v2749 = vld [vmem:[#allocation2 + $0x390] sm:$0xff]
        %v2750 = vld [vmem:[#allocation2 + $0x398] sm:$0xff]
        %v2751 = vld [vmem:[#allocation2 + $0x3a0] sm:$0xff]
        %v2752 = vld [vmem:[#allocation2 + $0x3a8] sm:$0xff]
        %v2753 = vld [vmem:[#allocation2 + $0x3b0] sm:$0xff]
        %v2754 = vld [vmem:[#allocation2 + $0x3b8] sm:$0xff]
        %v2755 = vld [vmem:[#allocation2 + $0x3c0] sm:$0xff]
        %v2756 = vld [vmem:[#allocation2 + $0x3c8] sm:$0xff]
        %v2757 = vld [vmem:[#allocation2 + $0x3d0] sm:$0xff]
        %v2758 = vld [vmem:[#allocation2 + $0x3d8] sm:$0xff]
        %v2759 = vld [vmem:[#allocation2 + $0x3e0] sm:$0xff]
        %v2760 = vld [vmem:[#allocation2 + $0x3e8] sm:$0xff]
        %v2761 = vld [vmem:[#allocation2 + $0x3f0] sm:$0xff]
        %v2762 = vld [vmem:[#allocation2 + $0x3f8] sm:$0xff]
        %v2763 = vld [vmem:[#allocation2 + $0x400] sm:$0xff]
        %v2764 = vld [vmem:[#allocation2 + $0x408] sm:$0xff]
        %v2765 = vld [vmem:[#allocation2 + $0x410] sm:$0xff]
        %v2766 = vld [vmem:[#allocation2 + $0x418] sm:$0xff]
        %v2767 = vld [vmem:[#allocation2 + $0x420] sm:$0xff]
        %v2768 = vld [vmem:[#allocation2 + $0x428] sm:$0xff]
        %v2769 = vld [vmem:[#allocation2 + $0x430] sm:$0xff]
        %v2770 = vld [vmem:[#allocation2 + $0x438] sm:$0xff]
        %v2771 = vld [vmem:[#allocation2 + $0x440] sm:$0xff]
        %v2772 = vld [vmem:[#allocation2 + $0x448] sm:$0xff]
        %v2773 = vld [vmem:[#allocation2 + $0x450] sm:$0xff]
        %v2774 = vld [vmem:[#allocation2 + $0x458] sm:$0xff]
        %v2775 = vld [vmem:[#allocation2 + $0x460] sm:$0xff]
        %v2776 = vld [vmem:[#allocation2 + $0x468] sm:$0xff]
        %v2777 = vld [vmem:[#allocation2 + $0x470] sm:$0xff]
        %v2778 = vld [vmem:[#allocation2 + $0x478] sm:$0xff]
        %v2779 = vld [vmem:[#allocation2 + $0x480] sm:$0xff]
        %v2780 = vld [vmem:[#allocation2 + $0x488] sm:$0xff]
        %v2781 = vld [vmem:[#allocation2 + $0x490] sm:$0xff]
        %v2782 = vld [vmem:[#allocation2 + $0x498] sm:$0xff]
        %v2783 = vld [vmem:[#allocation2 + $0x4a0] sm:$0xff]
        %v2784 = vld [vmem:[#allocation2 + $0x4a8] sm:$0xff]
        %v2785 = vld [vmem:[#allocation2 + $0x4b0] sm:$0xff]
        %v2786 = vld [vmem:[#allocation2 + $0x4b8] sm:$0xff]
        %v2787 = vld [vmem:[#allocation2 + $0x4c0] sm:$0xff]
        %v2788 = vld [vmem:[#allocation2 + $0x4c8] sm:$0xff]
        %v2789 = vld [vmem:[#allocation2 + $0x4d0] sm:$0xff]
        %v2790 = vld [vmem:[#allocation2 + $0x4d8] sm:$0xff]
        %v2791 = vld [vmem:[#allocation2 + $0x4e0] sm:$0xff]
        %v2792 = vld [vmem:[#allocation2 + $0x4e8] sm:$0xff]
        %v2793 = vld [vmem:[#allocation2 + $0x4f0] sm:$0xff]
        %v2794 = vld [vmem:[#allocation2 + $0x4f8] sm:$0xff]
        %v2795 = vld [vmem:[#allocation2 + $0x500] sm:$0xff]
        %v2796 = vld [vmem:[#allocation2 + $0x508] sm:$0xff]
        %v2797 = vld [vmem:[#allocation2 + $0x510] sm:$0xff]
        %v2798 = vld [vmem:[#allocation2 + $0x518] sm:$0xff]
        %v2799 = vld [vmem:[#allocation2 + $0x520] sm:$0xff]
        %v2800 = vld [vmem:[#allocation2 + $0x528] sm:$0xff]
        %v2801 = vld [vmem:[#allocation2 + $0x530] sm:$0xff]
        %v2802 = vld [vmem:[#allocation2 + $0x538] sm:$0xff]
        %v2803 = vld [vmem:[#allocation2 + $0x540] sm:$0xff]
        %v2804 = vld [vmem:[#allocation2 + $0x548] sm:$0xff]
        %v2805 = vld [vmem:[#allocation2 + $0x550] sm:$0xff]
        %v2806 = vld [vmem:[#allocation2 + $0x558] sm:$0xff]
        %v2807 = vld [vmem:[#allocation2 + $0x560] sm:$0xff]
        %v2808 = vld [vmem:[#allocation2 + $0x568] sm:$0xff]
        %v2809 = vld [vmem:[#allocation2 + $0x570] sm:$0xff]
        %v2810 = vld [vmem:[#allocation2 + $0x578] sm:$0xff]
        %v2811 = vld [vmem:[#allocation2 + $0x580] sm:$0xff]
        %v2812 = vld [vmem:[#allocation2 + $0x588] sm:$0xff]
        %v2813 = vld [vmem:[#allocation2 + $0x590] sm:$0xff]
        %v2814 = vld [vmem:[#allocation2 + $0x598] sm:$0xff]
        %v2815 = vld [vmem:[#allocation2 + $0x5a0] sm:$0xff]
        %v2816 = vld [vmem:[#allocation2 + $0x5a8] sm:$0xff]
        %v2817 = vld [vmem:[#allocation2 + $0x5b0] sm:$0xff]
        %v2818 = vld [vmem:[#allocation2 + $0x5b8] sm:$0xff]
        %v2819 = vld [vmem:[#allocation2 + $0x5c0] sm:$0xff]
        %v2820 = vld [vmem:[#allocation2 + $0x5c8] sm:$0xff]
        %v2821 = vld [vmem:[#allocation2 + $0x5d0] sm:$0xff]
        %v2822 = vld [vmem:[#allocation2 + $0x5d8] sm:$0xff]
        %v2823 = vld [vmem:[#allocation2 + $0x5e0] sm:$0xff]
        %v2824 = vld [vmem:[#allocation2 + $0x5e8] sm:$0xff]
        %v2825 = vld [vmem:[#allocation2 + $0x5f0] sm:$0xff]
        %v2826 = vld [vmem:[#allocation2 + $0x5f8] sm:$0xff]
        %v2827 = vld [vmem:[#allocation2 + $0x600] sm:$0xff]
        %v2828 = vld [vmem:[#allocation2 + $0x608] sm:$0xff]
        %v2829 = vld [vmem:[#allocation2 + $0x610] sm:$0xff]
        %v2830 = vld [vmem:[#allocation2 + $0x618] sm:$0xff]
        %v2831 = vld [vmem:[#allocation2 + $0x620] sm:$0xff]
        %v2832 = vld [vmem:[#allocation2 + $0x628] sm:$0xff]
        %v2833 = vld [vmem:[#allocation2 + $0x630] sm:$0xff]
        %v2834 = vld [vmem:[#allocation2 + $0x638] sm:$0xff]
        %v2835 = vld [vmem:[#allocation2 + $0x640] sm:$0xff]
        %v2836 = vld [vmem:[#allocation2 + $0x648] sm:$0xff]
        %v2837 = vld [vmem:[#allocation2 + $0x650] sm:$0xff]
        %v2838 = vld [vmem:[#allocation2 + $0x658] sm:$0xff]
        %v2839 = vld [vmem:[#allocation2 + $0x660] sm:$0xff]
        %v2840 = vld [vmem:[#allocation2 + $0x668] sm:$0xff]
        %v2841 = vld [vmem:[#allocation2 + $0x670] sm:$0xff]
        %v2842 = vld [vmem:[#allocation2 + $0x678] sm:$0xff]
        %v2843 = vld [vmem:[#allocation2 + $0x680] sm:$0xff]
        %v2844 = vld [vmem:[#allocation2 + $0x688] sm:$0xff]
        %v2845 = vld [vmem:[#allocation2 + $0x690] sm:$0xff]
        %v2846 = vld [vmem:[#allocation2 + $0x698] sm:$0xff]
        %v2847 = vld [vmem:[#allocation2 + $0x6a0] sm:$0xff]
        %v2848 = vld [vmem:[#allocation2 + $0x6a8] sm:$0xff]
        %v2849 = vld [vmem:[#allocation2 + $0x6b0] sm:$0xff]
        %v2850 = vld [vmem:[#allocation2 + $0x6b8] sm:$0xff]
        %v2851 = vld [vmem:[#allocation2 + $0x6c0] sm:$0xff]
        %v2852 = vld [vmem:[#allocation2 + $0x6c8] sm:$0xff]
        %v2853 = vld [vmem:[#allocation2 + $0x6d0] sm:$0xff]
        %v2854 = vld [vmem:[#allocation2 + $0x6d8] sm:$0xff]
        %v2855 = vld [vmem:[#allocation2 + $0x6e0] sm:$0xff]
        %v2856 = vld [vmem:[#allocation2 + $0x6e8] sm:$0xff]
        %v2857 = vld [vmem:[#allocation2 + $0x6f0] sm:$0xff]
        %v2858 = vld [vmem:[#allocation2 + $0x6f8] sm:$0xff]
        %v2859 = vld [vmem:[#allocation2 + $0x700] sm:$0xff]
        %v2860 = vld [vmem:[#allocation2 + $0x708] sm:$0xff]
        %v2861 = vld [vmem:[#allocation2 + $0x710] sm:$0xff]
        %v2862 = vld [vmem:[#allocation2 + $0x718] sm:$0xff]
        %v2863 = vld [vmem:[#allocation2 + $0x720] sm:$0xff]
        %v2864 = vld [vmem:[#allocation2 + $0x728] sm:$0xff]
        %v2865 = vld [vmem:[#allocation2 + $0x730] sm:$0xff]
        %v2866 = vld [vmem:[#allocation2 + $0x738] sm:$0xff]
        %v2867 = vld [vmem:[#allocation2 + $0x740] sm:$0xff]
        %v2868 = vld [vmem:[#allocation2 + $0x748] sm:$0xff]
        %v2869 = vld [vmem:[#allocation2 + $0x750] sm:$0xff]
        %v2870 = vld [vmem:[#allocation2 + $0x758] sm:$0xff]
        %v2871 = vld [vmem:[#allocation2 + $0x760] sm:$0xff]
        %v2872 = vld [vmem:[#allocation2 + $0x768] sm:$0xff]
        %v2873 = vld [vmem:[#allocation2 + $0x770] sm:$0xff]
        %v2874 = vld [vmem:[#allocation2 + $0x778] sm:$0xff]
        %v2875 = vld [vmem:[#allocation2 + $0x780] sm:$0xff]
        %v2876 = vld [vmem:[#allocation2 + $0x788] sm:$0xff]
        %v2877 = vld [vmem:[#allocation2 + $0x790] sm:$0xff]
        %v2878 = vld [vmem:[#allocation2 + $0x798] sm:$0xff]
        %v2879 = vld [vmem:[#allocation2 + $0x7a0] sm:$0xff]
        %v2880 = vld [vmem:[#allocation2 + $0x7a8] sm:$0xff]
        %v2881 = vld [vmem:[#allocation2 + $0x7b0] sm:$0xff]
        %v2882 = vld [vmem:[#allocation2 + $0x7b8] sm:$0xff]
        %v2883 = vld [vmem:[#allocation2 + $0x7c0] sm:$0xff]
        %v2884 = vld [vmem:[#allocation2 + $0x7c8] sm:$0xff]
        %v2885 = vld [vmem:[#allocation2 + $0x7d0] sm:$0xff]
        %v2886 = vld [vmem:[#allocation2 + $0x7d8] sm:$0xff]
        %v2887 = vld [vmem:[#allocation2 + $0x7e0] sm:$0xff]
        %v2888 = vld [vmem:[#allocation2 + $0x7e8] sm:$0xff]
        %v2889 = vld [vmem:[#allocation2 + $0x7f0] sm:$0xff]
        %v2890 = vld [vmem:[#allocation2 + $0x7f8] sm:$0xff]
        %v2891 = vld [vmem:[#allocation2 + $0x800] sm:$0xff]
        %v2892 = vld [vmem:[#allocation2 + $0x808] sm:$0xff]
        %v2893 = vld [vmem:[#allocation2 + $0x810] sm:$0xff]
        %v2894 = vld [vmem:[#allocation2 + $0x818] sm:$0xff]
        %v2895 = vld [vmem:[#allocation2 + $0x820] sm:$0xff]
        %v2896 = vld [vmem:[#allocation2 + $0x828] sm:$0xff]
        %v2897 = vld [vmem:[#allocation2 + $0x830] sm:$0xff]
        %v2898 = vld [vmem:[#allocation2 + $0x838] sm:$0xff]
        %v2899 = vld [vmem:[#allocation2 + $0x840] sm:$0xff]
        %v2900 = vld [vmem:[#allocation2 + $0x848] sm:$0xff]
        %v2901 = vld [vmem:[#allocation2 + $0x850] sm:$0xff]
        %v2902 = vld [vmem:[#allocation2 + $0x858] sm:$0xff]
        %v2903 = vld [vmem:[#allocation2 + $0x860] sm:$0xff]
        %v2904 = vld [vmem:[#allocation2 + $0x868] sm:$0xff]
        %v2905 = vld [vmem:[#allocation2 + $0x870] sm:$0xff]
        %v2906 = vld [vmem:[#allocation2 + $0x878] sm:$0xff]
        %v2907 = vld [vmem:[#allocation2 + $0x880] sm:$0xff]
        %v2908 = vld [vmem:[#allocation2 + $0x888] sm:$0xff]
        %v2909 = vld [vmem:[#allocation2 + $0x890] sm:$0xff]
        %v2910 = vld [vmem:[#allocation2 + $0x898] sm:$0xff]
        %v2911 = vld [vmem:[#allocation2 + $0x8a0] sm:$0xff]
        %v2912 = vld [vmem:[#allocation2 + $0x8a8] sm:$0xff]
        %v2913 = vld [vmem:[#allocation2 + $0x8b0] sm:$0xff]
        %v2914 = vld [vmem:[#allocation2 + $0x8b8] sm:$0xff]
        %v2915 = vld [vmem:[#allocation2 + $0x8c0] sm:$0xff]
        %v2916 = vld [vmem:[#allocation2 + $0x8c8] sm:$0xff]
        %v2917 = vld [vmem:[#allocation2 + $0x8d0] sm:$0xff]
        %v2918 = vld [vmem:[#allocation2 + $0x8d8] sm:$0xff]
        %v2919 = vld [vmem:[#allocation2 + $0x8e0] sm:$0xff]
        %v2920 = vld [vmem:[#allocation2 + $0x8e8] sm:$0xff]
        %v2921 = vld [vmem:[#allocation2 + $0x8f0] sm:$0xff]
        %v2922 = vld [vmem:[#allocation2 + $0x8f8] sm:$0xff]
        %v2923 = vld [vmem:[#allocation2 + $0x900] sm:$0xff]
        %v2924 = vld [vmem:[#allocation2 + $0x908] sm:$0xff]
        %v2925 = vld [vmem:[#allocation2 + $0x910] sm:$0xff]
        %v2926 = vld [vmem:[#allocation2 + $0x918] sm:$0xff]
        %v2927 = vld [vmem:[#allocation2 + $0x920] sm:$0xff]
        %v2928 = vld [vmem:[#allocation2 + $0x928] sm:$0xff]
        %v2929 = vld [vmem:[#allocation2 + $0x930] sm:$0xff]
        %v2930 = vld [vmem:[#allocation2 + $0x938] sm:$0xff]
        %v2931 = vld [vmem:[#allocation2 + $0x940] sm:$0xff]
        %v2932 = vld [vmem:[#allocation2 + $0x948] sm:$0xff]
        %v2933 = vld [vmem:[#allocation2 + $0x950] sm:$0xff]
        %v2934 = vld [vmem:[#allocation2 + $0x958] sm:$0xff]
        %v2935 = vld [vmem:[#allocation2 + $0x960] sm:$0xff]
        %v2936 = vld [vmem:[#allocation2 + $0x968] sm:$0xff]
        %v2937 = vld [vmem:[#allocation2 + $0x970] sm:$0xff]
        %v2938 = vld [vmem:[#allocation2 + $0x978] sm:$0xff]
        %v2939 = vld [vmem:[#allocation2 + $0x980] sm:$0xff]
        %v2940 = vld [vmem:[#allocation2 + $0x988] sm:$0xff]
        %v2941 = vld [vmem:[#allocation2 + $0x990] sm:$0xff]
        %v2942 = vld [vmem:[#allocation2 + $0x998] sm:$0xff]
        %v2943 = vld [vmem:[#allocation2 + $0x9a0] sm:$0xff]
        %v2944 = vld [vmem:[#allocation2 + $0x9a8] sm:$0xff]
        %v2945 = vld [vmem:[#allocation2 + $0x9b0] sm:$0xff]
        %v2946 = vld [vmem:[#allocation2 + $0x9b8] sm:$0xff]
        %v2947 = vld [vmem:[#allocation2 + $0x9c0] sm:$0xff]
        %v2948 = vld [vmem:[#allocation2 + $0x9c8] sm:$0xff]
        %v2949 = vld [vmem:[#allocation2 + $0x9d0] sm:$0xff]
        %v2950 = vld [vmem:[#allocation2 + $0x9d8] sm:$0xff]
        %v2951 = vld [vmem:[#allocation2 + $0x9e0] sm:$0xff]
        %v2952 = vld [vmem:[#allocation2 + $0x9e8] sm:$0xff]
        %v2953 = vld [vmem:[#allocation2 + $0x9f0] sm:$0xff]
        %v2954 = vld [vmem:[#allocation2 + $0x9f8] sm:$0xff]
        %v2955 = vld [vmem:[#allocation2 + $0xa00] sm:$0xff]
        %v2956 = vld [vmem:[#allocation2 + $0xa08] sm:$0xff]
        %v2957 = vld [vmem:[#allocation2 + $0xa10] sm:$0xff]
        %v2958 = vld [vmem:[#allocation2 + $0xa18] sm:$0xff]
        %v2959 = vld [vmem:[#allocation2 + $0xa20] sm:$0xff]
        %v2960 = vld [vmem:[#allocation2 + $0xa28] sm:$0xff]
        %v2961 = vld [vmem:[#allocation2 + $0xa30] sm:$0xff]
        %v2962 = vld [vmem:[#allocation2 + $0xa38] sm:$0xff]
        %v2963 = vld [vmem:[#allocation2 + $0xa40] sm:$0xff]
        %v2964 = vld [vmem:[#allocation2 + $0xa48] sm:$0xff]
        %v2965 = vld [vmem:[#allocation2 + $0xa50] sm:$0xff]
        %v2966 = vld [vmem:[#allocation2 + $0xa58] sm:$0xff]
        %v2967 = vld [vmem:[#allocation2 + $0xa60] sm:$0xff]
        %v2968 = vld [vmem:[#allocation2 + $0xa68] sm:$0xff]
        %v2969 = vld [vmem:[#allocation2 + $0xa70] sm:$0xff]
        %v2970 = vld [vmem:[#allocation2 + $0xa78] sm:$0xff]
        %v2971 = vld [vmem:[#allocation2 + $0xa80] sm:$0xff]
        %v2972 = vld [vmem:[#allocation2 + $0xa88] sm:$0xff]
        %v2973 = vld [vmem:[#allocation2 + $0xa90] sm:$0xff]
        %v2974 = vld [vmem:[#allocation2 + $0xa98] sm:$0xff]
        %v2975 = vld [vmem:[#allocation2 + $0xaa0] sm:$0xff]
        %v2976 = vld [vmem:[#allocation2 + $0xaa8] sm:$0xff]
        %v2977 = vld [vmem:[#allocation2 + $0xab0] sm:$0xff]
        %v2978 = vld [vmem:[#allocation2 + $0xab8] sm:$0xff]
        %v2979 = vld [vmem:[#allocation2 + $0xac0] sm:$0xff]
        %v2980 = vld [vmem:[#allocation2 + $0xac8] sm:$0xff]
        %v2981 = vld [vmem:[#allocation2 + $0xad0] sm:$0xff]
        %v2982 = vld [vmem:[#allocation2 + $0xad8] sm:$0xff]
        %v2983 = vld [vmem:[#allocation2 + $0xae0] sm:$0xff]
        %v2984 = vld [vmem:[#allocation2 + $0xae8] sm:$0xff]
        %v2985 = vld [vmem:[#allocation2 + $0xaf0] sm:$0xff]
        %v2986 = vld [vmem:[#allocation2 + $0xaf8] sm:$0xff]
        %v2987 = vld [vmem:[#allocation2 + $0xb00] sm:$0xff]
        %v2988 = vld [vmem:[#allocation2 + $0xb08] sm:$0xff]
        %v2989 = vld [vmem:[#allocation2 + $0xb10] sm:$0xff]
        %v2990 = vld [vmem:[#allocation2 + $0xb18] sm:$0xff]
        %v2991 = vld [vmem:[#allocation2 + $0xb20] sm:$0xff]
        %v2992 = vld [vmem:[#allocation2 + $0xb28] sm:$0xff]
        %v2993 = vld [vmem:[#allocation2 + $0xb30] sm:$0xff]
        %v2994 = vld [vmem:[#allocation2 + $0xb38] sm:$0xff]
        %v2995 = vld [vmem:[#allocation2 + $0xb40] sm:$0xff]
        %v2996 = vld [vmem:[#allocation2 + $0xb48] sm:$0xff]
        %v2997 = vld [vmem:[#allocation2 + $0xb50] sm:$0xff]
        %v2998 = vld [vmem:[#allocation2 + $0xb58] sm:$0xff]
        %v2999 = vld [vmem:[#allocation2 + $0xb60] sm:$0xff]
        %v3000 = vld [vmem:[#allocation2 + $0xb68] sm:$0xff]
        %v3001 = vld [vmem:[#allocation2 + $0xb70] sm:$0xff]
        %v3002 = vld [vmem:[#allocation2 + $0xb78] sm:$0xff]
        %v3003 = vld [vmem:[#allocation2 + $0xb80] sm:$0xff]
        %v3004 = vld [vmem:[#allocation2 + $0xb88] sm:$0xff]
        %v3005 = vld [vmem:[#allocation2 + $0xb90] sm:$0xff]
        %v3006 = vld [vmem:[#allocation2 + $0xb98] sm:$0xff]
        %v3007 = vld [vmem:[#allocation2 + $0xba0] sm:$0xff]
        %v3008 = vld [vmem:[#allocation2 + $0xba8] sm:$0xff]
        %v3009 = vld [vmem:[#allocation2 + $0xbb0] sm:$0xff]
        %v3010 = vld [vmem:[#allocation2 + $0xbb8] sm:$0xff]
        %v3011 = vld [vmem:[#allocation2 + $0xbc0] sm:$0xff]
        %v3012 = vld [vmem:[#allocation2 + $0xbc8] sm:$0xff]
        %v3013 = vld [vmem:[#allocation2 + $0xbd0] sm:$0xff]
        %v3014 = vld [vmem:[#allocation2 + $0xbd8] sm:$0xff]
        %v3015 = vld [vmem:[#allocation2 + $0xbe0] sm:$0xff]
        %v3016 = vld [vmem:[#allocation2 + $0xbe8] sm:$0xff]
        %v3017 = vld [vmem:[#allocation2 + $0xbf0] sm:$0xff]
        %v3018 = vld [vmem:[#allocation2 + $0xbf8] sm:$0xff]
        %v3019 = vld [vmem:[#allocation2 + $0xc00] sm:$0xff]
        %v3020 = vld [vmem:[#allocation2 + $0xc08] sm:$0xff]
        %v3021 = vld [vmem:[#allocation2 + $0xc10] sm:$0xff]
        %v3022 = vld [vmem:[#allocation2 + $0xc18] sm:$0xff]
        %v3023 = vld [vmem:[#allocation2 + $0xc20] sm:$0xff]
        %v3024 = vld [vmem:[#allocation2 + $0xc28] sm:$0xff]
        %v3025 = vld [vmem:[#allocation2 + $0xc30] sm:$0xff]
        %v3026 = vld [vmem:[#allocation2 + $0xc38] sm:$0xff]
        %v3027 = vld [vmem:[#allocation2 + $0xc40] sm:$0xff]
        %v3028 = vld [vmem:[#allocation2 + $0xc48] sm:$0xff]
        %v3029 = vld [vmem:[#allocation2 + $0xc50] sm:$0xff]
        %v3030 = vld [vmem:[#allocation2 + $0xc58] sm:$0xff]
        %v3031 = vld [vmem:[#allocation2 + $0xc60] sm:$0xff]
        %v3032 = vld [vmem:[#allocation2 + $0xc68] sm:$0xff]
        %v3033 = vld [vmem:[#allocation2 + $0xc70] sm:$0xff]
        %v3034 = vld [vmem:[#allocation2 + $0xc78] sm:$0xff]
        %v3035 = vld [vmem:[#allocation2 + $0xc80] sm:$0xff]
        %v3036 = vld [vmem:[#allocation2 + $0xc88] sm:$0xff]
        %v3037 = vld [vmem:[#allocation2 + $0xc90] sm:$0xff]
        %v3038 = vld [vmem:[#allocation2 + $0xc98] sm:$0xff]
        %v3039 = vld [vmem:[#allocation2 + $0xca0] sm:$0xff]
        %v3040 = vld [vmem:[#allocation2 + $0xca8] sm:$0xff]
        %v3041 = vld [vmem:[#allocation2 + $0xcb0] sm:$0xff]
        %v3042 = vld [vmem:[#allocation2 + $0xcb8] sm:$0xff]
        %v3043 = vld [vmem:[#allocation2 + $0xcc0] sm:$0xff]
        %v3044 = vld [vmem:[#allocation2 + $0xcc8] sm:$0xff]
        %v3045 = vld [vmem:[#allocation2 + $0xcd0] sm:$0xff]
        %v3046 = vld [vmem:[#allocation2 + $0xcd8] sm:$0xff]
        %v3047 = vld [vmem:[#allocation2 + $0xce0] sm:$0xff]
        %v3048 = vld [vmem:[#allocation2 + $0xce8] sm:$0xff]
        %v3049 = vld [vmem:[#allocation2 + $0xcf0] sm:$0xff]
        %v3050 = vld [vmem:[#allocation2 + $0xcf8] sm:$0xff]
        %v3051 = vld [vmem:[#allocation2 + $0xd00] sm:$0xff]
        %v3052 = vld [vmem:[#allocation2 + $0xd08] sm:$0xff]
        %v3053 = vld [vmem:[#allocation2 + $0xd10] sm:$0xff]
        %v3054 = vld [vmem:[#allocation2 + $0xd18] sm:$0xff]
        %v3055 = vld [vmem:[#allocation2 + $0xd20] sm:$0xff]
        %v3056 = vld [vmem:[#allocation2 + $0xd28] sm:$0xff]
        %v3057 = vld [vmem:[#allocation2 + $0xd30] sm:$0xff]
        %v3058 = vld [vmem:[#allocation2 + $0xd38] sm:$0xff]
        %v3059 = vld [vmem:[#allocation2 + $0xd40] sm:$0xff]
        %v3060 = vld [vmem:[#allocation2 + $0xd48] sm:$0xff]
        %v3061 = vld [vmem:[#allocation2 + $0xd50] sm:$0xff]
        %v3062 = vld [vmem:[#allocation2 + $0xd58] sm:$0xff]
        %v3063 = vld [vmem:[#allocation2 + $0xd60] sm:$0xff]
        %v3064 = vld [vmem:[#allocation2 + $0xd68] sm:$0xff]
        %v3065 = vld [vmem:[#allocation2 + $0xd70] sm:$0xff]
        %v3066 = vld [vmem:[#allocation2 + $0xd78] sm:$0xff]
        %v3067 = vld [vmem:[%s5] sm:$0xff]
        %v3068 = vld [vmem:[%s5 + $0x8] sm:$0xff]
        %3070 = vset.pattern.permute.xlu0 0
        %3071 = vperm.xlu0 %3070, %v3067
        %v3072 = vpop.permute.xlu0 %3071
        %3075 = vset.pattern.permute.xlu0 0
        %3076 = vperm.xlu0 %3075, %v3068
        %v3077 = vpop.permute.xlu0 %3076
        %vm3079 = vcmask 392192
        %v3081 = vsel %vm3079, %v2630, 0
        %v3084 = vsel %vm3079, %v2634, 0
        %3086 = vmatprep.subr.mxu0 %v2756
        %3087 = vmatpush1.msra.mxu0 %v2755
        %3088 = vmatprep.subr.mxu0 %v2748
        %3089 = vmatpush1.msra.mxu0 %v2747
        %3090 = vmatprep.subr.mxu0 %v2740
        %3091 = vmatpush1.msra.mxu0 %v2739
        %3092 = vmatprep.subr.mxu0 %v2732
        %3093 = vmatpush1.msra.mxu0 %v2731
        %3094 = vmatprep.subr.mxu0 %v2724
        %3095 = vmatpush1.msra.mxu0 %v2723
        %3096 = vmatprep.subr.mxu0 %v2716
        %3097 = vmatpush1.msra.mxu0 %v2715
        %3098 = vmatprep.subr.mxu0 %v2708
        %3099 = vmatpush1.msra.mxu0 %v2707
        %3100 = vmatprep.subr.mxu0 %v2700
        %3101 = vmatpush1.msra.mxu0 %v2699
        %3102 = vmatprep.subr.mxu0 %v2692
        %3103 = vmatpush1.msra.mxu0 %v2691
        %3104 = vmatprep.subr.mxu0 %v2684
        %3105 = vmatpush1.msra.mxu0 %v2683
        %3106 = vmatprep.subr.mxu0 %v2676
        %3107 = vmatpush1.msra.mxu0 %v2675
        %3108 = vmatprep.subr.mxu0 %v2668
        %3109 = vmatpush1.msra.mxu0 %v2667
        %3110 = vmatprep.subr.mxu0 %v2660
        %3111 = vmatpush1.msra.mxu0 %v2659
        %3112 = vmatprep.subr.mxu0 %v2652
        %3113 = vmatpush1.msra.mxu0 %v2651
        %3114 = vmatprep.subr.mxu0 %v2644
        %3115 = vmatpush1.msra.mxu0 %v2643
        %3116 = vmatprep.subr.mxu0 %v2636
        %3117 = vmatpush1.msra.mxu0 %v2635
        %3118 = vmatprep.subr.mxu0 %v2884
        %3119 = vmatpush2.msra.mxu0 %v2883
        %3120 = vmatprep.subr.mxu0 %v2876
        %3121 = vmatpush2.msra.mxu0 %v2875
        %3122 = vmatprep.subr.mxu0 %v2868
        %3123 = vmatpush2.msra.mxu0 %v2867
        %3124 = vmatprep.subr.mxu0 %v2860
        %3125 = vmatpush2.msra.mxu0 %v2859
        %3126 = vmatprep.subr.mxu0 %v2852
        %3127 = vmatpush2.msra.mxu0 %v2851
        %3128 = vmatprep.subr.mxu0 %v2844
        %3129 = vmatpush2.msra.mxu0 %v2843
        %3130 = vmatprep.subr.mxu0 %v2836
        %3131 = vmatpush2.msra.mxu0 %v2835
        %3132 = vmatprep.subr.mxu0 %v2828
        %3133 = vmatpush2.msra.mxu0 %v2827
        %3134 = vmatprep.subr.mxu0 %v2820
        %3135 = vmatpush2.msra.mxu0 %v2819
        %3136 = vmatprep.subr.mxu0 %v2812
        %3137 = vmatpush2.msra.mxu0 %v2811
        %3138 = vmatprep.subr.mxu0 %v2804
        %3139 = vmatpush2.msra.mxu0 %v2803
        %3140 = vmatprep.subr.mxu0 %v2796
        %3141 = vmatpush2.msra.mxu0 %v2795
        %3142 = vmatprep.subr.mxu0 %v2788
        %3143 = vmatpush2.msra.mxu0 %v2787
        %3144 = vmatprep.subr.mxu0 %v2780
        %3145 = vmatpush2.msra.mxu0 %v2779
        %3146 = vmatprep.subr.mxu0 %v2772
        %3147 = vmatpush2.msra.mxu0 %v2771
        %3148 = vmatprep.subr.mxu0 %v2764
        %3149 = vmatpush2.msra.mxu0 %v2763
        %3150 = vmatprep.mubr.f32.mxu0 %v2628
        %3151 = vmatmul.mubr.f32.gmra.mxu0 %v2627
        %v3152 = vpop.f32.mrf.mxu0
        %v3153 = vadd.f32 %v3072, %v3152
        %v3154 = vpop.f32.mrf.mxu0
        %v3155 = vadd.f32 %v3072, %v3154
        %3156 = vmatprep.mubr.f32.mxu0 %v2632
        %3157 = vmatmul.mubr.f32.gmra.mxu0 %v2631
        %v3158 = vpop.f32.mrf.mxu0
        %v3159 = vadd.f32 %v3077, %v3158
        %v3160 = vpop.f32.mrf.mxu0
        %v3161 = vadd.f32 %v3077, %v3160
        %3162 = vdwg.mxu0
        %3163 = vmatprep.subr.mxu0 %v3012
        %3164 = vmatpush1.msra.mxu0 %v3011
        %3165 = vmatprep.subr.mxu0 %v3004
        %3166 = vmatpush1.msra.mxu0 %v3003
        %3167 = vmatprep.subr.mxu0 %v2996
        %3168 = vmatpush1.msra.mxu0 %v2995
        %3169 = vmatprep.subr.mxu0 %v2988
        %3170 = vmatpush1.msra.mxu0 %v2987
        %3171 = vmatprep.subr.mxu0 %v2980
        %3172 = vmatpush1.msra.mxu0 %v2979
        %3173 = vmatprep.subr.mxu0 %v2972
        %3174 = vmatpush1.msra.mxu0 %v2971
        %3175 = vmatprep.subr.mxu0 %v2964
        %3176 = vmatpush1.msra.mxu0 %v2963
        %3177 = vmatprep.subr.mxu0 %v2956
        %3178 = vmatpush1.msra.mxu0 %v2955
        %3179 = vmatprep.subr.mxu0 %v2948
        %3180 = vmatpush1.msra.mxu0 %v2947
        %3181 = vmatprep.subr.mxu0 %v2940
        %3182 = vmatpush1.msra.mxu0 %v2939
        %3183 = vmatprep.subr.mxu0 %v2932
        %3184 = vmatpush1.msra.mxu0 %v2931
        %3185 = vmatprep.subr.mxu0 %v2924
        %3186 = vmatpush1.msra.mxu0 %v2923
        %3187 = vmatprep.subr.mxu0 %v2916
        %3188 = vmatpush1.msra.mxu0 %v2915
        %3189 = vmatprep.subr.mxu0 %v2908
        %3190 = vmatpush1.msra.mxu0 %v2907
        %3191 = vmatprep.subr.mxu0 %v2900
        %3192 = vmatpush1.msra.mxu0 %v2899
        %3193 = vmatprep.subr.mxu0 %v2892
        %3194 = vmatpush1.msra.mxu0 %v2891
        %3195 = vmatprep.subr.mxu0 0.0
        %3196 = vmatpush2.msra.mxu0 0.0
        %3197 = vmatprep.subr.mxu0 0.0
        %3198 = vmatpush2.msra.mxu0 0.0
        %3199 = vmatprep.subr.mxu0 0.0
        %3200 = vmatpush2.msra.mxu0 0.0
        %3201 = vmatprep.subr.mxu0 0.0
        %3202 = vmatpush2.msra.mxu0 0.0
        %3203 = vmatprep.subr.mxu0 0.0
        %3204 = vmatpush2.msra.mxu0 0.0
        %3205 = vmatprep.subr.mxu0 0.0
        %3206 = vmatpush2.msra.mxu0 0.0
        %3207 = vmatprep.subr.mxu0 0.0
        %3208 = vmatpush2.msra.mxu0 0.0
        %3209 = vmatprep.subr.mxu0 0.0
        %3210 = vmatpush2.msra.mxu0 0.0
        %3211 = vmatprep.subr.mxu0 0.0
        %3212 = vmatpush2.msra.mxu0 0.0
        %3213 = vmatprep.subr.mxu0 0.0
        %3214 = vmatpush2.msra.mxu0 0.0
        %3215 = vmatprep.subr.mxu0 %v3060
        %3216 = vmatpush2.msra.mxu0 %v3059
        %3217 = vmatprep.subr.mxu0 %v3052
        %3218 = vmatpush2.msra.mxu0 %v3051
        %3219 = vmatprep.subr.mxu0 %v3044
        %3220 = vmatpush2.msra.mxu0 %v3043
        %3221 = vmatprep.subr.mxu0 %v3036
        %3222 = vmatpush2.msra.mxu0 %v3035
        %3223 = vmatprep.subr.mxu0 %v3028
        %3224 = vmatpush2.msra.mxu0 %v3027
        %3225 = vmatprep.subr.mxu0 %v3020
        %3226 = vmatpush2.msra.mxu0 %v3019
        %3227 = vmatprep.mubr.f32.mxu0 %v3081
        %3228 = vmatmul.mubr.f32.gmra.mxu0 %v2629
        %v3229 = vpop.f32.mrf.mxu0
        %v3230 = vadd.f32 %v3153, %v3229
        %v3231 = vpop.f32.mrf.mxu0
        %v3232 = vadd.f32 %v3155, %v3231
        %3233 = vmatprep.mubr.f32.mxu0 %v3084
        %3234 = vmatmul.mubr.f32.gmra.mxu0 %v2633
        %v3235 = vpop.f32.mrf.mxu0
        %v3236 = vadd.f32 %v3159, %v3235
        %v3237 = vpop.f32.mrf.mxu0
        %v3238 = vadd.f32 %v3161, %v3237
        %3239 = vdwg.mxu0
        %3240 = vmatprep.subr.mxu0 %v2758
        %3241 = vmatpush1.msra.mxu0 %v2757
        %3242 = vmatprep.subr.mxu0 %v2750
        %3243 = vmatpush1.msra.mxu0 %v2749
        %3244 = vmatprep.subr.mxu0 %v2742
        %3245 = vmatpush1.msra.mxu0 %v2741
        %3246 = vmatprep.subr.mxu0 %v2734
        %3247 = vmatpush1.msra.mxu0 %v2733
        %3248 = vmatprep.subr.mxu0 %v2726
        %3249 = vmatpush1.msra.mxu0 %v2725
        %3250 = vmatprep.subr.mxu0 %v2718
        %3251 = vmatpush1.msra.mxu0 %v2717
        %3252 = vmatprep.subr.mxu0 %v2710
        %3253 = vmatpush1.msra.mxu0 %v2709
        %3254 = vmatprep.subr.mxu0 %v2702
        %3255 = vmatpush1.msra.mxu0 %v2701
        %3256 = vmatprep.subr.mxu0 %v2694
        %3257 = vmatpush1.msra.mxu0 %v2693
        %3258 = vmatprep.subr.mxu0 %v2686
        %3259 = vmatpush1.msra.mxu0 %v2685
        %3260 = vmatprep.subr.mxu0 %v2678
        %3261 = vmatpush1.msra.mxu0 %v2677
        %3262 = vmatprep.subr.mxu0 %v2670
        %3263 = vmatpush1.msra.mxu0 %v2669
        %3264 = vmatprep.subr.mxu0 %v2662
        %3265 = vmatpush1.msra.mxu0 %v2661
        %3266 = vmatprep.subr.mxu0 %v2654
        %3267 = vmatpush1.msra.mxu0 %v2653
        %3268 = vmatprep.subr.mxu0 %v2646
        %3269 = vmatpush1.msra.mxu0 %v2645
        %3270 = vmatprep.subr.mxu0 %v2638
        %3271 = vmatpush1.msra.mxu0 %v2637
        %3272 = vmatprep.subr.mxu0 %v2886
        %3273 = vmatpush2.msra.mxu0 %v2885
        %3274 = vmatprep.subr.mxu0 %v2878
        %3275 = vmatpush2.msra.mxu0 %v2877
        %3276 = vmatprep.subr.mxu0 %v2870
        %3277 = vmatpush2.msra.mxu0 %v2869
        %3278 = vmatprep.subr.mxu0 %v2862
        %3279 = vmatpush2.msra.mxu0 %v2861
        %3280 = vmatprep.subr.mxu0 %v2854
        %3281 = vmatpush2.msra.mxu0 %v2853
        %3282 = vmatprep.subr.mxu0 %v2846
        %3283 = vmatpush2.msra.mxu0 %v2845
        %3284 = vmatprep.subr.mxu0 %v2838
        %3285 = vmatpush2.msra.mxu0 %v2837
        %3286 = vmatprep.subr.mxu0 %v2830
        %3287 = vmatpush2.msra.mxu0 %v2829
        %3288 = vmatprep.subr.mxu0 %v2822
        %3289 = vmatpush2.msra.mxu0 %v2821
        %3290 = vmatprep.subr.mxu0 %v2814
        %3291 = vmatpush2.msra.mxu0 %v2813
        %3292 = vmatprep.subr.mxu0 %v2806
        %3293 = vmatpush2.msra.mxu0 %v2805
        %3294 = vmatprep.subr.mxu0 %v2798
        %3295 = vmatpush2.msra.mxu0 %v2797
        %3296 = vmatprep.subr.mxu0 %v2790
        %3297 = vmatpush2.msra.mxu0 %v2789
        %3298 = vmatprep.subr.mxu0 %v2782
        %3299 = vmatpush2.msra.mxu0 %v2781
        %3300 = vmatprep.subr.mxu0 %v2774
        %3301 = vmatpush2.msra.mxu0 %v2773
        %3302 = vmatprep.subr.mxu0 %v2766
        %3303 = vmatpush2.msra.mxu0 %v2765
        %3304 = vmatprep.mubr.f32.mxu0 %v2628
        %3305 = vmatmul.mubr.f32.gmra.mxu0 %v2627
        %v3306 = vpop.f32.mrf.mxu0
        %v3307 = vadd.f32 %v3072, %v3306
        %v3308 = vpop.f32.mrf.mxu0
        %v3309 = vadd.f32 %v3072, %v3308
        %3310 = vmatprep.mubr.f32.mxu0 %v2632
        %3311 = vmatmul.mubr.f32.gmra.mxu0 %v2631
        %v3312 = vpop.f32.mrf.mxu0
        %v3313 = vadd.f32 %v3077, %v3312
        %v3314 = vpop.f32.mrf.mxu0
        %v3315 = vadd.f32 %v3077, %v3314
        %3316 = vdwg.mxu0
        %3317 = vmatprep.subr.mxu0 %v3014
        %3318 = vmatpush1.msra.mxu0 %v3013
        %3319 = vmatprep.subr.mxu0 %v3006
        %3320 = vmatpush1.msra.mxu0 %v3005
        %3321 = vmatprep.subr.mxu0 %v2998
        %3322 = vmatpush1.msra.mxu0 %v2997
        %3323 = vmatprep.subr.mxu0 %v2990
        %3324 = vmatpush1.msra.mxu0 %v2989
        %3325 = vmatprep.subr.mxu0 %v2982
        %3326 = vmatpush1.msra.mxu0 %v2981
        %3327 = vmatprep.subr.mxu0 %v2974
        %3328 = vmatpush1.msra.mxu0 %v2973
        %3329 = vmatprep.subr.mxu0 %v2966
        %3330 = vmatpush1.msra.mxu0 %v2965
        %3331 = vmatprep.subr.mxu0 %v2958
        %3332 = vmatpush1.msra.mxu0 %v2957
        %3333 = vmatprep.subr.mxu0 %v2950
        %3334 = vmatpush1.msra.mxu0 %v2949
        %3335 = vmatprep.subr.mxu0 %v2942
        %3336 = vmatpush1.msra.mxu0 %v2941
        %3337 = vmatprep.subr.mxu0 %v2934
        %3338 = vmatpush1.msra.mxu0 %v2933
        %3339 = vmatprep.subr.mxu0 %v2926
        %3340 = vmatpush1.msra.mxu0 %v2925
        %3341 = vmatprep.subr.mxu0 %v2918
        %3342 = vmatpush1.msra.mxu0 %v2917
        %3343 = vmatprep.subr.mxu0 %v2910
        %3344 = vmatpush1.msra.mxu0 %v2909
        %3345 = vmatprep.subr.mxu0 %v2902
        %3346 = vmatpush1.msra.mxu0 %v2901
        %3347 = vmatprep.subr.mxu0 %v2894
        %3348 = vmatpush1.msra.mxu0 %v2893
        %3349 = vmatprep.subr.mxu0 0.0
        %3350 = vmatpush2.msra.mxu0 0.0
        %3351 = vmatprep.subr.mxu0 0.0
        %3352 = vmatpush2.msra.mxu0 0.0
        %3353 = vmatprep.subr.mxu0 0.0
        %3354 = vmatpush2.msra.mxu0 0.0
        %3355 = vmatprep.subr.mxu0 0.0
        %3356 = vmatpush2.msra.mxu0 0.0
        %3357 = vmatprep.subr.mxu0 0.0
        %3358 = vmatpush2.msra.mxu0 0.0
        %3359 = vmatprep.subr.mxu0 0.0
        %3360 = vmatpush2.msra.mxu0 0.0
        %3361 = vmatprep.subr.mxu0 0.0
        %3362 = vmatpush2.msra.mxu0 0.0
        %3363 = vmatprep.subr.mxu0 0.0
        %3364 = vmatpush2.msra.mxu0 0.0
        %3365 = vmatprep.subr.mxu0 0.0
        %3366 = vmatpush2.msra.mxu0 0.0
        %3367 = vmatprep.subr.mxu0 0.0
        %3368 = vmatpush2.msra.mxu0 0.0
        %3369 = vmatprep.subr.mxu0 %v3062
        %3370 = vmatpush2.msra.mxu0 %v3061
        %3371 = vmatprep.subr.mxu0 %v3054
        %3372 = vmatpush2.msra.mxu0 %v3053
        %3373 = vmatprep.subr.mxu0 %v3046
        %3374 = vmatpush2.msra.mxu0 %v3045
        %3375 = vmatprep.subr.mxu0 %v3038
        %3376 = vmatpush2.msra.mxu0 %v3037
        %3377 = vmatprep.subr.mxu0 %v3030
        %3378 = vmatpush2.msra.mxu0 %v3029
        %3379 = vmatprep.subr.mxu0 %v3022
        %3380 = vmatpush2.msra.mxu0 %v3021
        %3381 = vmatprep.mubr.f32.mxu0 %v3081
        %3382 = vmatmul.mubr.f32.gmra.mxu0 %v2629
        %v3383 = vpop.f32.mrf.mxu0
        %v3384 = vadd.f32 %v3307, %v3383
        %v3385 = vpop.f32.mrf.mxu0
        %v3386 = vadd.f32 %v3309, %v3385
        %3387 = vmatprep.mubr.f32.mxu0 %v3084
        %3388 = vmatmul.mubr.f32.gmra.mxu0 %v2633
        %v3389 = vpop.f32.mrf.mxu0
        %v3390 = vadd.f32 %v3313, %v3389
        %v3391 = vpop.f32.mrf.mxu0
        %v3392 = vadd.f32 %v3315, %v3391
        %3393 = vdwg.mxu0
        %3394 = vmatprep.subr.mxu0 %v2760
        %3395 = vmatpush1.msra.mxu0 %v2759
        %3396 = vmatprep.subr.mxu0 %v2752
        %3397 = vmatpush1.msra.mxu0 %v2751
        %3398 = vmatprep.subr.mxu0 %v2744
        %3399 = vmatpush1.msra.mxu0 %v2743
        %3400 = vmatprep.subr.mxu0 %v2736
        %3401 = vmatpush1.msra.mxu0 %v2735
        %3402 = vmatprep.subr.mxu0 %v2728
        %3403 = vmatpush1.msra.mxu0 %v2727
        %3404 = vmatprep.subr.mxu0 %v2720
        %3405 = vmatpush1.msra.mxu0 %v2719
        %3406 = vmatprep.subr.mxu0 %v2712
        %3407 = vmatpush1.msra.mxu0 %v2711
        %3408 = vmatprep.subr.mxu0 %v2704
        %3409 = vmatpush1.msra.mxu0 %v2703
        %3410 = vmatprep.subr.mxu0 %v2696
        %3411 = vmatpush1.msra.mxu0 %v2695
        %3412 = vmatprep.subr.mxu0 %v2688
        %3413 = vmatpush1.msra.mxu0 %v2687
        %3414 = vmatprep.subr.mxu0 %v2680
        %3415 = vmatpush1.msra.mxu0 %v2679
        %3416 = vmatprep.subr.mxu0 %v2672
        %3417 = vmatpush1.msra.mxu0 %v2671
        %3418 = vmatprep.subr.mxu0 %v2664
        %3419 = vmatpush1.msra.mxu0 %v2663
        %3420 = vmatprep.subr.mxu0 %v2656
        %3421 = vmatpush1.msra.mxu0 %v2655
        %3422 = vmatprep.subr.mxu0 %v2648
        %3423 = vmatpush1.msra.mxu0 %v2647
        %3424 = vmatprep.subr.mxu0 %v2640
        %3425 = vmatpush1.msra.mxu0 %v2639
        %3426 = vmatprep.subr.mxu0 %v2888
        %3427 = vmatpush2.msra.mxu0 %v2887
        %3428 = vmatprep.subr.mxu0 %v2880
        %3429 = vmatpush2.msra.mxu0 %v2879
        %3430 = vmatprep.subr.mxu0 %v2872
        %3431 = vmatpush2.msra.mxu0 %v2871
        %3432 = vmatprep.subr.mxu0 %v2864
        %3433 = vmatpush2.msra.mxu0 %v2863
        %3434 = vmatprep.subr.mxu0 %v2856
        %3435 = vmatpush2.msra.mxu0 %v2855
        %3436 = vmatprep.subr.mxu0 %v2848
        %3437 = vmatpush2.msra.mxu0 %v2847
        %3438 = vmatprep.subr.mxu0 %v2840
        %3439 = vmatpush2.msra.mxu0 %v2839
        %3440 = vmatprep.subr.mxu0 %v2832
        %3441 = vmatpush2.msra.mxu0 %v2831
        %3442 = vmatprep.subr.mxu0 %v2824
        %3443 = vmatpush2.msra.mxu0 %v2823
        %3444 = vmatprep.subr.mxu0 %v2816
        %3445 = vmatpush2.msra.mxu0 %v2815
        %3446 = vmatprep.subr.mxu0 %v2808
        %3447 = vmatpush2.msra.mxu0 %v2807
        %3448 = vmatprep.subr.mxu0 %v2800
        %3449 = vmatpush2.msra.mxu0 %v2799
        %3450 = vmatprep.subr.mxu0 %v2792
        %3451 = vmatpush2.msra.mxu0 %v2791
        %3452 = vmatprep.subr.mxu0 %v2784
        %3453 = vmatpush2.msra.mxu0 %v2783
        %3454 = vmatprep.subr.mxu0 %v2776
        %3455 = vmatpush2.msra.mxu0 %v2775
        %3456 = vmatprep.subr.mxu0 %v2768
        %3457 = vmatpush2.msra.mxu0 %v2767
        %3458 = vmatprep.mubr.f32.mxu0 %v2628
        %3459 = vmatmul.mubr.f32.gmra.mxu0 %v2627
        %v3460 = vpop.f32.mrf.mxu0
        %v3461 = vadd.f32 %v3072, %v3460
        %v3462 = vpop.f32.mrf.mxu0
        %v3463 = vadd.f32 %v3072, %v3462
        %3464 = vmatprep.mubr.f32.mxu0 %v2632
        %3465 = vmatmul.mubr.f32.gmra.mxu0 %v2631
        %v3466 = vpop.f32.mrf.mxu0
        %v3467 = vadd.f32 %v3077, %v3466
        %v3468 = vpop.f32.mrf.mxu0
        %v3469 = vadd.f32 %v3077, %v3468
        %3470 = vdwg.mxu0
        %3471 = vmatprep.subr.mxu0 %v3016
        %3472 = vmatpush1.msra.mxu0 %v3015
        %3473 = vmatprep.subr.mxu0 %v3008
        %3474 = vmatpush1.msra.mxu0 %v3007
        %3475 = vmatprep.subr.mxu0 %v3000
        %3476 = vmatpush1.msra.mxu0 %v2999
        %3477 = vmatprep.subr.mxu0 %v2992
        %3478 = vmatpush1.msra.mxu0 %v2991
        %3479 = vmatprep.subr.mxu0 %v2984
        %3480 = vmatpush1.msra.mxu0 %v2983
        %3481 = vmatprep.subr.mxu0 %v2976
        %3482 = vmatpush1.msra.mxu0 %v2975
        %3483 = vmatprep.subr.mxu0 %v2968
        %3484 = vmatpush1.msra.mxu0 %v2967
        %3485 = vmatprep.subr.mxu0 %v2960
        %3486 = vmatpush1.msra.mxu0 %v2959
        %3487 = vmatprep.subr.mxu0 %v2952
        %3488 = vmatpush1.msra.mxu0 %v2951
        %3489 = vmatprep.subr.mxu0 %v2944
        %3490 = vmatpush1.msra.mxu0 %v2943
        %3491 = vmatprep.subr.mxu0 %v2936
        %3492 = vmatpush1.msra.mxu0 %v2935
        %3493 = vmatprep.subr.mxu0 %v2928
        %3494 = vmatpush1.msra.mxu0 %v2927
        %3495 = vmatprep.subr.mxu0 %v2920
        %3496 = vmatpush1.msra.mxu0 %v2919
        %3497 = vmatprep.subr.mxu0 %v2912
        %3498 = vmatpush1.msra.mxu0 %v2911
        %3499 = vmatprep.subr.mxu0 %v2904
        %3500 = vmatpush1.msra.mxu0 %v2903
        %3501 = vmatprep.subr.mxu0 %v2896
        %3502 = vmatpush1.msra.mxu0 %v2895
        %3503 = vmatprep.subr.mxu0 0.0
        %3504 = vmatpush2.msra.mxu0 0.0
        %3505 = vmatprep.subr.mxu0 0.0
        %3506 = vmatpush2.msra.mxu0 0.0
        %3507 = vmatprep.subr.mxu0 0.0
        %3508 = vmatpush2.msra.mxu0 0.0
        %3509 = vmatprep.subr.mxu0 0.0
        %3510 = vmatpush2.msra.mxu0 0.0
        %3511 = vmatprep.subr.mxu0 0.0
        %3512 = vmatpush2.msra.mxu0 0.0
        %3513 = vmatprep.subr.mxu0 0.0
        %3514 = vmatpush2.msra.mxu0 0.0
        %3515 = vmatprep.subr.mxu0 0.0
        %3516 = vmatpush2.msra.mxu0 0.0
        %3517 = vmatprep.subr.mxu0 0.0
        %3518 = vmatpush2.msra.mxu0 0.0
        %3519 = vmatprep.subr.mxu0 0.0
        %3520 = vmatpush2.msra.mxu0 0.0
        %3521 = vmatprep.subr.mxu0 0.0
        %3522 = vmatpush2.msra.mxu0 0.0
        %3523 = vmatprep.subr.mxu0 %v3064
        %3524 = vmatpush2.msra.mxu0 %v3063
        %3525 = vmatprep.subr.mxu0 %v3056
        %3526 = vmatpush2.msra.mxu0 %v3055
        %3527 = vmatprep.subr.mxu0 %v3048
        %3528 = vmatpush2.msra.mxu0 %v3047
        %3529 = vmatprep.subr.mxu0 %v3040
        %3530 = vmatpush2.msra.mxu0 %v3039
        %3531 = vmatprep.subr.mxu0 %v3032
        %3532 = vmatpush2.msra.mxu0 %v3031
        %3533 = vmatprep.subr.mxu0 %v3024
        %3534 = vmatpush2.msra.mxu0 %v3023
        %3535 = vmatprep.mubr.f32.mxu0 %v3081
        %3536 = vmatmul.mubr.f32.gmra.mxu0 %v2629
        %v3537 = vpop.f32.mrf.mxu0
        %v3538 = vadd.f32 %v3461, %v3537
        %v3539 = vpop.f32.mrf.mxu0
        %v3540 = vadd.f32 %v3463, %v3539
        %3541 = vmatprep.mubr.f32.mxu0 %v3084
        %3542 = vmatmul.mubr.f32.gmra.mxu0 %v2633
        %v3543 = vpop.f32.mrf.mxu0
        %v3544 = vadd.f32 %v3467, %v3543
        %v3545 = vpop.f32.mrf.mxu0
        %v3546 = vadd.f32 %v3469, %v3545
        %3547 = vdwg.mxu0
        %3548 = vmatprep.subr.mxu0 %v2762
        %3549 = vmatpush1.msra.mxu0 %v2761
        %3550 = vmatprep.subr.mxu0 %v2754
        %3551 = vmatpush1.msra.mxu0 %v2753
        %3552 = vmatprep.subr.mxu0 %v2746
        %3553 = vmatpush1.msra.mxu0 %v2745
        %3554 = vmatprep.subr.mxu0 %v2738
        %3555 = vmatpush1.msra.mxu0 %v2737
        %3556 = vmatprep.subr.mxu0 %v2730
        %3557 = vmatpush1.msra.mxu0 %v2729
        %3558 = vmatprep.subr.mxu0 %v2722
        %3559 = vmatpush1.msra.mxu0 %v2721
        %3560 = vmatprep.subr.mxu0 %v2714
        %3561 = vmatpush1.msra.mxu0 %v2713
        %3562 = vmatprep.subr.mxu0 %v2706
        %3563 = vmatpush1.msra.mxu0 %v2705
        %3564 = vmatprep.subr.mxu0 %v2698
        %3565 = vmatpush1.msra.mxu0 %v2697
        %3566 = vmatprep.subr.mxu0 %v2690
        %3567 = vmatpush1.msra.mxu0 %v2689
        %3568 = vmatprep.subr.mxu0 %v2682
        %3569 = vmatpush1.msra.mxu0 %v2681
        %3570 = vmatprep.subr.mxu0 %v2674
        %3571 = vmatpush1.msra.mxu0 %v2673
        %3572 = vmatprep.subr.mxu0 %v2666
        %3573 = vmatpush1.msra.mxu0 %v2665
        %3574 = vmatprep.subr.mxu0 %v2658
        %3575 = vmatpush1.msra.mxu0 %v2657
        %3576 = vmatprep.subr.mxu0 %v2650
        %3577 = vmatpush1.msra.mxu0 %v2649
        %3578 = vmatprep.subr.mxu0 %v2642
        %3579 = vmatpush1.msra.mxu0 %v2641
        %3580 = vmatprep.subr.mxu0 %v2890
        %3581 = vmatpush2.msra.mxu0 %v2889
        %3582 = vmatprep.subr.mxu0 %v2882
        %3583 = vmatpush2.msra.mxu0 %v2881
        %3584 = vmatprep.subr.mxu0 %v2874
        %3585 = vmatpush2.msra.mxu0 %v2873
        %3586 = vmatprep.subr.mxu0 %v2866
        %3587 = vmatpush2.msra.mxu0 %v2865
        %3588 = vmatprep.subr.mxu0 %v2858
        %3589 = vmatpush2.msra.mxu0 %v2857
        %3590 = vmatprep.subr.mxu0 %v2850
        %3591 = vmatpush2.msra.mxu0 %v2849
        %3592 = vmatprep.subr.mxu0 %v2842
        %3593 = vmatpush2.msra.mxu0 %v2841
        %3594 = vmatprep.subr.mxu0 %v2834
        %3595 = vmatpush2.msra.mxu0 %v2833
        %3596 = vmatprep.subr.mxu0 %v2826
        %3597 = vmatpush2.msra.mxu0 %v2825
        %3598 = vmatprep.subr.mxu0 %v2818
        %3599 = vmatpush2.msra.mxu0 %v2817
        %3600 = vmatprep.subr.mxu0 %v2810
        %3601 = vmatpush2.msra.mxu0 %v2809
        %3602 = vmatprep.subr.mxu0 %v2802
        %3603 = vmatpush2.msra.mxu0 %v2801
        %3604 = vmatprep.subr.mxu0 %v2794
        %3605 = vmatpush2.msra.mxu0 %v2793
        %3606 = vmatprep.subr.mxu0 %v2786
        %3607 = vmatpush2.msra.mxu0 %v2785
        %3608 = vmatprep.subr.mxu0 %v2778
        %3609 = vmatpush2.msra.mxu0 %v2777
        %3610 = vmatprep.subr.mxu0 %v2770
        %3611 = vmatpush2.msra.mxu0 %v2769
        %3612 = vmatprep.mubr.f32.mxu0 %v2628
        %3613 = vmatmul.mubr.f32.gmra.mxu0 %v2627
        %v3614 = vpop.f32.mrf.mxu0
        %v3615 = vadd.f32 %v3072, %v3614
        %v3616 = vpop.f32.mrf.mxu0
        %v3617 = vadd.f32 %v3072, %v3616
        %3618 = vmatprep.mubr.f32.mxu0 %v2632
        %3619 = vmatmul.mubr.f32.gmra.mxu0 %v2631
        %v3620 = vpop.f32.mrf.mxu0
        %v3621 = vadd.f32 %v3077, %v3620
        %v3622 = vpop.f32.mrf.mxu0
        %v3623 = vadd.f32 %v3077, %v3622
        %3624 = vdwg.mxu0
        %3625 = vmatprep.subr.mxu0 %v3018
        %3626 = vmatpush1.msra.mxu0 %v3017
        %3627 = vmatprep.subr.mxu0 %v3010
        %3628 = vmatpush1.msra.mxu0 %v3009
        %3629 = vmatprep.subr.mxu0 %v3002
        %3630 = vmatpush1.msra.mxu0 %v3001
        %3631 = vmatprep.subr.mxu0 %v2994
        %3632 = vmatpush1.msra.mxu0 %v2993
        %3633 = vmatprep.subr.mxu0 %v2986
        %3634 = vmatpush1.msra.mxu0 %v2985
        %3635 = vmatprep.subr.mxu0 %v2978
        %3636 = vmatpush1.msra.mxu0 %v2977
        %3637 = vmatprep.subr.mxu0 %v2970
        %3638 = vmatpush1.msra.mxu0 %v2969
        %3639 = vmatprep.subr.mxu0 %v2962
        %3640 = vmatpush1.msra.mxu0 %v2961
        %3641 = vmatprep.subr.mxu0 %v2954
        %3642 = vmatpush1.msra.mxu0 %v2953
        %3643 = vmatprep.subr.mxu0 %v2946
        %3644 = vmatpush1.msra.mxu0 %v2945
        %3645 = vmatprep.subr.mxu0 %v2938
        %3646 = vmatpush1.msra.mxu0 %v2937
        %3647 = vmatprep.subr.mxu0 %v2930
        %3648 = vmatpush1.msra.mxu0 %v2929
        %3649 = vmatprep.subr.mxu0 %v2922
        %3650 = vmatpush1.msra.mxu0 %v2921
        %3651 = vmatprep.subr.mxu0 %v2914
        %3652 = vmatpush1.msra.mxu0 %v2913
        %3653 = vmatprep.subr.mxu0 %v2906
        %3654 = vmatpush1.msra.mxu0 %v2905
        %3655 = vmatprep.subr.mxu0 %v2898
        %3656 = vmatpush1.msra.mxu0 %v2897
        %3657 = vmatprep.subr.mxu0 0.0
        %3658 = vmatpush2.msra.mxu0 0.0
        %3659 = vmatprep.subr.mxu0 0.0
        %3660 = vmatpush2.msra.mxu0 0.0
        %3661 = vmatprep.subr.mxu0 0.0
        %3662 = vmatpush2.msra.mxu0 0.0
        %3663 = vmatprep.subr.mxu0 0.0
        %3664 = vmatpush2.msra.mxu0 0.0
        %3665 = vmatprep.subr.mxu0 0.0
        %3666 = vmatpush2.msra.mxu0 0.0
        %3667 = vmatprep.subr.mxu0 0.0
        %3668 = vmatpush2.msra.mxu0 0.0
        %3669 = vmatprep.subr.mxu0 0.0
        %3670 = vmatpush2.msra.mxu0 0.0
        %3671 = vmatprep.subr.mxu0 0.0
        %3672 = vmatpush2.msra.mxu0 0.0
        %3673 = vmatprep.subr.mxu0 0.0
        %3674 = vmatpush2.msra.mxu0 0.0
        %3675 = vmatprep.subr.mxu0 0.0
        %3676 = vmatpush2.msra.mxu0 0.0
        %3677 = vmatprep.subr.mxu0 %v3066
        %3678 = vmatpush2.msra.mxu0 %v3065
        %3679 = vmatprep.subr.mxu0 %v3058
        %3680 = vmatpush2.msra.mxu0 %v3057
        %3681 = vmatprep.subr.mxu0 %v3050
        %3682 = vmatpush2.msra.mxu0 %v3049
        %3683 = vmatprep.subr.mxu0 %v3042
        %3684 = vmatpush2.msra.mxu0 %v3041
        %3685 = vmatprep.subr.mxu0 %v3034
        %3686 = vmatpush2.msra.mxu0 %v3033
        %3687 = vmatprep.subr.mxu0 %v3026
        %3688 = vmatpush2.msra.mxu0 %v3025
        %3689 = vmatprep.mubr.f32.mxu0 %v3081
        %3690 = vmatmul.mubr.f32.gmra.mxu0 %v2629
        %v3691 = vpop.f32.mrf.mxu0
        %v3692 = vadd.f32 %v3615, %v3691
        %v3693 = vpop.f32.mrf.mxu0
        %v3694 = vadd.f32 %v3617, %v3693
        %3695 = vmatprep.mubr.f32.mxu0 %v3084
        %3696 = vmatmul.mubr.f32.gmra.mxu0 %v2633
        %v3697 = vpop.f32.mrf.mxu0
        %v3698 = vadd.f32 %v3621, %v3697
        %v3699 = vpop.f32.mrf.mxu0
        %v3700 = vadd.f32 %v3623, %v3699
        %3701 = vdwg.mxu0
        %v3703 = vlaneseq
        %v3704 = vshrl.u32 %v3703, 7
        %v3705 = vsub.s32 0, %v3704
        %v3706 = vrot.slane %v420, %v3705
        %v3707 = vlaneseq
        %v3708 = vshrl.u32 %v3707, 7
        %v3709 = vsub.s32 1, %v3708
        %v3710 = vrot.slane %v420, %v3709
        %v3711 = vlaneseq
        %v3712 = vshrl.u32 %v3711, 7
        %v3713 = vsub.s32 2, %v3712
        %v3714 = vrot.slane %v420, %v3713
        %v3715 = vlaneseq
        %v3716 = vshrl.u32 %v3715, 7
        %v3717 = vsub.s32 3, %v3716
        %v3718 = vrot.slane %v420, %v3717
        %v3719 = vlaneseq
        %v3720 = vshrl.u32 %v3719, 7
        %v3721 = vsub.s32 4, %v3720
        %v3722 = vrot.slane %v420, %v3721
        %v3723 = vlaneseq
        %v3724 = vshrl.u32 %v3723, 7
        %v3725 = vsub.s32 5, %v3724
        %v3726 = vrot.slane %v420, %v3725
        %v3727 = vlaneseq
        %v3728 = vshrl.u32 %v3727, 7
        %v3729 = vsub.s32 6, %v3728
        %v3730 = vrot.slane %v420, %v3729
        %v3731 = vlaneseq
        %v3732 = vshrl.u32 %v3731, 7
        %v3733 = vsub.s32 7, %v3732
        %v3734 = vrot.slane %v420, %v3733
        %v3743 = vmul.f32 %v3230, %v3706
        %v3744 = vmul.f32 %v3232, %v3710
        %v3745 = vmul.f32 %v3384, %v3714
        %v3746 = vmul.f32 %v3386, %v3718
        %v3747 = vmul.f32 %v3538, %v3722
        %v3748 = vmul.f32 %v3540, %v3726
        %v3749 = vmul.f32 %v3692, %v3730
        %v3750 = vmul.f32 %v3694, %v3734
        %v3751 = vmul.f32 %v3236, %v3706
        %v3752 = vmul.f32 %v3238, %v3710
        %v3753 = vmul.f32 %v3390, %v3714
        %v3754 = vmul.f32 %v3392, %v3718
        %v3755 = vmul.f32 %v3544, %v3722
        %v3756 = vmul.f32 %v3546, %v3726
        %v3757 = vmul.f32 %v3698, %v3730
        %v3758 = vmul.f32 %v3700, %v3734
        %v3759 = vadd.f32 %v3743, %v3744
        %v3760 = vadd.f32 %v3759, %v3745
        %v3761 = vadd.f32 %v3760, %v3746
        %v3762 = vadd.f32 %v3761, %v3747
        %v3763 = vadd.f32 %v3762, %v3748
        %v3764 = vadd.f32 %v3763, %v3749
        %v3765 = vadd.f32 %v3764, %v3750
        %3766 = vadd.xlane.f32.xlu0 %v3765
        %v3767 = vpop.xlane.xlu0 %3766
        %v3768 = vadd.f32 %v3751, %v3752
        %v3769 = vadd.f32 %v3768, %v3753
        %v3770 = vadd.f32 %v3769, %v3754
        %v3771 = vadd.f32 %v3770, %v3755
        %v3772 = vadd.f32 %v3771, %v3756
        %v3773 = vadd.f32 %v3772, %v3757
        %v3774 = vadd.f32 %v3773, %v3758
        %3775 = vadd.xlane.f32.xlu0 %v3774
        %v3776 = vpop.xlane.xlu0 %3775
        %v3777 = vmul.f32 %v3743, %v3743
        %v3778 = vmul.f32 %v3744, %v3744
        %v3779 = vmul.f32 %v3745, %v3745
        %v3780 = vmul.f32 %v3746, %v3746
        %v3781 = vmul.f32 %v3747, %v3747
        %v3782 = vmul.f32 %v3748, %v3748
        %v3783 = vmul.f32 %v3749, %v3749
        %v3784 = vmul.f32 %v3750, %v3750
        %v3785 = vmul.f32 %v3751, %v3751
        %v3786 = vmul.f32 %v3752, %v3752
        %v3787 = vmul.f32 %v3753, %v3753
        %v3788 = vmul.f32 %v3754, %v3754
        %v3789 = vmul.f32 %v3755, %v3755
        %v3790 = vmul.f32 %v3756, %v3756
        %v3791 = vmul.f32 %v3757, %v3757
        %v3792 = vmul.f32 %v3758, %v3758
        %v3793 = vadd.f32 %v3777, %v3778
        %v3794 = vadd.f32 %v3793, %v3779
        %v3795 = vadd.f32 %v3794, %v3780
        %v3796 = vadd.f32 %v3795, %v3781
        %v3797 = vadd.f32 %v3796, %v3782
        %v3798 = vadd.f32 %v3797, %v3783
        %v3799 = vadd.f32 %v3798, %v3784
        %3800 = vadd.xlane.f32.xlu0 %v3799
        %v3801 = vpop.xlane.xlu0 %3800
        %v3802 = vadd.f32 %v3785, %v3786
        %v3803 = vadd.f32 %v3802, %v3787
        %v3804 = vadd.f32 %v3803, %v3788
        %v3805 = vadd.f32 %v3804, %v3789
        %v3806 = vadd.f32 %v3805, %v3790
        %v3807 = vadd.f32 %v3806, %v3791
        %v3808 = vadd.f32 %v3807, %v3792
        %3809 = vadd.xlane.f32.xlu0 %v3808
        %v3810 = vpop.xlane.xlu0 %3809
        %v3811 = vld [vmem:[%s2] sm:$0xff]
        %v3812 = vld [vmem:[%s2 + $0x8] sm:$0xff]
        %v3813 = vsel %vm1483, %v3767, %v3801
        %v3814 = vsel %vm1483, %v3776, %v3810
        %vm3815 = vcmask 130048
        %v3817 = vsel %vm3815, %v3811, 0
        %v3820 = vsel %vm3815, %v3812, 0
        %3822 = vmatprep.subr.mxu0 0.0
        %3823 = vmatpush1.msra.mxu0 0.0
        %3824 = vmatprep.subr.mxu0 0.0
        %3825 = vmatpush1.msra.mxu0 0.0
        %3826 = vmatprep.subr.mxu0 0.0
        %3827 = vmatpush1.msra.mxu0 0.0
        %3828 = vmatprep.subr.mxu0 0.0
        %3829 = vmatpush1.msra.mxu0 0.0
        %3830 = vmatprep.subr.mxu0 0.0
        %3831 = vmatpush1.msra.mxu0 0.0
        %3832 = vmatprep.subr.mxu0 0.0
        %3833 = vmatpush1.msra.mxu0 0.0
        %3834 = vmatprep.subr.mxu0 0.0
        %3835 = vmatpush1.msra.mxu0 0.0
        %3836 = vmatprep.subr.mxu0 0.0
        %3837 = vmatpush1.msra.mxu0 0.0
        %3838 = vmatprep.subr.mxu0 0.0
        %3839 = vmatpush1.msra.mxu0 0.0
        %3840 = vmatprep.subr.mxu0 0.0
        %3841 = vmatpush1.msra.mxu0 0.0
        %3842 = vmatprep.subr.mxu0 0.0
        %3843 = vmatpush1.msra.mxu0 0.0
        %3844 = vmatprep.subr.mxu0 0.0
        %3845 = vmatpush1.msra.mxu0 0.0
        %3846 = vmatprep.subr.mxu0 0.0
        %3847 = vmatpush1.msra.mxu0 0.0
        %3848 = vmatprep.subr.mxu0 0.0
        %3849 = vmatpush1.msra.mxu0 0.0
        %3850 = vmatprep.subr.mxu0 0.0
        %3851 = vmatpush1.msra.mxu0 %v3814
        %3852 = vmatprep.subr.mxu0 0.0
        %3853 = vmatpush1.msra.mxu0 %v3813
        %3854 = vmatprep.subr.mxu0 0.0
        %3855 = vmatpush2.msra.mxu0 0.0
        %3856 = vmatprep.subr.mxu0 0.0
        %3857 = vmatpush2.msra.mxu0 0.0
        %3858 = vmatprep.subr.mxu0 0.0
        %3859 = vmatpush2.msra.mxu0 0.0
        %3860 = vmatprep.subr.mxu0 0.0
        %3861 = vmatpush2.msra.mxu0 0.0
        %3862 = vmatprep.subr.mxu0 0.0
        %3863 = vmatpush2.msra.mxu0 0.0
        %3864 = vmatprep.subr.mxu0 0.0
        %3865 = vmatpush2.msra.mxu0 0.0
        %3866 = vmatprep.subr.mxu0 0.0
        %3867 = vmatpush2.msra.mxu0 0.0
        %3868 = vmatprep.subr.mxu0 0.0
        %3869 = vmatpush2.msra.mxu0 0.0
        %3870 = vmatprep.subr.mxu0 0.0
        %3871 = vmatpush2.msra.mxu0 0.0
        %3872 = vmatprep.subr.mxu0 0.0
        %3873 = vmatpush2.msra.mxu0 0.0
        %3874 = vmatprep.subr.mxu0 0.0
        %3875 = vmatpush2.msra.mxu0 0.0
        %3876 = vmatprep.subr.mxu0 0.0
        %3877 = vmatpush2.msra.mxu0 0.0
        %3878 = vmatprep.subr.mxu0 0.0
        %3879 = vmatpush2.msra.mxu0 0.0
        %3880 = vmatprep.subr.mxu0 0.0
        %3881 = vmatpush2.msra.mxu0 0.0
        %3882 = vmatprep.subr.mxu0 0.0
        %3883 = vmatpush2.msra.mxu0 0.0
        %3884 = vmatprep.subr.mxu0 0.0
        %3885 = vmatpush2.msra.mxu0 0.0
        %3886 = vmatprep.mubr.f32.mxu0 0.0
        %3887 = vmatmul.mubr.f32.gmra.mxu0 %v3817
        %v3888 = vpop.f32.mrf.mxu0
        %v3889 = vadd.f32 0.0, %v3888
        %v3890 = vpop.f32.mrf.mxu0
        %3891 = vmatprep.mubr.f32.mxu0 0.0
        %3892 = vmatmul.mubr.f32.gmra.mxu0 %v3820
        %v3893 = vpop.f32.mrf.mxu0
        %v3894 = vadd.f32 0.0, %v3893
        %v3895 = vpop.f32.mrf.mxu0
        %3896 = vdwg.mxu0
        %v3897 = vmul.f32 %v3889, 0.0009765625
        %v3898 = vmul.f32 %v3894, 0.0009765625
        %v3899 = vmul.f32 %v3897, %v3897
        %v3900 = vmul.f32 %v3898, %v3898
        %3903 = vrot.lane.b32.xlu0 %v3899, 1
        %v3904 = vpop.permute.xlu0 %3903
        %3905 = vrot.lane.b32.xlu0 %v3900, 1
        %v3906 = vpop.permute.xlu0 %3905
        %v3909 = vsub.f32 %v3897, %v3904
        %v3910 = vsub.f32 %v3898, %v3906
        %v3911 = vld [vmem:[%s6] sm:$0xff]
        %v3912 = vld [vmem:[%s6 + $0x8] sm:$0xff]
        %v3913 = vadd.f32 %v3909, 1e-05
        %v3914 = vadd.f32 %v3910, 1e-05
        %v3915 = vrsqrt.pop %v3913
        %v3916 = vrsqrt.pop %v3914
        %3919 = vrot.lane.b32.xlu0 %v3915, 127
        %v3920 = vpop.permute.xlu0 %3919
        %3921 = vrot.lane.b32.xlu0 %v3916, 127
        %v3922 = vpop.permute.xlu0 %3921
        %v3925 = vmul.f32 %v3911, %v3920
        %v3926 = vmul.f32 %v3912, %v3922
        %v3927 = vld [vmem:[%s7] sm:$0xff]
        %v3928 = vld [vmem:[%s7 + $0x8] sm:$0xff]
        %v3929 = vmul.f32 %v3897, %v3925
        %v3930 = vmul.f32 %v3898, %v3926
        %v3931 = vsub.f32 %v3927, %v3929
        %v3932 = vsub.f32 %v3928, %v3930
        %3934 = vset.pattern.permute.xlu0 0
        %3935 = vperm.xlu0 %3934, %v3925
        %v3936 = vpop.permute.xlu0 %3935
        %3939 = vset.pattern.permute.xlu0 0
        %3940 = vperm.xlu0 %3939, %v3926
        %v3941 = vpop.permute.xlu0 %3940
        %v3943 = vmul.f32 %v3230, %v3936
        %v3944 = vmul.f32 %v3232, %v3936
        %v3945 = vmul.f32 %v3384, %v3936
        %v3946 = vmul.f32 %v3386, %v3936
        %v3947 = vmul.f32 %v3538, %v3936
        %v3948 = vmul.f32 %v3540, %v3936
        %v3949 = vmul.f32 %v3692, %v3936
        %v3950 = vmul.f32 %v3694, %v3936
        %v3951 = vmul.f32 %v3236, %v3941
        %v3952 = vmul.f32 %v3238, %v3941
        %v3953 = vmul.f32 %v3390, %v3941
        %v3954 = vmul.f32 %v3392, %v3941
        %v3955 = vmul.f32 %v3544, %v3941
        %v3956 = vmul.f32 %v3546, %v3941
        %v3957 = vmul.f32 %v3698, %v3941
        %v3958 = vmul.f32 %v3700, %v3941
        %3960 = vset.pattern.permute.xlu0 0
        %3961 = vperm.xlu0 %3960, %v3931
        %v3962 = vpop.permute.xlu0 %3961
        %3965 = vset.pattern.permute.xlu0 0
        %3966 = vperm.xlu0 %3965, %v3932
        %v3967 = vpop.permute.xlu0 %3966
        %v3969 = vadd.f32 %v3943, %v3962
        %v3970 = vadd.f32 %v3944, %v3962
        %v3971 = vadd.f32 %v3945, %v3962
        %v3972 = vadd.f32 %v3946, %v3962
        %v3973 = vadd.f32 %v3947, %v3962
        %v3974 = vadd.f32 %v3948, %v3962
        %v3975 = vadd.f32 %v3949, %v3962
        %v3976 = vadd.f32 %v3950, %v3962
        %v3977 = vadd.f32 %v3951, %v3967
        %v3978 = vadd.f32 %v3952, %v3967
        %v3979 = vadd.f32 %v3953, %v3967
        %v3980 = vadd.f32 %v3954, %v3967
        %v3981 = vadd.f32 %v3955, %v3967
        %v3982 = vadd.f32 %v3956, %v3967
        %v3983 = vadd.f32 %v3957, %v3967
        %v3984 = vadd.f32 %v3958, %v3967
        %vm3985 = vcmp.ge.f32.partialorder %v3969, 0.0
        %vm3986 = vcmp.ge.f32.partialorder %v3970, 0.0
        %vm3987 = vcmp.ge.f32.partialorder %v3971, 0.0
        %vm3988 = vcmp.ge.f32.partialorder %v3972, 0.0
        %vm3989 = vcmp.ge.f32.partialorder %v3973, 0.0
        %vm3990 = vcmp.ge.f32.partialorder %v3974, 0.0
        %vm3991 = vcmp.ge.f32.partialorder %v3975, 0.0
        %vm3992 = vcmp.ge.f32.partialorder %v3976, 0.0
        %vm3993 = vcmp.ge.f32.partialorder %v3977, 0.0
        %vm3994 = vcmp.ge.f32.partialorder %v3978, 0.0
        %vm3995 = vcmp.ge.f32.partialorder %v3979, 0.0
        %vm3996 = vcmp.ge.f32.partialorder %v3980, 0.0
        %vm3997 = vcmp.ge.f32.partialorder %v3981, 0.0
        %vm3998 = vcmp.ge.f32.partialorder %v3982, 0.0
        %vm3999 = vcmp.ge.f32.partialorder %v3983, 0.0
        %vm4000 = vcmp.ge.f32.partialorder %v3984, 0.0
        %v4001 = vmul.f32 %v3969, 0.01
        %v4002 = vmul.f32 %v3970, 0.01
        %v4003 = vmul.f32 %v3971, 0.01
        %v4004 = vmul.f32 %v3972, 0.01
        %v4005 = vmul.f32 %v3973, 0.01
        %v4006 = vmul.f32 %v3974, 0.01
        %v4007 = vmul.f32 %v3975, 0.01
        %v4008 = vmul.f32 %v3976, 0.01
        %v4009 = vmul.f32 %v3977, 0.01
        %v4010 = vmul.f32 %v3978, 0.01
        %v4011 = vmul.f32 %v3979, 0.01
        %v4012 = vmul.f32 %v3980, 0.01
        %v4013 = vmul.f32 %v3981, 0.01
        %v4014 = vmul.f32 %v3982, 0.01
        %v4015 = vmul.f32 %v3983, 0.01
        %v4016 = vmul.f32 %v3984, 0.01
        %v4017 = vsel %vm3985, %v3969, %v4001
        %v4018 = vsel %vm3986, %v3970, %v4002
        %v4019 = vsel %vm3987, %v3971, %v4003
        %v4020 = vsel %vm3988, %v3972, %v4004
        %v4021 = vsel %vm3989, %v3973, %v4005
        %v4022 = vsel %vm3990, %v3974, %v4006
        %v4023 = vsel %vm3991, %v3975, %v4007
        %v4024 = vsel %vm3992, %v3976, %v4008
        %v4025 = vsel %vm3993, %v3977, %v4009
        %v4026 = vsel %vm3994, %v3978, %v4010
        %v4027 = vsel %vm3995, %v3979, %v4011
        %v4028 = vsel %vm3996, %v3980, %v4012
        %v4029 = vsel %vm3997, %v3981, %v4013
        %v4030 = vsel %vm3998, %v3982, %v4014
        %v4031 = vsel %vm3999, %v3983, %v4015
        %v4032 = vsel %vm4000, %v3984, %v4016
        %v4033 = vmul.f32 %v4017, %v3706
        %v4034 = vmul.f32 %v4018, %v3710
        %v4035 = vmul.f32 %v4019, %v3714
        %v4036 = vmul.f32 %v4020, %v3718
        %v4037 = vmul.f32 %v4021, %v3722
        %v4038 = vmul.f32 %v4022, %v3726
        %v4039 = vmul.f32 %v4023, %v3730
        %v4040 = vmul.f32 %v4024, %v3734
        %v4041 = vmul.f32 %v4025, %v3706
        %v4042 = vmul.f32 %v4026, %v3710
        %v4043 = vmul.f32 %v4027, %v3714
        %v4044 = vmul.f32 %v4028, %v3718
        %v4045 = vmul.f32 %v4029, %v3722
        %v4046 = vmul.f32 %v4030, %v3726
        %v4047 = vmul.f32 %v4031, %v3730
        %v4048 = vmul.f32 %v4032, %v3734
        %4051 = vrot.lane.b32.xlu0 %v4040, 111
        %v4052 = vpop.permute.xlu0 %4051
        %4053 = vrot.lane.b32.xlu0 %v4048, 111
        %v4054 = vpop.permute.xlu0 %4053
        %4071 = vrot.lane.b32.xlu0 %v4033, 111
        %v4072 = vpop.permute.xlu0 %4071
        %4073 = vrot.lane.b32.xlu0 %v4034, 111
        %v4074 = vpop.permute.xlu0 %4073
        %4075 = vrot.lane.b32.xlu0 %v4035, 111
        %v4076 = vpop.permute.xlu0 %4075
        %4077 = vrot.lane.b32.xlu0 %v4036, 111
        %v4078 = vpop.permute.xlu0 %4077
        %4079 = vrot.lane.b32.xlu0 %v4037, 111
        %v4080 = vpop.permute.xlu0 %4079
        %4081 = vrot.lane.b32.xlu0 %v4038, 111
        %v4082 = vpop.permute.xlu0 %4081
        %4083 = vrot.lane.b32.xlu0 %v4039, 111
        %v4084 = vpop.permute.xlu0 %4083
        %4085 = vrot.lane.b32.xlu0 %v4041, 111
        %v4086 = vpop.permute.xlu0 %4085
        %4087 = vrot.lane.b32.xlu0 %v4042, 111
        %v4088 = vpop.permute.xlu0 %4087
        %4089 = vrot.lane.b32.xlu0 %v4043, 111
        %v4090 = vpop.permute.xlu0 %4089
        %4091 = vrot.lane.b32.xlu0 %v4044, 111
        %v4092 = vpop.permute.xlu0 %4091
        %4093 = vrot.lane.b32.xlu0 %v4045, 111
        %v4094 = vpop.permute.xlu0 %4093
        %4095 = vrot.lane.b32.xlu0 %v4046, 111
        %v4096 = vpop.permute.xlu0 %4095
        %4097 = vrot.lane.b32.xlu0 %v4047, 111
        %v4098 = vpop.permute.xlu0 %4097
        %v4099 = vsel %vm487, %v4072, %v4074
        %v4100 = vsel %vm487, %v4074, %v4076
        %v4101 = vsel %vm487, %v4076, %v4078
        %v4102 = vsel %vm487, %v4078, %v4080
        %v4103 = vsel %vm487, %v4080, %v4082
        %v4104 = vsel %vm487, %v4082, %v4084
        %v4105 = vsel %vm487, %v4084, %v4052
        %v4106 = vsel %vm487, %v4086, %v4088
        %v4107 = vsel %vm487, %v4088, %v4090
        %v4108 = vsel %vm487, %v4090, %v4092
        %v4109 = vsel %vm487, %v4092, %v4094
        %v4110 = vsel %vm487, %v4094, %v4096
        %v4111 = vsel %vm487, %v4096, %v4098
        %v4112 = vsel %vm487, %v4098, %v4054
        %v4129 = vsel %vm487, %v4052, %v4072
        %v4130 = vsel %vm487, %v4054, %v4086
        %4131 = vst [vmem:[#allocation2] sm:$0xff] %v4129
        %4132 = vst [vmem:[#allocation2 + $0x8] sm:$0xff] %v4099
        %4133 = vst [vmem:[#allocation2 + $0x10] sm:$0xff] %v4100
        %4134 = vst [vmem:[#allocation2 + $0x18] sm:$0xff] %v4101
        %4135 = vst [vmem:[#allocation2 + $0x20] sm:$0xff] %v4102
        %4136 = vst [vmem:[#allocation2 + $0x28] sm:$0xff] %v4103
        %4137 = vst [vmem:[#allocation2 + $0x30] sm:$0xff] %v4104
        %4138 = vst [vmem:[#allocation2 + $0x38] sm:$0xff] %v4105
        %4139 = vst [vmem:[#allocation2 + $0x40] sm:$0xff] %v4130
        %4140 = vst [vmem:[#allocation2 + $0x48] sm:$0xff] %v4106
        %4141 = vst [vmem:[#allocation2 + $0x50] sm:$0xff] %v4107
        %4142 = vst [vmem:[#allocation2 + $0x58] sm:$0xff] %v4108
        %4143 = vst [vmem:[#allocation2 + $0x60] sm:$0xff] %v4109
        %4144 = vst [vmem:[#allocation2 + $0x68] sm:$0xff] %v4110
        %4145 = vst [vmem:[#allocation2 + $0x70] sm:$0xff] %v4111
        %4146 = vst [vmem:[#allocation2 + $0x78] sm:$0xff] %v4112
        %4147 = vrot.lane.b32.xlu0 %v4040, 110
        %v4148 = vpop.permute.xlu0 %4147
        %4149 = vrot.lane.b32.xlu0 %v4048, 110
        %v4150 = vpop.permute.xlu0 %4149
        %4153 = vrot.lane.b32.xlu0 %v4033, 110
        %v4154 = vpop.permute.xlu0 %4153
        %4155 = vrot.lane.b32.xlu0 %v4034, 110
        %v4156 = vpop.permute.xlu0 %4155
        %4157 = vrot.lane.b32.xlu0 %v4035, 110
        %v4158 = vpop.permute.xlu0 %4157
        %4159 = vrot.lane.b32.xlu0 %v4036, 110
        %v4160 = vpop.permute.xlu0 %4159
        %4161 = vrot.lane.b32.xlu0 %v4037, 110
        %v4162 = vpop.permute.xlu0 %4161
        %4163 = vrot.lane.b32.xlu0 %v4038, 110
        %v4164 = vpop.permute.xlu0 %4163
        %4165 = vrot.lane.b32.xlu0 %v4039, 110
        %v4166 = vpop.permute.xlu0 %4165
        %4167 = vrot.lane.b32.xlu0 %v4041, 110
        %v4168 = vpop.permute.xlu0 %4167
        %4169 = vrot.lane.b32.xlu0 %v4042, 110
        %v4170 = vpop.permute.xlu0 %4169
        %4171 = vrot.lane.b32.xlu0 %v4043, 110
        %v4172 = vpop.permute.xlu0 %4171
        %4173 = vrot.lane.b32.xlu0 %v4044, 110
        %v4174 = vpop.permute.xlu0 %4173
        %4175 = vrot.lane.b32.xlu0 %v4045, 110
        %v4176 = vpop.permute.xlu0 %4175
        %4177 = vrot.lane.b32.xlu0 %v4046, 110
        %v4178 = vpop.permute.xlu0 %4177
        %4179 = vrot.lane.b32.xlu0 %v4047, 110
        %v4180 = vpop.permute.xlu0 %4179
        %v4181 = vsel %vm570, %v4154, %v4156
        %v4182 = vsel %vm570, %v4156, %v4158
        %v4183 = vsel %vm570, %v4158, %v4160
        %v4184 = vsel %vm570, %v4160, %v4162
        %v4185 = vsel %vm570, %v4162, %v4164
        %v4186 = vsel %vm570, %v4164, %v4166
        %v4187 = vsel %vm570, %v4166, %v4148
        %v4188 = vsel %vm570, %v4168, %v4170
        %v4189 = vsel %vm570, %v4170, %v4172
        %v4190 = vsel %vm570, %v4172, %v4174
        %v4191 = vsel %vm570, %v4174, %v4176
        %v4192 = vsel %vm570, %v4176, %v4178
        %v4193 = vsel %vm570, %v4178, %v4180
        %v4194 = vsel %vm570, %v4180, %v4150
        %v4211 = vsel %vm570, %v4148, %v4154
        %v4212 = vsel %vm570, %v4150, %v4168
        %4213 = vst [vmem:[#allocation2 + $0x80] sm:$0xff] %v4211
        %4214 = vst [vmem:[#allocation2 + $0x88] sm:$0xff] %v4181
        %4215 = vst [vmem:[#allocation2 + $0x90] sm:$0xff] %v4182
        %4216 = vst [vmem:[#allocation2 + $0x98] sm:$0xff] %v4183
        %4217 = vst [vmem:[#allocation2 + $0xa0] sm:$0xff] %v4184
        %4218 = vst [vmem:[#allocation2 + $0xa8] sm:$0xff] %v4185
        %4219 = vst [vmem:[#allocation2 + $0xb0] sm:$0xff] %v4186
        %4220 = vst [vmem:[#allocation2 + $0xb8] sm:$0xff] %v4187
        %4221 = vst [vmem:[#allocation2 + $0xc0] sm:$0xff] %v4212
        %4222 = vst [vmem:[#allocation2 + $0xc8] sm:$0xff] %v4188
        %4223 = vst [vmem:[#allocation2 + $0xd0] sm:$0xff] %v4189
        %4224 = vst [vmem:[#allocation2 + $0xd8] sm:$0xff] %v4190
        %4225 = vst [vmem:[#allocation2 + $0xe0] sm:$0xff] %v4191
        %4226 = vst [vmem:[#allocation2 + $0xe8] sm:$0xff] %v4192
        %4227 = vst [vmem:[#allocation2 + $0xf0] sm:$0xff] %v4193
        %4228 = vst [vmem:[#allocation2 + $0xf8] sm:$0xff] %v4194
        %4229 = vrot.lane.b32.xlu0 %v4040, 109
        %v4230 = vpop.permute.xlu0 %4229
        %4231 = vrot.lane.b32.xlu0 %v4048, 109
        %v4232 = vpop.permute.xlu0 %4231
        %4235 = vrot.lane.b32.xlu0 %v4033, 109
        %v4236 = vpop.permute.xlu0 %4235
        %4237 = vrot.lane.b32.xlu0 %v4034, 109
        %v4238 = vpop.permute.xlu0 %4237
        %4239 = vrot.lane.b32.xlu0 %v4035, 109
        %v4240 = vpop.permute.xlu0 %4239
        %4241 = vrot.lane.b32.xlu0 %v4036, 109
        %v4242 = vpop.permute.xlu0 %4241
        %4243 = vrot.lane.b32.xlu0 %v4037, 109
        %v4244 = vpop.permute.xlu0 %4243
        %4245 = vrot.lane.b32.xlu0 %v4038, 109
        %v4246 = vpop.permute.xlu0 %4245
        %4247 = vrot.lane.b32.xlu0 %v4039, 109
        %v4248 = vpop.permute.xlu0 %4247
        %4249 = vrot.lane.b32.xlu0 %v4041, 109
        %v4250 = vpop.permute.xlu0 %4249
        %4251 = vrot.lane.b32.xlu0 %v4042, 109
        %v4252 = vpop.permute.xlu0 %4251
        %4253 = vrot.lane.b32.xlu0 %v4043, 109
        %v4254 = vpop.permute.xlu0 %4253
        %4255 = vrot.lane.b32.xlu0 %v4044, 109
        %v4256 = vpop.permute.xlu0 %4255
        %4257 = vrot.lane.b32.xlu0 %v4045, 109
        %v4258 = vpop.permute.xlu0 %4257
        %4259 = vrot.lane.b32.xlu0 %v4046, 109
        %v4260 = vpop.permute.xlu0 %4259
        %4261 = vrot.lane.b32.xlu0 %v4047, 109
        %v4262 = vpop.permute.xlu0 %4261
        %v4263 = vsel %vm653, %v4236, %v4238
        %v4264 = vsel %vm653, %v4238, %v4240
        %v4265 = vsel %vm653, %v4240, %v4242
        %v4266 = vsel %vm653, %v4242, %v4244
        %v4267 = vsel %vm653, %v4244, %v4246
        %v4268 = vsel %vm653, %v4246, %v4248
        %v4269 = vsel %vm653, %v4248, %v4230
        %v4270 = vsel %vm653, %v4250, %v4252
        %v4271 = vsel %vm653, %v4252, %v4254
        %v4272 = vsel %vm653, %v4254, %v4256
        %v4273 = vsel %vm653, %v4256, %v4258
        %v4274 = vsel %vm653, %v4258, %v4260
        %v4275 = vsel %vm653, %v4260, %v4262
        %v4276 = vsel %vm653, %v4262, %v4232
        %v4293 = vsel %vm653, %v4230, %v4236
        %v4294 = vsel %vm653, %v4232, %v4250
        %4295 = vst [vmem:[#allocation2 + $0x100] sm:$0xff] %v4293
        %4296 = vst [vmem:[#allocation2 + $0x108] sm:$0xff] %v4263
        %4297 = vst [vmem:[#allocation2 + $0x110] sm:$0xff] %v4264
        %4298 = vst [vmem:[#allocation2 + $0x118] sm:$0xff] %v4265
        %4299 = vst [vmem:[#allocation2 + $0x120] sm:$0xff] %v4266
        %4300 = vst [vmem:[#allocation2 + $0x128] sm:$0xff] %v4267
        %4301 = vst [vmem:[#allocation2 + $0x130] sm:$0xff] %v4268
        %4302 = vst [vmem:[#allocation2 + $0x138] sm:$0xff] %v4269
        %4303 = vst [vmem:[#allocation2 + $0x140] sm:$0xff] %v4294
        %4304 = vst [vmem:[#allocation2 + $0x148] sm:$0xff] %v4270
        %4305 = vst [vmem:[#allocation2 + $0x150] sm:$0xff] %v4271
        %4306 = vst [vmem:[#allocation2 + $0x158] sm:$0xff] %v4272
        %4307 = vst [vmem:[#allocation2 + $0x160] sm:$0xff] %v4273
        %4308 = vst [vmem:[#allocation2 + $0x168] sm:$0xff] %v4274
        %4309 = vst [vmem:[#allocation2 + $0x170] sm:$0xff] %v4275
        %4310 = vst [vmem:[#allocation2 + $0x178] sm:$0xff] %v4276
        %4311 = vrot.lane.b32.xlu0 %v4040, 101
        %v4312 = vpop.permute.xlu0 %4311
        %4313 = vrot.lane.b32.xlu0 %v4048, 101
        %v4314 = vpop.permute.xlu0 %4313
        %4317 = vrot.lane.b32.xlu0 %v4033, 101
        %v4318 = vpop.permute.xlu0 %4317
        %4319 = vrot.lane.b32.xlu0 %v4034, 101
        %v4320 = vpop.permute.xlu0 %4319
        %4321 = vrot.lane.b32.xlu0 %v4035, 101
        %v4322 = vpop.permute.xlu0 %4321
        %4323 = vrot.lane.b32.xlu0 %v4036, 101
        %v4324 = vpop.permute.xlu0 %4323
        %4325 = vrot.lane.b32.xlu0 %v4037, 101
        %v4326 = vpop.permute.xlu0 %4325
        %4327 = vrot.lane.b32.xlu0 %v4038, 101
        %v4328 = vpop.permute.xlu0 %4327
        %4329 = vrot.lane.b32.xlu0 %v4039, 101
        %v4330 = vpop.permute.xlu0 %4329
        %4331 = vrot.lane.b32.xlu0 %v4041, 101
        %v4332 = vpop.permute.xlu0 %4331
        %4333 = vrot.lane.b32.xlu0 %v4042, 101
        %v4334 = vpop.permute.xlu0 %4333
        %4335 = vrot.lane.b32.xlu0 %v4043, 101
        %v4336 = vpop.permute.xlu0 %4335
        %4337 = vrot.lane.b32.xlu0 %v4044, 101
        %v4338 = vpop.permute.xlu0 %4337
        %4339 = vrot.lane.b32.xlu0 %v4045, 101
        %v4340 = vpop.permute.xlu0 %4339
        %4341 = vrot.lane.b32.xlu0 %v4046, 101
        %v4342 = vpop.permute.xlu0 %4341
        %4343 = vrot.lane.b32.xlu0 %v4047, 101
        %v4344 = vpop.permute.xlu0 %4343
        %v4345 = vsel %vm736, %v4318, %v4320
        %v4346 = vsel %vm736, %v4320, %v4322
        %v4347 = vsel %vm736, %v4322, %v4324
        %v4348 = vsel %vm736, %v4324, %v4326
        %v4349 = vsel %vm736, %v4326, %v4328
        %v4350 = vsel %vm736, %v4328, %v4330
        %v4351 = vsel %vm736, %v4330, %v4312
        %v4352 = vsel %vm736, %v4332, %v4334
        %v4353 = vsel %vm736, %v4334, %v4336
        %v4354 = vsel %vm736, %v4336, %v4338
        %v4355 = vsel %vm736, %v4338, %v4340
        %v4356 = vsel %vm736, %v4340, %v4342
        %v4357 = vsel %vm736, %v4342, %v4344
        %v4358 = vsel %vm736, %v4344, %v4314
        %v4375 = vsel %vm736, %v4312, %v4318
        %v4376 = vsel %vm736, %v4314, %v4332
        %4377 = vst [vmem:[#allocation2 + $0x180] sm:$0xff] %v4375
        %4378 = vst [vmem:[#allocation2 + $0x188] sm:$0xff] %v4345
        %4379 = vst [vmem:[#allocation2 + $0x190] sm:$0xff] %v4346
        %4380 = vst [vmem:[#allocation2 + $0x198] sm:$0xff] %v4347
        %4381 = vst [vmem:[#allocation2 + $0x1a0] sm:$0xff] %v4348
        %4382 = vst [vmem:[#allocation2 + $0x1a8] sm:$0xff] %v4349
        %4383 = vst [vmem:[#allocation2 + $0x1b0] sm:$0xff] %v4350
        %4384 = vst [vmem:[#allocation2 + $0x1b8] sm:$0xff] %v4351
        %4385 = vst [vmem:[#allocation2 + $0x1c0] sm:$0xff] %v4376
        %4386 = vst [vmem:[#allocation2 + $0x1c8] sm:$0xff] %v4352
        %4387 = vst [vmem:[#allocation2 + $0x1d0] sm:$0xff] %v4353
        %4388 = vst [vmem:[#allocation2 + $0x1d8] sm:$0xff] %v4354
        %4389 = vst [vmem:[#allocation2 + $0x1e0] sm:$0xff] %v4355
        %4390 = vst [vmem:[#allocation2 + $0x1e8] sm:$0xff] %v4356
        %4391 = vst [vmem:[#allocation2 + $0x1f0] sm:$0xff] %v4357
        %4392 = vst [vmem:[#allocation2 + $0x1f8] sm:$0xff] %v4358
        %4393 = vrot.lane.b32.xlu0 %v4040, 100
        %v4394 = vpop.permute.xlu0 %4393
        %4395 = vrot.lane.b32.xlu0 %v4048, 100
        %v4396 = vpop.permute.xlu0 %4395
        %4399 = vrot.lane.b32.xlu0 %v4033, 100
        %v4400 = vpop.permute.xlu0 %4399
        %4401 = vrot.lane.b32.xlu0 %v4034, 100
        %v4402 = vpop.permute.xlu0 %4401
        %4403 = vrot.lane.b32.xlu0 %v4035, 100
        %v4404 = vpop.permute.xlu0 %4403
        %4405 = vrot.lane.b32.xlu0 %v4036, 100
        %v4406 = vpop.permute.xlu0 %4405
        %4407 = vrot.lane.b32.xlu0 %v4037, 100
        %v4408 = vpop.permute.xlu0 %4407
        %4409 = vrot.lane.b32.xlu0 %v4038, 100
        %v4410 = vpop.permute.xlu0 %4409
        %4411 = vrot.lane.b32.xlu0 %v4039, 100
        %v4412 = vpop.permute.xlu0 %4411
        %4413 = vrot.lane.b32.xlu0 %v4041, 100
        %v4414 = vpop.permute.xlu0 %4413
        %4415 = vrot.lane.b32.xlu0 %v4042, 100
        %v4416 = vpop.permute.xlu0 %4415
        %4417 = vrot.lane.b32.xlu0 %v4043, 100
        %v4418 = vpop.permute.xlu0 %4417
        %4419 = vrot.lane.b32.xlu0 %v4044, 100
        %v4420 = vpop.permute.xlu0 %4419
        %4421 = vrot.lane.b32.xlu0 %v4045, 100
        %v4422 = vpop.permute.xlu0 %4421
        %4423 = vrot.lane.b32.xlu0 %v4046, 100
        %v4424 = vpop.permute.xlu0 %4423
        %4425 = vrot.lane.b32.xlu0 %v4047, 100
        %v4426 = vpop.permute.xlu0 %4425
        %v4427 = vsel %vm819, %v4400, %v4402
        %v4428 = vsel %vm819, %v4402, %v4404
        %v4429 = vsel %vm819, %v4404, %v4406
        %v4430 = vsel %vm819, %v4406, %v4408
        %v4431 = vsel %vm819, %v4408, %v4410
        %v4432 = vsel %vm819, %v4410, %v4412
        %v4433 = vsel %vm819, %v4412, %v4394
        %v4434 = vsel %vm819, %v4414, %v4416
        %v4435 = vsel %vm819, %v4416, %v4418
        %v4436 = vsel %vm819, %v4418, %v4420
        %v4437 = vsel %vm819, %v4420, %v4422
        %v4438 = vsel %vm819, %v4422, %v4424
        %v4439 = vsel %vm819, %v4424, %v4426
        %v4440 = vsel %vm819, %v4426, %v4396
        %v4457 = vsel %vm819, %v4394, %v4400
        %v4458 = vsel %vm819, %v4396, %v4414
        %4459 = vst [vmem:[#allocation2 + $0x200] sm:$0xff] %v4457
        %4460 = vst [vmem:[#allocation2 + $0x208] sm:$0xff] %v4427
        %4461 = vst [vmem:[#allocation2 + $0x210] sm:$0xff] %v4428
        %4462 = vst [vmem:[#allocation2 + $0x218] sm:$0xff] %v4429
        %4463 = vst [vmem:[#allocation2 + $0x220] sm:$0xff] %v4430
        %4464 = vst [vmem:[#allocation2 + $0x228] sm:$0xff] %v4431
        %4465 = vst [vmem:[#allocation2 + $0x230] sm:$0xff] %v4432
        %4466 = vst [vmem:[#allocation2 + $0x238] sm:$0xff] %v4433
        %4467 = vst [vmem:[#allocation2 + $0x240] sm:$0xff] %v4458
        %4468 = vst [vmem:[#allocation2 + $0x248] sm:$0xff] %v4434
        %4469 = vst [vmem:[#allocation2 + $0x250] sm:$0xff] %v4435
        %4470 = vst [vmem:[#allocation2 + $0x258] sm:$0xff] %v4436
        %4471 = vst [vmem:[#allocation2 + $0x260] sm:$0xff] %v4437
        %4472 = vst [vmem:[#allocation2 + $0x268] sm:$0xff] %v4438
        %4473 = vst [vmem:[#allocation2 + $0x270] sm:$0xff] %v4439
        %4474 = vst [vmem:[#allocation2 + $0x278] sm:$0xff] %v4440
        %4475 = vrot.lane.b32.xlu0 %v4040, 99
        %v4476 = vpop.permute.xlu0 %4475
        %4477 = vrot.lane.b32.xlu0 %v4048, 99
        %v4478 = vpop.permute.xlu0 %4477
        %4481 = vrot.lane.b32.xlu0 %v4033, 99
        %v4482 = vpop.permute.xlu0 %4481
        %4483 = vrot.lane.b32.xlu0 %v4034, 99
        %v4484 = vpop.permute.xlu0 %4483
        %4485 = vrot.lane.b32.xlu0 %v4035, 99
        %v4486 = vpop.permute.xlu0 %4485
        %4487 = vrot.lane.b32.xlu0 %v4036, 99
        %v4488 = vpop.permute.xlu0 %4487
        %4489 = vrot.lane.b32.xlu0 %v4037, 99
        %v4490 = vpop.permute.xlu0 %4489
        %4491 = vrot.lane.b32.xlu0 %v4038, 99
        %v4492 = vpop.permute.xlu0 %4491
        %4493 = vrot.lane.b32.xlu0 %v4039, 99
        %v4494 = vpop.permute.xlu0 %4493
        %4495 = vrot.lane.b32.xlu0 %v4041, 99
        %v4496 = vpop.permute.xlu0 %4495
        %4497 = vrot.lane.b32.xlu0 %v4042, 99
        %v4498 = vpop.permute.xlu0 %4497
        %4499 = vrot.lane.b32.xlu0 %v4043, 99
        %v4500 = vpop.permute.xlu0 %4499
        %4501 = vrot.lane.b32.xlu0 %v4044, 99
        %v4502 = vpop.permute.xlu0 %4501
        %4503 = vrot.lane.b32.xlu0 %v4045, 99
        %v4504 = vpop.permute.xlu0 %4503
        %4505 = vrot.lane.b32.xlu0 %v4046, 99
        %v4506 = vpop.permute.xlu0 %4505
        %4507 = vrot.lane.b32.xlu0 %v4047, 99
        %v4508 = vpop.permute.xlu0 %4507
        %v4509 = vsel %vm902, %v4482, %v4484
        %v4510 = vsel %vm902, %v4484, %v4486
        %v4511 = vsel %vm902, %v4486, %v4488
        %v4512 = vsel %vm902, %v4488, %v4490
        %v4513 = vsel %vm902, %v4490, %v4492
        %v4514 = vsel %vm902, %v4492, %v4494
        %v4515 = vsel %vm902, %v4494, %v4476
        %v4516 = vsel %vm902, %v4496, %v4498
        %v4517 = vsel %vm902, %v4498, %v4500
        %v4518 = vsel %vm902, %v4500, %v4502
        %v4519 = vsel %vm902, %v4502, %v4504
        %v4520 = vsel %vm902, %v4504, %v4506
        %v4521 = vsel %vm902, %v4506, %v4508
        %v4522 = vsel %vm902, %v4508, %v4478
        %v4539 = vsel %vm902, %v4476, %v4482
        %v4540 = vsel %vm902, %v4478, %v4496
        %4541 = vst [vmem:[#allocation2 + $0x280] sm:$0xff] %v4539
        %4542 = vst [vmem:[#allocation2 + $0x288] sm:$0xff] %v4509
        %4543 = vst [vmem:[#allocation2 + $0x290] sm:$0xff] %v4510
        %4544 = vst [vmem:[#allocation2 + $0x298] sm:$0xff] %v4511
        %4545 = vst [vmem:[#allocation2 + $0x2a0] sm:$0xff] %v4512
        %4546 = vst [vmem:[#allocation2 + $0x2a8] sm:$0xff] %v4513
        %4547 = vst [vmem:[#allocation2 + $0x2b0] sm:$0xff] %v4514
        %4548 = vst [vmem:[#allocation2 + $0x2b8] sm:$0xff] %v4515
        %4549 = vst [vmem:[#allocation2 + $0x2c0] sm:$0xff] %v4540
        %4550 = vst [vmem:[#allocation2 + $0x2c8] sm:$0xff] %v4516
        %4551 = vst [vmem:[#allocation2 + $0x2d0] sm:$0xff] %v4517
        %4552 = vst [vmem:[#allocation2 + $0x2d8] sm:$0xff] %v4518
        %4553 = vst [vmem:[#allocation2 + $0x2e0] sm:$0xff] %v4519
        %4554 = vst [vmem:[#allocation2 + $0x2e8] sm:$0xff] %v4520
        %4555 = vst [vmem:[#allocation2 + $0x2f0] sm:$0xff] %v4521
        %4556 = vst [vmem:[#allocation2 + $0x2f8] sm:$0xff] %v4522
        %4557 = vrot.lane.b32.xlu0 %v4040, 91
        %v4558 = vpop.permute.xlu0 %4557
        %4559 = vrot.lane.b32.xlu0 %v4048, 91
        %v4560 = vpop.permute.xlu0 %4559
        %4563 = vrot.lane.b32.xlu0 %v4033, 91
        %v4564 = vpop.permute.xlu0 %4563
        %4565 = vrot.lane.b32.xlu0 %v4034, 91
        %v4566 = vpop.permute.xlu0 %4565
        %4567 = vrot.lane.b32.xlu0 %v4035, 91
        %v4568 = vpop.permute.xlu0 %4567
        %4569 = vrot.lane.b32.xlu0 %v4036, 91
        %v4570 = vpop.permute.xlu0 %4569
        %4571 = vrot.lane.b32.xlu0 %v4037, 91
        %v4572 = vpop.permute.xlu0 %4571
        %4573 = vrot.lane.b32.xlu0 %v4038, 91
        %v4574 = vpop.permute.xlu0 %4573
        %4575 = vrot.lane.b32.xlu0 %v4039, 91
        %v4576 = vpop.permute.xlu0 %4575
        %4577 = vrot.lane.b32.xlu0 %v4041, 91
        %v4578 = vpop.permute.xlu0 %4577
        %4579 = vrot.lane.b32.xlu0 %v4042, 91
        %v4580 = vpop.permute.xlu0 %4579
        %4581 = vrot.lane.b32.xlu0 %v4043, 91
        %v4582 = vpop.permute.xlu0 %4581
        %4583 = vrot.lane.b32.xlu0 %v4044, 91
        %v4584 = vpop.permute.xlu0 %4583
        %4585 = vrot.lane.b32.xlu0 %v4045, 91
        %v4586 = vpop.permute.xlu0 %4585
        %4587 = vrot.lane.b32.xlu0 %v4046, 91
        %v4588 = vpop.permute.xlu0 %4587
        %4589 = vrot.lane.b32.xlu0 %v4047, 91
        %v4590 = vpop.permute.xlu0 %4589
        %v4591 = vsel %vm985, %v4564, %v4566
        %v4592 = vsel %vm985, %v4566, %v4568
        %v4593 = vsel %vm985, %v4568, %v4570
        %v4594 = vsel %vm985, %v4570, %v4572
        %v4595 = vsel %vm985, %v4572, %v4574
        %v4596 = vsel %vm985, %v4574, %v4576
        %v4597 = vsel %vm985, %v4576, %v4558
        %v4598 = vsel %vm985, %v4578, %v4580
        %v4599 = vsel %vm985, %v4580, %v4582
        %v4600 = vsel %vm985, %v4582, %v4584
        %v4601 = vsel %vm985, %v4584, %v4586
        %v4602 = vsel %vm985, %v4586, %v4588
        %v4603 = vsel %vm985, %v4588, %v4590
        %v4604 = vsel %vm985, %v4590, %v4560
        %v4621 = vsel %vm985, %v4558, %v4564
        %v4622 = vsel %vm985, %v4560, %v4578
        %4623 = vst [vmem:[#allocation2 + $0x300] sm:$0xff] %v4621
        %4624 = vst [vmem:[#allocation2 + $0x308] sm:$0xff] %v4591
        %4625 = vst [vmem:[#allocation2 + $0x310] sm:$0xff] %v4592
        %4626 = vst [vmem:[#allocation2 + $0x318] sm:$0xff] %v4593
        %4627 = vst [vmem:[#allocation2 + $0x320] sm:$0xff] %v4594
        %4628 = vst [vmem:[#allocation2 + $0x328] sm:$0xff] %v4595
        %4629 = vst [vmem:[#allocation2 + $0x330] sm:$0xff] %v4596
        %4630 = vst [vmem:[#allocation2 + $0x338] sm:$0xff] %v4597
        %4631 = vst [vmem:[#allocation2 + $0x340] sm:$0xff] %v4622
        %4632 = vst [vmem:[#allocation2 + $0x348] sm:$0xff] %v4598
        %4633 = vst [vmem:[#allocation2 + $0x350] sm:$0xff] %v4599
        %4634 = vst [vmem:[#allocation2 + $0x358] sm:$0xff] %v4600
        %4635 = vst [vmem:[#allocation2 + $0x360] sm:$0xff] %v4601
        %4636 = vst [vmem:[#allocation2 + $0x368] sm:$0xff] %v4602
        %4637 = vst [vmem:[#allocation2 + $0x370] sm:$0xff] %v4603
        %4638 = vst [vmem:[#allocation2 + $0x378] sm:$0xff] %v4604
        %4639 = vrot.lane.b32.xlu0 %v4040, 90
        %v4640 = vpop.permute.xlu0 %4639
        %4641 = vrot.lane.b32.xlu0 %v4048, 90
        %v4642 = vpop.permute.xlu0 %4641
        %4645 = vrot.lane.b32.xlu0 %v4033, 90
        %v4646 = vpop.permute.xlu0 %4645
        %4647 = vrot.lane.b32.xlu0 %v4034, 90
        %v4648 = vpop.permute.xlu0 %4647
        %4649 = vrot.lane.b32.xlu0 %v4035, 90
        %v4650 = vpop.permute.xlu0 %4649
        %4651 = vrot.lane.b32.xlu0 %v4036, 90
        %v4652 = vpop.permute.xlu0 %4651
        %4653 = vrot.lane.b32.xlu0 %v4037, 90
        %v4654 = vpop.permute.xlu0 %4653
        %4655 = vrot.lane.b32.xlu0 %v4038, 90
        %v4656 = vpop.permute.xlu0 %4655
        %4657 = vrot.lane.b32.xlu0 %v4039, 90
        %v4658 = vpop.permute.xlu0 %4657
        %4659 = vrot.lane.b32.xlu0 %v4041, 90
        %v4660 = vpop.permute.xlu0 %4659
        %4661 = vrot.lane.b32.xlu0 %v4042, 90
        %v4662 = vpop.permute.xlu0 %4661
        %4663 = vrot.lane.b32.xlu0 %v4043, 90
        %v4664 = vpop.permute.xlu0 %4663
        %4665 = vrot.lane.b32.xlu0 %v4044, 90
        %v4666 = vpop.permute.xlu0 %4665
        %4667 = vrot.lane.b32.xlu0 %v4045, 90
        %v4668 = vpop.permute.xlu0 %4667
        %4669 = vrot.lane.b32.xlu0 %v4046, 90
        %v4670 = vpop.permute.xlu0 %4669
        %4671 = vrot.lane.b32.xlu0 %v4047, 90
        %v4672 = vpop.permute.xlu0 %4671
        %v4673 = vsel %vm1068, %v4646, %v4648
        %v4674 = vsel %vm1068, %v4648, %v4650
        %v4675 = vsel %vm1068, %v4650, %v4652
        %v4676 = vsel %vm1068, %v4652, %v4654
        %v4677 = vsel %vm1068, %v4654, %v4656
        %v4678 = vsel %vm1068, %v4656, %v4658
        %v4679 = vsel %vm1068, %v4658, %v4640
        %v4680 = vsel %vm1068, %v4660, %v4662
        %v4681 = vsel %vm1068, %v4662, %v4664
        %v4682 = vsel %vm1068, %v4664, %v4666
        %v4683 = vsel %vm1068, %v4666, %v4668
        %v4684 = vsel %vm1068, %v4668, %v4670
        %v4685 = vsel %vm1068, %v4670, %v4672
        %v4686 = vsel %vm1068, %v4672, %v4642
        %v4703 = vsel %vm1068, %v4640, %v4646
        %v4704 = vsel %vm1068, %v4642, %v4660
        %4705 = vst [vmem:[#allocation2 + $0x380] sm:$0xff] %v4703
        %4706 = vst [vmem:[#allocation2 + $0x388] sm:$0xff] %v4673
        %4707 = vst [vmem:[#allocation2 + $0x390] sm:$0xff] %v4674
        %4708 = vst [vmem:[#allocation2 + $0x398] sm:$0xff] %v4675
        %4709 = vst [vmem:[#allocation2 + $0x3a0] sm:$0xff] %v4676
        %4710 = vst [vmem:[#allocation2 + $0x3a8] sm:$0xff] %v4677
        %4711 = vst [vmem:[#allocation2 + $0x3b0] sm:$0xff] %v4678
        %4712 = vst [vmem:[#allocation2 + $0x3b8] sm:$0xff] %v4679
        %4713 = vst [vmem:[#allocation2 + $0x3c0] sm:$0xff] %v4704
        %4714 = vst [vmem:[#allocation2 + $0x3c8] sm:$0xff] %v4680
        %4715 = vst [vmem:[#allocation2 + $0x3d0] sm:$0xff] %v4681
        %4716 = vst [vmem:[#allocation2 + $0x3d8] sm:$0xff] %v4682
        %4717 = vst [vmem:[#allocation2 + $0x3e0] sm:$0xff] %v4683
        %4718 = vst [vmem:[#allocation2 + $0x3e8] sm:$0xff] %v4684
        %4719 = vst [vmem:[#allocation2 + $0x3f0] sm:$0xff] %v4685
        %4720 = vst [vmem:[#allocation2 + $0x3f8] sm:$0xff] %v4686
        %4721 = vrot.lane.b32.xlu0 %v4040, 89
        %v4722 = vpop.permute.xlu0 %4721
        %4723 = vrot.lane.b32.xlu0 %v4048, 89
        %v4724 = vpop.permute.xlu0 %4723
        %4727 = vrot.lane.b32.xlu0 %v4033, 89
        %v4728 = vpop.permute.xlu0 %4727
        %4729 = vrot.lane.b32.xlu0 %v4034, 89
        %v4730 = vpop.permute.xlu0 %4729
        %4731 = vrot.lane.b32.xlu0 %v4035, 89
        %v4732 = vpop.permute.xlu0 %4731
        %4733 = vrot.lane.b32.xlu0 %v4036, 89
        %v4734 = vpop.permute.xlu0 %4733
        %4735 = vrot.lane.b32.xlu0 %v4037, 89
        %v4736 = vpop.permute.xlu0 %4735
        %4737 = vrot.lane.b32.xlu0 %v4038, 89
        %v4738 = vpop.permute.xlu0 %4737
        %4739 = vrot.lane.b32.xlu0 %v4039, 89
        %v4740 = vpop.permute.xlu0 %4739
        %4741 = vrot.lane.b32.xlu0 %v4041, 89
        %v4742 = vpop.permute.xlu0 %4741
        %4743 = vrot.lane.b32.xlu0 %v4042, 89
        %v4744 = vpop.permute.xlu0 %4743
        %4745 = vrot.lane.b32.xlu0 %v4043, 89
        %v4746 = vpop.permute.xlu0 %4745
        %4747 = vrot.lane.b32.xlu0 %v4044, 89
        %v4748 = vpop.permute.xlu0 %4747
        %4749 = vrot.lane.b32.xlu0 %v4045, 89
        %v4750 = vpop.permute.xlu0 %4749
        %4751 = vrot.lane.b32.xlu0 %v4046, 89
        %v4752 = vpop.permute.xlu0 %4751
        %4753 = vrot.lane.b32.xlu0 %v4047, 89
        %v4754 = vpop.permute.xlu0 %4753
        %v4755 = vsel %vm1151, %v4728, %v4730
        %v4756 = vsel %vm1151, %v4730, %v4732
        %v4757 = vsel %vm1151, %v4732, %v4734
        %v4758 = vsel %vm1151, %v4734, %v4736
        %v4759 = vsel %vm1151, %v4736, %v4738
        %v4760 = vsel %vm1151, %v4738, %v4740
        %v4761 = vsel %vm1151, %v4740, %v4722
        %v4762 = vsel %vm1151, %v4742, %v4744
        %v4763 = vsel %vm1151, %v4744, %v4746
        %v4764 = vsel %vm1151, %v4746, %v4748
        %v4765 = vsel %vm1151, %v4748, %v4750
        %v4766 = vsel %vm1151, %v4750, %v4752
        %v4767 = vsel %vm1151, %v4752, %v4754
        %v4768 = vsel %vm1151, %v4754, %v4724
        %v4785 = vsel %vm1151, %v4722, %v4728
        %v4786 = vsel %vm1151, %v4724, %v4742
        %4787 = vst [vmem:[#allocation2 + $0x400] sm:$0xff] %v4785
        %4788 = vst [vmem:[#allocation2 + $0x408] sm:$0xff] %v4755
        %4789 = vst [vmem:[#allocation2 + $0x410] sm:$0xff] %v4756
        %4790 = vst [vmem:[#allocation2 + $0x418] sm:$0xff] %v4757
        %4791 = vst [vmem:[#allocation2 + $0x420] sm:$0xff] %v4758
        %4792 = vst [vmem:[#allocation2 + $0x428] sm:$0xff] %v4759
        %4793 = vst [vmem:[#allocation2 + $0x430] sm:$0xff] %v4760
        %4794 = vst [vmem:[#allocation2 + $0x438] sm:$0xff] %v4761
        %4795 = vst [vmem:[#allocation2 + $0x440] sm:$0xff] %v4786
        %4796 = vst [vmem:[#allocation2 + $0x448] sm:$0xff] %v4762
        %4797 = vst [vmem:[#allocation2 + $0x450] sm:$0xff] %v4763
        %4798 = vst [vmem:[#allocation2 + $0x458] sm:$0xff] %v4764
        %4799 = vst [vmem:[#allocation2 + $0x460] sm:$0xff] %v4765
        %4800 = vst [vmem:[#allocation2 + $0x468] sm:$0xff] %v4766
        %4801 = vst [vmem:[#allocation2 + $0x470] sm:$0xff] %v4767
        %4802 = vst [vmem:[#allocation2 + $0x478] sm:$0xff] %v4768
        %4803 = vrot.lane.b32.xlu0 %v4040, 11
        %v4804 = vpop.permute.xlu0 %4803
        %4805 = vrot.lane.b32.xlu0 %v4048, 11
        %v4806 = vpop.permute.xlu0 %4805
        %4809 = vrot.lane.b32.xlu0 %v4033, 11
        %v4810 = vpop.permute.xlu0 %4809
        %4811 = vrot.lane.b32.xlu0 %v4034, 11
        %v4812 = vpop.permute.xlu0 %4811
        %4813 = vrot.lane.b32.xlu0 %v4035, 11
        %v4814 = vpop.permute.xlu0 %4813
        %4815 = vrot.lane.b32.xlu0 %v4036, 11
        %v4816 = vpop.permute.xlu0 %4815
        %4817 = vrot.lane.b32.xlu0 %v4037, 11
        %v4818 = vpop.permute.xlu0 %4817
        %4819 = vrot.lane.b32.xlu0 %v4038, 11
        %v4820 = vpop.permute.xlu0 %4819
        %4821 = vrot.lane.b32.xlu0 %v4039, 11
        %v4822 = vpop.permute.xlu0 %4821
        %4823 = vrot.lane.b32.xlu0 %v4041, 11
        %v4824 = vpop.permute.xlu0 %4823
        %4825 = vrot.lane.b32.xlu0 %v4042, 11
        %v4826 = vpop.permute.xlu0 %4825
        %4827 = vrot.lane.b32.xlu0 %v4043, 11
        %v4828 = vpop.permute.xlu0 %4827
        %4829 = vrot.lane.b32.xlu0 %v4044, 11
        %v4830 = vpop.permute.xlu0 %4829
        %4831 = vrot.lane.b32.xlu0 %v4045, 11
        %v4832 = vpop.permute.xlu0 %4831
        %4833 = vrot.lane.b32.xlu0 %v4046, 11
        %v4834 = vpop.permute.xlu0 %4833
        %4835 = vrot.lane.b32.xlu0 %v4047, 11
        %v4836 = vpop.permute.xlu0 %4835
        %v4837 = vsel %vm1234, %v4810, %v4812
        %v4838 = vsel %vm1234, %v4812, %v4814
        %v4839 = vsel %vm1234, %v4814, %v4816
        %v4840 = vsel %vm1234, %v4816, %v4818
        %v4841 = vsel %vm1234, %v4818, %v4820
        %v4842 = vsel %vm1234, %v4820, %v4822
        %v4843 = vsel %vm1234, %v4822, %v4804
        %v4844 = vsel %vm1234, %v4824, %v4826
        %v4845 = vsel %vm1234, %v4826, %v4828
        %v4846 = vsel %vm1234, %v4828, %v4830
        %v4847 = vsel %vm1234, %v4830, %v4832
        %v4848 = vsel %vm1234, %v4832, %v4834
        %v4849 = vsel %vm1234, %v4834, %v4836
        %v4850 = vsel %vm1234, %v4836, %v4806
        %v4867 = vsel %vm1234, %v4804, %v4810
        %v4868 = vsel %vm1234, %v4806, %v4824
        %4869 = vst [vmem:[#allocation2 + $0x480] sm:$0xff] %v4867
        %4870 = vst [vmem:[#allocation2 + $0x488] sm:$0xff] %v4837
        %4871 = vst [vmem:[#allocation2 + $0x490] sm:$0xff] %v4838
        %4872 = vst [vmem:[#allocation2 + $0x498] sm:$0xff] %v4839
        %4873 = vst [vmem:[#allocation2 + $0x4a0] sm:$0xff] %v4840
        %4874 = vst [vmem:[#allocation2 + $0x4a8] sm:$0xff] %v4841
        %4875 = vst [vmem:[#allocation2 + $0x4b0] sm:$0xff] %v4842
        %4876 = vst [vmem:[#allocation2 + $0x4b8] sm:$0xff] %v4843
        %4877 = vst [vmem:[#allocation2 + $0x4c0] sm:$0xff] %v4868
        %4878 = vst [vmem:[#allocation2 + $0x4c8] sm:$0xff] %v4844
        %4879 = vst [vmem:[#allocation2 + $0x4d0] sm:$0xff] %v4845
        %4880 = vst [vmem:[#allocation2 + $0x4d8] sm:$0xff] %v4846
        %4881 = vst [vmem:[#allocation2 + $0x4e0] sm:$0xff] %v4847
        %4882 = vst [vmem:[#allocation2 + $0x4e8] sm:$0xff] %v4848
        %4883 = vst [vmem:[#allocation2 + $0x4f0] sm:$0xff] %v4849
        %4884 = vst [vmem:[#allocation2 + $0x4f8] sm:$0xff] %v4850
        %4885 = vrot.lane.b32.xlu0 %v4040, 10
        %v4886 = vpop.permute.xlu0 %4885
        %4887 = vrot.lane.b32.xlu0 %v4048, 10
        %v4888 = vpop.permute.xlu0 %4887
        %4891 = vrot.lane.b32.xlu0 %v4033, 10
        %v4892 = vpop.permute.xlu0 %4891
        %4893 = vrot.lane.b32.xlu0 %v4034, 10
        %v4894 = vpop.permute.xlu0 %4893
        %4895 = vrot.lane.b32.xlu0 %v4035, 10
        %v4896 = vpop.permute.xlu0 %4895
        %4897 = vrot.lane.b32.xlu0 %v4036, 10
        %v4898 = vpop.permute.xlu0 %4897
        %4899 = vrot.lane.b32.xlu0 %v4037, 10
        %v4900 = vpop.permute.xlu0 %4899
        %4901 = vrot.lane.b32.xlu0 %v4038, 10
        %v4902 = vpop.permute.xlu0 %4901
        %4903 = vrot.lane.b32.xlu0 %v4039, 10
        %v4904 = vpop.permute.xlu0 %4903
        %4905 = vrot.lane.b32.xlu0 %v4041, 10
        %v4906 = vpop.permute.xlu0 %4905
        %4907 = vrot.lane.b32.xlu0 %v4042, 10
        %v4908 = vpop.permute.xlu0 %4907
        %4909 = vrot.lane.b32.xlu0 %v4043, 10
        %v4910 = vpop.permute.xlu0 %4909
        %4911 = vrot.lane.b32.xlu0 %v4044, 10
        %v4912 = vpop.permute.xlu0 %4911
        %4913 = vrot.lane.b32.xlu0 %v4045, 10
        %v4914 = vpop.permute.xlu0 %4913
        %4915 = vrot.lane.b32.xlu0 %v4046, 10
        %v4916 = vpop.permute.xlu0 %4915
        %4917 = vrot.lane.b32.xlu0 %v4047, 10
        %v4918 = vpop.permute.xlu0 %4917
        %v4919 = vsel %vm1317, %v4892, %v4894
        %v4920 = vsel %vm1317, %v4894, %v4896
        %v4921 = vsel %vm1317, %v4896, %v4898
        %v4922 = vsel %vm1317, %v4898, %v4900
        %v4923 = vsel %vm1317, %v4900, %v4902
        %v4924 = vsel %vm1317, %v4902, %v4904
        %v4925 = vsel %vm1317, %v4904, %v4886
        %v4926 = vsel %vm1317, %v4906, %v4908
        %v4927 = vsel %vm1317, %v4908, %v4910
        %v4928 = vsel %vm1317, %v4910, %v4912
        %v4929 = vsel %vm1317, %v4912, %v4914
        %v4930 = vsel %vm1317, %v4914, %v4916
        %v4931 = vsel %vm1317, %v4916, %v4918
        %v4932 = vsel %vm1317, %v4918, %v4888
        %v4949 = vsel %vm1317, %v4886, %v4892
        %v4950 = vsel %vm1317, %v4888, %v4906
        %4951 = vst [vmem:[#allocation2 + $0x500] sm:$0xff] %v4949
        %4952 = vst [vmem:[#allocation2 + $0x508] sm:$0xff] %v4919
        %4953 = vst [vmem:[#allocation2 + $0x510] sm:$0xff] %v4920
        %4954 = vst [vmem:[#allocation2 + $0x518] sm:$0xff] %v4921
        %4955 = vst [vmem:[#allocation2 + $0x520] sm:$0xff] %v4922
        %4956 = vst [vmem:[#allocation2 + $0x528] sm:$0xff] %v4923
        %4957 = vst [vmem:[#allocation2 + $0x530] sm:$0xff] %v4924
        %4958 = vst [vmem:[#allocation2 + $0x538] sm:$0xff] %v4925
        %4959 = vst [vmem:[#allocation2 + $0x540] sm:$0xff] %v4950
        %4960 = vst [vmem:[#allocation2 + $0x548] sm:$0xff] %v4926
        %4961 = vst [vmem:[#allocation2 + $0x550] sm:$0xff] %v4927
        %4962 = vst [vmem:[#allocation2 + $0x558] sm:$0xff] %v4928
        %4963 = vst [vmem:[#allocation2 + $0x560] sm:$0xff] %v4929
        %4964 = vst [vmem:[#allocation2 + $0x568] sm:$0xff] %v4930
        %4965 = vst [vmem:[#allocation2 + $0x570] sm:$0xff] %v4931
        %4966 = vst [vmem:[#allocation2 + $0x578] sm:$0xff] %v4932
        %4967 = vrot.lane.b32.xlu0 %v4040, 9
        %v4968 = vpop.permute.xlu0 %4967
        %4969 = vrot.lane.b32.xlu0 %v4048, 9
        %v4970 = vpop.permute.xlu0 %4969
        %4973 = vrot.lane.b32.xlu0 %v4033, 9
        %v4974 = vpop.permute.xlu0 %4973
        %4975 = vrot.lane.b32.xlu0 %v4034, 9
        %v4976 = vpop.permute.xlu0 %4975
        %4977 = vrot.lane.b32.xlu0 %v4035, 9
        %v4978 = vpop.permute.xlu0 %4977
        %4979 = vrot.lane.b32.xlu0 %v4036, 9
        %v4980 = vpop.permute.xlu0 %4979
        %4981 = vrot.lane.b32.xlu0 %v4037, 9
        %v4982 = vpop.permute.xlu0 %4981
        %4983 = vrot.lane.b32.xlu0 %v4038, 9
        %v4984 = vpop.permute.xlu0 %4983
        %4985 = vrot.lane.b32.xlu0 %v4039, 9
        %v4986 = vpop.permute.xlu0 %4985
        %4987 = vrot.lane.b32.xlu0 %v4041, 9
        %v4988 = vpop.permute.xlu0 %4987
        %4989 = vrot.lane.b32.xlu0 %v4042, 9
        %v4990 = vpop.permute.xlu0 %4989
        %4991 = vrot.lane.b32.xlu0 %v4043, 9
        %v4992 = vpop.permute.xlu0 %4991
        %4993 = vrot.lane.b32.xlu0 %v4044, 9
        %v4994 = vpop.permute.xlu0 %4993
        %4995 = vrot.lane.b32.xlu0 %v4045, 9
        %v4996 = vpop.permute.xlu0 %4995
        %4997 = vrot.lane.b32.xlu0 %v4046, 9
        %v4998 = vpop.permute.xlu0 %4997
        %4999 = vrot.lane.b32.xlu0 %v4047, 9
        %v5000 = vpop.permute.xlu0 %4999
        %v5001 = vsel %vm1400, %v4974, %v4976
        %v5002 = vsel %vm1400, %v4976, %v4978
        %v5003 = vsel %vm1400, %v4978, %v4980
        %v5004 = vsel %vm1400, %v4980, %v4982
        %v5005 = vsel %vm1400, %v4982, %v4984
        %v5006 = vsel %vm1400, %v4984, %v4986
        %v5007 = vsel %vm1400, %v4986, %v4968
        %v5008 = vsel %vm1400, %v4988, %v4990
        %v5009 = vsel %vm1400, %v4990, %v4992
        %v5010 = vsel %vm1400, %v4992, %v4994
        %v5011 = vsel %vm1400, %v4994, %v4996
        %v5012 = vsel %vm1400, %v4996, %v4998
        %v5013 = vsel %vm1400, %v4998, %v5000
        %v5014 = vsel %vm1400, %v5000, %v4970
        %v5031 = vsel %vm1400, %v4968, %v4974
        %v5032 = vsel %vm1400, %v4970, %v4988
        %5033 = vst [vmem:[#allocation2 + $0x580] sm:$0xff] %v5031
        %5034 = vst [vmem:[#allocation2 + $0x588] sm:$0xff] %v5001
        %5035 = vst [vmem:[#allocation2 + $0x590] sm:$0xff] %v5002
        %5036 = vst [vmem:[#allocation2 + $0x598] sm:$0xff] %v5003
        %5037 = vst [vmem:[#allocation2 + $0x5a0] sm:$0xff] %v5004
        %5038 = vst [vmem:[#allocation2 + $0x5a8] sm:$0xff] %v5005
        %5039 = vst [vmem:[#allocation2 + $0x5b0] sm:$0xff] %v5006
        %5040 = vst [vmem:[#allocation2 + $0x5b8] sm:$0xff] %v5007
        %5041 = vst [vmem:[#allocation2 + $0x5c0] sm:$0xff] %v5032
        %5042 = vst [vmem:[#allocation2 + $0x5c8] sm:$0xff] %v5008
        %5043 = vst [vmem:[#allocation2 + $0x5d0] sm:$0xff] %v5009
        %5044 = vst [vmem:[#allocation2 + $0x5d8] sm:$0xff] %v5010
        %5045 = vst [vmem:[#allocation2 + $0x5e0] sm:$0xff] %v5011
        %5046 = vst [vmem:[#allocation2 + $0x5e8] sm:$0xff] %v5012
        %5047 = vst [vmem:[#allocation2 + $0x5f0] sm:$0xff] %v5013
        %5048 = vst [vmem:[#allocation2 + $0x5f8] sm:$0xff] %v5014
        %5049 = vrot.lane.b32.xlu0 %v4040, 1
        %v5050 = vpop.permute.xlu0 %5049
        %5051 = vrot.lane.b32.xlu0 %v4048, 1
        %v5052 = vpop.permute.xlu0 %5051
        %5055 = vrot.lane.b32.xlu0 %v4033, 1
        %v5056 = vpop.permute.xlu0 %5055
        %5057 = vrot.lane.b32.xlu0 %v4034, 1
        %v5058 = vpop.permute.xlu0 %5057
        %5059 = vrot.lane.b32.xlu0 %v4035, 1
        %v5060 = vpop.permute.xlu0 %5059
        %5061 = vrot.lane.b32.xlu0 %v4036, 1
        %v5062 = vpop.permute.xlu0 %5061
        %5063 = vrot.lane.b32.xlu0 %v4037, 1
        %v5064 = vpop.permute.xlu0 %5063
        %5065 = vrot.lane.b32.xlu0 %v4038, 1
        %v5066 = vpop.permute.xlu0 %5065
        %5067 = vrot.lane.b32.xlu0 %v4039, 1
        %v5068 = vpop.permute.xlu0 %5067
        %5069 = vrot.lane.b32.xlu0 %v4041, 1
        %v5070 = vpop.permute.xlu0 %5069
        %5071 = vrot.lane.b32.xlu0 %v4042, 1
        %v5072 = vpop.permute.xlu0 %5071
        %5073 = vrot.lane.b32.xlu0 %v4043, 1
        %v5074 = vpop.permute.xlu0 %5073
        %5075 = vrot.lane.b32.xlu0 %v4044, 1
        %v5076 = vpop.permute.xlu0 %5075
        %5077 = vrot.lane.b32.xlu0 %v4045, 1
        %v5078 = vpop.permute.xlu0 %5077
        %5079 = vrot.lane.b32.xlu0 %v4046, 1
        %v5080 = vpop.permute.xlu0 %5079
        %5081 = vrot.lane.b32.xlu0 %v4047, 1
        %v5082 = vpop.permute.xlu0 %5081
        %v5083 = vsel %vm1483, %v5056, %v5058
        %v5084 = vsel %vm1483, %v5058, %v5060
        %v5085 = vsel %vm1483, %v5060, %v5062
        %v5086 = vsel %vm1483, %v5062, %v5064
        %v5087 = vsel %vm1483, %v5064, %v5066
        %v5088 = vsel %vm1483, %v5066, %v5068
        %v5089 = vsel %vm1483, %v5068, %v5050
        %v5090 = vsel %vm1483, %v5070, %v5072
        %v5091 = vsel %vm1483, %v5072, %v5074
        %v5092 = vsel %vm1483, %v5074, %v5076
        %v5093 = vsel %vm1483, %v5076, %v5078
        %v5094 = vsel %vm1483, %v5078, %v5080
        %v5095 = vsel %vm1483, %v5080, %v5082
        %v5096 = vsel %vm1483, %v5082, %v5052
        %v5113 = vsel %vm1483, %v5050, %v5056
        %v5114 = vsel %vm1483, %v5052, %v5070
        %5115 = vst [vmem:[#allocation2 + $0x600] sm:$0xff] %v5113
        %5116 = vst [vmem:[#allocation2 + $0x608] sm:$0xff] %v5083
        %5117 = vst [vmem:[#allocation2 + $0x610] sm:$0xff] %v5084
        %5118 = vst [vmem:[#allocation2 + $0x618] sm:$0xff] %v5085
        %5119 = vst [vmem:[#allocation2 + $0x620] sm:$0xff] %v5086
        %5120 = vst [vmem:[#allocation2 + $0x628] sm:$0xff] %v5087
        %5121 = vst [vmem:[#allocation2 + $0x630] sm:$0xff] %v5088
        %5122 = vst [vmem:[#allocation2 + $0x638] sm:$0xff] %v5089
        %5123 = vst [vmem:[#allocation2 + $0x640] sm:$0xff] %v5114
        %5124 = vst [vmem:[#allocation2 + $0x648] sm:$0xff] %v5090
        %5125 = vst [vmem:[#allocation2 + $0x650] sm:$0xff] %v5091
        %5126 = vst [vmem:[#allocation2 + $0x658] sm:$0xff] %v5092
        %5127 = vst [vmem:[#allocation2 + $0x660] sm:$0xff] %v5093
        %5128 = vst [vmem:[#allocation2 + $0x668] sm:$0xff] %v5094
        %5129 = vst [vmem:[#allocation2 + $0x670] sm:$0xff] %v5095
        %5130 = vst [vmem:[#allocation2 + $0x678] sm:$0xff] %v5096
        %5131 = vst [vmem:[#allocation2 + $0x680] sm:$0xff] %v4033
        %5132 = vst [vmem:[#allocation2 + $0x688] sm:$0xff] %v4034
        %5133 = vst [vmem:[#allocation2 + $0x690] sm:$0xff] %v4035
        %5134 = vst [vmem:[#allocation2 + $0x698] sm:$0xff] %v4036
        %5135 = vst [vmem:[#allocation2 + $0x6a0] sm:$0xff] %v4037
        %5136 = vst [vmem:[#allocation2 + $0x6a8] sm:$0xff] %v4038
        %5137 = vst [vmem:[#allocation2 + $0x6b0] sm:$0xff] %v4039
        %5138 = vst [vmem:[#allocation2 + $0x6b8] sm:$0xff] %v4040
        %5139 = vst [vmem:[#allocation2 + $0x6c0] sm:$0xff] %v4041
        %5140 = vst [vmem:[#allocation2 + $0x6c8] sm:$0xff] %v4042
        %5141 = vst [vmem:[#allocation2 + $0x6d0] sm:$0xff] %v4043
        %5142 = vst [vmem:[#allocation2 + $0x6d8] sm:$0xff] %v4044
        %5143 = vst [vmem:[#allocation2 + $0x6e0] sm:$0xff] %v4045
        %5144 = vst [vmem:[#allocation2 + $0x6e8] sm:$0xff] %v4046
        %5145 = vst [vmem:[#allocation2 + $0x6f0] sm:$0xff] %v4047
        %5146 = vst [vmem:[#allocation2 + $0x6f8] sm:$0xff] %v4048
        %5147 = vrot.lane.b32.xlu0 %v4033, 127
        %v5148 = vpop.permute.xlu0 %5147
        %5149 = vrot.lane.b32.xlu0 %v4034, 127
        %v5150 = vpop.permute.xlu0 %5149
        %5151 = vrot.lane.b32.xlu0 %v4035, 127
        %v5152 = vpop.permute.xlu0 %5151
        %5153 = vrot.lane.b32.xlu0 %v4036, 127
        %v5154 = vpop.permute.xlu0 %5153
        %5155 = vrot.lane.b32.xlu0 %v4037, 127
        %v5156 = vpop.permute.xlu0 %5155
        %5157 = vrot.lane.b32.xlu0 %v4038, 127
        %v5158 = vpop.permute.xlu0 %5157
        %5159 = vrot.lane.b32.xlu0 %v4039, 127
        %v5160 = vpop.permute.xlu0 %5159
        %5161 = vrot.lane.b32.xlu0 %v4040, 127
        %v5162 = vpop.permute.xlu0 %5161
        %5163 = vrot.lane.b32.xlu0 %v4041, 127
        %v5164 = vpop.permute.xlu0 %5163
        %5165 = vrot.lane.b32.xlu0 %v4042, 127
        %v5166 = vpop.permute.xlu0 %5165
        %5167 = vrot.lane.b32.xlu0 %v4043, 127
        %v5168 = vpop.permute.xlu0 %5167
        %5169 = vrot.lane.b32.xlu0 %v4044, 127
        %v5170 = vpop.permute.xlu0 %5169
        %5171 = vrot.lane.b32.xlu0 %v4045, 127
        %v5172 = vpop.permute.xlu0 %5171
        %5173 = vrot.lane.b32.xlu0 %v4046, 127
        %v5174 = vpop.permute.xlu0 %5173
        %5175 = vrot.lane.b32.xlu0 %v4047, 127
        %v5176 = vpop.permute.xlu0 %5175
        %5177 = vrot.lane.b32.xlu0 %v4048, 127
        %v5178 = vpop.permute.xlu0 %5177
        %v5179 = vsel %vm1580, %v5148, %v5150
        %v5180 = vsel %vm1580, %v5150, %v5152
        %v5181 = vsel %vm1580, %v5152, %v5154
        %v5182 = vsel %vm1580, %v5154, %v5156
        %v5183 = vsel %vm1580, %v5156, %v5158
        %v5184 = vsel %vm1580, %v5158, %v5160
        %v5185 = vsel %vm1580, %v5160, %v5162
        %v5186 = vsel %vm1580, %v5164, %v5166
        %v5187 = vsel %vm1580, %v5166, %v5168
        %v5188 = vsel %vm1580, %v5168, %v5170
        %v5189 = vsel %vm1580, %v5170, %v5172
        %v5190 = vsel %vm1580, %v5172, %v5174
        %v5191 = vsel %vm1580, %v5174, %v5176
        %v5192 = vsel %vm1580, %v5176, %v5178
        %v5211 = vsel %vm1580, %v5162, %v5148
        %v5212 = vsel %vm1580, %v5178, %v5164
        %5213 = vst [vmem:[#allocation2 + $0x700] sm:$0xff] %v5179
        %5214 = vst [vmem:[#allocation2 + $0x708] sm:$0xff] %v5180
        %5215 = vst [vmem:[#allocation2 + $0x710] sm:$0xff] %v5181
        %5216 = vst [vmem:[#allocation2 + $0x718] sm:$0xff] %v5182
        %5217 = vst [vmem:[#allocation2 + $0x720] sm:$0xff] %v5183
        %5218 = vst [vmem:[#allocation2 + $0x728] sm:$0xff] %v5184
        %5219 = vst [vmem:[#allocation2 + $0x730] sm:$0xff] %v5185
        %5220 = vst [vmem:[#allocation2 + $0x738] sm:$0xff] %v5211
        %5221 = vst [vmem:[#allocation2 + $0x740] sm:$0xff] %v5186
        %5222 = vst [vmem:[#allocation2 + $0x748] sm:$0xff] %v5187
        %5223 = vst [vmem:[#allocation2 + $0x750] sm:$0xff] %v5188
        %5224 = vst [vmem:[#allocation2 + $0x758] sm:$0xff] %v5189
        %5225 = vst [vmem:[#allocation2 + $0x760] sm:$0xff] %v5190
        %5226 = vst [vmem:[#allocation2 + $0x768] sm:$0xff] %v5191
        %5227 = vst [vmem:[#allocation2 + $0x770] sm:$0xff] %v5192
        %5228 = vst [vmem:[#allocation2 + $0x778] sm:$0xff] %v5212
        %5229 = vrot.lane.b32.xlu0 %v4033, 119
        %v5230 = vpop.permute.xlu0 %5229
        %5231 = vrot.lane.b32.xlu0 %v4034, 119
        %v5232 = vpop.permute.xlu0 %5231
        %5233 = vrot.lane.b32.xlu0 %v4035, 119
        %v5234 = vpop.permute.xlu0 %5233
        %5235 = vrot.lane.b32.xlu0 %v4036, 119
        %v5236 = vpop.permute.xlu0 %5235
        %5237 = vrot.lane.b32.xlu0 %v4037, 119
        %v5238 = vpop.permute.xlu0 %5237
        %5239 = vrot.lane.b32.xlu0 %v4038, 119
        %v5240 = vpop.permute.xlu0 %5239
        %5241 = vrot.lane.b32.xlu0 %v4039, 119
        %v5242 = vpop.permute.xlu0 %5241
        %5243 = vrot.lane.b32.xlu0 %v4040, 119
        %v5244 = vpop.permute.xlu0 %5243
        %5245 = vrot.lane.b32.xlu0 %v4041, 119
        %v5246 = vpop.permute.xlu0 %5245
        %5247 = vrot.lane.b32.xlu0 %v4042, 119
        %v5248 = vpop.permute.xlu0 %5247
        %5249 = vrot.lane.b32.xlu0 %v4043, 119
        %v5250 = vpop.permute.xlu0 %5249
        %5251 = vrot.lane.b32.xlu0 %v4044, 119
        %v5252 = vpop.permute.xlu0 %5251
        %5253 = vrot.lane.b32.xlu0 %v4045, 119
        %v5254 = vpop.permute.xlu0 %5253
        %5255 = vrot.lane.b32.xlu0 %v4046, 119
        %v5256 = vpop.permute.xlu0 %5255
        %5257 = vrot.lane.b32.xlu0 %v4047, 119
        %v5258 = vpop.permute.xlu0 %5257
        %5259 = vrot.lane.b32.xlu0 %v4048, 119
        %v5260 = vpop.permute.xlu0 %5259
        %v5261 = vsel %vm1663, %v5230, %v5232
        %v5262 = vsel %vm1663, %v5232, %v5234
        %v5263 = vsel %vm1663, %v5234, %v5236
        %v5264 = vsel %vm1663, %v5236, %v5238
        %v5265 = vsel %vm1663, %v5238, %v5240
        %v5266 = vsel %vm1663, %v5240, %v5242
        %v5267 = vsel %vm1663, %v5242, %v5244
        %v5268 = vsel %vm1663, %v5246, %v5248
        %v5269 = vsel %vm1663, %v5248, %v5250
        %v5270 = vsel %vm1663, %v5250, %v5252
        %v5271 = vsel %vm1663, %v5252, %v5254
        %v5272 = vsel %vm1663, %v5254, %v5256
        %v5273 = vsel %vm1663, %v5256, %v5258
        %v5274 = vsel %vm1663, %v5258, %v5260
        %v5293 = vsel %vm1663, %v5244, %v5230
        %v5294 = vsel %vm1663, %v5260, %v5246
        %5295 = vst [vmem:[#allocation2 + $0x780] sm:$0xff] %v5261
        %5296 = vst [vmem:[#allocation2 + $0x788] sm:$0xff] %v5262
        %5297 = vst [vmem:[#allocation2 + $0x790] sm:$0xff] %v5263
        %5298 = vst [vmem:[#allocation2 + $0x798] sm:$0xff] %v5264
        %5299 = vst [vmem:[#allocation2 + $0x7a0] sm:$0xff] %v5265
        %5300 = vst [vmem:[#allocation2 + $0x7a8] sm:$0xff] %v5266
        %5301 = vst [vmem:[#allocation2 + $0x7b0] sm:$0xff] %v5267
        %5302 = vst [vmem:[#allocation2 + $0x7b8] sm:$0xff] %v5293
        %5303 = vst [vmem:[#allocation2 + $0x7c0] sm:$0xff] %v5268
        %5304 = vst [vmem:[#allocation2 + $0x7c8] sm:$0xff] %v5269
        %5305 = vst [vmem:[#allocation2 + $0x7d0] sm:$0xff] %v5270
        %5306 = vst [vmem:[#allocation2 + $0x7d8] sm:$0xff] %v5271
        %5307 = vst [vmem:[#allocation2 + $0x7e0] sm:$0xff] %v5272
        %5308 = vst [vmem:[#allocation2 + $0x7e8] sm:$0xff] %v5273
        %5309 = vst [vmem:[#allocation2 + $0x7f0] sm:$0xff] %v5274
        %5310 = vst [vmem:[#allocation2 + $0x7f8] sm:$0xff] %v5294
        %5311 = vrot.lane.b32.xlu0 %v4033, 118
        %v5312 = vpop.permute.xlu0 %5311
        %5313 = vrot.lane.b32.xlu0 %v4034, 118
        %v5314 = vpop.permute.xlu0 %5313
        %5315 = vrot.lane.b32.xlu0 %v4035, 118
        %v5316 = vpop.permute.xlu0 %5315
        %5317 = vrot.lane.b32.xlu0 %v4036, 118
        %v5318 = vpop.permute.xlu0 %5317
        %5319 = vrot.lane.b32.xlu0 %v4037, 118
        %v5320 = vpop.permute.xlu0 %5319
        %5321 = vrot.lane.b32.xlu0 %v4038, 118
        %v5322 = vpop.permute.xlu0 %5321
        %5323 = vrot.lane.b32.xlu0 %v4039, 118
        %v5324 = vpop.permute.xlu0 %5323
        %5325 = vrot.lane.b32.xlu0 %v4040, 118
        %v5326 = vpop.permute.xlu0 %5325
        %5327 = vrot.lane.b32.xlu0 %v4041, 118
        %v5328 = vpop.permute.xlu0 %5327
        %5329 = vrot.lane.b32.xlu0 %v4042, 118
        %v5330 = vpop.permute.xlu0 %5329
        %5331 = vrot.lane.b32.xlu0 %v4043, 118
        %v5332 = vpop.permute.xlu0 %5331
        %5333 = vrot.lane.b32.xlu0 %v4044, 118
        %v5334 = vpop.permute.xlu0 %5333
        %5335 = vrot.lane.b32.xlu0 %v4045, 118
        %v5336 = vpop.permute.xlu0 %5335
        %5337 = vrot.lane.b32.xlu0 %v4046, 118
        %v5338 = vpop.permute.xlu0 %5337
        %5339 = vrot.lane.b32.xlu0 %v4047, 118
        %v5340 = vpop.permute.xlu0 %5339
        %5341 = vrot.lane.b32.xlu0 %v4048, 118
        %v5342 = vpop.permute.xlu0 %5341
        %v5343 = vsel %vm1746, %v5312, %v5314
        %v5344 = vsel %vm1746, %v5314, %v5316
        %v5345 = vsel %vm1746, %v5316, %v5318
        %v5346 = vsel %vm1746, %v5318, %v5320
        %v5347 = vsel %vm1746, %v5320, %v5322
        %v5348 = vsel %vm1746, %v5322, %v5324
        %v5349 = vsel %vm1746, %v5324, %v5326
        %v5350 = vsel %vm1746, %v5328, %v5330
        %v5351 = vsel %vm1746, %v5330, %v5332
        %v5352 = vsel %vm1746, %v5332, %v5334
        %v5353 = vsel %vm1746, %v5334, %v5336
        %v5354 = vsel %vm1746, %v5336, %v5338
        %v5355 = vsel %vm1746, %v5338, %v5340
        %v5356 = vsel %vm1746, %v5340, %v5342
        %v5375 = vsel %vm1746, %v5326, %v5312
        %v5376 = vsel %vm1746, %v5342, %v5328
        %5377 = vst [vmem:[#allocation2 + $0x800] sm:$0xff] %v5343
        %5378 = vst [vmem:[#allocation2 + $0x808] sm:$0xff] %v5344
        %5379 = vst [vmem:[#allocation2 + $0x810] sm:$0xff] %v5345
        %5380 = vst [vmem:[#allocation2 + $0x818] sm:$0xff] %v5346
        %5381 = vst [vmem:[#allocation2 + $0x820] sm:$0xff] %v5347
        %5382 = vst [vmem:[#allocation2 + $0x828] sm:$0xff] %v5348
        %5383 = vst [vmem:[#allocation2 + $0x830] sm:$0xff] %v5349
        %5384 = vst [vmem:[#allocation2 + $0x838] sm:$0xff] %v5375
        %5385 = vst [vmem:[#allocation2 + $0x840] sm:$0xff] %v5350
        %5386 = vst [vmem:[#allocation2 + $0x848] sm:$0xff] %v5351
        %5387 = vst [vmem:[#allocation2 + $0x850] sm:$0xff] %v5352
        %5388 = vst [vmem:[#allocation2 + $0x858] sm:$0xff] %v5353
        %5389 = vst [vmem:[#allocation2 + $0x860] sm:$0xff] %v5354
        %5390 = vst [vmem:[#allocation2 + $0x868] sm:$0xff] %v5355
        %5391 = vst [vmem:[#allocation2 + $0x870] sm:$0xff] %v5356
        %5392 = vst [vmem:[#allocation2 + $0x878] sm:$0xff] %v5376
        %5393 = vrot.lane.b32.xlu0 %v4033, 117
        %v5394 = vpop.permute.xlu0 %5393
        %5395 = vrot.lane.b32.xlu0 %v4034, 117
        %v5396 = vpop.permute.xlu0 %5395
        %5397 = vrot.lane.b32.xlu0 %v4035, 117
        %v5398 = vpop.permute.xlu0 %5397
        %5399 = vrot.lane.b32.xlu0 %v4036, 117
        %v5400 = vpop.permute.xlu0 %5399
        %5401 = vrot.lane.b32.xlu0 %v4037, 117
        %v5402 = vpop.permute.xlu0 %5401
        %5403 = vrot.lane.b32.xlu0 %v4038, 117
        %v5404 = vpop.permute.xlu0 %5403
        %5405 = vrot.lane.b32.xlu0 %v4039, 117
        %v5406 = vpop.permute.xlu0 %5405
        %5407 = vrot.lane.b32.xlu0 %v4040, 117
        %v5408 = vpop.permute.xlu0 %5407
        %5409 = vrot.lane.b32.xlu0 %v4041, 117
        %v5410 = vpop.permute.xlu0 %5409
        %5411 = vrot.lane.b32.xlu0 %v4042, 117
        %v5412 = vpop.permute.xlu0 %5411
        %5413 = vrot.lane.b32.xlu0 %v4043, 117
        %v5414 = vpop.permute.xlu0 %5413
        %5415 = vrot.lane.b32.xlu0 %v4044, 117
        %v5416 = vpop.permute.xlu0 %5415
        %5417 = vrot.lane.b32.xlu0 %v4045, 117
        %v5418 = vpop.permute.xlu0 %5417
        %5419 = vrot.lane.b32.xlu0 %v4046, 117
        %v5420 = vpop.permute.xlu0 %5419
        %5421 = vrot.lane.b32.xlu0 %v4047, 117
        %v5422 = vpop.permute.xlu0 %5421
        %5423 = vrot.lane.b32.xlu0 %v4048, 117
        %v5424 = vpop.permute.xlu0 %5423
        %v5425 = vsel %vm1829, %v5394, %v5396
        %v5426 = vsel %vm1829, %v5396, %v5398
        %v5427 = vsel %vm1829, %v5398, %v5400
        %v5428 = vsel %vm1829, %v5400, %v5402
        %v5429 = vsel %vm1829, %v5402, %v5404
        %v5430 = vsel %vm1829, %v5404, %v5406
        %v5431 = vsel %vm1829, %v5406, %v5408
        %v5432 = vsel %vm1829, %v5410, %v5412
        %v5433 = vsel %vm1829, %v5412, %v5414
        %v5434 = vsel %vm1829, %v5414, %v5416
        %v5435 = vsel %vm1829, %v5416, %v5418
        %v5436 = vsel %vm1829, %v5418, %v5420
        %v5437 = vsel %vm1829, %v5420, %v5422
        %v5438 = vsel %vm1829, %v5422, %v5424
        %v5457 = vsel %vm1829, %v5408, %v5394
        %v5458 = vsel %vm1829, %v5424, %v5410
        %5459 = vst [vmem:[#allocation2 + $0x880] sm:$0xff] %v5425
        %5460 = vst [vmem:[#allocation2 + $0x888] sm:$0xff] %v5426
        %5461 = vst [vmem:[#allocation2 + $0x890] sm:$0xff] %v5427
        %5462 = vst [vmem:[#allocation2 + $0x898] sm:$0xff] %v5428
        %5463 = vst [vmem:[#allocation2 + $0x8a0] sm:$0xff] %v5429
        %5464 = vst [vmem:[#allocation2 + $0x8a8] sm:$0xff] %v5430
        %5465 = vst [vmem:[#allocation2 + $0x8b0] sm:$0xff] %v5431
        %5466 = vst [vmem:[#allocation2 + $0x8b8] sm:$0xff] %v5457
        %5467 = vst [vmem:[#allocation2 + $0x8c0] sm:$0xff] %v5432
        %5468 = vst [vmem:[#allocation2 + $0x8c8] sm:$0xff] %v5433
        %5469 = vst [vmem:[#allocation2 + $0x8d0] sm:$0xff] %v5434
        %5470 = vst [vmem:[#allocation2 + $0x8d8] sm:$0xff] %v5435
        %5471 = vst [vmem:[#allocation2 + $0x8e0] sm:$0xff] %v5436
        %5472 = vst [vmem:[#allocation2 + $0x8e8] sm:$0xff] %v5437
        %5473 = vst [vmem:[#allocation2 + $0x8f0] sm:$0xff] %v5438
        %5474 = vst [vmem:[#allocation2 + $0x8f8] sm:$0xff] %v5458
        %5475 = vrot.lane.b32.xlu0 %v4033, 39
        %v5476 = vpop.permute.xlu0 %5475
        %5477 = vrot.lane.b32.xlu0 %v4034, 39
        %v5478 = vpop.permute.xlu0 %5477
        %5479 = vrot.lane.b32.xlu0 %v4035, 39
        %v5480 = vpop.permute.xlu0 %5479
        %5481 = vrot.lane.b32.xlu0 %v4036, 39
        %v5482 = vpop.permute.xlu0 %5481
        %5483 = vrot.lane.b32.xlu0 %v4037, 39
        %v5484 = vpop.permute.xlu0 %5483
        %5485 = vrot.lane.b32.xlu0 %v4038, 39
        %v5486 = vpop.permute.xlu0 %5485
        %5487 = vrot.lane.b32.xlu0 %v4039, 39
        %v5488 = vpop.permute.xlu0 %5487
        %5489 = vrot.lane.b32.xlu0 %v4040, 39
        %v5490 = vpop.permute.xlu0 %5489
        %5491 = vrot.lane.b32.xlu0 %v4041, 39
        %v5492 = vpop.permute.xlu0 %5491
        %5493 = vrot.lane.b32.xlu0 %v4042, 39
        %v5494 = vpop.permute.xlu0 %5493
        %5495 = vrot.lane.b32.xlu0 %v4043, 39
        %v5496 = vpop.permute.xlu0 %5495
        %5497 = vrot.lane.b32.xlu0 %v4044, 39
        %v5498 = vpop.permute.xlu0 %5497
        %5499 = vrot.lane.b32.xlu0 %v4045, 39
        %v5500 = vpop.permute.xlu0 %5499
        %5501 = vrot.lane.b32.xlu0 %v4046, 39
        %v5502 = vpop.permute.xlu0 %5501
        %5503 = vrot.lane.b32.xlu0 %v4047, 39
        %v5504 = vpop.permute.xlu0 %5503
        %5505 = vrot.lane.b32.xlu0 %v4048, 39
        %v5506 = vpop.permute.xlu0 %5505
        %v5507 = vsel %vm1912, %v5476, %v5478
        %v5508 = vsel %vm1912, %v5478, %v5480
        %v5509 = vsel %vm1912, %v5480, %v5482
        %v5510 = vsel %vm1912, %v5482, %v5484
        %v5511 = vsel %vm1912, %v5484, %v5486
        %v5512 = vsel %vm1912, %v5486, %v5488
        %v5513 = vsel %vm1912, %v5488, %v5490
        %v5514 = vsel %vm1912, %v5492, %v5494
        %v5515 = vsel %vm1912, %v5494, %v5496
        %v5516 = vsel %vm1912, %v5496, %v5498
        %v5517 = vsel %vm1912, %v5498, %v5500
        %v5518 = vsel %vm1912, %v5500, %v5502
        %v5519 = vsel %vm1912, %v5502, %v5504
        %v5520 = vsel %vm1912, %v5504, %v5506
        %v5539 = vsel %vm1912, %v5490, %v5476
        %v5540 = vsel %vm1912, %v5506, %v5492
        %5541 = vst [vmem:[#allocation2 + $0x900] sm:$0xff] %v5507
        %5542 = vst [vmem:[#allocation2 + $0x908] sm:$0xff] %v5508
        %5543 = vst [vmem:[#allocation2 + $0x910] sm:$0xff] %v5509
        %5544 = vst [vmem:[#allocation2 + $0x918] sm:$0xff] %v5510
        %5545 = vst [vmem:[#allocation2 + $0x920] sm:$0xff] %v5511
        %5546 = vst [vmem:[#allocation2 + $0x928] sm:$0xff] %v5512
        %5547 = vst [vmem:[#allocation2 + $0x930] sm:$0xff] %v5513
        %5548 = vst [vmem:[#allocation2 + $0x938] sm:$0xff] %v5539
        %5549 = vst [vmem:[#allocation2 + $0x940] sm:$0xff] %v5514
        %5550 = vst [vmem:[#allocation2 + $0x948] sm:$0xff] %v5515
        %5551 = vst [vmem:[#allocation2 + $0x950] sm:$0xff] %v5516
        %5552 = vst [vmem:[#allocation2 + $0x958] sm:$0xff] %v5517
        %5553 = vst [vmem:[#allocation2 + $0x960] sm:$0xff] %v5518
        %5554 = vst [vmem:[#allocation2 + $0x968] sm:$0xff] %v5519
        %5555 = vst [vmem:[#allocation2 + $0x970] sm:$0xff] %v5520
        %5556 = vst [vmem:[#allocation2 + $0x978] sm:$0xff] %v5540
        %5557 = vrot.lane.b32.xlu0 %v4033, 38
        %v5558 = vpop.permute.xlu0 %5557
        %5559 = vrot.lane.b32.xlu0 %v4034, 38
        %v5560 = vpop.permute.xlu0 %5559
        %5561 = vrot.lane.b32.xlu0 %v4035, 38
        %v5562 = vpop.permute.xlu0 %5561
        %5563 = vrot.lane.b32.xlu0 %v4036, 38
        %v5564 = vpop.permute.xlu0 %5563
        %5565 = vrot.lane.b32.xlu0 %v4037, 38
        %v5566 = vpop.permute.xlu0 %5565
        %5567 = vrot.lane.b32.xlu0 %v4038, 38
        %v5568 = vpop.permute.xlu0 %5567
        %5569 = vrot.lane.b32.xlu0 %v4039, 38
        %v5570 = vpop.permute.xlu0 %5569
        %5571 = vrot.lane.b32.xlu0 %v4040, 38
        %v5572 = vpop.permute.xlu0 %5571
        %5573 = vrot.lane.b32.xlu0 %v4041, 38
        %v5574 = vpop.permute.xlu0 %5573
        %5575 = vrot.lane.b32.xlu0 %v4042, 38
        %v5576 = vpop.permute.xlu0 %5575
        %5577 = vrot.lane.b32.xlu0 %v4043, 38
        %v5578 = vpop.permute.xlu0 %5577
        %5579 = vrot.lane.b32.xlu0 %v4044, 38
        %v5580 = vpop.permute.xlu0 %5579
        %5581 = vrot.lane.b32.xlu0 %v4045, 38
        %v5582 = vpop.permute.xlu0 %5581
        %5583 = vrot.lane.b32.xlu0 %v4046, 38
        %v5584 = vpop.permute.xlu0 %5583
        %5585 = vrot.lane.b32.xlu0 %v4047, 38
        %v5586 = vpop.permute.xlu0 %5585
        %5587 = vrot.lane.b32.xlu0 %v4048, 38
        %v5588 = vpop.permute.xlu0 %5587
        %v5589 = vsel %vm1995, %v5558, %v5560
        %v5590 = vsel %vm1995, %v5560, %v5562
        %v5591 = vsel %vm1995, %v5562, %v5564
        %v5592 = vsel %vm1995, %v5564, %v5566
        %v5593 = vsel %vm1995, %v5566, %v5568
        %v5594 = vsel %vm1995, %v5568, %v5570
        %v5595 = vsel %vm1995, %v5570, %v5572
        %v5596 = vsel %vm1995, %v5574, %v5576
        %v5597 = vsel %vm1995, %v5576, %v5578
        %v5598 = vsel %vm1995, %v5578, %v5580
        %v5599 = vsel %vm1995, %v5580, %v5582
        %v5600 = vsel %vm1995, %v5582, %v5584
        %v5601 = vsel %vm1995, %v5584, %v5586
        %v5602 = vsel %vm1995, %v5586, %v5588
        %v5621 = vsel %vm1995, %v5572, %v5558
        %v5622 = vsel %vm1995, %v5588, %v5574
        %5623 = vst [vmem:[#allocation2 + $0x980] sm:$0xff] %v5589
        %5624 = vst [vmem:[#allocation2 + $0x988] sm:$0xff] %v5590
        %5625 = vst [vmem:[#allocation2 + $0x990] sm:$0xff] %v5591
        %5626 = vst [vmem:[#allocation2 + $0x998] sm:$0xff] %v5592
        %5627 = vst [vmem:[#allocation2 + $0x9a0] sm:$0xff] %v5593
        %5628 = vst [vmem:[#allocation2 + $0x9a8] sm:$0xff] %v5594
        %5629 = vst [vmem:[#allocation2 + $0x9b0] sm:$0xff] %v5595
        %5630 = vst [vmem:[#allocation2 + $0x9b8] sm:$0xff] %v5621
        %5631 = vst [vmem:[#allocation2 + $0x9c0] sm:$0xff] %v5596
        %5632 = vst [vmem:[#allocation2 + $0x9c8] sm:$0xff] %v5597
        %5633 = vst [vmem:[#allocation2 + $0x9d0] sm:$0xff] %v5598
        %5634 = vst [vmem:[#allocation2 + $0x9d8] sm:$0xff] %v5599
        %5635 = vst [vmem:[#allocation2 + $0x9e0] sm:$0xff] %v5600
        %5636 = vst [vmem:[#allocation2 + $0x9e8] sm:$0xff] %v5601
        %5637 = vst [vmem:[#allocation2 + $0x9f0] sm:$0xff] %v5602
        %5638 = vst [vmem:[#allocation2 + $0x9f8] sm:$0xff] %v5622
        %5639 = vrot.lane.b32.xlu0 %v4033, 37
        %v5640 = vpop.permute.xlu0 %5639
        %5641 = vrot.lane.b32.xlu0 %v4034, 37
        %v5642 = vpop.permute.xlu0 %5641
        %5643 = vrot.lane.b32.xlu0 %v4035, 37
        %v5644 = vpop.permute.xlu0 %5643
        %5645 = vrot.lane.b32.xlu0 %v4036, 37
        %v5646 = vpop.permute.xlu0 %5645
        %5647 = vrot.lane.b32.xlu0 %v4037, 37
        %v5648 = vpop.permute.xlu0 %5647
        %5649 = vrot.lane.b32.xlu0 %v4038, 37
        %v5650 = vpop.permute.xlu0 %5649
        %5651 = vrot.lane.b32.xlu0 %v4039, 37
        %v5652 = vpop.permute.xlu0 %5651
        %5653 = vrot.lane.b32.xlu0 %v4040, 37
        %v5654 = vpop.permute.xlu0 %5653
        %5655 = vrot.lane.b32.xlu0 %v4041, 37
        %v5656 = vpop.permute.xlu0 %5655
        %5657 = vrot.lane.b32.xlu0 %v4042, 37
        %v5658 = vpop.permute.xlu0 %5657
        %5659 = vrot.lane.b32.xlu0 %v4043, 37
        %v5660 = vpop.permute.xlu0 %5659
        %5661 = vrot.lane.b32.xlu0 %v4044, 37
        %v5662 = vpop.permute.xlu0 %5661
        %5663 = vrot.lane.b32.xlu0 %v4045, 37
        %v5664 = vpop.permute.xlu0 %5663
        %5665 = vrot.lane.b32.xlu0 %v4046, 37
        %v5666 = vpop.permute.xlu0 %5665
        %5667 = vrot.lane.b32.xlu0 %v4047, 37
        %v5668 = vpop.permute.xlu0 %5667
        %5669 = vrot.lane.b32.xlu0 %v4048, 37
        %v5670 = vpop.permute.xlu0 %5669
        %v5671 = vsel %vm2078, %v5640, %v5642
        %v5672 = vsel %vm2078, %v5642, %v5644
        %v5673 = vsel %vm2078, %v5644, %v5646
        %v5674 = vsel %vm2078, %v5646, %v5648
        %v5675 = vsel %vm2078, %v5648, %v5650
        %v5676 = vsel %vm2078, %v5650, %v5652
        %v5677 = vsel %vm2078, %v5652, %v5654
        %v5678 = vsel %vm2078, %v5656, %v5658
        %v5679 = vsel %vm2078, %v5658, %v5660
        %v5680 = vsel %vm2078, %v5660, %v5662
        %v5681 = vsel %vm2078, %v5662, %v5664
        %v5682 = vsel %vm2078, %v5664, %v5666
        %v5683 = vsel %vm2078, %v5666, %v5668
        %v5684 = vsel %vm2078, %v5668, %v5670
        %v5703 = vsel %vm2078, %v5654, %v5640
        %v5704 = vsel %vm2078, %v5670, %v5656
        %5705 = vst [vmem:[#allocation2 + $0xa00] sm:$0xff] %v5671
        %5706 = vst [vmem:[#allocation2 + $0xa08] sm:$0xff] %v5672
        %5707 = vst [vmem:[#allocation2 + $0xa10] sm:$0xff] %v5673
        %5708 = vst [vmem:[#allocation2 + $0xa18] sm:$0xff] %v5674
        %5709 = vst [vmem:[#allocation2 + $0xa20] sm:$0xff] %v5675
        %5710 = vst [vmem:[#allocation2 + $0xa28] sm:$0xff] %v5676
        %5711 = vst [vmem:[#allocation2 + $0xa30] sm:$0xff] %v5677
        %5712 = vst [vmem:[#allocation2 + $0xa38] sm:$0xff] %v5703
        %5713 = vst [vmem:[#allocation2 + $0xa40] sm:$0xff] %v5678
        %5714 = vst [vmem:[#allocation2 + $0xa48] sm:$0xff] %v5679
        %5715 = vst [vmem:[#allocation2 + $0xa50] sm:$0xff] %v5680
        %5716 = vst [vmem:[#allocation2 + $0xa58] sm:$0xff] %v5681
        %5717 = vst [vmem:[#allocation2 + $0xa60] sm:$0xff] %v5682
        %5718 = vst [vmem:[#allocation2 + $0xa68] sm:$0xff] %v5683
        %5719 = vst [vmem:[#allocation2 + $0xa70] sm:$0xff] %v5684
        %5720 = vst [vmem:[#allocation2 + $0xa78] sm:$0xff] %v5704
        %5721 = vrot.lane.b32.xlu0 %v4033, 29
        %v5722 = vpop.permute.xlu0 %5721
        %5723 = vrot.lane.b32.xlu0 %v4034, 29
        %v5724 = vpop.permute.xlu0 %5723
        %5725 = vrot.lane.b32.xlu0 %v4035, 29
        %v5726 = vpop.permute.xlu0 %5725
        %5727 = vrot.lane.b32.xlu0 %v4036, 29
        %v5728 = vpop.permute.xlu0 %5727
        %5729 = vrot.lane.b32.xlu0 %v4037, 29
        %v5730 = vpop.permute.xlu0 %5729
        %5731 = vrot.lane.b32.xlu0 %v4038, 29
        %v5732 = vpop.permute.xlu0 %5731
        %5733 = vrot.lane.b32.xlu0 %v4039, 29
        %v5734 = vpop.permute.xlu0 %5733
        %5735 = vrot.lane.b32.xlu0 %v4040, 29
        %v5736 = vpop.permute.xlu0 %5735
        %5737 = vrot.lane.b32.xlu0 %v4041, 29
        %v5738 = vpop.permute.xlu0 %5737
        %5739 = vrot.lane.b32.xlu0 %v4042, 29
        %v5740 = vpop.permute.xlu0 %5739
        %5741 = vrot.lane.b32.xlu0 %v4043, 29
        %v5742 = vpop.permute.xlu0 %5741
        %5743 = vrot.lane.b32.xlu0 %v4044, 29
        %v5744 = vpop.permute.xlu0 %5743
        %5745 = vrot.lane.b32.xlu0 %v4045, 29
        %v5746 = vpop.permute.xlu0 %5745
        %5747 = vrot.lane.b32.xlu0 %v4046, 29
        %v5748 = vpop.permute.xlu0 %5747
        %5749 = vrot.lane.b32.xlu0 %v4047, 29
        %v5750 = vpop.permute.xlu0 %5749
        %5751 = vrot.lane.b32.xlu0 %v4048, 29
        %v5752 = vpop.permute.xlu0 %5751
        %v5753 = vsel %vm2161, %v5722, %v5724
        %v5754 = vsel %vm2161, %v5724, %v5726
        %v5755 = vsel %vm2161, %v5726, %v5728
        %v5756 = vsel %vm2161, %v5728, %v5730
        %v5757 = vsel %vm2161, %v5730, %v5732
        %v5758 = vsel %vm2161, %v5732, %v5734
        %v5759 = vsel %vm2161, %v5734, %v5736
        %v5760 = vsel %vm2161, %v5738, %v5740
        %v5761 = vsel %vm2161, %v5740, %v5742
        %v5762 = vsel %vm2161, %v5742, %v5744
        %v5763 = vsel %vm2161, %v5744, %v5746
        %v5764 = vsel %vm2161, %v5746, %v5748
        %v5765 = vsel %vm2161, %v5748, %v5750
        %v5766 = vsel %vm2161, %v5750, %v5752
        %v5785 = vsel %vm2161, %v5736, %v5722
        %v5786 = vsel %vm2161, %v5752, %v5738
        %5787 = vst [vmem:[#allocation2 + $0xa80] sm:$0xff] %v5753
        %5788 = vst [vmem:[#allocation2 + $0xa88] sm:$0xff] %v5754
        %5789 = vst [vmem:[#allocation2 + $0xa90] sm:$0xff] %v5755
        %5790 = vst [vmem:[#allocation2 + $0xa98] sm:$0xff] %v5756
        %5791 = vst [vmem:[#allocation2 + $0xaa0] sm:$0xff] %v5757
        %5792 = vst [vmem:[#allocation2 + $0xaa8] sm:$0xff] %v5758
        %5793 = vst [vmem:[#allocation2 + $0xab0] sm:$0xff] %v5759
        %5794 = vst [vmem:[#allocation2 + $0xab8] sm:$0xff] %v5785
        %5795 = vst [vmem:[#allocation2 + $0xac0] sm:$0xff] %v5760
        %5796 = vst [vmem:[#allocation2 + $0xac8] sm:$0xff] %v5761
        %5797 = vst [vmem:[#allocation2 + $0xad0] sm:$0xff] %v5762
        %5798 = vst [vmem:[#allocation2 + $0xad8] sm:$0xff] %v5763
        %5799 = vst [vmem:[#allocation2 + $0xae0] sm:$0xff] %v5764
        %5800 = vst [vmem:[#allocation2 + $0xae8] sm:$0xff] %v5765
        %5801 = vst [vmem:[#allocation2 + $0xaf0] sm:$0xff] %v5766
        %5802 = vst [vmem:[#allocation2 + $0xaf8] sm:$0xff] %v5786
        %5803 = vrot.lane.b32.xlu0 %v4033, 28
        %v5804 = vpop.permute.xlu0 %5803
        %5805 = vrot.lane.b32.xlu0 %v4034, 28
        %v5806 = vpop.permute.xlu0 %5805
        %5807 = vrot.lane.b32.xlu0 %v4035, 28
        %v5808 = vpop.permute.xlu0 %5807
        %5809 = vrot.lane.b32.xlu0 %v4036, 28
        %v5810 = vpop.permute.xlu0 %5809
        %5811 = vrot.lane.b32.xlu0 %v4037, 28
        %v5812 = vpop.permute.xlu0 %5811
        %5813 = vrot.lane.b32.xlu0 %v4038, 28
        %v5814 = vpop.permute.xlu0 %5813
        %5815 = vrot.lane.b32.xlu0 %v4039, 28
        %v5816 = vpop.permute.xlu0 %5815
        %5817 = vrot.lane.b32.xlu0 %v4040, 28
        %v5818 = vpop.permute.xlu0 %5817
        %5819 = vrot.lane.b32.xlu0 %v4041, 28
        %v5820 = vpop.permute.xlu0 %5819
        %5821 = vrot.lane.b32.xlu0 %v4042, 28
        %v5822 = vpop.permute.xlu0 %5821
        %5823 = vrot.lane.b32.xlu0 %v4043, 28
        %v5824 = vpop.permute.xlu0 %5823
        %5825 = vrot.lane.b32.xlu0 %v4044, 28
        %v5826 = vpop.permute.xlu0 %5825
        %5827 = vrot.lane.b32.xlu0 %v4045, 28
        %v5828 = vpop.permute.xlu0 %5827
        %5829 = vrot.lane.b32.xlu0 %v4046, 28
        %v5830 = vpop.permute.xlu0 %5829
        %5831 = vrot.lane.b32.xlu0 %v4047, 28
        %v5832 = vpop.permute.xlu0 %5831
        %5833 = vrot.lane.b32.xlu0 %v4048, 28
        %v5834 = vpop.permute.xlu0 %5833
        %v5835 = vsel %vm2244, %v5804, %v5806
        %v5836 = vsel %vm2244, %v5806, %v5808
        %v5837 = vsel %vm2244, %v5808, %v5810
        %v5838 = vsel %vm2244, %v5810, %v5812
        %v5839 = vsel %vm2244, %v5812, %v5814
        %v5840 = vsel %vm2244, %v5814, %v5816
        %v5841 = vsel %vm2244, %v5816, %v5818
        %v5842 = vsel %vm2244, %v5820, %v5822
        %v5843 = vsel %vm2244, %v5822, %v5824
        %v5844 = vsel %vm2244, %v5824, %v5826
        %v5845 = vsel %vm2244, %v5826, %v5828
        %v5846 = vsel %vm2244, %v5828, %v5830
        %v5847 = vsel %vm2244, %v5830, %v5832
        %v5848 = vsel %vm2244, %v5832, %v5834
        %v5867 = vsel %vm2244, %v5818, %v5804
        %v5868 = vsel %vm2244, %v5834, %v5820
        %5869 = vst [vmem:[#allocation2 + $0xb00] sm:$0xff] %v5835
        %5870 = vst [vmem:[#allocation2 + $0xb08] sm:$0xff] %v5836
        %5871 = vst [vmem:[#allocation2 + $0xb10] sm:$0xff] %v5837
        %5872 = vst [vmem:[#allocation2 + $0xb18] sm:$0xff] %v5838
        %5873 = vst [vmem:[#allocation2 + $0xb20] sm:$0xff] %v5839
        %5874 = vst [vmem:[#allocation2 + $0xb28] sm:$0xff] %v5840
        %5875 = vst [vmem:[#allocation2 + $0xb30] sm:$0xff] %v5841
        %5876 = vst [vmem:[#allocation2 + $0xb38] sm:$0xff] %v5867
        %5877 = vst [vmem:[#allocation2 + $0xb40] sm:$0xff] %v5842
        %5878 = vst [vmem:[#allocation2 + $0xb48] sm:$0xff] %v5843
        %5879 = vst [vmem:[#allocation2 + $0xb50] sm:$0xff] %v5844
        %5880 = vst [vmem:[#allocation2 + $0xb58] sm:$0xff] %v5845
        %5881 = vst [vmem:[#allocation2 + $0xb60] sm:$0xff] %v5846
        %5882 = vst [vmem:[#allocation2 + $0xb68] sm:$0xff] %v5847
        %5883 = vst [vmem:[#allocation2 + $0xb70] sm:$0xff] %v5848
        %5884 = vst [vmem:[#allocation2 + $0xb78] sm:$0xff] %v5868
        %5885 = vrot.lane.b32.xlu0 %v4033, 27
        %v5886 = vpop.permute.xlu0 %5885
        %5887 = vrot.lane.b32.xlu0 %v4034, 27
        %v5888 = vpop.permute.xlu0 %5887
        %5889 = vrot.lane.b32.xlu0 %v4035, 27
        %v5890 = vpop.permute.xlu0 %5889
        %5891 = vrot.lane.b32.xlu0 %v4036, 27
        %v5892 = vpop.permute.xlu0 %5891
        %5893 = vrot.lane.b32.xlu0 %v4037, 27
        %v5894 = vpop.permute.xlu0 %5893
        %5895 = vrot.lane.b32.xlu0 %v4038, 27
        %v5896 = vpop.permute.xlu0 %5895
        %5897 = vrot.lane.b32.xlu0 %v4039, 27
        %v5898 = vpop.permute.xlu0 %5897
        %5899 = vrot.lane.b32.xlu0 %v4040, 27
        %v5900 = vpop.permute.xlu0 %5899
        %5901 = vrot.lane.b32.xlu0 %v4041, 27
        %v5902 = vpop.permute.xlu0 %5901
        %5903 = vrot.lane.b32.xlu0 %v4042, 27
        %v5904 = vpop.permute.xlu0 %5903
        %5905 = vrot.lane.b32.xlu0 %v4043, 27
        %v5906 = vpop.permute.xlu0 %5905
        %5907 = vrot.lane.b32.xlu0 %v4044, 27
        %v5908 = vpop.permute.xlu0 %5907
        %5909 = vrot.lane.b32.xlu0 %v4045, 27
        %v5910 = vpop.permute.xlu0 %5909
        %5911 = vrot.lane.b32.xlu0 %v4046, 27
        %v5912 = vpop.permute.xlu0 %5911
        %5913 = vrot.lane.b32.xlu0 %v4047, 27
        %v5914 = vpop.permute.xlu0 %5913
        %5915 = vrot.lane.b32.xlu0 %v4048, 27
        %v5916 = vpop.permute.xlu0 %5915
        %v5917 = vsel %vm2327, %v5886, %v5888
        %v5918 = vsel %vm2327, %v5888, %v5890
        %v5919 = vsel %vm2327, %v5890, %v5892
        %v5920 = vsel %vm2327, %v5892, %v5894
        %v5921 = vsel %vm2327, %v5894, %v5896
        %v5922 = vsel %vm2327, %v5896, %v5898
        %v5923 = vsel %vm2327, %v5898, %v5900
        %v5924 = vsel %vm2327, %v5902, %v5904
        %v5925 = vsel %vm2327, %v5904, %v5906
        %v5926 = vsel %vm2327, %v5906, %v5908
        %v5927 = vsel %vm2327, %v5908, %v5910
        %v5928 = vsel %vm2327, %v5910, %v5912
        %v5929 = vsel %vm2327, %v5912, %v5914
        %v5930 = vsel %vm2327, %v5914, %v5916
        %v5949 = vsel %vm2327, %v5900, %v5886
        %v5950 = vsel %vm2327, %v5916, %v5902
        %5951 = vst [vmem:[#allocation2 + $0xb80] sm:$0xff] %v5917
        %5952 = vst [vmem:[#allocation2 + $0xb88] sm:$0xff] %v5918
        %5953 = vst [vmem:[#allocation2 + $0xb90] sm:$0xff] %v5919
        %5954 = vst [vmem:[#allocation2 + $0xb98] sm:$0xff] %v5920
        %5955 = vst [vmem:[#allocation2 + $0xba0] sm:$0xff] %v5921
        %5956 = vst [vmem:[#allocation2 + $0xba8] sm:$0xff] %v5922
        %5957 = vst [vmem:[#allocation2 + $0xbb0] sm:$0xff] %v5923
        %5958 = vst [vmem:[#allocation2 + $0xbb8] sm:$0xff] %v5949
        %5959 = vst [vmem:[#allocation2 + $0xbc0] sm:$0xff] %v5924
        %5960 = vst [vmem:[#allocation2 + $0xbc8] sm:$0xff] %v5925
        %5961 = vst [vmem:[#allocation2 + $0xbd0] sm:$0xff] %v5926
        %5962 = vst [vmem:[#allocation2 + $0xbd8] sm:$0xff] %v5927
        %5963 = vst [vmem:[#allocation2 + $0xbe0] sm:$0xff] %v5928
        %5964 = vst [vmem:[#allocation2 + $0xbe8] sm:$0xff] %v5929
        %5965 = vst [vmem:[#allocation2 + $0xbf0] sm:$0xff] %v5930
        %5966 = vst [vmem:[#allocation2 + $0xbf8] sm:$0xff] %v5950
        %5967 = vrot.lane.b32.xlu0 %v4033, 19
        %v5968 = vpop.permute.xlu0 %5967
        %5969 = vrot.lane.b32.xlu0 %v4034, 19
        %v5970 = vpop.permute.xlu0 %5969
        %5971 = vrot.lane.b32.xlu0 %v4035, 19
        %v5972 = vpop.permute.xlu0 %5971
        %5973 = vrot.lane.b32.xlu0 %v4036, 19
        %v5974 = vpop.permute.xlu0 %5973
        %5975 = vrot.lane.b32.xlu0 %v4037, 19
        %v5976 = vpop.permute.xlu0 %5975
        %5977 = vrot.lane.b32.xlu0 %v4038, 19
        %v5978 = vpop.permute.xlu0 %5977
        %5979 = vrot.lane.b32.xlu0 %v4039, 19
        %v5980 = vpop.permute.xlu0 %5979
        %5981 = vrot.lane.b32.xlu0 %v4040, 19
        %v5982 = vpop.permute.xlu0 %5981
        %5983 = vrot.lane.b32.xlu0 %v4041, 19
        %v5984 = vpop.permute.xlu0 %5983
        %5985 = vrot.lane.b32.xlu0 %v4042, 19
        %v5986 = vpop.permute.xlu0 %5985
        %5987 = vrot.lane.b32.xlu0 %v4043, 19
        %v5988 = vpop.permute.xlu0 %5987
        %5989 = vrot.lane.b32.xlu0 %v4044, 19
        %v5990 = vpop.permute.xlu0 %5989
        %5991 = vrot.lane.b32.xlu0 %v4045, 19
        %v5992 = vpop.permute.xlu0 %5991
        %5993 = vrot.lane.b32.xlu0 %v4046, 19
        %v5994 = vpop.permute.xlu0 %5993
        %5995 = vrot.lane.b32.xlu0 %v4047, 19
        %v5996 = vpop.permute.xlu0 %5995
        %5997 = vrot.lane.b32.xlu0 %v4048, 19
        %v5998 = vpop.permute.xlu0 %5997
        %v5999 = vsel %vm2410, %v5968, %v5970
        %v6000 = vsel %vm2410, %v5970, %v5972
        %v6001 = vsel %vm2410, %v5972, %v5974
        %v6002 = vsel %vm2410, %v5974, %v5976
        %v6003 = vsel %vm2410, %v5976, %v5978
        %v6004 = vsel %vm2410, %v5978, %v5980
        %v6005 = vsel %vm2410, %v5980, %v5982
        %v6006 = vsel %vm2410, %v5984, %v5986
        %v6007 = vsel %vm2410, %v5986, %v5988
        %v6008 = vsel %vm2410, %v5988, %v5990
        %v6009 = vsel %vm2410, %v5990, %v5992
        %v6010 = vsel %vm2410, %v5992, %v5994
        %v6011 = vsel %vm2410, %v5994, %v5996
        %v6012 = vsel %vm2410, %v5996, %v5998
        %v6031 = vsel %vm2410, %v5982, %v5968
        %v6032 = vsel %vm2410, %v5998, %v5984
        %6033 = vst [vmem:[#allocation2 + $0xc00] sm:$0xff] %v5999
        %6034 = vst [vmem:[#allocation2 + $0xc08] sm:$0xff] %v6000
        %6035 = vst [vmem:[#allocation2 + $0xc10] sm:$0xff] %v6001
        %6036 = vst [vmem:[#allocation2 + $0xc18] sm:$0xff] %v6002
        %6037 = vst [vmem:[#allocation2 + $0xc20] sm:$0xff] %v6003
        %6038 = vst [vmem:[#allocation2 + $0xc28] sm:$0xff] %v6004
        %6039 = vst [vmem:[#allocation2 + $0xc30] sm:$0xff] %v6005
        %6040 = vst [vmem:[#allocation2 + $0xc38] sm:$0xff] %v6031
        %6041 = vst [vmem:[#allocation2 + $0xc40] sm:$0xff] %v6006
        %6042 = vst [vmem:[#allocation2 + $0xc48] sm:$0xff] %v6007
        %6043 = vst [vmem:[#allocation2 + $0xc50] sm:$0xff] %v6008
        %6044 = vst [vmem:[#allocation2 + $0xc58] sm:$0xff] %v6009
        %6045 = vst [vmem:[#allocation2 + $0xc60] sm:$0xff] %v6010
        %6046 = vst [vmem:[#allocation2 + $0xc68] sm:$0xff] %v6011
        %6047 = vst [vmem:[#allocation2 + $0xc70] sm:$0xff] %v6012
        %6048 = vst [vmem:[#allocation2 + $0xc78] sm:$0xff] %v6032
        %6049 = vrot.lane.b32.xlu0 %v4033, 18
        %v6050 = vpop.permute.xlu0 %6049
        %6051 = vrot.lane.b32.xlu0 %v4034, 18
        %v6052 = vpop.permute.xlu0 %6051
        %6053 = vrot.lane.b32.xlu0 %v4035, 18
        %v6054 = vpop.permute.xlu0 %6053
        %6055 = vrot.lane.b32.xlu0 %v4036, 18
        %v6056 = vpop.permute.xlu0 %6055
        %6057 = vrot.lane.b32.xlu0 %v4037, 18
        %v6058 = vpop.permute.xlu0 %6057
        %6059 = vrot.lane.b32.xlu0 %v4038, 18
        %v6060 = vpop.permute.xlu0 %6059
        %6061 = vrot.lane.b32.xlu0 %v4039, 18
        %v6062 = vpop.permute.xlu0 %6061
        %6063 = vrot.lane.b32.xlu0 %v4040, 18
        %v6064 = vpop.permute.xlu0 %6063
        %6065 = vrot.lane.b32.xlu0 %v4041, 18
        %v6066 = vpop.permute.xlu0 %6065
        %6067 = vrot.lane.b32.xlu0 %v4042, 18
        %v6068 = vpop.permute.xlu0 %6067
        %6069 = vrot.lane.b32.xlu0 %v4043, 18
        %v6070 = vpop.permute.xlu0 %6069
        %6071 = vrot.lane.b32.xlu0 %v4044, 18
        %v6072 = vpop.permute.xlu0 %6071
        %6073 = vrot.lane.b32.xlu0 %v4045, 18
        %v6074 = vpop.permute.xlu0 %6073
        %6075 = vrot.lane.b32.xlu0 %v4046, 18
        %v6076 = vpop.permute.xlu0 %6075
        %6077 = vrot.lane.b32.xlu0 %v4047, 18
        %v6078 = vpop.permute.xlu0 %6077
        %6079 = vrot.lane.b32.xlu0 %v4048, 18
        %v6080 = vpop.permute.xlu0 %6079
        %v6081 = vsel %vm2493, %v6050, %v6052
        %v6082 = vsel %vm2493, %v6052, %v6054
        %v6083 = vsel %vm2493, %v6054, %v6056
        %v6084 = vsel %vm2493, %v6056, %v6058
        %v6085 = vsel %vm2493, %v6058, %v6060
        %v6086 = vsel %vm2493, %v6060, %v6062
        %v6087 = vsel %vm2493, %v6062, %v6064
        %v6088 = vsel %vm2493, %v6066, %v6068
        %v6089 = vsel %vm2493, %v6068, %v6070
        %v6090 = vsel %vm2493, %v6070, %v6072
        %v6091 = vsel %vm2493, %v6072, %v6074
        %v6092 = vsel %vm2493, %v6074, %v6076
        %v6093 = vsel %vm2493, %v6076, %v6078
        %v6094 = vsel %vm2493, %v6078, %v6080
        %v6113 = vsel %vm2493, %v6064, %v6050
        %v6114 = vsel %vm2493, %v6080, %v6066
        %6115 = vst [vmem:[#allocation2 + $0xc80] sm:$0xff] %v6081
        %6116 = vst [vmem:[#allocation2 + $0xc88] sm:$0xff] %v6082
        %6117 = vst [vmem:[#allocation2 + $0xc90] sm:$0xff] %v6083
        %6118 = vst [vmem:[#allocation2 + $0xc98] sm:$0xff] %v6084
        %6119 = vst [vmem:[#allocation2 + $0xca0] sm:$0xff] %v6085
        %6120 = vst [vmem:[#allocation2 + $0xca8] sm:$0xff] %v6086
        %6121 = vst [vmem:[#allocation2 + $0xcb0] sm:$0xff] %v6087
        %6122 = vst [vmem:[#allocation2 + $0xcb8] sm:$0xff] %v6113
        %6123 = vst [vmem:[#allocation2 + $0xcc0] sm:$0xff] %v6088
        %6124 = vst [vmem:[#allocation2 + $0xcc8] sm:$0xff] %v6089
        %6125 = vst [vmem:[#allocation2 + $0xcd0] sm:$0xff] %v6090
        %6126 = vst [vmem:[#allocation2 + $0xcd8] sm:$0xff] %v6091
        %6127 = vst [vmem:[#allocation2 + $0xce0] sm:$0xff] %v6092
        %6128 = vst [vmem:[#allocation2 + $0xce8] sm:$0xff] %v6093
        %6129 = vst [vmem:[#allocation2 + $0xcf0] sm:$0xff] %v6094
        %6130 = vst [vmem:[#allocation2 + $0xcf8] sm:$0xff] %v6114
        %6131 = vrot.lane.b32.xlu0 %v4033, 17
        %v6132 = vpop.permute.xlu0 %6131
        %6133 = vrot.lane.b32.xlu0 %v4034, 17
        %v6134 = vpop.permute.xlu0 %6133
        %6135 = vrot.lane.b32.xlu0 %v4035, 17
        %v6136 = vpop.permute.xlu0 %6135
        %6137 = vrot.lane.b32.xlu0 %v4036, 17
        %v6138 = vpop.permute.xlu0 %6137
        %6139 = vrot.lane.b32.xlu0 %v4037, 17
        %v6140 = vpop.permute.xlu0 %6139
        %6141 = vrot.lane.b32.xlu0 %v4038, 17
        %v6142 = vpop.permute.xlu0 %6141
        %6143 = vrot.lane.b32.xlu0 %v4039, 17
        %v6144 = vpop.permute.xlu0 %6143
        %6145 = vrot.lane.b32.xlu0 %v4040, 17
        %v6146 = vpop.permute.xlu0 %6145
        %6147 = vrot.lane.b32.xlu0 %v4041, 17
        %v6148 = vpop.permute.xlu0 %6147
        %6149 = vrot.lane.b32.xlu0 %v4042, 17
        %v6150 = vpop.permute.xlu0 %6149
        %6151 = vrot.lane.b32.xlu0 %v4043, 17
        %v6152 = vpop.permute.xlu0 %6151
        %6153 = vrot.lane.b32.xlu0 %v4044, 17
        %v6154 = vpop.permute.xlu0 %6153
        %6155 = vrot.lane.b32.xlu0 %v4045, 17
        %v6156 = vpop.permute.xlu0 %6155
        %6157 = vrot.lane.b32.xlu0 %v4046, 17
        %v6158 = vpop.permute.xlu0 %6157
        %6159 = vrot.lane.b32.xlu0 %v4047, 17
        %v6160 = vpop.permute.xlu0 %6159
        %6161 = vrot.lane.b32.xlu0 %v4048, 17
        %v6162 = vpop.permute.xlu0 %6161
        %v6163 = vsel %vm2576, %v6132, %v6134
        %v6164 = vsel %vm2576, %v6134, %v6136
        %v6165 = vsel %vm2576, %v6136, %v6138
        %v6166 = vsel %vm2576, %v6138, %v6140
        %v6167 = vsel %vm2576, %v6140, %v6142
        %v6168 = vsel %vm2576, %v6142, %v6144
        %v6169 = vsel %vm2576, %v6144, %v6146
        %v6170 = vsel %vm2576, %v6148, %v6150
        %v6171 = vsel %vm2576, %v6150, %v6152
        %v6172 = vsel %vm2576, %v6152, %v6154
        %v6173 = vsel %vm2576, %v6154, %v6156
        %v6174 = vsel %vm2576, %v6156, %v6158
        %v6175 = vsel %vm2576, %v6158, %v6160
        %v6176 = vsel %vm2576, %v6160, %v6162
        %v6195 = vsel %vm2576, %v6146, %v6132
        %v6196 = vsel %vm2576, %v6162, %v6148
        %6197 = vst [vmem:[#allocation2 + $0xd00] sm:$0xff] %v6163
        %6198 = vst [vmem:[#allocation2 + $0xd08] sm:$0xff] %v6164
        %6199 = vst [vmem:[#allocation2 + $0xd10] sm:$0xff] %v6165
        %6200 = vst [vmem:[#allocation2 + $0xd18] sm:$0xff] %v6166
        %6201 = vst [vmem:[#allocation2 + $0xd20] sm:$0xff] %v6167
        %6202 = vst [vmem:[#allocation2 + $0xd28] sm:$0xff] %v6168
        %6203 = vst [vmem:[#allocation2 + $0xd30] sm:$0xff] %v6169
        %6204 = vst [vmem:[#allocation2 + $0xd38] sm:$0xff] %v6195
        %6205 = vst [vmem:[#allocation2 + $0xd40] sm:$0xff] %v6170
        %6206 = vst [vmem:[#allocation2 + $0xd48] sm:$0xff] %v6171
        %6207 = vst [vmem:[#allocation2 + $0xd50] sm:$0xff] %v6172
        %6208 = vst [vmem:[#allocation2 + $0xd58] sm:$0xff] %v6173
        %6209 = vst [vmem:[#allocation2 + $0xd60] sm:$0xff] %v6174
        %6210 = vst [vmem:[#allocation2 + $0xd68] sm:$0xff] %v6175
        %6211 = vst [vmem:[#allocation2 + $0xd70] sm:$0xff] %v6176
        %6212 = vst [vmem:[#allocation2 + $0xd78] sm:$0xff] %v6196
        %v6213 = vld [vmem:[#allocation6] sm:$0xff]
        %v6214 = vld [vmem:[#allocation6 + $0x8] sm:$0xff]
        %v6215 = vld [vmem:[#allocation6 + $0x10] sm:$0xff]
        %v6216 = vld [vmem:[#allocation6 + $0x18] sm:$0xff]
        %v6217 = vld [vmem:[#allocation6 + $0x20] sm:$0xff]
        %v6218 = vld [vmem:[#allocation6 + $0x28] sm:$0xff]
        %v6219 = vld [vmem:[#allocation6 + $0x30] sm:$0xff]
        %v6220 = vld [vmem:[#allocation6 + $0x38] sm:$0xff]
        %v6221 = vld [vmem:[#allocation2] sm:$0xff]
        %v6222 = vld [vmem:[#allocation2 + $0x8] sm:$0xff]
        %v6223 = vld [vmem:[#allocation2 + $0x10] sm:$0xff]
        %v6224 = vld [vmem:[#allocation2 + $0x18] sm:$0xff]
        %v6225 = vld [vmem:[#allocation2 + $0x20] sm:$0xff]
        %v6226 = vld [vmem:[#allocation2 + $0x28] sm:$0xff]
        %v6227 = vld [vmem:[#allocation2 + $0x30] sm:$0xff]
        %v6228 = vld [vmem:[#allocation2 + $0x38] sm:$0xff]
        %v6229 = vld [vmem:[#allocation2 + $0x40] sm:$0xff]
        %v6230 = vld [vmem:[#allocation2 + $0x48] sm:$0xff]
        %v6231 = vld [vmem:[#allocation2 + $0x50] sm:$0xff]
        %v6232 = vld [vmem:[#allocation2 + $0x58] sm:$0xff]
        %v6233 = vld [vmem:[#allocation2 + $0x60] sm:$0xff]
        %v6234 = vld [vmem:[#allocation2 + $0x68] sm:$0xff]
        %v6235 = vld [vmem:[#allocation2 + $0x70] sm:$0xff]
        %v6236 = vld [vmem:[#allocation2 + $0x78] sm:$0xff]
        %v6237 = vld [vmem:[#allocation2 + $0x80] sm:$0xff]
        %v6238 = vld [vmem:[#allocation2 + $0x88] sm:$0xff]
        %v6239 = vld [vmem:[#allocation2 + $0x90] sm:$0xff]
        %v6240 = vld [vmem:[#allocation2 + $0x98] sm:$0xff]
        %v6241 = vld [vmem:[#allocation2 + $0xa0] sm:$0xff]
        %v6242 = vld [vmem:[#allocation2 + $0xa8] sm:$0xff]
        %v6243 = vld [vmem:[#allocation2 + $0xb0] sm:$0xff]
        %v6244 = vld [vmem:[#allocation2 + $0xb8] sm:$0xff]
        %v6245 = vld [vmem:[#allocation2 + $0xc0] sm:$0xff]
        %v6246 = vld [vmem:[#allocation2 + $0xc8] sm:$0xff]
        %v6247 = vld [vmem:[#allocation2 + $0xd0] sm:$0xff]
        %v6248 = vld [vmem:[#allocation2 + $0xd8] sm:$0xff]
        %v6249 = vld [vmem:[#allocation2 + $0xe0] sm:$0xff]
        %v6250 = vld [vmem:[#allocation2 + $0xe8] sm:$0xff]
        %v6251 = vld [vmem:[#allocation2 + $0xf0] sm:$0xff]
        %v6252 = vld [vmem:[#allocation2 + $0xf8] sm:$0xff]
        %v6253 = vld [vmem:[#allocation2 + $0x100] sm:$0xff]
        %v6254 = vld [vmem:[#allocation2 + $0x108] sm:$0xff]
        %v6255 = vld [vmem:[#allocation2 + $0x110] sm:$0xff]
        %v6256 = vld [vmem:[#allocation2 + $0x118] sm:$0xff]
        %v6257 = vld [vmem:[#allocation2 + $0x120] sm:$0xff]
        %v6258 = vld [vmem:[#allocation2 + $0x128] sm:$0xff]
        %v6259 = vld [vmem:[#allocation2 + $0x130] sm:$0xff]
        %v6260 = vld [vmem:[#allocation2 + $0x138] sm:$0xff]
        %v6261 = vld [vmem:[#allocation2 + $0x140] sm:$0xff]
        %v6262 = vld [vmem:[#allocation2 + $0x148] sm:$0xff]
        %v6263 = vld [vmem:[#allocation2 + $0x150] sm:$0xff]
        %v6264 = vld [vmem:[#allocation2 + $0x158] sm:$0xff]
        %v6265 = vld [vmem:[#allocation2 + $0x160] sm:$0xff]
        %v6266 = vld [vmem:[#allocation2 + $0x168] sm:$0xff]
        %v6267 = vld [vmem:[#allocation2 + $0x170] sm:$0xff]
        %v6268 = vld [vmem:[#allocation2 + $0x178] sm:$0xff]
        %v6269 = vld [vmem:[#allocation2 + $0x180] sm:$0xff]
        %v6270 = vld [vmem:[#allocation2 + $0x188] sm:$0xff]
        %v6271 = vld [vmem:[#allocation2 + $0x190] sm:$0xff]
        %v6272 = vld [vmem:[#allocation2 + $0x198] sm:$0xff]
        %v6273 = vld [vmem:[#allocation2 + $0x1a0] sm:$0xff]
        %v6274 = vld [vmem:[#allocation2 + $0x1a8] sm:$0xff]
        %v6275 = vld [vmem:[#allocation2 + $0x1b0] sm:$0xff]
        %v6276 = vld [vmem:[#allocation2 + $0x1b8] sm:$0xff]
        %v6277 = vld [vmem:[#allocation2 + $0x1c0] sm:$0xff]
        %v6278 = vld [vmem:[#allocation2 + $0x1c8] sm:$0xff]
        %v6279 = vld [vmem:[#allocation2 + $0x1d0] sm:$0xff]
        %v6280 = vld [vmem:[#allocation2 + $0x1d8] sm:$0xff]
        %v6281 = vld [vmem:[#allocation2 + $0x1e0] sm:$0xff]
        %v6282 = vld [vmem:[#allocation2 + $0x1e8] sm:$0xff]
        %v6283 = vld [vmem:[#allocation2 + $0x1f0] sm:$0xff]
        %v6284 = vld [vmem:[#allocation2 + $0x1f8] sm:$0xff]
        %v6285 = vld [vmem:[#allocation2 + $0x200] sm:$0xff]
        %v6286 = vld [vmem:[#allocation2 + $0x208] sm:$0xff]
        %v6287 = vld [vmem:[#allocation2 + $0x210] sm:$0xff]
        %v6288 = vld [vmem:[#allocation2 + $0x218] sm:$0xff]
        %v6289 = vld [vmem:[#allocation2 + $0x220] sm:$0xff]
        %v6290 = vld [vmem:[#allocation2 + $0x228] sm:$0xff]
        %v6291 = vld [vmem:[#allocation2 + $0x230] sm:$0xff]
        %v6292 = vld [vmem:[#allocation2 + $0x238] sm:$0xff]
        %v6293 = vld [vmem:[#allocation2 + $0x240] sm:$0xff]
        %v6294 = vld [vmem:[#allocation2 + $0x248] sm:$0xff]
        %v6295 = vld [vmem:[#allocation2 + $0x250] sm:$0xff]
        %v6296 = vld [vmem:[#allocation2 + $0x258] sm:$0xff]
        %v6297 = vld [vmem:[#allocation2 + $0x260] sm:$0xff]
        %v6298 = vld [vmem:[#allocation2 + $0x268] sm:$0xff]
        %v6299 = vld [vmem:[#allocation2 + $0x270] sm:$0xff]
        %v6300 = vld [vmem:[#allocation2 + $0x278] sm:$0xff]
        %v6301 = vld [vmem:[#allocation2 + $0x280] sm:$0xff]
        %v6302 = vld [vmem:[#allocation2 + $0x288] sm:$0xff]
        %v6303 = vld [vmem:[#allocation2 + $0x290] sm:$0xff]
        %v6304 = vld [vmem:[#allocation2 + $0x298] sm:$0xff]
        %v6305 = vld [vmem:[#allocation2 + $0x2a0] sm:$0xff]
        %v6306 = vld [vmem:[#allocation2 + $0x2a8] sm:$0xff]
        %v6307 = vld [vmem:[#allocation2 + $0x2b0] sm:$0xff]
        %v6308 = vld [vmem:[#allocation2 + $0x2b8] sm:$0xff]
        %v6309 = vld [vmem:[#allocation2 + $0x2c0] sm:$0xff]
        %v6310 = vld [vmem:[#allocation2 + $0x2c8] sm:$0xff]
        %v6311 = vld [vmem:[#allocation2 + $0x2d0] sm:$0xff]
        %v6312 = vld [vmem:[#allocation2 + $0x2d8] sm:$0xff]
        %v6313 = vld [vmem:[#allocation2 + $0x2e0] sm:$0xff]
        %v6314 = vld [vmem:[#allocation2 + $0x2e8] sm:$0xff]
        %v6315 = vld [vmem:[#allocation2 + $0x2f0] sm:$0xff]
        %v6316 = vld [vmem:[#allocation2 + $0x2f8] sm:$0xff]
        %v6317 = vld [vmem:[#allocation2 + $0x300] sm:$0xff]
        %v6318 = vld [vmem:[#allocation2 + $0x308] sm:$0xff]
        %v6319 = vld [vmem:[#allocation2 + $0x310] sm:$0xff]
        %v6320 = vld [vmem:[#allocation2 + $0x318] sm:$0xff]
        %v6321 = vld [vmem:[#allocation2 + $0x320] sm:$0xff]
        %v6322 = vld [vmem:[#allocation2 + $0x328] sm:$0xff]
        %v6323 = vld [vmem:[#allocation2 + $0x330] sm:$0xff]
        %v6324 = vld [vmem:[#allocation2 + $0x338] sm:$0xff]
        %v6325 = vld [vmem:[#allocation2 + $0x340] sm:$0xff]
        %v6326 = vld [vmem:[#allocation2 + $0x348] sm:$0xff]
        %v6327 = vld [vmem:[#allocation2 + $0x350] sm:$0xff]
        %v6328 = vld [vmem:[#allocation2 + $0x358] sm:$0xff]
        %v6329 = vld [vmem:[#allocation2 + $0x360] sm:$0xff]
        %v6330 = vld [vmem:[#allocation2 + $0x368] sm:$0xff]
        %v6331 = vld [vmem:[#allocation2 + $0x370] sm:$0xff]
        %v6332 = vld [vmem:[#allocation2 + $0x378] sm:$0xff]
        %v6333 = vld [vmem:[#allocation2 + $0x380] sm:$0xff]
        %v6334 = vld [vmem:[#allocation2 + $0x388] sm:$0xff]
        %v6335 = vld [vmem:[#allocation2 + $0x390] sm:$0xff]
        %v6336 = vld [vmem:[#allocation2 + $0x398] sm:$0xff]
        %v6337 = vld [vmem:[#allocation2 + $0x3a0] sm:$0xff]
        %v6338 = vld [vmem:[#allocation2 + $0x3a8] sm:$0xff]
        %v6339 = vld [vmem:[#allocation2 + $0x3b0] sm:$0xff]
        %v6340 = vld [vmem:[#allocation2 + $0x3b8] sm:$0xff]
        %v6341 = vld [vmem:[#allocation2 + $0x3c0] sm:$0xff]
        %v6342 = vld [vmem:[#allocation2 + $0x3c8] sm:$0xff]
        %v6343 = vld [vmem:[#allocation2 + $0x3d0] sm:$0xff]
        %v6344 = vld [vmem:[#allocation2 + $0x3d8] sm:$0xff]
        %v6345 = vld [vmem:[#allocation2 + $0x3e0] sm:$0xff]
        %v6346 = vld [vmem:[#allocation2 + $0x3e8] sm:$0xff]
        %v6347 = vld [vmem:[#allocation2 + $0x3f0] sm:$0xff]
        %v6348 = vld [vmem:[#allocation2 + $0x3f8] sm:$0xff]
        %v6349 = vld [vmem:[#allocation2 + $0x400] sm:$0xff]
        %v6350 = vld [vmem:[#allocation2 + $0x408] sm:$0xff]
        %v6351 = vld [vmem:[#allocation2 + $0x410] sm:$0xff]
        %v6352 = vld [vmem:[#allocation2 + $0x418] sm:$0xff]
        %v6353 = vld [vmem:[#allocation2 + $0x420] sm:$0xff]
        %v6354 = vld [vmem:[#allocation2 + $0x428] sm:$0xff]
        %v6355 = vld [vmem:[#allocation2 + $0x430] sm:$0xff]
        %v6356 = vld [vmem:[#allocation2 + $0x438] sm:$0xff]
        %v6357 = vld [vmem:[#allocation2 + $0x440] sm:$0xff]
        %v6358 = vld [vmem:[#allocation2 + $0x448] sm:$0xff]
        %v6359 = vld [vmem:[#allocation2 + $0x450] sm:$0xff]
        %v6360 = vld [vmem:[#allocation2 + $0x458] sm:$0xff]
        %v6361 = vld [vmem:[#allocation2 + $0x460] sm:$0xff]
        %v6362 = vld [vmem:[#allocation2 + $0x468] sm:$0xff]
        %v6363 = vld [vmem:[#allocation2 + $0x470] sm:$0xff]
        %v6364 = vld [vmem:[#allocation2 + $0x478] sm:$0xff]
        %v6365 = vld [vmem:[#allocation2 + $0x480] sm:$0xff]
        %v6366 = vld [vmem:[#allocation2 + $0x488] sm:$0xff]
        %v6367 = vld [vmem:[#allocation2 + $0x490] sm:$0xff]
        %v6368 = vld [vmem:[#allocation2 + $0x498] sm:$0xff]
        %v6369 = vld [vmem:[#allocation2 + $0x4a0] sm:$0xff]
        %v6370 = vld [vmem:[#allocation2 + $0x4a8] sm:$0xff]
        %v6371 = vld [vmem:[#allocation2 + $0x4b0] sm:$0xff]
        %v6372 = vld [vmem:[#allocation2 + $0x4b8] sm:$0xff]
        %v6373 = vld [vmem:[#allocation2 + $0x4c0] sm:$0xff]
        %v6374 = vld [vmem:[#allocation2 + $0x4c8] sm:$0xff]
        %v6375 = vld [vmem:[#allocation2 + $0x4d0] sm:$0xff]
        %v6376 = vld [vmem:[#allocation2 + $0x4d8] sm:$0xff]
        %v6377 = vld [vmem:[#allocation2 + $0x4e0] sm:$0xff]
        %v6378 = vld [vmem:[#allocation2 + $0x4e8] sm:$0xff]
        %v6379 = vld [vmem:[#allocation2 + $0x4f0] sm:$0xff]
        %v6380 = vld [vmem:[#allocation2 + $0x4f8] sm:$0xff]
        %v6381 = vld [vmem:[#allocation2 + $0x500] sm:$0xff]
        %v6382 = vld [vmem:[#allocation2 + $0x508] sm:$0xff]
        %v6383 = vld [vmem:[#allocation2 + $0x510] sm:$0xff]
        %v6384 = vld [vmem:[#allocation2 + $0x518] sm:$0xff]
        %v6385 = vld [vmem:[#allocation2 + $0x520] sm:$0xff]
        %v6386 = vld [vmem:[#allocation2 + $0x528] sm:$0xff]
        %v6387 = vld [vmem:[#allocation2 + $0x530] sm:$0xff]
        %v6388 = vld [vmem:[#allocation2 + $0x538] sm:$0xff]
        %v6389 = vld [vmem:[#allocation2 + $0x540] sm:$0xff]
        %v6390 = vld [vmem:[#allocation2 + $0x548] sm:$0xff]
        %v6391 = vld [vmem:[#allocation2 + $0x550] sm:$0xff]
        %v6392 = vld [vmem:[#allocation2 + $0x558] sm:$0xff]
        %v6393 = vld [vmem:[#allocation2 + $0x560] sm:$0xff]
        %v6394 = vld [vmem:[#allocation2 + $0x568] sm:$0xff]
        %v6395 = vld [vmem:[#allocation2 + $0x570] sm:$0xff]
        %v6396 = vld [vmem:[#allocation2 + $0x578] sm:$0xff]
        %v6397 = vld [vmem:[#allocation2 + $0x580] sm:$0xff]
        %v6398 = vld [vmem:[#allocation2 + $0x588] sm:$0xff]
        %v6399 = vld [vmem:[#allocation2 + $0x590] sm:$0xff]
        %v6400 = vld [vmem:[#allocation2 + $0x598] sm:$0xff]
        %v6401 = vld [vmem:[#allocation2 + $0x5a0] sm:$0xff]
        %v6402 = vld [vmem:[#allocation2 + $0x5a8] sm:$0xff]
        %v6403 = vld [vmem:[#allocation2 + $0x5b0] sm:$0xff]
        %v6404 = vld [vmem:[#allocation2 + $0x5b8] sm:$0xff]
        %v6405 = vld [vmem:[#allocation2 + $0x5c0] sm:$0xff]
        %v6406 = vld [vmem:[#allocation2 + $0x5c8] sm:$0xff]
        %v6407 = vld [vmem:[#allocation2 + $0x5d0] sm:$0xff]
        %v6408 = vld [vmem:[#allocation2 + $0x5d8] sm:$0xff]
        %v6409 = vld [vmem:[#allocation2 + $0x5e0] sm:$0xff]
        %v6410 = vld [vmem:[#allocation2 + $0x5e8] sm:$0xff]
        %v6411 = vld [vmem:[#allocation2 + $0x5f0] sm:$0xff]
        %v6412 = vld [vmem:[#allocation2 + $0x5f8] sm:$0xff]
        %v6413 = vld [vmem:[#allocation2 + $0x600] sm:$0xff]
        %v6414 = vld [vmem:[#allocation2 + $0x608] sm:$0xff]
        %v6415 = vld [vmem:[#allocation2 + $0x610] sm:$0xff]
        %v6416 = vld [vmem:[#allocation2 + $0x618] sm:$0xff]
        %v6417 = vld [vmem:[#allocation2 + $0x620] sm:$0xff]
        %v6418 = vld [vmem:[#allocation2 + $0x628] sm:$0xff]
        %v6419 = vld [vmem:[#allocation2 + $0x630] sm:$0xff]
        %v6420 = vld [vmem:[#allocation2 + $0x638] sm:$0xff]
        %v6421 = vld [vmem:[#allocation2 + $0x640] sm:$0xff]
        %v6422 = vld [vmem:[#allocation2 + $0x648] sm:$0xff]
        %v6423 = vld [vmem:[#allocation2 + $0x650] sm:$0xff]
        %v6424 = vld [vmem:[#allocation2 + $0x658] sm:$0xff]
        %v6425 = vld [vmem:[#allocation2 + $0x660] sm:$0xff]
        %v6426 = vld [vmem:[#allocation2 + $0x668] sm:$0xff]
        %v6427 = vld [vmem:[#allocation2 + $0x670] sm:$0xff]
        %v6428 = vld [vmem:[#allocation2 + $0x678] sm:$0xff]
        %v6429 = vld [vmem:[#allocation2 + $0x680] sm:$0xff]
        %v6430 = vld [vmem:[#allocation2 + $0x688] sm:$0xff]
        %v6431 = vld [vmem:[#allocation2 + $0x690] sm:$0xff]
        %v6432 = vld [vmem:[#allocation2 + $0x698] sm:$0xff]
        %v6433 = vld [vmem:[#allocation2 + $0x6a0] sm:$0xff]
        %v6434 = vld [vmem:[#allocation2 + $0x6a8] sm:$0xff]
        %v6435 = vld [vmem:[#allocation2 + $0x6b0] sm:$0xff]
        %v6436 = vld [vmem:[#allocation2 + $0x6b8] sm:$0xff]
        %v6437 = vld [vmem:[#allocation2 + $0x6c0] sm:$0xff]
        %v6438 = vld [vmem:[#allocation2 + $0x6c8] sm:$0xff]
        %v6439 = vld [vmem:[#allocation2 + $0x6d0] sm:$0xff]
        %v6440 = vld [vmem:[#allocation2 + $0x6d8] sm:$0xff]
        %v6441 = vld [vmem:[#allocation2 + $0x6e0] sm:$0xff]
        %v6442 = vld [vmem:[#allocation2 + $0x6e8] sm:$0xff]
        %v6443 = vld [vmem:[#allocation2 + $0x6f0] sm:$0xff]
        %v6444 = vld [vmem:[#allocation2 + $0x6f8] sm:$0xff]
        %v6445 = vld [vmem:[#allocation2 + $0x700] sm:$0xff]
        %v6446 = vld [vmem:[#allocation2 + $0x708] sm:$0xff]
        %v6447 = vld [vmem:[#allocation2 + $0x710] sm:$0xff]
        %v6448 = vld [vmem:[#allocation2 + $0x718] sm:$0xff]
        %v6449 = vld [vmem:[#allocation2 + $0x720] sm:$0xff]
        %v6450 = vld [vmem:[#allocation2 + $0x728] sm:$0xff]
        %v6451 = vld [vmem:[#allocation2 + $0x730] sm:$0xff]
        %v6452 = vld [vmem:[#allocation2 + $0x738] sm:$0xff]
        %v6453 = vld [vmem:[#allocation2 + $0x740] sm:$0xff]
        %v6454 = vld [vmem:[#allocation2 + $0x748] sm:$0xff]
        %v6455 = vld [vmem:[#allocation2 + $0x750] sm:$0xff]
        %v6456 = vld [vmem:[#allocation2 + $0x758] sm:$0xff]
        %v6457 = vld [vmem:[#allocation2 + $0x760] sm:$0xff]
        %v6458 = vld [vmem:[#allocation2 + $0x768] sm:$0xff]
        %v6459 = vld [vmem:[#allocation2 + $0x770] sm:$0xff]
        %v6460 = vld [vmem:[#allocation2 + $0x778] sm:$0xff]
        %v6461 = vld [vmem:[#allocation2 + $0x780] sm:$0xff]
        %v6462 = vld [vmem:[#allocation2 + $0x788] sm:$0xff]
        %v6463 = vld [vmem:[#allocation2 + $0x790] sm:$0xff]
        %v6464 = vld [vmem:[#allocation2 + $0x798] sm:$0xff]
        %v6465 = vld [vmem:[#allocation2 + $0x7a0] sm:$0xff]
        %v6466 = vld [vmem:[#allocation2 + $0x7a8] sm:$0xff]
        %v6467 = vld [vmem:[#allocation2 + $0x7b0] sm:$0xff]
        %v6468 = vld [vmem:[#allocation2 + $0x7b8] sm:$0xff]
        %v6469 = vld [vmem:[#allocation2 + $0x7c0] sm:$0xff]
        %v6470 = vld [vmem:[#allocation2 + $0x7c8] sm:$0xff]
        %v6471 = vld [vmem:[#allocation2 + $0x7d0] sm:$0xff]
        %v6472 = vld [vmem:[#allocation2 + $0x7d8] sm:$0xff]
        %v6473 = vld [vmem:[#allocation2 + $0x7e0] sm:$0xff]
        %v6474 = vld [vmem:[#allocation2 + $0x7e8] sm:$0xff]
        %v6475 = vld [vmem:[#allocation2 + $0x7f0] sm:$0xff]
        %v6476 = vld [vmem:[#allocation2 + $0x7f8] sm:$0xff]
        %v6477 = vld [vmem:[#allocation2 + $0x800] sm:$0xff]
        %v6478 = vld [vmem:[#allocation2 + $0x808] sm:$0xff]
        %v6479 = vld [vmem:[#allocation2 + $0x810] sm:$0xff]
        %v6480 = vld [vmem:[#allocation2 + $0x818] sm:$0xff]
        %v6481 = vld [vmem:[#allocation2 + $0x820] sm:$0xff]
        %v6482 = vld [vmem:[#allocation2 + $0x828] sm:$0xff]
        %v6483 = vld [vmem:[#allocation2 + $0x830] sm:$0xff]
        %v6484 = vld [vmem:[#allocation2 + $0x838] sm:$0xff]
        %v6485 = vld [vmem:[#allocation2 + $0x840] sm:$0xff]
        %v6486 = vld [vmem:[#allocation2 + $0x848] sm:$0xff]
        %v6487 = vld [vmem:[#allocation2 + $0x850] sm:$0xff]
        %v6488 = vld [vmem:[#allocation2 + $0x858] sm:$0xff]
        %v6489 = vld [vmem:[#allocation2 + $0x860] sm:$0xff]
        %v6490 = vld [vmem:[#allocation2 + $0x868] sm:$0xff]
        %v6491 = vld [vmem:[#allocation2 + $0x870] sm:$0xff]
        %v6492 = vld [vmem:[#allocation2 + $0x878] sm:$0xff]
        %v6493 = vld [vmem:[#allocation2 + $0x880] sm:$0xff]
        %v6494 = vld [vmem:[#allocation2 + $0x888] sm:$0xff]
        %v6495 = vld [vmem:[#allocation2 + $0x890] sm:$0xff]
        %v6496 = vld [vmem:[#allocation2 + $0x898] sm:$0xff]
        %v6497 = vld [vmem:[#allocation2 + $0x8a0] sm:$0xff]
        %v6498 = vld [vmem:[#allocation2 + $0x8a8] sm:$0xff]
        %v6499 = vld [vmem:[#allocation2 + $0x8b0] sm:$0xff]
        %v6500 = vld [vmem:[#allocation2 + $0x8b8] sm:$0xff]
        %v6501 = vld [vmem:[#allocation2 + $0x8c0] sm:$0xff]
        %v6502 = vld [vmem:[#allocation2 + $0x8c8] sm:$0xff]
        %v6503 = vld [vmem:[#allocation2 + $0x8d0] sm:$0xff]
        %v6504 = vld [vmem:[#allocation2 + $0x8d8] sm:$0xff]
        %v6505 = vld [vmem:[#allocation2 + $0x8e0] sm:$0xff]
        %v6506 = vld [vmem:[#allocation2 + $0x8e8] sm:$0xff]
        %v6507 = vld [vmem:[#allocation2 + $0x8f0] sm:$0xff]
        %v6508 = vld [vmem:[#allocation2 + $0x8f8] sm:$0xff]
        %v6509 = vld [vmem:[#allocation2 + $0x900] sm:$0xff]
        %v6510 = vld [vmem:[#allocation2 + $0x908] sm:$0xff]
        %v6511 = vld [vmem:[#allocation2 + $0x910] sm:$0xff]
        %v6512 = vld [vmem:[#allocation2 + $0x918] sm:$0xff]
        %v6513 = vld [vmem:[#allocation2 + $0x920] sm:$0xff]
        %v6514 = vld [vmem:[#allocation2 + $0x928] sm:$0xff]
        %v6515 = vld [vmem:[#allocation2 + $0x930] sm:$0xff]
        %v6516 = vld [vmem:[#allocation2 + $0x938] sm:$0xff]
        %v6517 = vld [vmem:[#allocation2 + $0x940] sm:$0xff]
        %v6518 = vld [vmem:[#allocation2 + $0x948] sm:$0xff]
        %v6519 = vld [vmem:[#allocation2 + $0x950] sm:$0xff]
        %v6520 = vld [vmem:[#allocation2 + $0x958] sm:$0xff]
        %v6521 = vld [vmem:[#allocation2 + $0x960] sm:$0xff]
        %v6522 = vld [vmem:[#allocation2 + $0x968] sm:$0xff]
        %v6523 = vld [vmem:[#allocation2 + $0x970] sm:$0xff]
        %v6524 = vld [vmem:[#allocation2 + $0x978] sm:$0xff]
        %v6525 = vld [vmem:[#allocation2 + $0x980] sm:$0xff]
        %v6526 = vld [vmem:[#allocation2 + $0x988] sm:$0xff]
        %v6527 = vld [vmem:[#allocation2 + $0x990] sm:$0xff]
        %v6528 = vld [vmem:[#allocation2 + $0x998] sm:$0xff]
        %v6529 = vld [vmem:[#allocation2 + $0x9a0] sm:$0xff]
        %v6530 = vld [vmem:[#allocation2 + $0x9a8] sm:$0xff]
        %v6531 = vld [vmem:[#allocation2 + $0x9b0] sm:$0xff]
        %v6532 = vld [vmem:[#allocation2 + $0x9b8] sm:$0xff]
        %v6533 = vld [vmem:[#allocation2 + $0x9c0] sm:$0xff]
        %v6534 = vld [vmem:[#allocation2 + $0x9c8] sm:$0xff]
        %v6535 = vld [vmem:[#allocation2 + $0x9d0] sm:$0xff]
        %v6536 = vld [vmem:[#allocation2 + $0x9d8] sm:$0xff]
        %v6537 = vld [vmem:[#allocation2 + $0x9e0] sm:$0xff]
        %v6538 = vld [vmem:[#allocation2 + $0x9e8] sm:$0xff]
        %v6539 = vld [vmem:[#allocation2 + $0x9f0] sm:$0xff]
        %v6540 = vld [vmem:[#allocation2 + $0x9f8] sm:$0xff]
        %v6541 = vld [vmem:[#allocation2 + $0xa00] sm:$0xff]
        %v6542 = vld [vmem:[#allocation2 + $0xa08] sm:$0xff]
        %v6543 = vld [vmem:[#allocation2 + $0xa10] sm:$0xff]
        %v6544 = vld [vmem:[#allocation2 + $0xa18] sm:$0xff]
        %v6545 = vld [vmem:[#allocation2 + $0xa20] sm:$0xff]
        %v6546 = vld [vmem:[#allocation2 + $0xa28] sm:$0xff]
        %v6547 = vld [vmem:[#allocation2 + $0xa30] sm:$0xff]
        %v6548 = vld [vmem:[#allocation2 + $0xa38] sm:$0xff]
        %v6549 = vld [vmem:[#allocation2 + $0xa40] sm:$0xff]
        %v6550 = vld [vmem:[#allocation2 + $0xa48] sm:$0xff]
        %v6551 = vld [vmem:[#allocation2 + $0xa50] sm:$0xff]
        %v6552 = vld [vmem:[#allocation2 + $0xa58] sm:$0xff]
        %v6553 = vld [vmem:[#allocation2 + $0xa60] sm:$0xff]
        %v6554 = vld [vmem:[#allocation2 + $0xa68] sm:$0xff]
        %v6555 = vld [vmem:[#allocation2 + $0xa70] sm:$0xff]
        %v6556 = vld [vmem:[#allocation2 + $0xa78] sm:$0xff]
        %v6557 = vld [vmem:[#allocation2 + $0xa80] sm:$0xff]
        %v6558 = vld [vmem:[#allocation2 + $0xa88] sm:$0xff]
        %v6559 = vld [vmem:[#allocation2 + $0xa90] sm:$0xff]
        %v6560 = vld [vmem:[#allocation2 + $0xa98] sm:$0xff]
        %v6561 = vld [vmem:[#allocation2 + $0xaa0] sm:$0xff]
        %v6562 = vld [vmem:[#allocation2 + $0xaa8] sm:$0xff]
        %v6563 = vld [vmem:[#allocation2 + $0xab0] sm:$0xff]
        %v6564 = vld [vmem:[#allocation2 + $0xab8] sm:$0xff]
        %v6565 = vld [vmem:[#allocation2 + $0xac0] sm:$0xff]
        %v6566 = vld [vmem:[#allocation2 + $0xac8] sm:$0xff]
        %v6567 = vld [vmem:[#allocation2 + $0xad0] sm:$0xff]
        %v6568 = vld [vmem:[#allocation2 + $0xad8] sm:$0xff]
        %v6569 = vld [vmem:[#allocation2 + $0xae0] sm:$0xff]
        %v6570 = vld [vmem:[#allocation2 + $0xae8] sm:$0xff]
        %v6571 = vld [vmem:[#allocation2 + $0xaf0] sm:$0xff]
        %v6572 = vld [vmem:[#allocation2 + $0xaf8] sm:$0xff]
        %v6573 = vld [vmem:[#allocation2 + $0xb00] sm:$0xff]
        %v6574 = vld [vmem:[#allocation2 + $0xb08] sm:$0xff]
        %v6575 = vld [vmem:[#allocation2 + $0xb10] sm:$0xff]
        %v6576 = vld [vmem:[#allocation2 + $0xb18] sm:$0xff]
        %v6577 = vld [vmem:[#allocation2 + $0xb20] sm:$0xff]
        %v6578 = vld [vmem:[#allocation2 + $0xb28] sm:$0xff]
        %v6579 = vld [vmem:[#allocation2 + $0xb30] sm:$0xff]
        %v6580 = vld [vmem:[#allocation2 + $0xb38] sm:$0xff]
        %v6581 = vld [vmem:[#allocation2 + $0xb40] sm:$0xff]
        %v6582 = vld [vmem:[#allocation2 + $0xb48] sm:$0xff]
        %v6583 = vld [vmem:[#allocation2 + $0xb50] sm:$0xff]
        %v6584 = vld [vmem:[#allocation2 + $0xb58] sm:$0xff]
        %v6585 = vld [vmem:[#allocation2 + $0xb60] sm:$0xff]
        %v6586 = vld [vmem:[#allocation2 + $0xb68] sm:$0xff]
        %v6587 = vld [vmem:[#allocation2 + $0xb70] sm:$0xff]
        %v6588 = vld [vmem:[#allocation2 + $0xb78] sm:$0xff]
        %v6589 = vld [vmem:[#allocation2 + $0xb80] sm:$0xff]
        %v6590 = vld [vmem:[#allocation2 + $0xb88] sm:$0xff]
        %v6591 = vld [vmem:[#allocation2 + $0xb90] sm:$0xff]
        %v6592 = vld [vmem:[#allocation2 + $0xb98] sm:$0xff]
        %v6593 = vld [vmem:[#allocation2 + $0xba0] sm:$0xff]
        %v6594 = vld [vmem:[#allocation2 + $0xba8] sm:$0xff]
        %v6595 = vld [vmem:[#allocation2 + $0xbb0] sm:$0xff]
        %v6596 = vld [vmem:[#allocation2 + $0xbb8] sm:$0xff]
        %v6597 = vld [vmem:[#allocation2 + $0xbc0] sm:$0xff]
        %v6598 = vld [vmem:[#allocation2 + $0xbc8] sm:$0xff]
        %v6599 = vld [vmem:[#allocation2 + $0xbd0] sm:$0xff]
        %v6600 = vld [vmem:[#allocation2 + $0xbd8] sm:$0xff]
        %v6601 = vld [vmem:[#allocation2 + $0xbe0] sm:$0xff]
        %v6602 = vld [vmem:[#allocation2 + $0xbe8] sm:$0xff]
        %v6603 = vld [vmem:[#allocation2 + $0xbf0] sm:$0xff]
        %v6604 = vld [vmem:[#allocation2 + $0xbf8] sm:$0xff]
        %v6605 = vld [vmem:[#allocation2 + $0xc00] sm:$0xff]
        %v6606 = vld [vmem:[#allocation2 + $0xc08] sm:$0xff]
        %v6607 = vld [vmem:[#allocation2 + $0xc10] sm:$0xff]
        %v6608 = vld [vmem:[#allocation2 + $0xc18] sm:$0xff]
        %v6609 = vld [vmem:[#allocation2 + $0xc20] sm:$0xff]
        %v6610 = vld [vmem:[#allocation2 + $0xc28] sm:$0xff]
        %v6611 = vld [vmem:[#allocation2 + $0xc30] sm:$0xff]
        %v6612 = vld [vmem:[#allocation2 + $0xc38] sm:$0xff]
        %v6613 = vld [vmem:[#allocation2 + $0xc40] sm:$0xff]
        %v6614 = vld [vmem:[#allocation2 + $0xc48] sm:$0xff]
        %v6615 = vld [vmem:[#allocation2 + $0xc50] sm:$0xff]
        %v6616 = vld [vmem:[#allocation2 + $0xc58] sm:$0xff]
        %v6617 = vld [vmem:[#allocation2 + $0xc60] sm:$0xff]
        %v6618 = vld [vmem:[#allocation2 + $0xc68] sm:$0xff]
        %v6619 = vld [vmem:[#allocation2 + $0xc70] sm:$0xff]
        %v6620 = vld [vmem:[#allocation2 + $0xc78] sm:$0xff]
        %v6621 = vld [vmem:[#allocation2 + $0xc80] sm:$0xff]
        %v6622 = vld [vmem:[#allocation2 + $0xc88] sm:$0xff]
        %v6623 = vld [vmem:[#allocation2 + $0xc90] sm:$0xff]
        %v6624 = vld [vmem:[#allocation2 + $0xc98] sm:$0xff]
        %v6625 = vld [vmem:[#allocation2 + $0xca0] sm:$0xff]
        %v6626 = vld [vmem:[#allocation2 + $0xca8] sm:$0xff]
        %v6627 = vld [vmem:[#allocation2 + $0xcb0] sm:$0xff]
        %v6628 = vld [vmem:[#allocation2 + $0xcb8] sm:$0xff]
        %v6629 = vld [vmem:[#allocation2 + $0xcc0] sm:$0xff]
        %v6630 = vld [vmem:[#allocation2 + $0xcc8] sm:$0xff]
        %v6631 = vld [vmem:[#allocation2 + $0xcd0] sm:$0xff]
        %v6632 = vld [vmem:[#allocation2 + $0xcd8] sm:$0xff]
        %v6633 = vld [vmem:[#allocation2 + $0xce0] sm:$0xff]
        %v6634 = vld [vmem:[#allocation2 + $0xce8] sm:$0xff]
        %v6635 = vld [vmem:[#allocation2 + $0xcf0] sm:$0xff]
        %v6636 = vld [vmem:[#allocation2 + $0xcf8] sm:$0xff]
        %v6637 = vld [vmem:[#allocation2 + $0xd00] sm:$0xff]
        %v6638 = vld [vmem:[#allocation2 + $0xd08] sm:$0xff]
        %v6639 = vld [vmem:[#allocation2 + $0xd10] sm:$0xff]
        %v6640 = vld [vmem:[#allocation2 + $0xd18] sm:$0xff]
        %v6641 = vld [vmem:[#allocation2 + $0xd20] sm:$0xff]
        %v6642 = vld [vmem:[#allocation2 + $0xd28] sm:$0xff]
        %v6643 = vld [vmem:[#allocation2 + $0xd30] sm:$0xff]
        %v6644 = vld [vmem:[#allocation2 + $0xd38] sm:$0xff]
        %v6645 = vld [vmem:[#allocation2 + $0xd40] sm:$0xff]
        %v6646 = vld [vmem:[#allocation2 + $0xd48] sm:$0xff]
        %v6647 = vld [vmem:[#allocation2 + $0xd50] sm:$0xff]
        %v6648 = vld [vmem:[#allocation2 + $0xd58] sm:$0xff]
        %v6649 = vld [vmem:[#allocation2 + $0xd60] sm:$0xff]
        %v6650 = vld [vmem:[#allocation2 + $0xd68] sm:$0xff]
        %v6651 = vld [vmem:[#allocation2 + $0xd70] sm:$0xff]
        %v6652 = vld [vmem:[#allocation2 + $0xd78] sm:$0xff]
        %v6653 = vld [vmem:[%s8] sm:$0xff]
        %v6654 = vld [vmem:[%s8 + $0x8] sm:$0xff]
        %6656 = vset.pattern.permute.xlu0 0
        %6657 = vperm.xlu0 %6656, %v6653
        %v6658 = vpop.permute.xlu0 %6657
        %6661 = vset.pattern.permute.xlu0 0
        %6662 = vperm.xlu0 %6661, %v6654
        %v6663 = vpop.permute.xlu0 %6662
        %v6666 = vsel %vm3079, %v6216, 0
        %v6669 = vsel %vm3079, %v6220, 0
        %6671 = vmatprep.subr.mxu0 %v6342
        %6672 = vmatpush1.msra.mxu0 %v6341
        %6673 = vmatprep.subr.mxu0 %v6334
        %6674 = vmatpush1.msra.mxu0 %v6333
        %6675 = vmatprep.subr.mxu0 %v6326
        %6676 = vmatpush1.msra.mxu0 %v6325
        %6677 = vmatprep.subr.mxu0 %v6318
        %6678 = vmatpush1.msra.mxu0 %v6317
        %6679 = vmatprep.subr.mxu0 %v6310
        %6680 = vmatpush1.msra.mxu0 %v6309
        %6681 = vmatprep.subr.mxu0 %v6302
        %6682 = vmatpush1.msra.mxu0 %v6301
        %6683 = vmatprep.subr.mxu0 %v6294
        %6684 = vmatpush1.msra.mxu0 %v6293
        %6685 = vmatprep.subr.mxu0 %v6286
        %6686 = vmatpush1.msra.mxu0 %v6285
        %6687 = vmatprep.subr.mxu0 %v6278
        %6688 = vmatpush1.msra.mxu0 %v6277
        %6689 = vmatprep.subr.mxu0 %v6270
        %6690 = vmatpush1.msra.mxu0 %v6269
        %6691 = vmatprep.subr.mxu0 %v6262
        %6692 = vmatpush1.msra.mxu0 %v6261
        %6693 = vmatprep.subr.mxu0 %v6254
        %6694 = vmatpush1.msra.mxu0 %v6253
        %6695 = vmatprep.subr.mxu0 %v6246
        %6696 = vmatpush1.msra.mxu0 %v6245
        %6697 = vmatprep.subr.mxu0 %v6238
        %6698 = vmatpush1.msra.mxu0 %v6237
        %6699 = vmatprep.subr.mxu0 %v6230
        %6700 = vmatpush1.msra.mxu0 %v6229
        %6701 = vmatprep.subr.mxu0 %v6222
        %6702 = vmatpush1.msra.mxu0 %v6221
        %6703 = vmatprep.subr.mxu0 %v6470
        %6704 = vmatpush2.msra.mxu0 %v6469
        %6705 = vmatprep.subr.mxu0 %v6462
        %6706 = vmatpush2.msra.mxu0 %v6461
        %6707 = vmatprep.subr.mxu0 %v6454
        %6708 = vmatpush2.msra.mxu0 %v6453
        %6709 = vmatprep.subr.mxu0 %v6446
        %6710 = vmatpush2.msra.mxu0 %v6445
        %6711 = vmatprep.subr.mxu0 %v6438
        %6712 = vmatpush2.msra.mxu0 %v6437
        %6713 = vmatprep.subr.mxu0 %v6430
        %6714 = vmatpush2.msra.mxu0 %v6429
        %6715 = vmatprep.subr.mxu0 %v6422
        %6716 = vmatpush2.msra.mxu0 %v6421
        %6717 = vmatprep.subr.mxu0 %v6414
        %6718 = vmatpush2.msra.mxu0 %v6413
        %6719 = vmatprep.subr.mxu0 %v6406
        %6720 = vmatpush2.msra.mxu0 %v6405
        %6721 = vmatprep.subr.mxu0 %v6398
        %6722 = vmatpush2.msra.mxu0 %v6397
        %6723 = vmatprep.subr.mxu0 %v6390
        %6724 = vmatpush2.msra.mxu0 %v6389
        %6725 = vmatprep.subr.mxu0 %v6382
        %6726 = vmatpush2.msra.mxu0 %v6381
        %6727 = vmatprep.subr.mxu0 %v6374
        %6728 = vmatpush2.msra.mxu0 %v6373
        %6729 = vmatprep.subr.mxu0 %v6366
        %6730 = vmatpush2.msra.mxu0 %v6365
        %6731 = vmatprep.subr.mxu0 %v6358
        %6732 = vmatpush2.msra.mxu0 %v6357
        %6733 = vmatprep.subr.mxu0 %v6350
        %6734 = vmatpush2.msra.mxu0 %v6349
        %6735 = vmatprep.mubr.f32.mxu0 %v6214
        %6736 = vmatmul.mubr.f32.gmra.mxu0 %v6213
        %v6737 = vpop.f32.mrf.mxu0
        %v6738 = vadd.f32 %v6658, %v6737
        %v6739 = vpop.f32.mrf.mxu0
        %v6740 = vadd.f32 %v6658, %v6739
        %6741 = vmatprep.mubr.f32.mxu0 %v6218
        %6742 = vmatmul.mubr.f32.gmra.mxu0 %v6217
        %v6743 = vpop.f32.mrf.mxu0
        %v6744 = vadd.f32 %v6663, %v6743
        %v6745 = vpop.f32.mrf.mxu0
        %v6746 = vadd.f32 %v6663, %v6745
        %6747 = vdwg.mxu0
        %6748 = vmatprep.subr.mxu0 %v6598
        %6749 = vmatpush1.msra.mxu0 %v6597
        %6750 = vmatprep.subr.mxu0 %v6590
        %6751 = vmatpush1.msra.mxu0 %v6589
        %6752 = vmatprep.subr.mxu0 %v6582
        %6753 = vmatpush1.msra.mxu0 %v6581
        %6754 = vmatprep.subr.mxu0 %v6574
        %6755 = vmatpush1.msra.mxu0 %v6573
        %6756 = vmatprep.subr.mxu0 %v6566
        %6757 = vmatpush1.msra.mxu0 %v6565
        %6758 = vmatprep.subr.mxu0 %v6558
        %6759 = vmatpush1.msra.mxu0 %v6557
        %6760 = vmatprep.subr.mxu0 %v6550
        %6761 = vmatpush1.msra.mxu0 %v6549
        %6762 = vmatprep.subr.mxu0 %v6542
        %6763 = vmatpush1.msra.mxu0 %v6541
        %6764 = vmatprep.subr.mxu0 %v6534
        %6765 = vmatpush1.msra.mxu0 %v6533
        %6766 = vmatprep.subr.mxu0 %v6526
        %6767 = vmatpush1.msra.mxu0 %v6525
        %6768 = vmatprep.subr.mxu0 %v6518
        %6769 = vmatpush1.msra.mxu0 %v6517
        %6770 = vmatprep.subr.mxu0 %v6510
        %6771 = vmatpush1.msra.mxu0 %v6509
        %6772 = vmatprep.subr.mxu0 %v6502
        %6773 = vmatpush1.msra.mxu0 %v6501
        %6774 = vmatprep.subr.mxu0 %v6494
        %6775 = vmatpush1.msra.mxu0 %v6493
        %6776 = vmatprep.subr.mxu0 %v6486
        %6777 = vmatpush1.msra.mxu0 %v6485
        %6778 = vmatprep.subr.mxu0 %v6478
        %6779 = vmatpush1.msra.mxu0 %v6477
        %6780 = vmatprep.subr.mxu0 0.0
        %6781 = vmatpush2.msra.mxu0 0.0
        %6782 = vmatprep.subr.mxu0 0.0
        %6783 = vmatpush2.msra.mxu0 0.0
        %6784 = vmatprep.subr.mxu0 0.0
        %6785 = vmatpush2.msra.mxu0 0.0
        %6786 = vmatprep.subr.mxu0 0.0
        %6787 = vmatpush2.msra.mxu0 0.0
        %6788 = vmatprep.subr.mxu0 0.0
        %6789 = vmatpush2.msra.mxu0 0.0
        %6790 = vmatprep.subr.mxu0 0.0
        %6791 = vmatpush2.msra.mxu0 0.0
        %6792 = vmatprep.subr.mxu0 0.0
        %6793 = vmatpush2.msra.mxu0 0.0
        %6794 = vmatprep.subr.mxu0 0.0
        %6795 = vmatpush2.msra.mxu0 0.0
        %6796 = vmatprep.subr.mxu0 0.0
        %6797 = vmatpush2.msra.mxu0 0.0
        %6798 = vmatprep.subr.mxu0 0.0
        %6799 = vmatpush2.msra.mxu0 0.0
        %6800 = vmatprep.subr.mxu0 %v6646
        %6801 = vmatpush2.msra.mxu0 %v6645
        %6802 = vmatprep.subr.mxu0 %v6638
        %6803 = vmatpush2.msra.mxu0 %v6637
        %6804 = vmatprep.subr.mxu0 %v6630
        %6805 = vmatpush2.msra.mxu0 %v6629
        %6806 = vmatprep.subr.mxu0 %v6622
        %6807 = vmatpush2.msra.mxu0 %v6621
        %6808 = vmatprep.subr.mxu0 %v6614
        %6809 = vmatpush2.msra.mxu0 %v6613
        %6810 = vmatprep.subr.mxu0 %v6606
        %6811 = vmatpush2.msra.mxu0 %v6605
        %6812 = vmatprep.mubr.f32.mxu0 %v6666
        %6813 = vmatmul.mubr.f32.gmra.mxu0 %v6215
        %v6814 = vpop.f32.mrf.mxu0
        %v6815 = vadd.f32 %v6738, %v6814
        %v6816 = vpop.f32.mrf.mxu0
        %v6817 = vadd.f32 %v6740, %v6816
        %6818 = vmatprep.mubr.f32.mxu0 %v6669
        %6819 = vmatmul.mubr.f32.gmra.mxu0 %v6219
        %v6820 = vpop.f32.mrf.mxu0
        %v6821 = vadd.f32 %v6744, %v6820
        %v6822 = vpop.f32.mrf.mxu0
        %v6823 = vadd.f32 %v6746, %v6822
        %6824 = vdwg.mxu0
        %6825 = vmatprep.subr.mxu0 %v6344
        %6826 = vmatpush1.msra.mxu0 %v6343
        %6827 = vmatprep.subr.mxu0 %v6336
        %6828 = vmatpush1.msra.mxu0 %v6335
        %6829 = vmatprep.subr.mxu0 %v6328
        %6830 = vmatpush1.msra.mxu0 %v6327
        %6831 = vmatprep.subr.mxu0 %v6320
        %6832 = vmatpush1.msra.mxu0 %v6319
        %6833 = vmatprep.subr.mxu0 %v6312
        %6834 = vmatpush1.msra.mxu0 %v6311
        %6835 = vmatprep.subr.mxu0 %v6304
        %6836 = vmatpush1.msra.mxu0 %v6303
        %6837 = vmatprep.subr.mxu0 %v6296
        %6838 = vmatpush1.msra.mxu0 %v6295
        %6839 = vmatprep.subr.mxu0 %v6288
        %6840 = vmatpush1.msra.mxu0 %v6287
        %6841 = vmatprep.subr.mxu0 %v6280
        %6842 = vmatpush1.msra.mxu0 %v6279
        %6843 = vmatprep.subr.mxu0 %v6272
        %6844 = vmatpush1.msra.mxu0 %v6271
        %6845 = vmatprep.subr.mxu0 %v6264
        %6846 = vmatpush1.msra.mxu0 %v6263
        %6847 = vmatprep.subr.mxu0 %v6256
        %6848 = vmatpush1.msra.mxu0 %v6255
        %6849 = vmatprep.subr.mxu0 %v6248
        %6850 = vmatpush1.msra.mxu0 %v6247
        %6851 = vmatprep.subr.mxu0 %v6240
        %6852 = vmatpush1.msra.mxu0 %v6239
        %6853 = vmatprep.subr.mxu0 %v6232
        %6854 = vmatpush1.msra.mxu0 %v6231
        %6855 = vmatprep.subr.mxu0 %v6224
        %6856 = vmatpush1.msra.mxu0 %v6223
        %6857 = vmatprep.subr.mxu0 %v6472
        %6858 = vmatpush2.msra.mxu0 %v6471
        %6859 = vmatprep.subr.mxu0 %v6464
        %6860 = vmatpush2.msra.mxu0 %v6463
        %6861 = vmatprep.subr.mxu0 %v6456
        %6862 = vmatpush2.msra.mxu0 %v6455
        %6863 = vmatprep.subr.mxu0 %v6448
        %6864 = vmatpush2.msra.mxu0 %v6447
        %6865 = vmatprep.subr.mxu0 %v6440
        %6866 = vmatpush2.msra.mxu0 %v6439
        %6867 = vmatprep.subr.mxu0 %v6432
        %6868 = vmatpush2.msra.mxu0 %v6431
        %6869 = vmatprep.subr.mxu0 %v6424
        %6870 = vmatpush2.msra.mxu0 %v6423
        %6871 = vmatprep.subr.mxu0 %v6416
        %6872 = vmatpush2.msra.mxu0 %v6415
        %6873 = vmatprep.subr.mxu0 %v6408
        %6874 = vmatpush2.msra.mxu0 %v6407
        %6875 = vmatprep.subr.mxu0 %v6400
        %6876 = vmatpush2.msra.mxu0 %v6399
        %6877 = vmatprep.subr.mxu0 %v6392
        %6878 = vmatpush2.msra.mxu0 %v6391
        %6879 = vmatprep.subr.mxu0 %v6384
        %6880 = vmatpush2.msra.mxu0 %v6383
        %6881 = vmatprep.subr.mxu0 %v6376
        %6882 = vmatpush2.msra.mxu0 %v6375
        %6883 = vmatprep.subr.mxu0 %v6368
        %6884 = vmatpush2.msra.mxu0 %v6367
        %6885 = vmatprep.subr.mxu0 %v6360
        %6886 = vmatpush2.msra.mxu0 %v6359
        %6887 = vmatprep.subr.mxu0 %v6352
        %6888 = vmatpush2.msra.mxu0 %v6351
        %6889 = vmatprep.mubr.f32.mxu0 %v6214
        %6890 = vmatmul.mubr.f32.gmra.mxu0 %v6213
        %v6891 = vpop.f32.mrf.mxu0
        %v6892 = vadd.f32 %v6658, %v6891
        %v6893 = vpop.f32.mrf.mxu0
        %v6894 = vadd.f32 %v6658, %v6893
        %6895 = vmatprep.mubr.f32.mxu0 %v6218
        %6896 = vmatmul.mubr.f32.gmra.mxu0 %v6217
        %v6897 = vpop.f32.mrf.mxu0
        %v6898 = vadd.f32 %v6663, %v6897
        %v6899 = vpop.f32.mrf.mxu0
        %v6900 = vadd.f32 %v6663, %v6899
        %6901 = vdwg.mxu0
        %6902 = vmatprep.subr.mxu0 %v6600
        %6903 = vmatpush1.msra.mxu0 %v6599
        %6904 = vmatprep.subr.mxu0 %v6592
        %6905 = vmatpush1.msra.mxu0 %v6591
        %6906 = vmatprep.subr.mxu0 %v6584
        %6907 = vmatpush1.msra.mxu0 %v6583
        %6908 = vmatprep.subr.mxu0 %v6576
        %6909 = vmatpush1.msra.mxu0 %v6575
        %6910 = vmatprep.subr.mxu0 %v6568
        %6911 = vmatpush1.msra.mxu0 %v6567
        %6912 = vmatprep.subr.mxu0 %v6560
        %6913 = vmatpush1.msra.mxu0 %v6559
        %6914 = vmatprep.subr.mxu0 %v6552
        %6915 = vmatpush1.msra.mxu0 %v6551
        %6916 = vmatprep.subr.mxu0 %v6544
        %6917 = vmatpush1.msra.mxu0 %v6543
        %6918 = vmatprep.subr.mxu0 %v6536
        %6919 = vmatpush1.msra.mxu0 %v6535
        %6920 = vmatprep.subr.mxu0 %v6528
        %6921 = vmatpush1.msra.mxu0 %v6527
        %6922 = vmatprep.subr.mxu0 %v6520
        %6923 = vmatpush1.msra.mxu0 %v6519
        %6924 = vmatprep.subr.mxu0 %v6512
        %6925 = vmatpush1.msra.mxu0 %v6511
        %6926 = vmatprep.subr.mxu0 %v6504
        %6927 = vmatpush1.msra.mxu0 %v6503
        %6928 = vmatprep.subr.mxu0 %v6496
        %6929 = vmatpush1.msra.mxu0 %v6495
        %6930 = vmatprep.subr.mxu0 %v6488
        %6931 = vmatpush1.msra.mxu0 %v6487
        %6932 = vmatprep.subr.mxu0 %v6480
        %6933 = vmatpush1.msra.mxu0 %v6479
        %6934 = vmatprep.subr.mxu0 0.0
        %6935 = vmatpush2.msra.mxu0 0.0
        %6936 = vmatprep.subr.mxu0 0.0
        %6937 = vmatpush2.msra.mxu0 0.0
        %6938 = vmatprep.subr.mxu0 0.0
        %6939 = vmatpush2.msra.mxu0 0.0
        %6940 = vmatprep.subr.mxu0 0.0
        %6941 = vmatpush2.msra.mxu0 0.0
        %6942 = vmatprep.subr.mxu0 0.0
        %6943 = vmatpush2.msra.mxu0 0.0
        %6944 = vmatprep.subr.mxu0 0.0
        %6945 = vmatpush2.msra.mxu0 0.0
        %6946 = vmatprep.subr.mxu0 0.0
        %6947 = vmatpush2.msra.mxu0 0.0
        %6948 = vmatprep.subr.mxu0 0.0
        %6949 = vmatpush2.msra.mxu0 0.0
        %6950 = vmatprep.subr.mxu0 0.0
        %6951 = vmatpush2.msra.mxu0 0.0
        %6952 = vmatprep.subr.mxu0 0.0
        %6953 = vmatpush2.msra.mxu0 0.0
        %6954 = vmatprep.subr.mxu0 %v6648
        %6955 = vmatpush2.msra.mxu0 %v6647
        %6956 = vmatprep.subr.mxu0 %v6640
        %6957 = vmatpush2.msra.mxu0 %v6639
        %6958 = vmatprep.subr.mxu0 %v6632
        %6959 = vmatpush2.msra.mxu0 %v6631
        %6960 = vmatprep.subr.mxu0 %v6624
        %6961 = vmatpush2.msra.mxu0 %v6623
        %6962 = vmatprep.subr.mxu0 %v6616
        %6963 = vmatpush2.msra.mxu0 %v6615
        %6964 = vmatprep.subr.mxu0 %v6608
        %6965 = vmatpush2.msra.mxu0 %v6607
        %6966 = vmatprep.mubr.f32.mxu0 %v6666
        %6967 = vmatmul.mubr.f32.gmra.mxu0 %v6215
        %v6968 = vpop.f32.mrf.mxu0
        %v6969 = vadd.f32 %v6892, %v6968
        %v6970 = vpop.f32.mrf.mxu0
        %v6971 = vadd.f32 %v6894, %v6970
        %6972 = vmatprep.mubr.f32.mxu0 %v6669
        %6973 = vmatmul.mubr.f32.gmra.mxu0 %v6219
        %v6974 = vpop.f32.mrf.mxu0
        %v6975 = vadd.f32 %v6898, %v6974
        %v6976 = vpop.f32.mrf.mxu0
        %v6977 = vadd.f32 %v6900, %v6976
        %6978 = vdwg.mxu0
        %6979 = vmatprep.subr.mxu0 %v6346
        %6980 = vmatpush1.msra.mxu0 %v6345
        %6981 = vmatprep.subr.mxu0 %v6338
        %6982 = vmatpush1.msra.mxu0 %v6337
        %6983 = vmatprep.subr.mxu0 %v6330
        %6984 = vmatpush1.msra.mxu0 %v6329
        %6985 = vmatprep.subr.mxu0 %v6322
        %6986 = vmatpush1.msra.mxu0 %v6321
        %6987 = vmatprep.subr.mxu0 %v6314
        %6988 = vmatpush1.msra.mxu0 %v6313
        %6989 = vmatprep.subr.mxu0 %v6306
        %6990 = vmatpush1.msra.mxu0 %v6305
        %6991 = vmatprep.subr.mxu0 %v6298
        %6992 = vmatpush1.msra.mxu0 %v6297
        %6993 = vmatprep.subr.mxu0 %v6290
        %6994 = vmatpush1.msra.mxu0 %v6289
        %6995 = vmatprep.subr.mxu0 %v6282
        %6996 = vmatpush1.msra.mxu0 %v6281
        %6997 = vmatprep.subr.mxu0 %v6274
        %6998 = vmatpush1.msra.mxu0 %v6273
        %6999 = vmatprep.subr.mxu0 %v6266
        %7000 = vmatpush1.msra.mxu0 %v6265
        %7001 = vmatprep.subr.mxu0 %v6258
        %7002 = vmatpush1.msra.mxu0 %v6257
        %7003 = vmatprep.subr.mxu0 %v6250
        %7004 = vmatpush1.msra.mxu0 %v6249
        %7005 = vmatprep.subr.mxu0 %v6242
        %7006 = vmatpush1.msra.mxu0 %v6241
        %7007 = vmatprep.subr.mxu0 %v6234
        %7008 = vmatpush1.msra.mxu0 %v6233
        %7009 = vmatprep.subr.mxu0 %v6226
        %7010 = vmatpush1.msra.mxu0 %v6225
        %7011 = vmatprep.subr.mxu0 %v6474
        %7012 = vmatpush2.msra.mxu0 %v6473
        %7013 = vmatprep.subr.mxu0 %v6466
        %7014 = vmatpush2.msra.mxu0 %v6465
        %7015 = vmatprep.subr.mxu0 %v6458
        %7016 = vmatpush2.msra.mxu0 %v6457
        %7017 = vmatprep.subr.mxu0 %v6450
        %7018 = vmatpush2.msra.mxu0 %v6449
        %7019 = vmatprep.subr.mxu0 %v6442
        %7020 = vmatpush2.msra.mxu0 %v6441
        %7021 = vmatprep.subr.mxu0 %v6434
        %7022 = vmatpush2.msra.mxu0 %v6433
        %7023 = vmatprep.subr.mxu0 %v6426
        %7024 = vmatpush2.msra.mxu0 %v6425
        %7025 = vmatprep.subr.mxu0 %v6418
        %7026 = vmatpush2.msra.mxu0 %v6417
        %7027 = vmatprep.subr.mxu0 %v6410
        %7028 = vmatpush2.msra.mxu0 %v6409
        %7029 = vmatprep.subr.mxu0 %v6402
        %7030 = vmatpush2.msra.mxu0 %v6401
        %7031 = vmatprep.subr.mxu0 %v6394
        %7032 = vmatpush2.msra.mxu0 %v6393
        %7033 = vmatprep.subr.mxu0 %v6386
        %7034 = vmatpush2.msra.mxu0 %v6385
        %7035 = vmatprep.subr.mxu0 %v6378
        %7036 = vmatpush2.msra.mxu0 %v6377
        %7037 = vmatprep.subr.mxu0 %v6370
        %7038 = vmatpush2.msra.mxu0 %v6369
        %7039 = vmatprep.subr.mxu0 %v6362
        %7040 = vmatpush2.msra.mxu0 %v6361
        %7041 = vmatprep.subr.mxu0 %v6354
        %7042 = vmatpush2.msra.mxu0 %v6353
        %7043 = vmatprep.mubr.f32.mxu0 %v6214
        %7044 = vmatmul.mubr.f32.gmra.mxu0 %v6213
        %v7045 = vpop.f32.mrf.mxu0
        %v7046 = vadd.f32 %v6658, %v7045
        %v7047 = vpop.f32.mrf.mxu0
        %v7048 = vadd.f32 %v6658, %v7047
        %7049 = vmatprep.mubr.f32.mxu0 %v6218
        %7050 = vmatmul.mubr.f32.gmra.mxu0 %v6217
        %v7051 = vpop.f32.mrf.mxu0
        %v7052 = vadd.f32 %v6663, %v7051
        %v7053 = vpop.f32.mrf.mxu0
        %v7054 = vadd.f32 %v6663, %v7053
        %7055 = vdwg.mxu0
        %7056 = vmatprep.subr.mxu0 %v6602
        %7057 = vmatpush1.msra.mxu0 %v6601
        %7058 = vmatprep.subr.mxu0 %v6594
        %7059 = vmatpush1.msra.mxu0 %v6593
        %7060 = vmatprep.subr.mxu0 %v6586
        %7061 = vmatpush1.msra.mxu0 %v6585
        %7062 = vmatprep.subr.mxu0 %v6578
        %7063 = vmatpush1.msra.mxu0 %v6577
        %7064 = vmatprep.subr.mxu0 %v6570
        %7065 = vmatpush1.msra.mxu0 %v6569
        %7066 = vmatprep.subr.mxu0 %v6562
        %7067 = vmatpush1.msra.mxu0 %v6561
        %7068 = vmatprep.subr.mxu0 %v6554
        %7069 = vmatpush1.msra.mxu0 %v6553
        %7070 = vmatprep.subr.mxu0 %v6546
        %7071 = vmatpush1.msra.mxu0 %v6545
        %7072 = vmatprep.subr.mxu0 %v6538
        %7073 = vmatpush1.msra.mxu0 %v6537
        %7074 = vmatprep.subr.mxu0 %v6530
        %7075 = vmatpush1.msra.mxu0 %v6529
        %7076 = vmatprep.subr.mxu0 %v6522
        %7077 = vmatpush1.msra.mxu0 %v6521
        %7078 = vmatprep.subr.mxu0 %v6514
        %7079 = vmatpush1.msra.mxu0 %v6513
        %7080 = vmatprep.subr.mxu0 %v6506
        %7081 = vmatpush1.msra.mxu0 %v6505
        %7082 = vmatprep.subr.mxu0 %v6498
        %7083 = vmatpush1.msra.mxu0 %v6497
        %7084 = vmatprep.subr.mxu0 %v6490
        %7085 = vmatpush1.msra.mxu0 %v6489
        %7086 = vmatprep.subr.mxu0 %v6482
        %7087 = vmatpush1.msra.mxu0 %v6481
        %7088 = vmatprep.subr.mxu0 0.0
        %7089 = vmatpush2.msra.mxu0 0.0
        %7090 = vmatprep.subr.mxu0 0.0
        %7091 = vmatpush2.msra.mxu0 0.0
        %7092 = vmatprep.subr.mxu0 0.0
        %7093 = vmatpush2.msra.mxu0 0.0
        %7094 = vmatprep.subr.mxu0 0.0
        %7095 = vmatpush2.msra.mxu0 0.0
        %7096 = vmatprep.subr.mxu0 0.0
        %7097 = vmatpush2.msra.mxu0 0.0
        %7098 = vmatprep.subr.mxu0 0.0
        %7099 = vmatpush2.msra.mxu0 0.0
        %7100 = vmatprep.subr.mxu0 0.0
        %7101 = vmatpush2.msra.mxu0 0.0
        %7102 = vmatprep.subr.mxu0 0.0
        %7103 = vmatpush2.msra.mxu0 0.0
        %7104 = vmatprep.subr.mxu0 0.0
        %7105 = vmatpush2.msra.mxu0 0.0
        %7106 = vmatprep.subr.mxu0 0.0
        %7107 = vmatpush2.msra.mxu0 0.0
        %7108 = vmatprep.subr.mxu0 %v6650
        %7109 = vmatpush2.msra.mxu0 %v6649
        %7110 = vmatprep.subr.mxu0 %v6642
        %7111 = vmatpush2.msra.mxu0 %v6641
        %7112 = vmatprep.subr.mxu0 %v6634
        %7113 = vmatpush2.msra.mxu0 %v6633
        %7114 = vmatprep.subr.mxu0 %v6626
        %7115 = vmatpush2.msra.mxu0 %v6625
        %7116 = vmatprep.subr.mxu0 %v6618
        %7117 = vmatpush2.msra.mxu0 %v6617
        %7118 = vmatprep.subr.mxu0 %v6610
        %7119 = vmatpush2.msra.mxu0 %v6609
        %7120 = vmatprep.mubr.f32.mxu0 %v6666
        %7121 = vmatmul.mubr.f32.gmra.mxu0 %v6215
        %v7122 = vpop.f32.mrf.mxu0
        %v7123 = vadd.f32 %v7046, %v7122
        %v7124 = vpop.f32.mrf.mxu0
        %v7125 = vadd.f32 %v7048, %v7124
        %7126 = vmatprep.mubr.f32.mxu0 %v6669
        %7127 = vmatmul.mubr.f32.gmra.mxu0 %v6219
        %v7128 = vpop.f32.mrf.mxu0
        %v7129 = vadd.f32 %v7052, %v7128
        %v7130 = vpop.f32.mrf.mxu0
        %v7131 = vadd.f32 %v7054, %v7130
        %7132 = vdwg.mxu0
        %7133 = vmatprep.subr.mxu0 %v6348
        %7134 = vmatpush1.msra.mxu0 %v6347
        %7135 = vmatprep.subr.mxu0 %v6340
        %7136 = vmatpush1.msra.mxu0 %v6339
        %7137 = vmatprep.subr.mxu0 %v6332
        %7138 = vmatpush1.msra.mxu0 %v6331
        %7139 = vmatprep.subr.mxu0 %v6324
        %7140 = vmatpush1.msra.mxu0 %v6323
        %7141 = vmatprep.subr.mxu0 %v6316
        %7142 = vmatpush1.msra.mxu0 %v6315
        %7143 = vmatprep.subr.mxu0 %v6308
        %7144 = vmatpush1.msra.mxu0 %v6307
        %7145 = vmatprep.subr.mxu0 %v6300
        %7146 = vmatpush1.msra.mxu0 %v6299
        %7147 = vmatprep.subr.mxu0 %v6292
        %7148 = vmatpush1.msra.mxu0 %v6291
        %7149 = vmatprep.subr.mxu0 %v6284
        %7150 = vmatpush1.msra.mxu0 %v6283
        %7151 = vmatprep.subr.mxu0 %v6276
        %7152 = vmatpush1.msra.mxu0 %v6275
        %7153 = vmatprep.subr.mxu0 %v6268
        %7154 = vmatpush1.msra.mxu0 %v6267
        %7155 = vmatprep.subr.mxu0 %v6260
        %7156 = vmatpush1.msra.mxu0 %v6259
        %7157 = vmatprep.subr.mxu0 %v6252
        %7158 = vmatpush1.msra.mxu0 %v6251
        %7159 = vmatprep.subr.mxu0 %v6244
        %7160 = vmatpush1.msra.mxu0 %v6243
        %7161 = vmatprep.subr.mxu0 %v6236
        %7162 = vmatpush1.msra.mxu0 %v6235
        %7163 = vmatprep.subr.mxu0 %v6228
        %7164 = vmatpush1.msra.mxu0 %v6227
        %7165 = vmatprep.subr.mxu0 %v6476
        %7166 = vmatpush2.msra.mxu0 %v6475
        %7167 = vmatprep.subr.mxu0 %v6468
        %7168 = vmatpush2.msra.mxu0 %v6467
        %7169 = vmatprep.subr.mxu0 %v6460
        %7170 = vmatpush2.msra.mxu0 %v6459
        %7171 = vmatprep.subr.mxu0 %v6452
        %7172 = vmatpush2.msra.mxu0 %v6451
        %7173 = vmatprep.subr.mxu0 %v6444
        %7174 = vmatpush2.msra.mxu0 %v6443
        %7175 = vmatprep.subr.mxu0 %v6436
        %7176 = vmatpush2.msra.mxu0 %v6435
        %7177 = vmatprep.subr.mxu0 %v6428
        %7178 = vmatpush2.msra.mxu0 %v6427
        %7179 = vmatprep.subr.mxu0 %v6420
        %7180 = vmatpush2.msra.mxu0 %v6419
        %7181 = vmatprep.subr.mxu0 %v6412
        %7182 = vmatpush2.msra.mxu0 %v6411
        %7183 = vmatprep.subr.mxu0 %v6404
        %7184 = vmatpush2.msra.mxu0 %v6403
        %7185 = vmatprep.subr.mxu0 %v6396
        %7186 = vmatpush2.msra.mxu0 %v6395
        %7187 = vmatprep.subr.mxu0 %v6388
        %7188 = vmatpush2.msra.mxu0 %v6387
        %7189 = vmatprep.subr.mxu0 %v6380
        %7190 = vmatpush2.msra.mxu0 %v6379
        %7191 = vmatprep.subr.mxu0 %v6372
        %7192 = vmatpush2.msra.mxu0 %v6371
        %7193 = vmatprep.subr.mxu0 %v6364
        %7194 = vmatpush2.msra.mxu0 %v6363
        %7195 = vmatprep.subr.mxu0 %v6356
        %7196 = vmatpush2.msra.mxu0 %v6355
        %7197 = vmatprep.mubr.f32.mxu0 %v6214
        %7198 = vmatmul.mubr.f32.gmra.mxu0 %v6213
        %v7199 = vpop.f32.mrf.mxu0
        %v7200 = vadd.f32 %v6658, %v7199
        %v7201 = vpop.f32.mrf.mxu0
        %v7202 = vadd.f32 %v6658, %v7201
        %7203 = vmatprep.mubr.f32.mxu0 %v6218
        %7204 = vmatmul.mubr.f32.gmra.mxu0 %v6217
        %v7205 = vpop.f32.mrf.mxu0
        %v7206 = vadd.f32 %v6663, %v7205
        %v7207 = vpop.f32.mrf.mxu0
        %v7208 = vadd.f32 %v6663, %v7207
        %7209 = vdwg.mxu0
        %7210 = vmatprep.subr.mxu0 %v6604
        %7211 = vmatpush1.msra.mxu0 %v6603
        %7212 = vmatprep.subr.mxu0 %v6596
        %7213 = vmatpush1.msra.mxu0 %v6595
        %7214 = vmatprep.subr.mxu0 %v6588
        %7215 = vmatpush1.msra.mxu0 %v6587
        %7216 = vmatprep.subr.mxu0 %v6580
        %7217 = vmatpush1.msra.mxu0 %v6579
        %7218 = vmatprep.subr.mxu0 %v6572
        %7219 = vmatpush1.msra.mxu0 %v6571
        %7220 = vmatprep.subr.mxu0 %v6564
        %7221 = vmatpush1.msra.mxu0 %v6563
        %7222 = vmatprep.subr.mxu0 %v6556
        %7223 = vmatpush1.msra.mxu0 %v6555
        %7224 = vmatprep.subr.mxu0 %v6548
        %7225 = vmatpush1.msra.mxu0 %v6547
        %7226 = vmatprep.subr.mxu0 %v6540
        %7227 = vmatpush1.msra.mxu0 %v6539
        %7228 = vmatprep.subr.mxu0 %v6532
        %7229 = vmatpush1.msra.mxu0 %v6531
        %7230 = vmatprep.subr.mxu0 %v6524
        %7231 = vmatpush1.msra.mxu0 %v6523
        %7232 = vmatprep.subr.mxu0 %v6516
        %7233 = vmatpush1.msra.mxu0 %v6515
        %7234 = vmatprep.subr.mxu0 %v6508
        %7235 = vmatpush1.msra.mxu0 %v6507
        %7236 = vmatprep.subr.mxu0 %v6500
        %7237 = vmatpush1.msra.mxu0 %v6499
        %7238 = vmatprep.subr.mxu0 %v6492
        %7239 = vmatpush1.msra.mxu0 %v6491
        %7240 = vmatprep.subr.mxu0 %v6484
        %7241 = vmatpush1.msra.mxu0 %v6483
        %7242 = vmatprep.subr.mxu0 0.0
        %7243 = vmatpush2.msra.mxu0 0.0
        %7244 = vmatprep.subr.mxu0 0.0
        %7245 = vmatpush2.msra.mxu0 0.0
        %7246 = vmatprep.subr.mxu0 0.0
        %7247 = vmatpush2.msra.mxu0 0.0
        %7248 = vmatprep.subr.mxu0 0.0
        %7249 = vmatpush2.msra.mxu0 0.0
        %7250 = vmatprep.subr.mxu0 0.0
        %7251 = vmatpush2.msra.mxu0 0.0
        %7252 = vmatprep.subr.mxu0 0.0
        %7253 = vmatpush2.msra.mxu0 0.0
        %7254 = vmatprep.subr.mxu0 0.0
        %7255 = vmatpush2.msra.mxu0 0.0
        %7256 = vmatprep.subr.mxu0 0.0
        %7257 = vmatpush2.msra.mxu0 0.0
        %7258 = vmatprep.subr.mxu0 0.0
        %7259 = vmatpush2.msra.mxu0 0.0
        %7260 = vmatprep.subr.mxu0 0.0
        %7261 = vmatpush2.msra.mxu0 0.0
        %7262 = vmatprep.subr.mxu0 %v6652
        %7263 = vmatpush2.msra.mxu0 %v6651
        %7264 = vmatprep.subr.mxu0 %v6644
        %7265 = vmatpush2.msra.mxu0 %v6643
        %7266 = vmatprep.subr.mxu0 %v6636
        %7267 = vmatpush2.msra.mxu0 %v6635
        %7268 = vmatprep.subr.mxu0 %v6628
        %7269 = vmatpush2.msra.mxu0 %v6627
        %7270 = vmatprep.subr.mxu0 %v6620
        %7271 = vmatpush2.msra.mxu0 %v6619
        %7272 = vmatprep.subr.mxu0 %v6612
        %7273 = vmatpush2.msra.mxu0 %v6611
        %7274 = vmatprep.mubr.f32.mxu0 %v6666
        %7275 = vmatmul.mubr.f32.gmra.mxu0 %v6215
        %v7276 = vpop.f32.mrf.mxu0
        %v7277 = vadd.f32 %v7200, %v7276
        %v7278 = vpop.f32.mrf.mxu0
        %v7279 = vadd.f32 %v7202, %v7278
        %7280 = vmatprep.mubr.f32.mxu0 %v6669
        %7281 = vmatmul.mubr.f32.gmra.mxu0 %v6219
        %v7282 = vpop.f32.mrf.mxu0
        %v7283 = vadd.f32 %v7206, %v7282
        %v7284 = vpop.f32.mrf.mxu0
        %v7285 = vadd.f32 %v7208, %v7284
        %7286 = vdwg.mxu0
        %v7287 = vmul.f32 %v6815, %v3706
        %v7288 = vmul.f32 %v6817, %v3710
        %v7289 = vmul.f32 %v6969, %v3714
        %v7290 = vmul.f32 %v6971, %v3718
        %v7291 = vmul.f32 %v7123, %v3722
        %v7292 = vmul.f32 %v7125, %v3726
        %v7293 = vmul.f32 %v7277, %v3730
        %v7294 = vmul.f32 %v7279, %v3734
        %v7295 = vmul.f32 %v6821, %v3706
        %v7296 = vmul.f32 %v6823, %v3710
        %v7297 = vmul.f32 %v6975, %v3714
        %v7298 = vmul.f32 %v6977, %v3718
        %v7299 = vmul.f32 %v7129, %v3722
        %v7300 = vmul.f32 %v7131, %v3726
        %v7301 = vmul.f32 %v7283, %v3730
        %v7302 = vmul.f32 %v7285, %v3734
        %v7303 = vadd.f32 %v7287, %v7288
        %v7304 = vadd.f32 %v7303, %v7289
        %v7305 = vadd.f32 %v7304, %v7290
        %v7306 = vadd.f32 %v7305, %v7291
        %v7307 = vadd.f32 %v7306, %v7292
        %v7308 = vadd.f32 %v7307, %v7293
        %v7309 = vadd.f32 %v7308, %v7294
        %7310 = vadd.xlane.f32.xlu0 %v7309
        %v7311 = vpop.xlane.xlu0 %7310
        %v7312 = vadd.f32 %v7295, %v7296
        %v7313 = vadd.f32 %v7312, %v7297
        %v7314 = vadd.f32 %v7313, %v7298
        %v7315 = vadd.f32 %v7314, %v7299
        %v7316 = vadd.f32 %v7315, %v7300
        %v7317 = vadd.f32 %v7316, %v7301
        %v7318 = vadd.f32 %v7317, %v7302
        %7319 = vadd.xlane.f32.xlu0 %v7318
        %v7320 = vpop.xlane.xlu0 %7319
        %v7321 = vmul.f32 %v7287, %v7287
        %v7322 = vmul.f32 %v7288, %v7288
        %v7323 = vmul.f32 %v7289, %v7289
        %v7324 = vmul.f32 %v7290, %v7290
        %v7325 = vmul.f32 %v7291, %v7291
        %v7326 = vmul.f32 %v7292, %v7292
        %v7327 = vmul.f32 %v7293, %v7293
        %v7328 = vmul.f32 %v7294, %v7294
        %v7329 = vmul.f32 %v7295, %v7295
        %v7330 = vmul.f32 %v7296, %v7296
        %v7331 = vmul.f32 %v7297, %v7297
        %v7332 = vmul.f32 %v7298, %v7298
        %v7333 = vmul.f32 %v7299, %v7299
        %v7334 = vmul.f32 %v7300, %v7300
        %v7335 = vmul.f32 %v7301, %v7301
        %v7336 = vmul.f32 %v7302, %v7302
        %v7337 = vadd.f32 %v7321, %v7322
        %v7338 = vadd.f32 %v7337, %v7323
        %v7339 = vadd.f32 %v7338, %v7324
        %v7340 = vadd.f32 %v7339, %v7325
        %v7341 = vadd.f32 %v7340, %v7326
        %v7342 = vadd.f32 %v7341, %v7327
        %v7343 = vadd.f32 %v7342, %v7328
        %7344 = vadd.xlane.f32.xlu0 %v7343
        %v7345 = vpop.xlane.xlu0 %7344
        %v7346 = vadd.f32 %v7329, %v7330
        %v7347 = vadd.f32 %v7346, %v7331
        %v7348 = vadd.f32 %v7347, %v7332
        %v7349 = vadd.f32 %v7348, %v7333
        %v7350 = vadd.f32 %v7349, %v7334
        %v7351 = vadd.f32 %v7350, %v7335
        %v7352 = vadd.f32 %v7351, %v7336
        %7353 = vadd.xlane.f32.xlu0 %v7352
        %v7354 = vpop.xlane.xlu0 %7353
        %v7355 = vld [vmem:[%s2] sm:$0xff]
        %v7356 = vld [vmem:[%s2 + $0x8] sm:$0xff]
        %v7357 = vsel %vm1483, %v7311, %v7345
        %v7358 = vsel %vm1483, %v7320, %v7354
        %v7360 = vsel %vm3815, %v7355, 0
        %v7363 = vsel %vm3815, %v7356, 0
        %7365 = vmatprep.subr.mxu0 0.0
        %7366 = vmatpush1.msra.mxu0 0.0
        %7367 = vmatprep.subr.mxu0 0.0
        %7368 = vmatpush1.msra.mxu0 0.0
        %7369 = vmatprep.subr.mxu0 0.0
        %7370 = vmatpush1.msra.mxu0 0.0
        %7371 = vmatprep.subr.mxu0 0.0
        %7372 = vmatpush1.msra.mxu0 0.0
        %7373 = vmatprep.subr.mxu0 0.0
        %7374 = vmatpush1.msra.mxu0 0.0
        %7375 = vmatprep.subr.mxu0 0.0
        %7376 = vmatpush1.msra.mxu0 0.0
        %7377 = vmatprep.subr.mxu0 0.0
        %7378 = vmatpush1.msra.mxu0 0.0
        %7379 = vmatprep.subr.mxu0 0.0
        %7380 = vmatpush1.msra.mxu0 0.0
        %7381 = vmatprep.subr.mxu0 0.0
        %7382 = vmatpush1.msra.mxu0 0.0
        %7383 = vmatprep.subr.mxu0 0.0
        %7384 = vmatpush1.msra.mxu0 0.0
        %7385 = vmatprep.subr.mxu0 0.0
        %7386 = vmatpush1.msra.mxu0 0.0
        %7387 = vmatprep.subr.mxu0 0.0
        %7388 = vmatpush1.msra.mxu0 0.0
        %7389 = vmatprep.subr.mxu0 0.0
        %7390 = vmatpush1.msra.mxu0 0.0
        %7391 = vmatprep.subr.mxu0 0.0
        %7392 = vmatpush1.msra.mxu0 0.0
        %7393 = vmatprep.subr.mxu0 0.0
        %7394 = vmatpush1.msra.mxu0 %v7358
        %7395 = vmatprep.subr.mxu0 0.0
        %7396 = vmatpush1.msra.mxu0 %v7357
        %7397 = vmatprep.subr.mxu0 0.0
        %7398 = vmatpush2.msra.mxu0 0.0
        %7399 = vmatprep.subr.mxu0 0.0
        %7400 = vmatpush2.msra.mxu0 0.0
        %7401 = vmatprep.subr.mxu0 0.0
        %7402 = vmatpush2.msra.mxu0 0.0
        %7403 = vmatprep.subr.mxu0 0.0
        %7404 = vmatpush2.msra.mxu0 0.0
        %7405 = vmatprep.subr.mxu0 0.0
        %7406 = vmatpush2.msra.mxu0 0.0
        %7407 = vmatprep.subr.mxu0 0.0
        %7408 = vmatpush2.msra.mxu0 0.0
        %7409 = vmatprep.subr.mxu0 0.0
        %7410 = vmatpush2.msra.mxu0 0.0
        %7411 = vmatprep.subr.mxu0 0.0
        %7412 = vmatpush2.msra.mxu0 0.0
        %7413 = vmatprep.subr.mxu0 0.0
        %7414 = vmatpush2.msra.mxu0 0.0
        %7415 = vmatprep.subr.mxu0 0.0
        %7416 = vmatpush2.msra.mxu0 0.0
        %7417 = vmatprep.subr.mxu0 0.0
        %7418 = vmatpush2.msra.mxu0 0.0
        %7419 = vmatprep.subr.mxu0 0.0
        %7420 = vmatpush2.msra.mxu0 0.0
        %7421 = vmatprep.subr.mxu0 0.0
        %7422 = vmatpush2.msra.mxu0 0.0
        %7423 = vmatprep.subr.mxu0 0.0
        %7424 = vmatpush2.msra.mxu0 0.0
        %7425 = vmatprep.subr.mxu0 0.0
        %7426 = vmatpush2.msra.mxu0 0.0
        %7427 = vmatprep.subr.mxu0 0.0
        %7428 = vmatpush2.msra.mxu0 0.0
        %7429 = vmatprep.mubr.f32.mxu0 0.0
        %7430 = vmatmul.mubr.f32.gmra.mxu0 %v7360
        %v7431 = vpop.f32.mrf.mxu0
        %v7432 = vadd.f32 0.0, %v7431
        %v7433 = vpop.f32.mrf.mxu0
        %7434 = vmatprep.mubr.f32.mxu0 0.0
        %7435 = vmatmul.mubr.f32.gmra.mxu0 %v7363
        %v7436 = vpop.f32.mrf.mxu0
        %v7437 = vadd.f32 0.0, %v7436
        %v7438 = vpop.f32.mrf.mxu0
        %7439 = vdwg.mxu0
        %v7440 = vmul.f32 %v7432, 0.0009765625
        %v7441 = vmul.f32 %v7437, 0.0009765625
        %v7442 = vmul.f32 %v7440, %v7440
        %v7443 = vmul.f32 %v7441, %v7441
        %7446 = vrot.lane.b32.xlu0 %v7442, 1
        %v7447 = vpop.permute.xlu0 %7446
        %7448 = vrot.lane.b32.xlu0 %v7443, 1
        %v7449 = vpop.permute.xlu0 %7448
        %v7452 = vsub.f32 %v7440, %v7447
        %v7453 = vsub.f32 %v7441, %v7449
        %v7454 = vld [vmem:[%s9] sm:$0xff]
        %v7455 = vld [vmem:[%s9 + $0x8] sm:$0xff]
        %v7456 = vadd.f32 %v7452, 1e-05
        %v7457 = vadd.f32 %v7453, 1e-05
        %v7458 = vrsqrt.pop %v7456
        %v7459 = vrsqrt.pop %v7457
        %7462 = vrot.lane.b32.xlu0 %v7458, 127
        %v7463 = vpop.permute.xlu0 %7462
        %7464 = vrot.lane.b32.xlu0 %v7459, 127
        %v7465 = vpop.permute.xlu0 %7464
        %v7468 = vmul.f32 %v7454, %v7463
        %v7469 = vmul.f32 %v7455, %v7465
        %v7470 = vld [vmem:[%s10] sm:$0xff]
        %v7471 = vld [vmem:[%s10 + $0x8] sm:$0xff]
        %v7472 = vmul.f32 %v7440, %v7468
        %v7473 = vmul.f32 %v7441, %v7469
        %v7474 = vsub.f32 %v7470, %v7472
        %v7475 = vsub.f32 %v7471, %v7473
        %7477 = vset.pattern.permute.xlu0 0
        %7478 = vperm.xlu0 %7477, %v7468
        %v7479 = vpop.permute.xlu0 %7478
        %7482 = vset.pattern.permute.xlu0 0
        %7483 = vperm.xlu0 %7482, %v7469
        %v7484 = vpop.permute.xlu0 %7483
        %v7486 = vmul.f32 %v6815, %v7479
        %v7487 = vmul.f32 %v6817, %v7479
        %v7488 = vmul.f32 %v6969, %v7479
        %v7489 = vmul.f32 %v6971, %v7479
        %v7490 = vmul.f32 %v7123, %v7479
        %v7491 = vmul.f32 %v7125, %v7479
        %v7492 = vmul.f32 %v7277, %v7479
        %v7493 = vmul.f32 %v7279, %v7479
        %v7494 = vmul.f32 %v6821, %v7484
        %v7495 = vmul.f32 %v6823, %v7484
        %v7496 = vmul.f32 %v6975, %v7484
        %v7497 = vmul.f32 %v6977, %v7484
        %v7498 = vmul.f32 %v7129, %v7484
        %v7499 = vmul.f32 %v7131, %v7484
        %v7500 = vmul.f32 %v7283, %v7484
        %v7501 = vmul.f32 %v7285, %v7484
        %7503 = vset.pattern.permute.xlu0 0
        %7504 = vperm.xlu0 %7503, %v7474
        %v7505 = vpop.permute.xlu0 %7504
        %7508 = vset.pattern.permute.xlu0 0
        %7509 = vperm.xlu0 %7508, %v7475
        %v7510 = vpop.permute.xlu0 %7509
        %v7512 = vadd.f32 %v7486, %v7505
        %v7513 = vadd.f32 %v7487, %v7505
        %v7514 = vadd.f32 %v7488, %v7505
        %v7515 = vadd.f32 %v7489, %v7505
        %v7516 = vadd.f32 %v7490, %v7505
        %v7517 = vadd.f32 %v7491, %v7505
        %v7518 = vadd.f32 %v7492, %v7505
        %v7519 = vadd.f32 %v7493, %v7505
        %v7520 = vadd.f32 %v7494, %v7510
        %v7521 = vadd.f32 %v7495, %v7510
        %v7522 = vadd.f32 %v7496, %v7510
        %v7523 = vadd.f32 %v7497, %v7510
        %v7524 = vadd.f32 %v7498, %v7510
        %v7525 = vadd.f32 %v7499, %v7510
        %v7526 = vadd.f32 %v7500, %v7510
        %v7527 = vadd.f32 %v7501, %v7510
        %vm7528 = vcmp.ge.f32.partialorder %v7512, 0.0
        %vm7529 = vcmp.ge.f32.partialorder %v7513, 0.0
        %vm7530 = vcmp.ge.f32.partialorder %v7514, 0.0
        %vm7531 = vcmp.ge.f32.partialorder %v7515, 0.0
        %vm7532 = vcmp.ge.f32.partialorder %v7516, 0.0
        %vm7533 = vcmp.ge.f32.partialorder %v7517, 0.0
        %vm7534 = vcmp.ge.f32.partialorder %v7518, 0.0
        %vm7535 = vcmp.ge.f32.partialorder %v7519, 0.0
        %vm7536 = vcmp.ge.f32.partialorder %v7520, 0.0
        %vm7537 = vcmp.ge.f32.partialorder %v7521, 0.0
        %vm7538 = vcmp.ge.f32.partialorder %v7522, 0.0
        %vm7539 = vcmp.ge.f32.partialorder %v7523, 0.0
        %vm7540 = vcmp.ge.f32.partialorder %v7524, 0.0
        %vm7541 = vcmp.ge.f32.partialorder %v7525, 0.0
        %vm7542 = vcmp.ge.f32.partialorder %v7526, 0.0
        %vm7543 = vcmp.ge.f32.partialorder %v7527, 0.0
        %v7544 = vmul.f32 %v7512, 0.01
        %v7545 = vmul.f32 %v7513, 0.01
        %v7546 = vmul.f32 %v7514, 0.01
        %v7547 = vmul.f32 %v7515, 0.01
        %v7548 = vmul.f32 %v7516, 0.01
        %v7549 = vmul.f32 %v7517, 0.01
        %v7550 = vmul.f32 %v7518, 0.01
        %v7551 = vmul.f32 %v7519, 0.01
        %v7552 = vmul.f32 %v7520, 0.01
        %v7553 = vmul.f32 %v7521, 0.01
        %v7554 = vmul.f32 %v7522, 0.01
        %v7555 = vmul.f32 %v7523, 0.01
        %v7556 = vmul.f32 %v7524, 0.01
        %v7557 = vmul.f32 %v7525, 0.01
        %v7558 = vmul.f32 %v7526, 0.01
        %v7559 = vmul.f32 %v7527, 0.01
        %v7560 = vsel %vm7528, %v7512, %v7544
        %v7561 = vsel %vm7529, %v7513, %v7545
        %v7562 = vsel %vm7530, %v7514, %v7546
        %v7563 = vsel %vm7531, %v7515, %v7547
        %v7564 = vsel %vm7532, %v7516, %v7548
        %v7565 = vsel %vm7533, %v7517, %v7549
        %v7566 = vsel %vm7534, %v7518, %v7550
        %v7567 = vsel %vm7535, %v7519, %v7551
        %v7568 = vsel %vm7536, %v7520, %v7552
        %v7569 = vsel %vm7537, %v7521, %v7553
        %v7570 = vsel %vm7538, %v7522, %v7554
        %v7571 = vsel %vm7539, %v7523, %v7555
        %v7572 = vsel %vm7540, %v7524, %v7556
        %v7573 = vsel %vm7541, %v7525, %v7557
        %v7574 = vsel %vm7542, %v7526, %v7558
        %v7575 = vsel %vm7543, %v7527, %v7559
        %v7576 = vadd.f32 %v7560, %v421
        %v7577 = vadd.f32 %v7561, %v422
        %v7578 = vadd.f32 %v7562, %v423
        %v7579 = vadd.f32 %v7563, %v424
        %v7580 = vadd.f32 %v7564, %v425
        %v7581 = vadd.f32 %v7565, %v426
        %v7582 = vadd.f32 %v7566, %v427
        %v7583 = vadd.f32 %v7567, %v428
        %v7584 = vadd.f32 %v7568, %v429
        %v7585 = vadd.f32 %v7569, %v430
        %v7586 = vadd.f32 %v7570, %v431
        %v7587 = vadd.f32 %v7571, %v432
        %v7588 = vadd.f32 %v7572, %v433
        %v7589 = vadd.f32 %v7573, %v434
        %v7590 = vadd.f32 %v7574, %v435
        %v7591 = vadd.f32 %v7575, %v436
        %7592 = vst [vmem:[%s419] sm:$0xff] %v7576
        %7593 = vst [vmem:[%s419 + $0x8] sm:$0xff] %v7577
        %7594 = vst [vmem:[%s419 + $0x10] sm:$0xff] %v7578
        %7595 = vst [vmem:[%s419 + $0x18] sm:$0xff] %v7579
        %7596 = vst [vmem:[%s419 + $0x20] sm:$0xff] %v7580
        %7597 = vst [vmem:[%s419 + $0x28] sm:$0xff] %v7581
        %7598 = vst [vmem:[%s419 + $0x30] sm:$0xff] %v7582
        %7599 = vst [vmem:[%s419 + $0x38] sm:$0xff] %v7583
        %7600 = vst [vmem:[%s419 + $0x40] sm:$0xff] %v7584
        %7601 = vst [vmem:[%s419 + $0x48] sm:$0xff] %v7585
        %7602 = vst [vmem:[%s419 + $0x50] sm:$0xff] %v7586
        %7603 = vst [vmem:[%s419 + $0x58] sm:$0xff] %v7587
        %7604 = vst [vmem:[%s419 + $0x60] sm:$0xff] %v7588
        %7605 = vst [vmem:[%s419 + $0x68] sm:$0xff] %v7589
        %7606 = vst [vmem:[%s419 + $0x70] sm:$0xff] %v7590
        %7607 = vst [vmem:[%s419 + $0x78] sm:$0xff] %v7591
        %s7608 = sand.u32 %s273, 1
        %s7609 = scalar_lea.sflag [#allocation5], %s7608
        %s7610 = sand.u32 %s273, 1
        %s7611 = smul.addr %s7610, 128
        %s7612 = scalar_lea.vmem [#allocation8], %s7611
        // Predicated region
        $region73: #{tpu_custom_call.1} parent=63 // pred_check
          %p7613 = pneg %p283
        $region74: #{tpu_custom_call.1} parent=63 // pred_check_branch
          %7615 = sbr.rel (%p7613) target = $region76
        $region75: #{tpu_custom_call.1} parent=63 // pred_region
          %s7617 = ssub.s32 2048, 2048
          %7618 = vsyncadd %s7609, %s7617
          %s7619 = smul.addr %s29, 16
          %s7620 = smul.addr %s7619, 128
          %s7621 = scalar_lea.hbm %s11, %s7620
          %s7622 = sshll.u32 %s7612, 4
          %s7623 = int_to_ptr.vmem [resolvable:$true] %s7622
          %7628 = dma.vmem_to_hbm [thread:$0]  %s7623, 2048, %s7621, %s7609, 1024, 1024, 64
        $region76: #{tpu_custom_call.1} parent=63 // pred_fallthru
          _
      $region64: #{tpu_custom_call.1} parent=5 // pred_fallthru
        _
      %p7629 = scmp.le.s32.totalorder 2, %s24
      // Predicated region
      $region77: #{tpu_custom_call.1} parent=5 // pred_check
        %p7630 = pneg %p7629
      $region78: #{tpu_custom_call.1} parent=5 // pred_check_branch
        %7632 = sbr.rel (%p7630) target = $region80
      $region79: #{tpu_custom_call.1} parent=5 // pred_region
        %s7633 = ssub.s32 %s24, 2
        // Predicated region
        $region81: #{tpu_custom_call.1} parent=79 // pred_check
          %p7634 = pneg %p289
        $region82: #{tpu_custom_call.1} parent=79 // pred_check_branch
          %7636 = sbr.rel (%p7634) target = $region84
        $region83: #{tpu_custom_call.1} parent=79 // pred_region
          %s7637 = sand.u32 %s274, 1
          %s7638 = scalar_lea.sflag [#allocation5], %s7637
          %s7639 = sand.u32 %s274, 1
          %s7640 = smul.addr %s7639, 128
          %s7641 = scalar_lea.vmem [#allocation8], %s7640
          %7642 = dma.done %s7638, 2048
        $region84: #{tpu_custom_call.1} parent=79 // pred_fallthru
          _
      $region80: #{tpu_custom_call.1} parent=5 // pred_fallthru
        _
    $region6: #{tpu_custom_call.1} parent=1 // loop_footer
      %s28 = sadd.s32 1, %s24
    $region7: #{tpu_custom_call.1} parent=1 // loop_footer_branch
      %23 = sbr.rel target = $region3
    $region8: #{tpu_custom_call.1} parent=1 // loop_exit
      _
    %7643 = vsyncpa [#allocation4], 1
    %s7644 = scalar_lea.sflag [#allocation4], 1
    %7645 = vsyncpa %s7644, 1
    %7646 = vsyncpa [#allocation7], 1
    %7647 = vsyncpa [#allocation5], 1
    %s7648 = scalar_lea.sflag [#allocation5], 1
    %7649 = vsyncpa %s7648, 1

</llo_original>
